<compile_context>
chip_gen: v7x
topology: tpu7x:2x2x1
jax: 0.10.0
libtpu: 0.0.40
codegen_flags: <defaults>
</compile_context>

<pallas_src>
import jax
import jax.numpy as jnp
from jax.experimental import pallas as pl
from jax.experimental.pallas import tpu as pltpu


_VMEM = pl.BlockSpec(memory_space=pltpu.MemorySpace.VMEM)


# ------------------------- Pallas kernels ---------------------------------

def _conv_mm_relu_kernel(p_ref, w_ref, b_ref, o_ref):
    # o = relu(W @ P + b);  W:(C,K)  P:(K,tm)  b:(C,1)  ->  o:(C,tm)
    acc = jnp.dot(w_ref[...], p_ref[...], preferred_element_type=jnp.float32)
    o_ref[...] = jnp.maximum(acc + b_ref[...], 0.0).astype(o_ref.dtype)


def _fc_fused_kernel(x_ref, w1_ref, b1_ref, w2_ref, b2_ref, o_ref, h_ref):
    # h = relu(W1 @ x + b1)            (512, N), kept in VMEM scratch
    # o = log_softmax(W2 @ h + b2, 0)  (10, N)
    h = jnp.dot(w1_ref[...], x_ref[...], preferred_element_type=jnp.float32)
    h_ref[...] = jnp.maximum(h + b1_ref[...], 0.0)
    z = jnp.dot(w2_ref[...], h_ref[...], preferred_element_type=jnp.float32)
    z = z + b2_ref[...]
    m = jnp.max(z, axis=0, keepdims=True)
    s = z - m
    lse = jnp.log(jnp.sum(jnp.exp(s), axis=0, keepdims=True))
    o_ref[...] = (s - lse).astype(o_ref.dtype)


# --------------------------- wrappers --------------------------------------

def _pick_tile(m, pref=2048):
    """Largest multiple of 128 <= pref dividing m; else m (single full block)."""
    if m <= pref:
        return m
    t = (pref // 128) * 128
    while t >= 128:
        if m % t == 0:
            return t
        t -= 128
    return m


def conv_mm_relu(p, w, b):
    # p: (K, M) patches, K padded to an 8-multiple, M = Ho*Wo*N (lane axis)
    # w: (C, K) torch conv weight reshaped (+ zero-padded K);  b: (C, 1)
    K, M = p.shape
    C = w.shape[0]
    tm = _pick_tile(M)
    return pl.pallas_call(
        _conv_mm_relu_kernel,
        out_shape=jax.ShapeDtypeStruct((C, M), jnp.float32),
        grid=(M // tm,),
        in_specs=[
            pl.BlockSpec((K, tm), lambda i: (0, i)),
            pl.BlockSpec((C, K), lambda i: (0, 0)),   # weights resident across grid
            pl.BlockSpec((C, 1), lambda i: (0, 0)),   # bias resident across grid
        ],
        out_specs=pl.BlockSpec((C, tm), lambda i: (0, i)),
        compiler_params=pltpu.CompilerParams(dimension_semantics=("parallel",)),
    )(p, w, b)


def fc_fused(xt, w1, b1, w2, b2):
    # xt: (2000, N); w1: (512, 2000); b1: (512, 1); w2: (10, 512); b2: (10, 1)
    H = w1.shape[0]
    O = w2.shape[0]
    N = xt.shape[1]
    return pl.pallas_call(
        _fc_fused_kernel,
        out_shape=jax.ShapeDtypeStruct((O, N), jnp.float32),
        in_specs=[_VMEM, _VMEM, _VMEM, _VMEM, _VMEM],
        out_specs=_VMEM,
        scratch_shapes=[pltpu.VMEM((H, N), jnp.float32)],
    )(xt, w1, b1, w2, b2)


def _im2col_T(x, kh, kw, k_pad):
    # x: (C, H, W, N) -> patches (k_pad, Ho*Wo*N), row order (c, kh, kw) to
    # match torch's weight.reshape(C_out, C*kh*kw); column order (h, w, n).
    # TODO(synk): do this patch gather in-kernel (strided VMEM reads) instead of XLA stack glue.
    C, H, W, N = x.shape
    Ho, Wo = H - kh + 1, W - kw + 1
    cols = [x[:, i:i + Ho, j:j + Wo, :] for i in range(kh) for j in range(kw)]
    p = jnp.stack(cols, axis=1).reshape(C * kh * kw, Ho * Wo * N)
    if k_pad > C * kh * kw:
        p = jnp.pad(p, ((0, k_pad - C * kh * kw), (0, 0)))
    return p


# --------------------------- full forward ----------------------------------

def digit_forward(prep, x):
    # x: (N, 1, 28, 28) float32, NCHW (torch layout)
    n = x.shape[0]
    xc = x.transpose(1, 2, 3, 0)                            # (1, 28, 28, N) -- only activation permute
    p1 = _im2col_T(xc, 5, 5, 32)                            # (32, 576N)
    o1 = conv_mm_relu(p1, prep["w1"], prep["b1"])           # (10, 576N) == (C,H,W,N), relu fused
    # 2x2/2 max-pool as one fused reshape+max (no strided copies, no extra call)
    o1 = o1.reshape(10, 12, 2, 12, 2, n).max(axis=(2, 4))   # (10, 12, 12, N)
    p2 = _im2col_T(o1, 3, 3, 96)                            # (96, 100N)
    o2 = conv_mm_relu(p2, prep["w2"], prep["b2"])           # (20, 100N) == (C,H,W,N), relu fused
    xt = o2.reshape(2000, n)                                # == torch .view(n,-1).T  (free reshape)
    out_t = fc_fused(xt, prep["w_fc1"], prep["b_fc1"],
                     prep["w_fc2"], prep["b_fc2"])          # (10, N)
    return out_t.T                                          # (N, 10)


# --------------------------- params -----------------------------------------

def init_params(key):
    # Deterministic PyTorch-style uniform(-1/sqrt(fan_in), 1/sqrt(fan_in)) init,
    # in torch's native layouts.
    ks = jax.random.split(key, 8)

    def u(k, shape, fan_in):
        bound = 1.0 / (fan_in ** 0.5)
        return jax.random.uniform(k, shape, jnp.float32, -bound, bound)

    return {
        "w1": u(ks[0], (10, 1, 5, 5), 1 * 5 * 5),
        "b1": u(ks[1], (10,), 1 * 5 * 5),
        "w2": u(ks[2], (20, 10, 3, 3), 10 * 3 * 3),
        "b2": u(ks[3], (20,), 10 * 3 * 3),
        "w_fc1": u(ks[4], (500, 2000), 2000),   # torch Linear weight is (out, in)
        "b_fc1": u(ks[5], (500,), 2000),
        "w_fc2": u(ks[6], (10, 500), 500),
        "b_fc2": u(ks[7], (10,), 500),
    }


def prepare_params(params):
    """One-time repack (OUTSIDE jit) of torch-layout params: conv weights to
    (C_out, K) matmul form with K zero-padded to an 8-multiple, fc hidden
    padded 500->512 with zeros, biases reshaped to (C, 1). Numerics unchanged,
    and no transposes happen at inference time."""
    w1 = jnp.pad(params["w1"].reshape(10, 25), ((0, 0), (0, 7)))   # (10, 32)
    w2 = jnp.pad(params["w2"].reshape(20, 90), ((0, 0), (0, 6)))   # (20, 96)
    w_fc1 = jnp.pad(params["w_fc1"], ((0, 12), (0, 0)))            # (512, 2000)
    b_fc1 = jnp.pad(params["b_fc1"], (0, 12)).reshape(512, 1)      # (512, 1)
    w_fc2 = jnp.pad(params["w_fc2"], ((0, 0), (0, 12)))            # (10, 512)
    return {
        "w1": w1, "b1": params["b1"].reshape(10, 1),
        "w2": w2, "b2": params["b2"].reshape(20, 1),
        "w_fc1": w_fc1, "b_fc1": b_fc1,
        "w_fc2": w_fc2, "b_fc2": params["b_fc2"].reshape(10, 1),
    }


# --------------------------- reference & main --------------------------------

def reference_forward(params, x):
    # Pure-XLA reference matching the PyTorch module exactly.
    y = jax.lax.conv_general_dilated(
        x, params["w1"], window_strides=(1, 1), padding="VALID",
        dimension_numbers=("NCHW", "OIHW", "NCHW"))
    y = jax.nn.relu(y + params["b1"].reshape(1, -1, 1, 1))
    y = jax.lax.reduce_window(y, -jnp.inf, jax.lax.max,
                              (1, 1, 2, 2), (1, 1, 2, 2), "VALID")
    y = jax.lax.conv_general_dilated(
        y, params["w2"], window_strides=(1, 1), padding="VALID",
        dimension_numbers=("NCHW", "OIHW", "NCHW"))
    y = jax.nn.relu(y + params["b2"].reshape(1, -1, 1, 1))
    y = y.reshape(x.shape[0], -1)
    y = jax.nn.relu(y @ params["w_fc1"].T + params["b_fc1"])
    y = y @ params["w_fc2"].T + params["b_fc2"]
    return jax.nn.log_softmax(y, axis=1)


if __name__ == "__main__":
    key = jax.random.PRNGKey(0)
    k_param, k_x = jax.random.split(key)
    params = init_params(k_param)
    prep = prepare_params(params)              # one-time, outside jit
    x = jax.random.normal(k_x, (2, 1, 28, 28), dtype=jnp.float32)

    fwd = jax.jit(digit_forward)
    out = jax.block_until_ready(fwd(prep, x))

    assert out.shape == (2, 10)
    # log_softmax rows should sum (in prob space) to ~1
    assert jnp.allclose(jnp.sum(jnp.exp(out), axis=1), 1.0, atol=1e-4)
    # match the pure-XLA reference of the original PyTorch module
    ref = reference_forward(params, x)
    assert jnp.allclose(out, ref, atol=1e-3, rtol=1e-3), \
        float(jnp.max(jnp.abs(out - ref)))
    print("KERNEL_OK")
</pallas_src>

<mosaic_0001>
module attributes {stable_mosaic.version = 11 : i64} {
  func.func @_conv_mm_relu_kernel(%arg0: i32, %arg1: memref<32x1152xf32, #tpu.memory_space<vmem>>, %arg2: memref<10x32xf32, #tpu.memory_space<vmem>>, %arg3: memref<10x1xf32, #tpu.memory_space<vmem>>, %arg4: memref<10x1152xf32, #tpu.memory_space<vmem>>) attributes {dimension_semantics = [#tpu.dimension_semantics<parallel>], iteration_bounds = array<i64: 1>, scalar_prefetch = 0 : i64, scratch_operands = 0 : i64, tpu.core_type = #tpu.core_type<tc>, window_params = [{transform_indices = @transform_0, window_bounds = array<i64: 32, 1152>}, {pipeline_mode = #tpu.pipeline_mode<synchronous>, transform_indices = @transform_1, window_bounds = array<i64: 10, 32>}, {pipeline_mode = #tpu.pipeline_mode<synchronous>, transform_indices = @transform_2, window_bounds = array<i64: 10, 1>}, {transform_indices = @transform_3, window_bounds = array<i64: 10, 1152>}]} {
    %c0 = arith.constant 0 : index
    %c0_0 = arith.constant 0 : index
    %0 = vector.load %arg2[%c0, %c0_0] : memref<10x32xf32, #tpu.memory_space<vmem>>, vector<10x32xf32>
    %c0_1 = arith.constant 0 : index
    %c0_2 = arith.constant 0 : index
    %1 = vector.load %arg1[%c0_1, %c0_2] : memref<32x1152xf32, #tpu.memory_space<vmem>>, vector<32x1152xf32>
    %cst = arith.constant dense<0.000000e+00> : vector<10x1152xf32>
    %2 = tpu.matmul %0, %1, %cst {dimension_numbers = #tpu.dot_dimension_numbers<[1], [0], [0], [1], [0, 0, 1, 1], [], []>} : vector<10x32xf32>, vector<32x1152xf32>, vector<10x1152xf32> -> vector<10x1152xf32>
    %c0_3 = arith.constant 0 : index
    %c0_4 = arith.constant 0 : index
    %3 = vector.load %arg3[%c0_3, %c0_4] : memref<10x1xf32, #tpu.memory_space<vmem>>, vector<10x1xf32>
    %4 = vector.broadcast %3 : vector<10x1xf32> to vector<10x1152xf32>
    %5 = arith.addf %2, %4 : vector<10x1152xf32>
    %cst_5 = arith.constant 0.000000e+00 : f32
    %6 = vector.broadcast %cst_5 : f32 to vector<10x1152xf32>
    %7 = arith.maximumf %5, %6 : vector<10x1152xf32>
    %c0_6 = arith.constant 0 : index
    %c0_7 = arith.constant 0 : index
    %8 = vector.load %arg4[%c0_6, %c0_7] : memref<10x1152xf32, #tpu.memory_space<vmem>>, vector<10x1152xf32>
    tpu.vector_store %arg4[%c0_6, %c0_7], %7 {strides = array<i32>} : memref<10x1152xf32, #tpu.memory_space<vmem>>, vector<10x1152xf32>,
    return
  }
  func.func @transform_0(%arg0: i32) -> (i32, i32) {
    %c0_i32 = arith.constant 0 : i32
    %c0_i32_0 = arith.constant 0 : i32
    return %c0_i32, %arg0 : i32, i32
  }
  func.func @transform_1(%arg0: i32) -> (i32, i32) {
    %c0_i32 = arith.constant 0 : i32
    %c0_i32_0 = arith.constant 0 : i32
    %c0_i32_1 = arith.constant 0 : i32
    return %c0_i32, %c0_i32_0 : i32, i32
  }
  func.func @transform_2(%arg0: i32) -> (i32, i32) {
    %c0_i32 = arith.constant 0 : i32
    %c0_i32_0 = arith.constant 0 : i32
    %c0_i32_1 = arith.constant 0 : i32
    return %c0_i32, %c0_i32_0 : i32, i32
  }
  func.func @transform_3(%arg0: i32) -> (i32, i32) {
    %c0_i32 = arith.constant 0 : i32
    %c0_i32_0 = arith.constant 0 : i32
    return %c0_i32, %arg0 : i32, i32
  }
}

module attributes {stable_mosaic.version = 11 : i64} {
  func.func @_conv_mm_relu_kernel(%arg0: i32, %arg1: memref<96x200xf32, #tpu.memory_space<vmem>>, %arg2: memref<20x96xf32, #tpu.memory_space<vmem>>, %arg3: memref<20x1xf32, #tpu.memory_space<vmem>>, %arg4: memref<20x200xf32, #tpu.memory_space<vmem>>) attributes {dimension_semantics = [#tpu.dimension_semantics<parallel>], iteration_bounds = array<i64: 1>, scalar_prefetch = 0 : i64, scratch_operands = 0 : i64, tpu.core_type = #tpu.core_type<tc>, window_params = [{transform_indices = @transform_0, window_bounds = array<i64: 96, 200>}, {pipeline_mode = #tpu.pipeline_mode<synchronous>, transform_indices = @transform_1, window_bounds = array<i64: 20, 96>}, {pipeline_mode = #tpu.pipeline_mode<synchronous>, transform_indices = @transform_2, window_bounds = array<i64: 20, 1>}, {transform_indices = @transform_3, window_bounds = array<i64: 20, 200>}]} {
    %c0 = arith.constant 0 : index
    %c0_0 = arith.constant 0 : index
    %0 = vector.load %arg2[%c0, %c0_0] : memref<20x96xf32, #tpu.memory_space<vmem>>, vector<20x96xf32>
    %c0_1 = arith.constant 0 : index
    %c0_2 = arith.constant 0 : index
    %1 = vector.load %arg1[%c0_1, %c0_2] : memref<96x200xf32, #tpu.memory_space<vmem>>, vector<96x200xf32>
    %cst = arith.constant dense<0.000000e+00> : vector<20x200xf32>
    %2 = tpu.matmul %0, %1, %cst {dimension_numbers = #tpu.dot_dimension_numbers<[1], [0], [0], [1], [0, 0, 1, 1], [], []>} : vector<20x96xf32>, vector<96x200xf32>, vector<20x200xf32> -> vector<20x200xf32>
    %c0_3 = arith.constant 0 : index
    %c0_4 = arith.constant 0 : index
    %3 = vector.load %arg3[%c0_3, %c0_4] : memref<20x1xf32, #tpu.memory_space<vmem>>, vector<20x1xf32>
    %4 = vector.broadcast %3 : vector<20x1xf32> to vector<20x200xf32>
    %5 = arith.addf %2, %4 : vector<20x200xf32>
    %cst_5 = arith.constant 0.000000e+00 : f32
    %6 = vector.broadcast %cst_5 : f32 to vector<20x200xf32>
    %7 = arith.maximumf %5, %6 : vector<20x200xf32>
    %c0_6 = arith.constant 0 : index
    %c0_7 = arith.constant 0 : index
    %8 = vector.load %arg4[%c0_6, %c0_7] : memref<20x200xf32, #tpu.memory_space<vmem>>, vector<20x200xf32>
    tpu.vector_store %arg4[%c0_6, %c0_7], %7 {strides = array<i32>} : memref<20x200xf32, #tpu.memory_space<vmem>>, vector<20x200xf32>,
    return
  }
  func.func @transform_0(%arg0: i32) -> (i32, i32) {
    %c0_i32 = arith.constant 0 : i32
    %c0_i32_0 = arith.constant 0 : i32
    return %c0_i32, %arg0 : i32, i32
  }
  func.func @transform_1(%arg0: i32) -> (i32, i32) {
    %c0_i32 = arith.constant 0 : i32
    %c0_i32_0 = arith.constant 0 : i32
    %c0_i32_1 = arith.constant 0 : i32
    return %c0_i32, %c0_i32_0 : i32, i32
  }
  func.func @transform_2(%arg0: i32) -> (i32, i32) {
    %c0_i32 = arith.constant 0 : i32
    %c0_i32_0 = arith.constant 0 : i32
    %c0_i32_1 = arith.constant 0 : i32
    return %c0_i32, %c0_i32_0 : i32, i32
  }
  func.func @transform_3(%arg0: i32) -> (i32, i32) {
    %c0_i32 = arith.constant 0 : i32
    %c0_i32_0 = arith.constant 0 : i32
    return %c0_i32, %arg0 : i32, i32
  }
}

module attributes {stable_mosaic.version = 11 : i64} {
  func.func @_fc_fused_kernel(%arg0: memref<2000x2xf32, #tpu.memory_space<vmem>>, %arg1: memref<512x2000xf32, #tpu.memory_space<vmem>>, %arg2: memref<512x1xf32, #tpu.memory_space<vmem>>, %arg3: memref<10x512xf32, #tpu.memory_space<vmem>>, %arg4: memref<10x1xf32, #tpu.memory_space<vmem>>, %arg5: memref<10x2xf32, #tpu.memory_space<vmem>>, %arg6: memref<512x2xf32, #tpu.memory_space<vmem>>) attributes {dimension_semantics = [], scalar_prefetch = 0 : i64, scratch_operands = 1 : i64, tpu.core_type = #tpu.core_type<tc>} {
    %c0 = arith.constant 0 : index
    %c0_0 = arith.constant 0 : index
    %0 = vector.load %arg1[%c0, %c0_0] : memref<512x2000xf32, #tpu.memory_space<vmem>>, vector<512x2000xf32>
    %c0_1 = arith.constant 0 : index
    %c0_2 = arith.constant 0 : index
    %1 = vector.load %arg0[%c0_1, %c0_2] : memref<2000x2xf32, #tpu.memory_space<vmem>>, vector<2000x2xf32>
    %cst = arith.constant dense<0.000000e+00> : vector<512x2xf32>
    %2 = tpu.matmul %0, %1, %cst {dimension_numbers = #tpu.dot_dimension_numbers<[1], [0], [0], [1], [0, 0, 1, 1], [], []>} : vector<512x2000xf32>, vector<2000x2xf32>, vector<512x2xf32> -> vector<512x2xf32>
    %c0_3 = arith.constant 0 : index
    %c0_4 = arith.constant 0 : index
    %3 = vector.load %arg2[%c0_3, %c0_4] : memref<512x1xf32, #tpu.memory_space<vmem>>, vector<512x1xf32>
    %4 = vector.broadcast %3 : vector<512x1xf32> to vector<512x2xf32>
    %5 = arith.addf %2, %4 : vector<512x2xf32>
    %cst_5 = arith.constant 0.000000e+00 : f32
    %6 = vector.broadcast %cst_5 : f32 to vector<512x2xf32>
    %7 = arith.maximumf %5, %6 : vector<512x2xf32>
    %c0_6 = arith.constant 0 : index
    %c0_7 = arith.constant 0 : index
    %8 = vector.load %arg6[%c0_6, %c0_7] : memref<512x2xf32, #tpu.memory_space<vmem>>, vector<512x2xf32>
    tpu.vector_store %arg6[%c0_6, %c0_7], %7 {strides = array<i32>} : memref<512x2xf32, #tpu.memory_space<vmem>>, vector<512x2xf32>,
    %c0_8 = arith.constant 0 : index
    %c0_9 = arith.constant 0 : index
    %9 = vector.load %arg3[%c0_8, %c0_9] : memref<10x512xf32, #tpu.memory_space<vmem>>, vector<10x512xf32>
    %c0_10 = arith.constant 0 : index
    %c0_11 = arith.constant 0 : index
    %10 = vector.load %arg6[%c0_10, %c0_11] : memref<512x2xf32, #tpu.memory_space<vmem>>, vector<512x2xf32>
    %cst_12 = arith.constant dense<0.000000e+00> : vector<10x2xf32>
    %11 = tpu.matmul %9, %10, %cst_12 {dimension_numbers = #tpu.dot_dimension_numbers<[1], [0], [0], [1], [0, 0, 1, 1], [], []>} : vector<10x512xf32>, vector<512x2xf32>, vector<10x2xf32> -> vector<10x2xf32>
    %c0_13 = arith.constant 0 : index
    %c0_14 = arith.constant 0 : index
    %12 = vector.load %arg4[%c0_13, %c0_14] : memref<10x1xf32, #tpu.memory_space<vmem>>, vector<10x1xf32>
    %13 = vector.broadcast %12 : vector<10x1xf32> to vector<10x2xf32>
    %14 = arith.addf %11, %13 : vector<10x2xf32>
    %cst_15 = arith.constant dense<0xFF800000> : vector<2xf32>
    %15 = vector.multi_reduction <maximumf>, %14, %cst_15 [0] : vector<10x2xf32> to vector<2xf32>
    %16 = vector.shape_cast %15 : vector<2xf32> to vector<1x2xf32>
    %17 = vector.broadcast %16 : vector<1x2xf32> to vector<10x2xf32>
    %18 = arith.subf %14, %17 : vector<10x2xf32>
    %19 = math.exp %18 : vector<10x2xf32>
    %cst_16 = arith.constant dense<0.000000e+00> : vector<2xf32>
    %20 = vector.multi_reduction <add>, %19, %cst_16 [0] : vector<10x2xf32> to vector<2xf32>
    %21 = vector.shape_cast %20 : vector<2xf32> to vector<1x2xf32>
    %22 = math.log %21 : vector<1x2xf32>
    %23 = vector.broadcast %22 : vector<1x2xf32> to vector<10x2xf32>
    %24 = arith.subf %18, %23 : vector<10x2xf32>
    %c0_17 = arith.constant 0 : index
    %c0_18 = arith.constant 0 : index
    %25 = vector.load %arg5[%c0_17, %c0_18] : memref<10x2xf32, #tpu.memory_space<vmem>>, vector<10x2xf32>
    tpu.vector_store %arg5[%c0_17, %c0_18], %24 {strides = array<i32>} : memref<10x2xf32, #tpu.memory_space<vmem>>, vector<10x2xf32>,
    return
  }
}

</mosaic_0001>

<llo_original>
// kernel: digit_forward.3
$region0: #{digit_forward.3}
  #allocation0 [shape = 'u32[]', space=smem, size = 0x4, offset = 0x4, fixed_abs, tag = 'smem constant byte address 0x4 - core index']
  #allocation1 [shape = 'u32[144,128]{1,0:T(1,128)}', space=vmem, size = 0x12000, scoped, tag = 'internal scratch']
  %s0 = inlined_call_operand.vmem [shape: f32[32,1152], index: 0, kind: input, shape index: {}]
  %s1 = inlined_call_operand.vmem [shape: f32[10,32], index: 1, kind: input, shape index: {}]
  %s2 = inlined_call_operand.vmem [shape: f32[10,1], index: 2, kind: input, shape index: {}]
  %s3 = inlined_call_operand.vmem [shape: f32[10,1152], index: 3, kind: output, shape index: {}]
  %s4 = sld [smem:[#allocation0]]
  $region22: #{digit_forward.3} parent=0
    _
  %s6 = ssub.s32 1, %s4
  %s7 = scalar_select 0, %s6, %s4
  // Predicated region
  $region2: #{digit_forward.3} parent=0 // pred_check
    _
  $region3: #{digit_forward.3} parent=0 // pred_check_branch
    %9 = sbr.rel (0) target = $region5
  $region4: #{digit_forward.3} parent=0 // pred_region
    _
  $region5: #{digit_forward.3} parent=0 // pred_fallthru
    _
  // Predicated region
  $region6: #{digit_forward.3} parent=0 // pred_check
    _
  $region7: #{digit_forward.3} parent=0 // pred_check_branch
    %11 = sbr.rel (0) target = $region9
  $region8: #{digit_forward.3} parent=0 // pred_region
    _
  $region9: #{digit_forward.3} parent=0 // pred_fallthru
    _
  // Predicated region
  $region10: #{digit_forward.3} parent=0 // pred_check
    _
  $region11: #{digit_forward.3} parent=0 // pred_check_branch
    %13 = sbr.rel (0) target = $region13
  $region12: #{digit_forward.3} parent=0 // pred_region
    _
  $region13: #{digit_forward.3} parent=0 // pred_fallthru
    _
  %v14 = vld [vmem:[%s1] sm:$0xff]
  %v15 = vld [vmem:[%s1 + $0x8] sm:$0x3]
  %v16 = vld [vmem:[%s0] sm:$0xff]
  %v17 = vld [vmem:[%s0 + $0x8] sm:$0xff]
  %v18 = vld [vmem:[%s0 + $0x10] sm:$0xff]
  %v19 = vld [vmem:[%s0 + $0x18] sm:$0xff]
  %v20 = vld [vmem:[%s0 + $0x20] sm:$0xff]
  %v21 = vld [vmem:[%s0 + $0x28] sm:$0xff]
  %v22 = vld [vmem:[%s0 + $0x30] sm:$0xff]
  %v23 = vld [vmem:[%s0 + $0x38] sm:$0xff]
  %v24 = vld [vmem:[%s0 + $0x40] sm:$0xff]
  %v25 = vld [vmem:[%s0 + $0x48] sm:$0xff]
  %v26 = vld [vmem:[%s0 + $0x50] sm:$0xff]
  %v27 = vld [vmem:[%s0 + $0x58] sm:$0xff]
  %v28 = vld [vmem:[%s0 + $0x60] sm:$0xff]
  %v29 = vld [vmem:[%s0 + $0x68] sm:$0xff]
  %v30 = vld [vmem:[%s0 + $0x70] sm:$0xff]
  %v31 = vld [vmem:[%s0 + $0x78] sm:$0xff]
  %v32 = vld [vmem:[%s0 + $0x80] sm:$0xff]
  %v33 = vld [vmem:[%s0 + $0x88] sm:$0xff]
  %v34 = vld [vmem:[%s0 + $0x90] sm:$0xff]
  %v35 = vld [vmem:[%s0 + $0x98] sm:$0xff]
  %v36 = vld [vmem:[%s0 + $0xa0] sm:$0xff]
  %v37 = vld [vmem:[%s0 + $0xa8] sm:$0xff]
  %v38 = vld [vmem:[%s0 + $0xb0] sm:$0xff]
  %v39 = vld [vmem:[%s0 + $0xb8] sm:$0xff]
  %v40 = vld [vmem:[%s0 + $0xc0] sm:$0xff]
  %v41 = vld [vmem:[%s0 + $0xc8] sm:$0xff]
  %v42 = vld [vmem:[%s0 + $0xd0] sm:$0xff]
  %v43 = vld [vmem:[%s0 + $0xd8] sm:$0xff]
  %v44 = vld [vmem:[%s0 + $0xe0] sm:$0xff]
  %v45 = vld [vmem:[%s0 + $0xe8] sm:$0xff]
  %v46 = vld [vmem:[%s0 + $0xf0] sm:$0xff]
  %v47 = vld [vmem:[%s0 + $0xf8] sm:$0xff]
  %v48 = vld [vmem:[%s0 + $0x100] sm:$0xff]
  %v49 = vld [vmem:[%s0 + $0x108] sm:$0xff]
  %v50 = vld [vmem:[%s0 + $0x110] sm:$0xff]
  %v51 = vld [vmem:[%s0 + $0x118] sm:$0xff]
  %v52 = vld [vmem:[%s2] sm:$0xff]
  %v53 = vld [vmem:[%s2 + $0x8] sm:$0x3]
  %55 = vset.pattern.permute.xlu0 0
  %56 = vperm.xlu0 %55, %v52
  %v57 = vpop.permute.xlu0 %56
  %60 = vset.pattern.permute.xlu0 0
  %61 = vperm.xlu0 %60, %v53
  %v62 = vpop.permute.xlu0 %61
  %vm64 = vcmask 261120
  %v66 = vsel %vm64, %v14, 0
  %v69 = vsel %vm64, %v15, 0
  %71 = vmatprep.subr.mxu0 %v17
  %72 = vmatpush1.msra.mxu0 %v16
  %73 = vmatprep.subr.mxu0 %v26
  %74 = vmatpush1.msra.mxu0 %v25
  %75 = vmatprep.subr.mxu0 %v35
  %76 = vmatpush1.msra.mxu0 %v34
  %77 = vmatprep.subr.mxu0 %v44
  %78 = vmatpush1.msra.mxu0 %v43
  %79 = vmatprep.subr.mxu0 0.0
  %80 = vmatpush1.msra.mxu0 0.0
  %81 = vmatprep.subr.mxu0 0.0
  %82 = vmatpush1.msra.mxu0 0.0
  %83 = vmatprep.subr.mxu0 0.0
  %84 = vmatpush1.msra.mxu0 0.0
  %85 = vmatprep.subr.mxu0 0.0
  %86 = vmatpush1.msra.mxu0 0.0
  %87 = vmatprep.subr.mxu0 0.0
  %88 = vmatpush1.msra.mxu0 0.0
  %89 = vmatprep.subr.mxu0 0.0
  %90 = vmatpush1.msra.mxu0 0.0
  %91 = vmatprep.subr.mxu0 0.0
  %92 = vmatpush1.msra.mxu0 0.0
  %93 = vmatprep.subr.mxu0 0.0
  %94 = vmatpush1.msra.mxu0 0.0
  %95 = vmatprep.subr.mxu0 0.0
  %96 = vmatpush1.msra.mxu0 0.0
  %97 = vmatprep.subr.mxu0 0.0
  %98 = vmatpush1.msra.mxu0 0.0
  %99 = vmatprep.subr.mxu0 0.0
  %100 = vmatpush1.msra.mxu0 0.0
  %101 = vmatprep.subr.mxu0 0.0
  %102 = vmatpush1.msra.mxu0 0.0
  %103 = vmatprep.subr.mxu0 0.0
  %104 = vmatpush1.msra.mxu0 0.0
  %105 = vmatprep.subr.mxu0 0.0
  %106 = vmatpush1.msra.mxu0 0.0
  %107 = vmatprep.subr.mxu0 0.0
  %108 = vmatpush1.msra.mxu0 0.0
  %109 = vmatprep.subr.mxu0 0.0
  %110 = vmatpush1.msra.mxu0 0.0
  %111 = vmatprep.subr.mxu0 0.0
  %112 = vmatpush1.msra.mxu0 0.0
  %113 = vmatprep.subr.mxu0 0.0
  %114 = vmatpush1.msra.mxu0 0.0
  %115 = vmatprep.subr.mxu0 0.0
  %116 = vmatpush1.msra.mxu0 0.0
  %117 = vmatprep.subr.mxu0 0.0
  %118 = vmatpush1.msra.mxu0 0.0
  %119 = vmatprep.subr.mxu0 0.0
  %120 = vmatpush1.msra.mxu0 0.0
  %121 = vmatprep.subr.mxu0 0.0
  %122 = vmatpush1.msra.mxu0 0.0
  %123 = vmatprep.subr.mxu0 0.0
  %124 = vmatpush1.msra.mxu0 0.0
  %125 = vmatprep.subr.mxu0 0.0
  %126 = vmatpush1.msra.mxu0 0.0
  %127 = vmatprep.subr.mxu0 0.0
  %128 = vmatpush1.msra.mxu0 0.0
  %129 = vmatprep.subr.mxu0 0.0
  %130 = vmatpush1.msra.mxu0 0.0
  %131 = vmatprep.subr.mxu0 0.0
  %132 = vmatpush1.msra.mxu0 0.0
  %133 = vmatprep.subr.mxu0 0.0
  %134 = vmatpush1.msra.mxu0 0.0
  %135 = vmatprep.mubr.f32.mxu0 0.0
  %136 = vmatmul.mubr.f32.gmra.mrb[0].mxu0 %v66
  %v137 = vpop.f32.mrb[0].mxu0
  %v138 = vadd.f32 %v57, %v137
  %v139 = vpop.f32.mrb[0].mxu0
  %v140 = vadd.f32 %v57, %v139
  %141 = vmatprep.mubr.f32.mxu0 0.0
  %142 = vmatmul.mubr.f32.gmra.mrb[0].mxu0 %v69
  %v143 = vpop.f32.mrb[0].mxu0
  %v144 = vadd.f32 %v62, %v143
  %v145 = vpop.f32.mrb[0].mxu0
  %v146 = vadd.f32 %v62, %v145
  %147 = vdwg.mxu0
  %148 = vmatprep.subr.mxu0 %v19
  %149 = vmatpush1.msra.mxu0 %v18
  %150 = vmatprep.subr.mxu0 %v28
  %151 = vmatpush1.msra.mxu0 %v27
  %152 = vmatprep.subr.mxu0 %v37
  %153 = vmatpush1.msra.mxu0 %v36
  %154 = vmatprep.subr.mxu0 %v46
  %155 = vmatpush1.msra.mxu0 %v45
  %156 = vmatprep.subr.mxu0 0.0
  %157 = vmatpush1.msra.mxu0 0.0
  %158 = vmatprep.subr.mxu0 0.0
  %159 = vmatpush1.msra.mxu0 0.0
  %160 = vmatprep.subr.mxu0 0.0
  %161 = vmatpush1.msra.mxu0 0.0
  %162 = vmatprep.subr.mxu0 0.0
  %163 = vmatpush1.msra.mxu0 0.0
  %164 = vmatprep.subr.mxu0 0.0
  %165 = vmatpush1.msra.mxu0 0.0
  %166 = vmatprep.subr.mxu0 0.0
  %167 = vmatpush1.msra.mxu0 0.0
  %168 = vmatprep.subr.mxu0 0.0
  %169 = vmatpush1.msra.mxu0 0.0
  %170 = vmatprep.subr.mxu0 0.0
  %171 = vmatpush1.msra.mxu0 0.0
  %172 = vmatprep.subr.mxu0 0.0
  %173 = vmatpush1.msra.mxu0 0.0
  %174 = vmatprep.subr.mxu0 0.0
  %175 = vmatpush1.msra.mxu0 0.0
  %176 = vmatprep.subr.mxu0 0.0
  %177 = vmatpush1.msra.mxu0 0.0
  %178 = vmatprep.subr.mxu0 0.0
  %179 = vmatpush1.msra.mxu0 0.0
  %180 = vmatprep.subr.mxu0 0.0
  %181 = vmatpush1.msra.mxu0 0.0
  %182 = vmatprep.subr.mxu0 0.0
  %183 = vmatpush1.msra.mxu0 0.0
  %184 = vmatprep.subr.mxu0 0.0
  %185 = vmatpush1.msra.mxu0 0.0
  %186 = vmatprep.subr.mxu0 0.0
  %187 = vmatpush1.msra.mxu0 0.0
  %188 = vmatprep.subr.mxu0 0.0
  %189 = vmatpush1.msra.mxu0 0.0
  %190 = vmatprep.subr.mxu0 0.0
  %191 = vmatpush1.msra.mxu0 0.0
  %192 = vmatprep.subr.mxu0 0.0
  %193 = vmatpush1.msra.mxu0 0.0
  %194 = vmatprep.subr.mxu0 0.0
  %195 = vmatpush1.msra.mxu0 0.0
  %196 = vmatprep.subr.mxu0 0.0
  %197 = vmatpush1.msra.mxu0 0.0
  %198 = vmatprep.subr.mxu0 0.0
  %199 = vmatpush1.msra.mxu0 0.0
  %200 = vmatprep.subr.mxu0 0.0
  %201 = vmatpush1.msra.mxu0 0.0
  %202 = vmatprep.subr.mxu0 0.0
  %203 = vmatpush1.msra.mxu0 0.0
  %204 = vmatprep.subr.mxu0 0.0
  %205 = vmatpush1.msra.mxu0 0.0
  %206 = vmatprep.subr.mxu0 0.0
  %207 = vmatpush1.msra.mxu0 0.0
  %208 = vmatprep.subr.mxu0 0.0
  %209 = vmatpush1.msra.mxu0 0.0
  %210 = vmatprep.subr.mxu0 0.0
  %211 = vmatpush1.msra.mxu0 0.0
  %212 = vmatprep.mubr.f32.mxu0 0.0
  %213 = vmatmul.mubr.f32.gmra.mrb[0].mxu0 %v66
  %v214 = vpop.f32.mrb[0].mxu0
  %v215 = vadd.f32 %v57, %v214
  %v216 = vpop.f32.mrb[0].mxu0
  %v217 = vadd.f32 %v57, %v216
  %218 = vmatprep.mubr.f32.mxu0 0.0
  %219 = vmatmul.mubr.f32.gmra.mrb[0].mxu0 %v69
  %v220 = vpop.f32.mrb[0].mxu0
  %v221 = vadd.f32 %v62, %v220
  %v222 = vpop.f32.mrb[0].mxu0
  %v223 = vadd.f32 %v62, %v222
  %224 = vdwg.mxu0
  %225 = vmatprep.subr.mxu0 %v21
  %226 = vmatpush1.msra.mxu0 %v20
  %227 = vmatprep.subr.mxu0 %v30
  %228 = vmatpush1.msra.mxu0 %v29
  %229 = vmatprep.subr.mxu0 %v39
  %230 = vmatpush1.msra.mxu0 %v38
  %231 = vmatprep.subr.mxu0 %v48
  %232 = vmatpush1.msra.mxu0 %v47
  %233 = vmatprep.subr.mxu0 0.0
  %234 = vmatpush1.msra.mxu0 0.0
  %235 = vmatprep.subr.mxu0 0.0
  %236 = vmatpush1.msra.mxu0 0.0
  %237 = vmatprep.subr.mxu0 0.0
  %238 = vmatpush1.msra.mxu0 0.0
  %239 = vmatprep.subr.mxu0 0.0
  %240 = vmatpush1.msra.mxu0 0.0
  %241 = vmatprep.subr.mxu0 0.0
  %242 = vmatpush1.msra.mxu0 0.0
  %243 = vmatprep.subr.mxu0 0.0
  %244 = vmatpush1.msra.mxu0 0.0
  %245 = vmatprep.subr.mxu0 0.0
  %246 = vmatpush1.msra.mxu0 0.0
  %247 = vmatprep.subr.mxu0 0.0
  %248 = vmatpush1.msra.mxu0 0.0
  %249 = vmatprep.subr.mxu0 0.0
  %250 = vmatpush1.msra.mxu0 0.0
  %251 = vmatprep.subr.mxu0 0.0
  %252 = vmatpush1.msra.mxu0 0.0
  %253 = vmatprep.subr.mxu0 0.0
  %254 = vmatpush1.msra.mxu0 0.0
  %255 = vmatprep.subr.mxu0 0.0
  %256 = vmatpush1.msra.mxu0 0.0
  %257 = vmatprep.subr.mxu0 0.0
  %258 = vmatpush1.msra.mxu0 0.0
  %259 = vmatprep.subr.mxu0 0.0
  %260 = vmatpush1.msra.mxu0 0.0
  %261 = vmatprep.subr.mxu0 0.0
  %262 = vmatpush1.msra.mxu0 0.0
  %263 = vmatprep.subr.mxu0 0.0
  %264 = vmatpush1.msra.mxu0 0.0
  %265 = vmatprep.subr.mxu0 0.0
  %266 = vmatpush1.msra.mxu0 0.0
  %267 = vmatprep.subr.mxu0 0.0
  %268 = vmatpush1.msra.mxu0 0.0
  %269 = vmatprep.subr.mxu0 0.0
  %270 = vmatpush1.msra.mxu0 0.0
  %271 = vmatprep.subr.mxu0 0.0
  %272 = vmatpush1.msra.mxu0 0.0
  %273 = vmatprep.subr.mxu0 0.0
  %274 = vmatpush1.msra.mxu0 0.0
  %275 = vmatprep.subr.mxu0 0.0
  %276 = vmatpush1.msra.mxu0 0.0
  %277 = vmatprep.subr.mxu0 0.0
  %278 = vmatpush1.msra.mxu0 0.0
  %279 = vmatprep.subr.mxu0 0.0
  %280 = vmatpush1.msra.mxu0 0.0
  %281 = vmatprep.subr.mxu0 0.0
  %282 = vmatpush1.msra.mxu0 0.0
  %283 = vmatprep.subr.mxu0 0.0
  %284 = vmatpush1.msra.mxu0 0.0
  %285 = vmatprep.subr.mxu0 0.0
  %286 = vmatpush1.msra.mxu0 0.0
  %287 = vmatprep.subr.mxu0 0.0
  %288 = vmatpush1.msra.mxu0 0.0
  %289 = vmatprep.mubr.f32.mxu0 0.0
  %290 = vmatmul.mubr.f32.gmra.mrb[0].mxu0 %v66
  %v291 = vpop.f32.mrb[0].mxu0
  %v292 = vadd.f32 %v57, %v291
  %v293 = vpop.f32.mrb[0].mxu0
  %v294 = vadd.f32 %v57, %v293
  %295 = vmatprep.mubr.f32.mxu0 0.0
  %296 = vmatmul.mubr.f32.gmra.mrb[0].mxu0 %v69
  %v297 = vpop.f32.mrb[0].mxu0
  %v298 = vadd.f32 %v62, %v297
  %v299 = vpop.f32.mrb[0].mxu0
  %v300 = vadd.f32 %v62, %v299
  %301 = vdwg.mxu0
  %302 = vmatprep.subr.mxu0 %v23
  %303 = vmatpush1.msra.mxu0 %v22
  %304 = vmatprep.subr.mxu0 %v32
  %305 = vmatpush1.msra.mxu0 %v31
  %306 = vmatprep.subr.mxu0 %v41
  %307 = vmatpush1.msra.mxu0 %v40
  %308 = vmatprep.subr.mxu0 %v50
  %309 = vmatpush1.msra.mxu0 %v49
  %310 = vmatprep.subr.mxu0 0.0
  %311 = vmatpush1.msra.mxu0 0.0
  %312 = vmatprep.subr.mxu0 0.0
  %313 = vmatpush1.msra.mxu0 0.0
  %314 = vmatprep.subr.mxu0 0.0
  %315 = vmatpush1.msra.mxu0 0.0
  %316 = vmatprep.subr.mxu0 0.0
  %317 = vmatpush1.msra.mxu0 0.0
  %318 = vmatprep.subr.mxu0 0.0
  %319 = vmatpush1.msra.mxu0 0.0
  %320 = vmatprep.subr.mxu0 0.0
  %321 = vmatpush1.msra.mxu0 0.0
  %322 = vmatprep.subr.mxu0 0.0
  %323 = vmatpush1.msra.mxu0 0.0
  %324 = vmatprep.subr.mxu0 0.0
  %325 = vmatpush1.msra.mxu0 0.0
  %326 = vmatprep.subr.mxu0 0.0
  %327 = vmatpush1.msra.mxu0 0.0
  %328 = vmatprep.subr.mxu0 0.0
  %329 = vmatpush1.msra.mxu0 0.0
  %330 = vmatprep.subr.mxu0 0.0
  %331 = vmatpush1.msra.mxu0 0.0
  %332 = vmatprep.subr.mxu0 0.0
  %333 = vmatpush1.msra.mxu0 0.0
  %334 = vmatprep.subr.mxu0 0.0
  %335 = vmatpush1.msra.mxu0 0.0
  %336 = vmatprep.subr.mxu0 0.0
  %337 = vmatpush1.msra.mxu0 0.0
  %338 = vmatprep.subr.mxu0 0.0
  %339 = vmatpush1.msra.mxu0 0.0
  %340 = vmatprep.subr.mxu0 0.0
  %341 = vmatpush1.msra.mxu0 0.0
  %342 = vmatprep.subr.mxu0 0.0
  %343 = vmatpush1.msra.mxu0 0.0
  %344 = vmatprep.subr.mxu0 0.0
  %345 = vmatpush1.msra.mxu0 0.0
  %346 = vmatprep.subr.mxu0 0.0
  %347 = vmatpush1.msra.mxu0 0.0
  %348 = vmatprep.subr.mxu0 0.0
  %349 = vmatpush1.msra.mxu0 0.0
  %350 = vmatprep.subr.mxu0 0.0
  %351 = vmatpush1.msra.mxu0 0.0
  %352 = vmatprep.subr.mxu0 0.0
  %353 = vmatpush1.msra.mxu0 0.0
  %354 = vmatprep.subr.mxu0 0.0
  %355 = vmatpush1.msra.mxu0 0.0
  %356 = vmatprep.subr.mxu0 0.0
  %357 = vmatpush1.msra.mxu0 0.0
  %358 = vmatprep.subr.mxu0 0.0
  %359 = vmatpush1.msra.mxu0 0.0
  %360 = vmatprep.subr.mxu0 0.0
  %361 = vmatpush1.msra.mxu0 0.0
  %362 = vmatprep.subr.mxu0 0.0
  %363 = vmatpush1.msra.mxu0 0.0
  %364 = vmatprep.subr.mxu0 0.0
  %365 = vmatpush1.msra.mxu0 0.0
  %366 = vmatprep.mubr.f32.mxu0 0.0
  %367 = vmatmul.mubr.f32.gmra.mrb[0].mxu0 %v66
  %v368 = vpop.f32.mrb[0].mxu0
  %v369 = vadd.f32 %v57, %v368
  %v370 = vpop.f32.mrb[0].mxu0
  %v371 = vadd.f32 %v57, %v370
  %372 = vmatprep.mubr.f32.mxu0 0.0
  %373 = vmatmul.mubr.f32.gmra.mrb[0].mxu0 %v69
  %v374 = vpop.f32.mrb[0].mxu0
  %v375 = vadd.f32 %v62, %v374
  %v376 = vpop.f32.mrb[0].mxu0
  %v377 = vadd.f32 %v62, %v376
  %378 = vdwg.mxu0
  %379 = vmatprep.subr.mxu0 0.0
  %380 = vmatpush1.msra.mxu0 %v24
  %381 = vmatprep.subr.mxu0 0.0
  %382 = vmatpush1.msra.mxu0 %v33
  %383 = vmatprep.subr.mxu0 0.0
  %384 = vmatpush1.msra.mxu0 %v42
  %385 = vmatprep.subr.mxu0 0.0
  %386 = vmatpush1.msra.mxu0 %v51
  %387 = vmatprep.subr.mxu0 0.0
  %388 = vmatpush1.msra.mxu0 0.0
  %389 = vmatprep.subr.mxu0 0.0
  %390 = vmatpush1.msra.mxu0 0.0
  %391 = vmatprep.subr.mxu0 0.0
  %392 = vmatpush1.msra.mxu0 0.0
  %393 = vmatprep.subr.mxu0 0.0
  %394 = vmatpush1.msra.mxu0 0.0
  %395 = vmatprep.subr.mxu0 0.0
  %396 = vmatpush1.msra.mxu0 0.0
  %397 = vmatprep.subr.mxu0 0.0
  %398 = vmatpush1.msra.mxu0 0.0
  %399 = vmatprep.subr.mxu0 0.0
  %400 = vmatpush1.msra.mxu0 0.0
  %401 = vmatprep.subr.mxu0 0.0
  %402 = vmatpush1.msra.mxu0 0.0
  %403 = vmatprep.subr.mxu0 0.0
  %404 = vmatpush1.msra.mxu0 0.0
  %405 = vmatprep.subr.mxu0 0.0
  %406 = vmatpush1.msra.mxu0 0.0
  %407 = vmatprep.subr.mxu0 0.0
  %408 = vmatpush1.msra.mxu0 0.0
  %409 = vmatprep.subr.mxu0 0.0
  %410 = vmatpush1.msra.mxu0 0.0
  %411 = vmatprep.subr.mxu0 0.0
  %412 = vmatpush1.msra.mxu0 0.0
  %413 = vmatprep.subr.mxu0 0.0
  %414 = vmatpush1.msra.mxu0 0.0
  %415 = vmatprep.subr.mxu0 0.0
  %416 = vmatpush1.msra.mxu0 0.0
  %417 = vmatprep.subr.mxu0 0.0
  %418 = vmatpush1.msra.mxu0 0.0
  %419 = vmatprep.subr.mxu0 0.0
  %420 = vmatpush1.msra.mxu0 0.0
  %421 = vmatprep.subr.mxu0 0.0
  %422 = vmatpush1.msra.mxu0 0.0
  %423 = vmatprep.subr.mxu0 0.0
  %424 = vmatpush1.msra.mxu0 0.0
  %425 = vmatprep.subr.mxu0 0.0
  %426 = vmatpush1.msra.mxu0 0.0
  %427 = vmatprep.subr.mxu0 0.0
  %428 = vmatpush1.msra.mxu0 0.0
  %429 = vmatprep.subr.mxu0 0.0
  %430 = vmatpush1.msra.mxu0 0.0
  %431 = vmatprep.subr.mxu0 0.0
  %432 = vmatpush1.msra.mxu0 0.0
  %433 = vmatprep.subr.mxu0 0.0
  %434 = vmatpush1.msra.mxu0 0.0
  %435 = vmatprep.subr.mxu0 0.0
  %436 = vmatpush1.msra.mxu0 0.0
  %437 = vmatprep.subr.mxu0 0.0
  %438 = vmatpush1.msra.mxu0 0.0
  %439 = vmatprep.subr.mxu0 0.0
  %440 = vmatpush1.msra.mxu0 0.0
  %441 = vmatprep.subr.mxu0 0.0
  %442 = vmatpush1.msra.mxu0 0.0
  %443 = vmatprep.mubr.f32.mxu0 0.0
  %444 = vmatmul.mubr.f32.gmra.mrb[0].mxu0 %v66
  %v445 = vpop.f32.mrb[0].mxu0
  %v446 = vadd.f32 %v57, %v445
  %v447 = vpop.f32.mrb[0].mxu0
  %448 = vmatprep.mubr.f32.mxu0 0.0
  %449 = vmatmul.mubr.f32.gmra.mrb[0].mxu0 %v69
  %v450 = vpop.f32.mrb[0].mxu0
  %v451 = vadd.f32 %v62, %v450
  %v452 = vpop.f32.mrb[0].mxu0
  %453 = vdwg.mxu0
  %v454 = vmax.f32 %v138, 0.0
  %v455 = vmax.f32 %v140, 0.0
  %v456 = vmax.f32 %v215, 0.0
  %v457 = vmax.f32 %v217, 0.0
  %v458 = vmax.f32 %v292, 0.0
  %v459 = vmax.f32 %v294, 0.0
  %v460 = vmax.f32 %v369, 0.0
  %v461 = vmax.f32 %v371, 0.0
  %v462 = vmax.f32 %v446, 0.0
  %v463 = vmax.f32 %v144, 0.0
  %v464 = vmax.f32 %v146, 0.0
  %v465 = vmax.f32 %v221, 0.0
  %v466 = vmax.f32 %v223, 0.0
  %v467 = vmax.f32 %v298, 0.0
  %v468 = vmax.f32 %v300, 0.0
  %v469 = vmax.f32 %v375, 0.0
  %v470 = vmax.f32 %v377, 0.0
  %v471 = vmax.f32 %v451, 0.0
  %472 = vst [vmem:[%s3] sm:$0xff] %v454
  %473 = vst [vmem:[%s3 + $0x8] sm:$0xff] %v455
  %474 = vst [vmem:[%s3 + $0x10] sm:$0xff] %v456
  %475 = vst [vmem:[%s3 + $0x18] sm:$0xff] %v457
  %476 = vst [vmem:[%s3 + $0x20] sm:$0xff] %v458
  %477 = vst [vmem:[%s3 + $0x28] sm:$0xff] %v459
  %478 = vst [vmem:[%s3 + $0x30] sm:$0xff] %v460
  %479 = vst [vmem:[%s3 + $0x38] sm:$0xff] %v461
  %480 = vst [vmem:[%s3 + $0x40] sm:$0xff] %v462
  %481 = vst [vmem:[%s3 + $0x48] sm:$0x3] %v463
  %482 = vst [vmem:[%s3 + $0x50] sm:$0x3] %v464
  %483 = vst [vmem:[%s3 + $0x58] sm:$0x3] %v465
  %484 = vst [vmem:[%s3 + $0x60] sm:$0x3] %v466
  %485 = vst [vmem:[%s3 + $0x68] sm:$0x3] %v467
  %486 = vst [vmem:[%s3 + $0x70] sm:$0x3] %v468
  %487 = vst [vmem:[%s3 + $0x78] sm:$0x3] %v469
  %488 = vst [vmem:[%s3 + $0x80] sm:$0x3] %v470
  %489 = vst [vmem:[%s3 + $0x88] sm:$0x3] %v471
  // Predicated region
  $region14: #{digit_forward.3} parent=0 // pred_check
    _
  $region15: #{digit_forward.3} parent=0 // pred_check_branch
    %491 = sbr.rel (0) target = $region17
  $region16: #{digit_forward.3} parent=0 // pred_region
    _
  $region17: #{digit_forward.3} parent=0 // pred_fallthru
    _
  // Predicated region
  $region18: #{digit_forward.3} parent=0 // pred_check
    _
  $region19: #{digit_forward.3} parent=0 // pred_check_branch
    %493 = sbr.rel (0) target = $region21
  $region20: #{digit_forward.3} parent=0 // pred_region
    _
  $region21: #{digit_forward.3} parent=0 // pred_fallthru
    _

// kernel: digit_forward.4
$region0: #{digit_forward.4}
  #allocation0 [shape = 'u32[]', space=smem, size = 0x4, offset = 0x4, fixed_abs, tag = 'smem constant byte address 0x4 - core index']
  #allocation1 [shape = 'u32[144,128]{1,0:T(1,128)}', space=vmem, size = 0x12000, scoped, tag = 'internal scratch']
  %s0 = inlined_call_operand.vmem [shape: f32[96,200], index: 0, kind: input, shape index: {}]
  %s1 = inlined_call_operand.vmem [shape: f32[20,96], index: 1, kind: input, shape index: {}]
  %s2 = inlined_call_operand.vmem [shape: f32[20,1], index: 2, kind: input, shape index: {}]
  %s3 = inlined_call_operand.vmem [shape: f32[20,200], index: 3, kind: output, shape index: {}]
  %s4 = sld [smem:[#allocation0]]
  $region22: #{digit_forward.4} parent=0
    _
  %s6 = ssub.s32 1, %s4
  %s7 = scalar_select 0, %s6, %s4
  // Predicated region
  $region2: #{digit_forward.4} parent=0 // pred_check
    _
  $region3: #{digit_forward.4} parent=0 // pred_check_branch
    %9 = sbr.rel (0) target = $region5
  $region4: #{digit_forward.4} parent=0 // pred_region
    _
  $region5: #{digit_forward.4} parent=0 // pred_fallthru
    _
  // Predicated region
  $region6: #{digit_forward.4} parent=0 // pred_check
    _
  $region7: #{digit_forward.4} parent=0 // pred_check_branch
    %11 = sbr.rel (0) target = $region9
  $region8: #{digit_forward.4} parent=0 // pred_region
    _
  $region9: #{digit_forward.4} parent=0 // pred_fallthru
    _
  // Predicated region
  $region10: #{digit_forward.4} parent=0 // pred_check
    _
  $region11: #{digit_forward.4} parent=0 // pred_check_branch
    %13 = sbr.rel (0) target = $region13
  $region12: #{digit_forward.4} parent=0 // pred_region
    _
  $region13: #{digit_forward.4} parent=0 // pred_fallthru
    _
  %v14 = vld [vmem:[%s1] sm:$0xff]
  %v15 = vld [vmem:[%s1 + $0x8] sm:$0xff]
  %v16 = vld [vmem:[%s1 + $0x10] sm:$0xf]
  %v17 = vld [vmem:[%s0] sm:$0xff]
  %v18 = vld [vmem:[%s0 + $0x8] sm:$0xff]
  %v19 = vld [vmem:[%s0 + $0x10] sm:$0xff]
  %v20 = vld [vmem:[%s0 + $0x18] sm:$0xff]
  %v21 = vld [vmem:[%s0 + $0x20] sm:$0xff]
  %v22 = vld [vmem:[%s0 + $0x28] sm:$0xff]
  %v23 = vld [vmem:[%s0 + $0x30] sm:$0xff]
  %v24 = vld [vmem:[%s0 + $0x38] sm:$0xff]
  %v25 = vld [vmem:[%s0 + $0x40] sm:$0xff]
  %v26 = vld [vmem:[%s0 + $0x48] sm:$0xff]
  %v27 = vld [vmem:[%s0 + $0x50] sm:$0xff]
  %v28 = vld [vmem:[%s0 + $0x58] sm:$0xff]
  %v29 = vld [vmem:[%s0 + $0x60] sm:$0xff]
  %v30 = vld [vmem:[%s0 + $0x68] sm:$0xff]
  %v31 = vld [vmem:[%s0 + $0x70] sm:$0xff]
  %v32 = vld [vmem:[%s0 + $0x78] sm:$0xff]
  %v33 = vld [vmem:[%s0 + $0x80] sm:$0xff]
  %v34 = vld [vmem:[%s0 + $0x88] sm:$0xff]
  %v35 = vld [vmem:[%s0 + $0x90] sm:$0xff]
  %v36 = vld [vmem:[%s0 + $0x98] sm:$0xff]
  %v37 = vld [vmem:[%s0 + $0xa0] sm:$0xff]
  %v38 = vld [vmem:[%s0 + $0xa8] sm:$0xff]
  %v39 = vld [vmem:[%s0 + $0xb0] sm:$0xff]
  %v40 = vld [vmem:[%s0 + $0xb8] sm:$0xff]
  %v41 = vld [vmem:[%s2] sm:$0xff]
  %v42 = vld [vmem:[%s2 + $0x8] sm:$0xff]
  %v43 = vld [vmem:[%s2 + $0x10] sm:$0xf]
  %45 = vset.pattern.permute.xlu0 0
  %46 = vperm.xlu0 %45, %v41
  %v47 = vpop.permute.xlu0 %46
  %50 = vset.pattern.permute.xlu0 0
  %51 = vperm.xlu0 %50, %v42
  %v52 = vpop.permute.xlu0 %51
  %55 = vset.pattern.permute.xlu0 0
  %56 = vperm.xlu0 %55, %v43
  %v57 = vpop.permute.xlu0 %56
  %vm59 = vcmask 785408
  %v61 = vsel %vm59, %v14, 0
  %v64 = vsel %vm59, %v15, 0
  %v67 = vsel %vm59, %v16, 0
  %69 = vmatprep.subr.mxu0 %v18
  %70 = vmatpush1.msra.mxu0 %v17
  %71 = vmatprep.subr.mxu0 %v20
  %72 = vmatpush1.msra.mxu0 %v19
  %73 = vmatprep.subr.mxu0 %v22
  %74 = vmatpush1.msra.mxu0 %v21
  %75 = vmatprep.subr.mxu0 %v24
  %76 = vmatpush1.msra.mxu0 %v23
  %77 = vmatprep.subr.mxu0 %v26
  %78 = vmatpush1.msra.mxu0 %v25
  %79 = vmatprep.subr.mxu0 %v28
  %80 = vmatpush1.msra.mxu0 %v27
  %81 = vmatprep.subr.mxu0 %v30
  %82 = vmatpush1.msra.mxu0 %v29
  %83 = vmatprep.subr.mxu0 %v32
  %84 = vmatpush1.msra.mxu0 %v31
  %85 = vmatprep.subr.mxu0 %v34
  %86 = vmatpush1.msra.mxu0 %v33
  %87 = vmatprep.subr.mxu0 %v36
  %88 = vmatpush1.msra.mxu0 %v35
  %89 = vmatprep.subr.mxu0 %v38
  %90 = vmatpush1.msra.mxu0 %v37
  %91 = vmatprep.subr.mxu0 %v40
  %92 = vmatpush1.msra.mxu0 %v39
  %93 = vmatprep.subr.mxu0 0.0
  %94 = vmatpush1.msra.mxu0 0.0
  %95 = vmatprep.subr.mxu0 0.0
  %96 = vmatpush1.msra.mxu0 0.0
  %97 = vmatprep.subr.mxu0 0.0
  %98 = vmatpush1.msra.mxu0 0.0
  %99 = vmatprep.subr.mxu0 0.0
  %100 = vmatpush1.msra.mxu0 0.0
  %101 = vmatprep.subr.mxu0 0.0
  %102 = vmatpush1.msra.mxu0 0.0
  %103 = vmatprep.subr.mxu0 0.0
  %104 = vmatpush1.msra.mxu0 0.0
  %105 = vmatprep.subr.mxu0 0.0
  %106 = vmatpush1.msra.mxu0 0.0
  %107 = vmatprep.subr.mxu0 0.0
  %108 = vmatpush1.msra.mxu0 0.0
  %109 = vmatprep.subr.mxu0 0.0
  %110 = vmatpush1.msra.mxu0 0.0
  %111 = vmatprep.subr.mxu0 0.0
  %112 = vmatpush1.msra.mxu0 0.0
  %113 = vmatprep.subr.mxu0 0.0
  %114 = vmatpush1.msra.mxu0 0.0
  %115 = vmatprep.subr.mxu0 0.0
  %116 = vmatpush1.msra.mxu0 0.0
  %117 = vmatprep.subr.mxu0 0.0
  %118 = vmatpush1.msra.mxu0 0.0
  %119 = vmatprep.subr.mxu0 0.0
  %120 = vmatpush1.msra.mxu0 0.0
  %121 = vmatprep.subr.mxu0 0.0
  %122 = vmatpush1.msra.mxu0 0.0
  %123 = vmatprep.subr.mxu0 0.0
  %124 = vmatpush1.msra.mxu0 0.0
  %125 = vmatprep.subr.mxu0 0.0
  %126 = vmatpush1.msra.mxu0 0.0
  %127 = vmatprep.subr.mxu0 0.0
  %128 = vmatpush1.msra.mxu0 0.0
  %129 = vmatprep.subr.mxu0 0.0
  %130 = vmatpush1.msra.mxu0 0.0
  %131 = vmatprep.subr.mxu0 0.0
  %132 = vmatpush1.msra.mxu0 0.0
  %133 = vmatprep.mubr.f32.mxu0 0.0
  %134 = vmatmul.mubr.f32.gmra.mrb[0].mxu0 %v61
  %v135 = vpop.f32.mrb[0].mxu0
  %v136 = vadd.f32 %v47, %v135
  %v137 = vpop.f32.mrb[0].mxu0
  %v138 = vadd.f32 %v47, %v137
  %139 = vmatprep.mubr.f32.mxu0 0.0
  %140 = vmatmul.mubr.f32.gmra.mrb[0].mxu0 %v64
  %v141 = vpop.f32.mrb[0].mxu0
  %v142 = vadd.f32 %v52, %v141
  %v143 = vpop.f32.mrb[0].mxu0
  %v144 = vadd.f32 %v52, %v143
  %145 = vmatprep.mubr.f32.mxu0 0.0
  %146 = vmatmul.mubr.f32.gmra.mrb[0].mxu0 %v67
  %v147 = vpop.f32.mrb[0].mxu0
  %v148 = vadd.f32 %v57, %v147
  %v149 = vpop.f32.mrb[0].mxu0
  %v150 = vadd.f32 %v57, %v149
  %151 = vdwg.mxu0
  %v152 = vmax.f32 %v136, 0.0
  %v153 = vmax.f32 %v138, 0.0
  %v154 = vmax.f32 %v142, 0.0
  %v155 = vmax.f32 %v144, 0.0
  %v156 = vmax.f32 %v148, 0.0
  %v157 = vmax.f32 %v150, 0.0
  %158 = vst [vmem:[%s3] sm:$0xff] %v152
  %vm159 = vcmask 588800
  %160 = vst.msk [vmem:[%s3 + $0x8] sm:$0xff] %vm159, %v153
  %161 = vst [vmem:[%s3 + $0x10] sm:$0xff] %v154
  %162 = vst.msk [vmem:[%s3 + $0x18] sm:$0xff] %vm159, %v155
  %163 = vst [vmem:[%s3 + $0x20] sm:$0xf] %v156
  %vm164 = vcmask 584704
  %165 = vst.msk [vmem:[%s3 + $0x28] sm:$0xf] %vm164, %v157
  // Predicated region
  $region14: #{digit_forward.4} parent=0 // pred_check
    _
  $region15: #{digit_forward.4} parent=0 // pred_check_branch
    %167 = sbr.rel (0) target = $region17
  $region16: #{digit_forward.4} parent=0 // pred_region
    _
  $region17: #{digit_forward.4} parent=0 // pred_fallthru
    _
  // Predicated region
  $region18: #{digit_forward.4} parent=0 // pred_check
    _
  $region19: #{digit_forward.4} parent=0 // pred_check_branch
    %169 = sbr.rel (0) target = $region21
  $region20: #{digit_forward.4} parent=0 // pred_region
    _
  $region21: #{digit_forward.4} parent=0 // pred_fallthru
    _

// kernel: digit_forward.5
$region0: #{digit_forward.5}
  #allocation0 [shape = 'u32[]', space=smem, size = 0x4, offset = 0x4, fixed_abs, tag = 'smem constant byte address 0x4 - core index']
  #allocation1 [shape = 'u32[144,128]{1,0:T(1,128)}', space=vmem, size = 0x12000, scoped, tag = 'internal scratch']
  #allocation2 [shape = 'f32[512,2]{1,0:T(8,128)}', space=vmem, size = 0x40000, scoped, tag = 'scratch operand']
  %s0 = inlined_call_operand.vmem [shape: f32[2000,2], index: 0, kind: input, shape index: {}]
  %s1 = inlined_call_operand.vmem [shape: f32[512,2000], index: 1, kind: input, shape index: {}]
  %s2 = inlined_call_operand.vmem [shape: f32[512,1], index: 2, kind: input, shape index: {}]
  %s3 = inlined_call_operand.vmem [shape: f32[10,512], index: 3, kind: input, shape index: {}]
  %s4 = inlined_call_operand.vmem [shape: f32[10,1], index: 4, kind: input, shape index: {}]
  %s5 = inlined_call_operand.vmem [shape: f32[10,2], index: 5, kind: output, shape index: {}]
  %s6 = sld [smem:[#allocation0]]
  $region30: #{digit_forward.5} parent=0
    _
  %s8 = ssub.s32 1, %s6
  %s9 = scalar_select 0, %s8, %s6
  // Predicated region
  $region2: #{digit_forward.5} parent=0 // pred_check
    _
  $region3: #{digit_forward.5} parent=0 // pred_check_branch
    %11 = sbr.rel (0) target = $region5
  $region4: #{digit_forward.5} parent=0 // pred_region
    _
  $region5: #{digit_forward.5} parent=0 // pred_fallthru
    _
  // Predicated region
  $region6: #{digit_forward.5} parent=0 // pred_check
    _
  $region7: #{digit_forward.5} parent=0 // pred_check_branch
    %13 = sbr.rel (0) target = $region9
  $region8: #{digit_forward.5} parent=0 // pred_region
    _
  $region9: #{digit_forward.5} parent=0 // pred_fallthru
    _
  // Predicated region
  $region10: #{digit_forward.5} parent=0 // pred_check
    _
  $region11: #{digit_forward.5} parent=0 // pred_check_branch
    %15 = sbr.rel (0) target = $region13
  $region12: #{digit_forward.5} parent=0 // pred_region
    _
  $region13: #{digit_forward.5} parent=0 // pred_fallthru
    _
  // Predicated region
  $region14: #{digit_forward.5} parent=0 // pred_check
    _
  $region15: #{digit_forward.5} parent=0 // pred_check_branch
    %17 = sbr.rel (0) target = $region17
  $region16: #{digit_forward.5} parent=0 // pred_region
    _
  $region17: #{digit_forward.5} parent=0 // pred_fallthru
    _
  // Predicated region
  $region18: #{digit_forward.5} parent=0 // pred_check
    _
  $region19: #{digit_forward.5} parent=0 // pred_check_branch
    %19 = sbr.rel (0) target = $region21
  $region20: #{digit_forward.5} parent=0 // pred_region
    _
  $region21: #{digit_forward.5} parent=0 // pred_fallthru
    _
  %v20 = vld [vmem:[%s1] sm:$0xff]
  %v21 = vld [vmem:[%s1 + $0x8] sm:$0xff]
  %v22 = vld [vmem:[%s1 + $0x10] sm:$0xff]
  %v23 = vld [vmem:[%s1 + $0x18] sm:$0xff]
  %v24 = vld [vmem:[%s1 + $0x20] sm:$0xff]
  %v25 = vld [vmem:[%s1 + $0x28] sm:$0xff]
  %v26 = vld [vmem:[%s1 + $0x30] sm:$0xff]
  %v27 = vld [vmem:[%s1 + $0x38] sm:$0xff]
  %v28 = vld [vmem:[%s1 + $0x40] sm:$0xff]
  %v29 = vld [vmem:[%s1 + $0x48] sm:$0xff]
  %v30 = vld [vmem:[%s1 + $0x50] sm:$0xff]
  %v31 = vld [vmem:[%s1 + $0x58] sm:$0xff]
  %v32 = vld [vmem:[%s1 + $0x60] sm:$0xff]
  %v33 = vld [vmem:[%s1 + $0x68] sm:$0xff]
  %v34 = vld [vmem:[%s1 + $0x70] sm:$0xff]
  %v35 = vld [vmem:[%s1 + $0x78] sm:$0xff]
  %v36 = vld [vmem:[%s1 + $0x80] sm:$0xff]
  %v37 = vld [vmem:[%s1 + $0x88] sm:$0xff]
  %v38 = vld [vmem:[%s1 + $0x90] sm:$0xff]
  %v39 = vld [vmem:[%s1 + $0x98] sm:$0xff]
  %v40 = vld [vmem:[%s1 + $0xa0] sm:$0xff]
  %v41 = vld [vmem:[%s1 + $0xa8] sm:$0xff]
  %v42 = vld [vmem:[%s1 + $0xb0] sm:$0xff]
  %v43 = vld [vmem:[%s1 + $0xb8] sm:$0xff]
  %v44 = vld [vmem:[%s1 + $0xc0] sm:$0xff]
  %v45 = vld [vmem:[%s1 + $0xc8] sm:$0xff]
  %v46 = vld [vmem:[%s1 + $0xd0] sm:$0xff]
  %v47 = vld [vmem:[%s1 + $0xd8] sm:$0xff]
  %v48 = vld [vmem:[%s1 + $0xe0] sm:$0xff]
  %v49 = vld [vmem:[%s1 + $0xe8] sm:$0xff]
  %v50 = vld [vmem:[%s1 + $0xf0] sm:$0xff]
  %v51 = vld [vmem:[%s1 + $0xf8] sm:$0xff]
  %v52 = vld [vmem:[%s1 + $0x100] sm:$0xff]
  %v53 = vld [vmem:[%s1 + $0x108] sm:$0xff]
  %v54 = vld [vmem:[%s1 + $0x110] sm:$0xff]
  %v55 = vld [vmem:[%s1 + $0x118] sm:$0xff]
  %v56 = vld [vmem:[%s1 + $0x120] sm:$0xff]
  %v57 = vld [vmem:[%s1 + $0x128] sm:$0xff]
  %v58 = vld [vmem:[%s1 + $0x130] sm:$0xff]
  %v59 = vld [vmem:[%s1 + $0x138] sm:$0xff]
  %v60 = vld [vmem:[%s1 + $0x140] sm:$0xff]
  %v61 = vld [vmem:[%s1 + $0x148] sm:$0xff]
  %v62 = vld [vmem:[%s1 + $0x150] sm:$0xff]
  %v63 = vld [vmem:[%s1 + $0x158] sm:$0xff]
  %v64 = vld [vmem:[%s1 + $0x160] sm:$0xff]
  %v65 = vld [vmem:[%s1 + $0x168] sm:$0xff]
  %v66 = vld [vmem:[%s1 + $0x170] sm:$0xff]
  %v67 = vld [vmem:[%s1 + $0x178] sm:$0xff]
  %v68 = vld [vmem:[%s1 + $0x180] sm:$0xff]
  %v69 = vld [vmem:[%s1 + $0x188] sm:$0xff]
  %v70 = vld [vmem:[%s1 + $0x190] sm:$0xff]
  %v71 = vld [vmem:[%s1 + $0x198] sm:$0xff]
  %v72 = vld [vmem:[%s1 + $0x1a0] sm:$0xff]
  %v73 = vld [vmem:[%s1 + $0x1a8] sm:$0xff]
  %v74 = vld [vmem:[%s1 + $0x1b0] sm:$0xff]
  %v75 = vld [vmem:[%s1 + $0x1b8] sm:$0xff]
  %v76 = vld [vmem:[%s1 + $0x1c0] sm:$0xff]
  %v77 = vld [vmem:[%s1 + $0x1c8] sm:$0xff]
  %v78 = vld [vmem:[%s1 + $0x1d0] sm:$0xff]
  %v79 = vld [vmem:[%s1 + $0x1d8] sm:$0xff]
  %v80 = vld [vmem:[%s1 + $0x1e0] sm:$0xff]
  %v81 = vld [vmem:[%s1 + $0x1e8] sm:$0xff]
  %v82 = vld [vmem:[%s1 + $0x1f0] sm:$0xff]
  %v83 = vld [vmem:[%s1 + $0x1f8] sm:$0xff]
  %v84 = vld [vmem:[%s1 + $0x200] sm:$0xff]
  %v85 = vld [vmem:[%s1 + $0x208] sm:$0xff]
  %v86 = vld [vmem:[%s1 + $0x210] sm:$0xff]
  %v87 = vld [vmem:[%s1 + $0x218] sm:$0xff]
  %v88 = vld [vmem:[%s1 + $0x220] sm:$0xff]
  %v89 = vld [vmem:[%s1 + $0x228] sm:$0xff]
  %v90 = vld [vmem:[%s1 + $0x230] sm:$0xff]
  %v91 = vld [vmem:[%s1 + $0x238] sm:$0xff]
  %v92 = vld [vmem:[%s1 + $0x240] sm:$0xff]
  %v93 = vld [vmem:[%s1 + $0x248] sm:$0xff]
  %v94 = vld [vmem:[%s1 + $0x250] sm:$0xff]
  %v95 = vld [vmem:[%s1 + $0x258] sm:$0xff]
  %v96 = vld [vmem:[%s1 + $0x260] sm:$0xff]
  %v97 = vld [vmem:[%s1 + $0x268] sm:$0xff]
  %v98 = vld [vmem:[%s1 + $0x270] sm:$0xff]
  %v99 = vld [vmem:[%s1 + $0x278] sm:$0xff]
  %v100 = vld [vmem:[%s1 + $0x280] sm:$0xff]
  %v101 = vld [vmem:[%s1 + $0x288] sm:$0xff]
  %v102 = vld [vmem:[%s1 + $0x290] sm:$0xff]
  %v103 = vld [vmem:[%s1 + $0x298] sm:$0xff]
  %v104 = vld [vmem:[%s1 + $0x2a0] sm:$0xff]
  %v105 = vld [vmem:[%s1 + $0x2a8] sm:$0xff]
  %v106 = vld [vmem:[%s1 + $0x2b0] sm:$0xff]
  %v107 = vld [vmem:[%s1 + $0x2b8] sm:$0xff]
  %v108 = vld [vmem:[%s1 + $0x2c0] sm:$0xff]
  %v109 = vld [vmem:[%s1 + $0x2c8] sm:$0xff]
  %v110 = vld [vmem:[%s1 + $0x2d0] sm:$0xff]
  %v111 = vld [vmem:[%s1 + $0x2d8] sm:$0xff]
  %v112 = vld [vmem:[%s1 + $0x2e0] sm:$0xff]
  %v113 = vld [vmem:[%s1 + $0x2e8] sm:$0xff]
  %v114 = vld [vmem:[%s1 + $0x2f0] sm:$0xff]
  %v115 = vld [vmem:[%s1 + $0x2f8] sm:$0xff]
  %v116 = vld [vmem:[%s1 + $0x300] sm:$0xff]
  %v117 = vld [vmem:[%s1 + $0x308] sm:$0xff]
  %v118 = vld [vmem:[%s1 + $0x310] sm:$0xff]
  %v119 = vld [vmem:[%s1 + $0x318] sm:$0xff]
  %v120 = vld [vmem:[%s1 + $0x320] sm:$0xff]
  %v121 = vld [vmem:[%s1 + $0x328] sm:$0xff]
  %v122 = vld [vmem:[%s1 + $0x330] sm:$0xff]
  %v123 = vld [vmem:[%s1 + $0x338] sm:$0xff]
  %v124 = vld [vmem:[%s1 + $0x340] sm:$0xff]
  %v125 = vld [vmem:[%s1 + $0x348] sm:$0xff]
  %v126 = vld [vmem:[%s1 + $0x350] sm:$0xff]
  %v127 = vld [vmem:[%s1 + $0x358] sm:$0xff]
  %v128 = vld [vmem:[%s1 + $0x360] sm:$0xff]
  %v129 = vld [vmem:[%s1 + $0x368] sm:$0xff]
  %v130 = vld [vmem:[%s1 + $0x370] sm:$0xff]
  %v131 = vld [vmem:[%s1 + $0x378] sm:$0xff]
  %v132 = vld [vmem:[%s1 + $0x380] sm:$0xff]
  %v133 = vld [vmem:[%s1 + $0x388] sm:$0xff]
  %v134 = vld [vmem:[%s1 + $0x390] sm:$0xff]
  %v135 = vld [vmem:[%s1 + $0x398] sm:$0xff]
  %v136 = vld [vmem:[%s1 + $0x3a0] sm:$0xff]
  %v137 = vld [vmem:[%s1 + $0x3a8] sm:$0xff]
  %v138 = vld [vmem:[%s1 + $0x3b0] sm:$0xff]
  %v139 = vld [vmem:[%s1 + $0x3b8] sm:$0xff]
  %v140 = vld [vmem:[%s1 + $0x3c0] sm:$0xff]
  %v141 = vld [vmem:[%s1 + $0x3c8] sm:$0xff]
  %v142 = vld [vmem:[%s1 + $0x3d0] sm:$0xff]
  %v143 = vld [vmem:[%s1 + $0x3d8] sm:$0xff]
  %v144 = vld [vmem:[%s1 + $0x3e0] sm:$0xff]
  %v145 = vld [vmem:[%s1 + $0x3e8] sm:$0xff]
  %v146 = vld [vmem:[%s1 + $0x3f0] sm:$0xff]
  %v147 = vld [vmem:[%s1 + $0x3f8] sm:$0xff]
  %v148 = vld [vmem:[%s1 + $0x400] sm:$0xff]
  %v149 = vld [vmem:[%s1 + $0x408] sm:$0xff]
  %v150 = vld [vmem:[%s1 + $0x410] sm:$0xff]
  %v151 = vld [vmem:[%s1 + $0x418] sm:$0xff]
  %v152 = vld [vmem:[%s1 + $0x420] sm:$0xff]
  %v153 = vld [vmem:[%s1 + $0x428] sm:$0xff]
  %v154 = vld [vmem:[%s1 + $0x430] sm:$0xff]
  %v155 = vld [vmem:[%s1 + $0x438] sm:$0xff]
  %v156 = vld [vmem:[%s1 + $0x440] sm:$0xff]
  %v157 = vld [vmem:[%s1 + $0x448] sm:$0xff]
  %v158 = vld [vmem:[%s1 + $0x450] sm:$0xff]
  %v159 = vld [vmem:[%s1 + $0x458] sm:$0xff]
  %v160 = vld [vmem:[%s1 + $0x460] sm:$0xff]
  %v161 = vld [vmem:[%s1 + $0x468] sm:$0xff]
  %v162 = vld [vmem:[%s1 + $0x470] sm:$0xff]
  %v163 = vld [vmem:[%s1 + $0x478] sm:$0xff]
  %v164 = vld [vmem:[%s1 + $0x480] sm:$0xff]
  %v165 = vld [vmem:[%s1 + $0x488] sm:$0xff]
  %v166 = vld [vmem:[%s1 + $0x490] sm:$0xff]
  %v167 = vld [vmem:[%s1 + $0x498] sm:$0xff]
  %v168 = vld [vmem:[%s1 + $0x4a0] sm:$0xff]
  %v169 = vld [vmem:[%s1 + $0x4a8] sm:$0xff]
  %v170 = vld [vmem:[%s1 + $0x4b0] sm:$0xff]
  %v171 = vld [vmem:[%s1 + $0x4b8] sm:$0xff]
  %v172 = vld [vmem:[%s1 + $0x4c0] sm:$0xff]
  %v173 = vld [vmem:[%s1 + $0x4c8] sm:$0xff]
  %v174 = vld [vmem:[%s1 + $0x4d0] sm:$0xff]
  %v175 = vld [vmem:[%s1 + $0x4d8] sm:$0xff]
  %v176 = vld [vmem:[%s1 + $0x4e0] sm:$0xff]
  %v177 = vld [vmem:[%s1 + $0x4e8] sm:$0xff]
  %v178 = vld [vmem:[%s1 + $0x4f0] sm:$0xff]
  %v179 = vld [vmem:[%s1 + $0x4f8] sm:$0xff]
  %v180 = vld [vmem:[%s1 + $0x500] sm:$0xff]
  %v181 = vld [vmem:[%s1 + $0x508] sm:$0xff]
  %v182 = vld [vmem:[%s1 + $0x510] sm:$0xff]
  %v183 = vld [vmem:[%s1 + $0x518] sm:$0xff]
  %v184 = vld [vmem:[%s1 + $0x520] sm:$0xff]
  %v185 = vld [vmem:[%s1 + $0x528] sm:$0xff]
  %v186 = vld [vmem:[%s1 + $0x530] sm:$0xff]
  %v187 = vld [vmem:[%s1 + $0x538] sm:$0xff]
  %v188 = vld [vmem:[%s1 + $0x540] sm:$0xff]
  %v189 = vld [vmem:[%s1 + $0x548] sm:$0xff]
  %v190 = vld [vmem:[%s1 + $0x550] sm:$0xff]
  %v191 = vld [vmem:[%s1 + $0x558] sm:$0xff]
  %v192 = vld [vmem:[%s1 + $0x560] sm:$0xff]
  %v193 = vld [vmem:[%s1 + $0x568] sm:$0xff]
  %v194 = vld [vmem:[%s1 + $0x570] sm:$0xff]
  %v195 = vld [vmem:[%s1 + $0x578] sm:$0xff]
  %v196 = vld [vmem:[%s1 + $0x580] sm:$0xff]
  %v197 = vld [vmem:[%s1 + $0x588] sm:$0xff]
  %v198 = vld [vmem:[%s1 + $0x590] sm:$0xff]
  %v199 = vld [vmem:[%s1 + $0x598] sm:$0xff]
  %v200 = vld [vmem:[%s1 + $0x5a0] sm:$0xff]
  %v201 = vld [vmem:[%s1 + $0x5a8] sm:$0xff]
  %v202 = vld [vmem:[%s1 + $0x5b0] sm:$0xff]
  %v203 = vld [vmem:[%s1 + $0x5b8] sm:$0xff]
  %v204 = vld [vmem:[%s1 + $0x5c0] sm:$0xff]
  %v205 = vld [vmem:[%s1 + $0x5c8] sm:$0xff]
  %v206 = vld [vmem:[%s1 + $0x5d0] sm:$0xff]
  %v207 = vld [vmem:[%s1 + $0x5d8] sm:$0xff]
  %v208 = vld [vmem:[%s1 + $0x5e0] sm:$0xff]
  %v209 = vld [vmem:[%s1 + $0x5e8] sm:$0xff]
  %v210 = vld [vmem:[%s1 + $0x5f0] sm:$0xff]
  %v211 = vld [vmem:[%s1 + $0x5f8] sm:$0xff]
  %v212 = vld [vmem:[%s1 + $0x600] sm:$0xff]
  %v213 = vld [vmem:[%s1 + $0x608] sm:$0xff]
  %v214 = vld [vmem:[%s1 + $0x610] sm:$0xff]
  %v215 = vld [vmem:[%s1 + $0x618] sm:$0xff]
  %v216 = vld [vmem:[%s1 + $0x620] sm:$0xff]
  %v217 = vld [vmem:[%s1 + $0x628] sm:$0xff]
  %v218 = vld [vmem:[%s1 + $0x630] sm:$0xff]
  %v219 = vld [vmem:[%s1 + $0x638] sm:$0xff]
  %v220 = vld [vmem:[%s1 + $0x640] sm:$0xff]
  %v221 = vld [vmem:[%s1 + $0x648] sm:$0xff]
  %v222 = vld [vmem:[%s1 + $0x650] sm:$0xff]
  %v223 = vld [vmem:[%s1 + $0x658] sm:$0xff]
  %v224 = vld [vmem:[%s1 + $0x660] sm:$0xff]
  %v225 = vld [vmem:[%s1 + $0x668] sm:$0xff]
  %v226 = vld [vmem:[%s1 + $0x670] sm:$0xff]
  %v227 = vld [vmem:[%s1 + $0x678] sm:$0xff]
  %v228 = vld [vmem:[%s1 + $0x680] sm:$0xff]
  %v229 = vld [vmem:[%s1 + $0x688] sm:$0xff]
  %v230 = vld [vmem:[%s1 + $0x690] sm:$0xff]
  %v231 = vld [vmem:[%s1 + $0x698] sm:$0xff]
  %v232 = vld [vmem:[%s1 + $0x6a0] sm:$0xff]
  %v233 = vld [vmem:[%s1 + $0x6a8] sm:$0xff]
  %v234 = vld [vmem:[%s1 + $0x6b0] sm:$0xff]
  %v235 = vld [vmem:[%s1 + $0x6b8] sm:$0xff]
  %v236 = vld [vmem:[%s1 + $0x6c0] sm:$0xff]
  %v237 = vld [vmem:[%s1 + $0x6c8] sm:$0xff]
  %v238 = vld [vmem:[%s1 + $0x6d0] sm:$0xff]
  %v239 = vld [vmem:[%s1 + $0x6d8] sm:$0xff]
  %v240 = vld [vmem:[%s1 + $0x6e0] sm:$0xff]
  %v241 = vld [vmem:[%s1 + $0x6e8] sm:$0xff]
  %v242 = vld [vmem:[%s1 + $0x6f0] sm:$0xff]
  %v243 = vld [vmem:[%s1 + $0x6f8] sm:$0xff]
  %v244 = vld [vmem:[%s1 + $0x700] sm:$0xff]
  %v245 = vld [vmem:[%s1 + $0x708] sm:$0xff]
  %v246 = vld [vmem:[%s1 + $0x710] sm:$0xff]
  %v247 = vld [vmem:[%s1 + $0x718] sm:$0xff]
  %v248 = vld [vmem:[%s1 + $0x720] sm:$0xff]
  %v249 = vld [vmem:[%s1 + $0x728] sm:$0xff]
  %v250 = vld [vmem:[%s1 + $0x730] sm:$0xff]
  %v251 = vld [vmem:[%s1 + $0x738] sm:$0xff]
  %v252 = vld [vmem:[%s1 + $0x740] sm:$0xff]
  %v253 = vld [vmem:[%s1 + $0x748] sm:$0xff]
  %v254 = vld [vmem:[%s1 + $0x750] sm:$0xff]
  %v255 = vld [vmem:[%s1 + $0x758] sm:$0xff]
  %v256 = vld [vmem:[%s1 + $0x760] sm:$0xff]
  %v257 = vld [vmem:[%s1 + $0x768] sm:$0xff]
  %v258 = vld [vmem:[%s1 + $0x770] sm:$0xff]
  %v259 = vld [vmem:[%s1 + $0x778] sm:$0xff]
  %v260 = vld [vmem:[%s1 + $0x780] sm:$0xff]
  %v261 = vld [vmem:[%s1 + $0x788] sm:$0xff]
  %v262 = vld [vmem:[%s1 + $0x790] sm:$0xff]
  %v263 = vld [vmem:[%s1 + $0x798] sm:$0xff]
  %v264 = vld [vmem:[%s1 + $0x7a0] sm:$0xff]
  %v265 = vld [vmem:[%s1 + $0x7a8] sm:$0xff]
  %v266 = vld [vmem:[%s1 + $0x7b0] sm:$0xff]
  %v267 = vld [vmem:[%s1 + $0x7b8] sm:$0xff]
  %v268 = vld [vmem:[%s1 + $0x7c0] sm:$0xff]
  %v269 = vld [vmem:[%s1 + $0x7c8] sm:$0xff]
  %v270 = vld [vmem:[%s1 + $0x7d0] sm:$0xff]
  %v271 = vld [vmem:[%s1 + $0x7d8] sm:$0xff]
  %v272 = vld [vmem:[%s1 + $0x7e0] sm:$0xff]
  %v273 = vld [vmem:[%s1 + $0x7e8] sm:$0xff]
  %v274 = vld [vmem:[%s1 + $0x7f0] sm:$0xff]
  %v275 = vld [vmem:[%s1 + $0x7f8] sm:$0xff]
  %v276 = vld [vmem:[%s1 + $0x800] sm:$0xff]
  %v277 = vld [vmem:[%s1 + $0x808] sm:$0xff]
  %v278 = vld [vmem:[%s1 + $0x810] sm:$0xff]
  %v279 = vld [vmem:[%s1 + $0x818] sm:$0xff]
  %v280 = vld [vmem:[%s1 + $0x820] sm:$0xff]
  %v281 = vld [vmem:[%s1 + $0x828] sm:$0xff]
  %v282 = vld [vmem:[%s1 + $0x830] sm:$0xff]
  %v283 = vld [vmem:[%s1 + $0x838] sm:$0xff]
  %v284 = vld [vmem:[%s1 + $0x840] sm:$0xff]
  %v285 = vld [vmem:[%s1 + $0x848] sm:$0xff]
  %v286 = vld [vmem:[%s1 + $0x850] sm:$0xff]
  %v287 = vld [vmem:[%s1 + $0x858] sm:$0xff]
  %v288 = vld [vmem:[%s1 + $0x860] sm:$0xff]
  %v289 = vld [vmem:[%s1 + $0x868] sm:$0xff]
  %v290 = vld [vmem:[%s1 + $0x870] sm:$0xff]
  %v291 = vld [vmem:[%s1 + $0x878] sm:$0xff]
  %v292 = vld [vmem:[%s1 + $0x880] sm:$0xff]
  %v293 = vld [vmem:[%s1 + $0x888] sm:$0xff]
  %v294 = vld [vmem:[%s1 + $0x890] sm:$0xff]
  %v295 = vld [vmem:[%s1 + $0x898] sm:$0xff]
  %v296 = vld [vmem:[%s1 + $0x8a0] sm:$0xff]
  %v297 = vld [vmem:[%s1 + $0x8a8] sm:$0xff]
  %v298 = vld [vmem:[%s1 + $0x8b0] sm:$0xff]
  %v299 = vld [vmem:[%s1 + $0x8b8] sm:$0xff]
  %v300 = vld [vmem:[%s1 + $0x8c0] sm:$0xff]
  %v301 = vld [vmem:[%s1 + $0x8c8] sm:$0xff]
  %v302 = vld [vmem:[%s1 + $0x8d0] sm:$0xff]
  %v303 = vld [vmem:[%s1 + $0x8d8] sm:$0xff]
  %v304 = vld [vmem:[%s1 + $0x8e0] sm:$0xff]
  %v305 = vld [vmem:[%s1 + $0x8e8] sm:$0xff]
  %v306 = vld [vmem:[%s1 + $0x8f0] sm:$0xff]
  %v307 = vld [vmem:[%s1 + $0x8f8] sm:$0xff]
  %v308 = vld [vmem:[%s1 + $0x900] sm:$0xff]
  %v309 = vld [vmem:[%s1 + $0x908] sm:$0xff]
  %v310 = vld [vmem:[%s1 + $0x910] sm:$0xff]
  %v311 = vld [vmem:[%s1 + $0x918] sm:$0xff]
  %v312 = vld [vmem:[%s1 + $0x920] sm:$0xff]
  %v313 = vld [vmem:[%s1 + $0x928] sm:$0xff]
  %v314 = vld [vmem:[%s1 + $0x930] sm:$0xff]
  %v315 = vld [vmem:[%s1 + $0x938] sm:$0xff]
  %v316 = vld [vmem:[%s1 + $0x940] sm:$0xff]
  %v317 = vld [vmem:[%s1 + $0x948] sm:$0xff]
  %v318 = vld [vmem:[%s1 + $0x950] sm:$0xff]
  %v319 = vld [vmem:[%s1 + $0x958] sm:$0xff]
  %v320 = vld [vmem:[%s1 + $0x960] sm:$0xff]
  %v321 = vld [vmem:[%s1 + $0x968] sm:$0xff]
  %v322 = vld [vmem:[%s1 + $0x970] sm:$0xff]
  %v323 = vld [vmem:[%s1 + $0x978] sm:$0xff]
  %v324 = vld [vmem:[%s1 + $0x980] sm:$0xff]
  %v325 = vld [vmem:[%s1 + $0x988] sm:$0xff]
  %v326 = vld [vmem:[%s1 + $0x990] sm:$0xff]
  %v327 = vld [vmem:[%s1 + $0x998] sm:$0xff]
  %v328 = vld [vmem:[%s1 + $0x9a0] sm:$0xff]
  %v329 = vld [vmem:[%s1 + $0x9a8] sm:$0xff]
  %v330 = vld [vmem:[%s1 + $0x9b0] sm:$0xff]
  %v331 = vld [vmem:[%s1 + $0x9b8] sm:$0xff]
  %v332 = vld [vmem:[%s1 + $0x9c0] sm:$0xff]
  %v333 = vld [vmem:[%s1 + $0x9c8] sm:$0xff]
  %v334 = vld [vmem:[%s1 + $0x9d0] sm:$0xff]
  %v335 = vld [vmem:[%s1 + $0x9d8] sm:$0xff]
  %v336 = vld [vmem:[%s1 + $0x9e0] sm:$0xff]
  %v337 = vld [vmem:[%s1 + $0x9e8] sm:$0xff]
  %v338 = vld [vmem:[%s1 + $0x9f0] sm:$0xff]
  %v339 = vld [vmem:[%s1 + $0x9f8] sm:$0xff]
  %v340 = vld [vmem:[%s1 + $0xa00] sm:$0xff]
  %v341 = vld [vmem:[%s1 + $0xa08] sm:$0xff]
  %v342 = vld [vmem:[%s1 + $0xa10] sm:$0xff]
  %v343 = vld [vmem:[%s1 + $0xa18] sm:$0xff]
  %v344 = vld [vmem:[%s1 + $0xa20] sm:$0xff]
  %v345 = vld [vmem:[%s1 + $0xa28] sm:$0xff]
  %v346 = vld [vmem:[%s1 + $0xa30] sm:$0xff]
  %v347 = vld [vmem:[%s1 + $0xa38] sm:$0xff]
  %v348 = vld [vmem:[%s1 + $0xa40] sm:$0xff]
  %v349 = vld [vmem:[%s1 + $0xa48] sm:$0xff]
  %v350 = vld [vmem:[%s1 + $0xa50] sm:$0xff]
  %v351 = vld [vmem:[%s1 + $0xa58] sm:$0xff]
  %v352 = vld [vmem:[%s1 + $0xa60] sm:$0xff]
  %v353 = vld [vmem:[%s1 + $0xa68] sm:$0xff]
  %v354 = vld [vmem:[%s1 + $0xa70] sm:$0xff]
  %v355 = vld [vmem:[%s1 + $0xa78] sm:$0xff]
  %v356 = vld [vmem:[%s1 + $0xa80] sm:$0xff]
  %v357 = vld [vmem:[%s1 + $0xa88] sm:$0xff]
  %v358 = vld [vmem:[%s1 + $0xa90] sm:$0xff]
  %v359 = vld [vmem:[%s1 + $0xa98] sm:$0xff]
  %v360 = vld [vmem:[%s1 + $0xaa0] sm:$0xff]
  %v361 = vld [vmem:[%s1 + $0xaa8] sm:$0xff]
  %v362 = vld [vmem:[%s1 + $0xab0] sm:$0xff]
  %v363 = vld [vmem:[%s1 + $0xab8] sm:$0xff]
  %v364 = vld [vmem:[%s1 + $0xac0] sm:$0xff]
  %v365 = vld [vmem:[%s1 + $0xac8] sm:$0xff]
  %v366 = vld [vmem:[%s1 + $0xad0] sm:$0xff]
  %v367 = vld [vmem:[%s1 + $0xad8] sm:$0xff]
  %v368 = vld [vmem:[%s1 + $0xae0] sm:$0xff]
  %v369 = vld [vmem:[%s1 + $0xae8] sm:$0xff]
  %v370 = vld [vmem:[%s1 + $0xaf0] sm:$0xff]
  %v371 = vld [vmem:[%s1 + $0xaf8] sm:$0xff]
  %v372 = vld [vmem:[%s1 + $0xb00] sm:$0xff]
  %v373 = vld [vmem:[%s1 + $0xb08] sm:$0xff]
  %v374 = vld [vmem:[%s1 + $0xb10] sm:$0xff]
  %v375 = vld [vmem:[%s1 + $0xb18] sm:$0xff]
  %v376 = vld [vmem:[%s1 + $0xb20] sm:$0xff]
  %v377 = vld [vmem:[%s1 + $0xb28] sm:$0xff]
  %v378 = vld [vmem:[%s1 + $0xb30] sm:$0xff]
  %v379 = vld [vmem:[%s1 + $0xb38] sm:$0xff]
  %v380 = vld [vmem:[%s1 + $0xb40] sm:$0xff]
  %v381 = vld [vmem:[%s1 + $0xb48] sm:$0xff]
  %v382 = vld [vmem:[%s1 + $0xb50] sm:$0xff]
  %v383 = vld [vmem:[%s1 + $0xb58] sm:$0xff]
  %v384 = vld [vmem:[%s1 + $0xb60] sm:$0xff]
  %v385 = vld [vmem:[%s1 + $0xb68] sm:$0xff]
  %v386 = vld [vmem:[%s1 + $0xb70] sm:$0xff]
  %v387 = vld [vmem:[%s1 + $0xb78] sm:$0xff]
  %v388 = vld [vmem:[%s1 + $0xb80] sm:$0xff]
  %v389 = vld [vmem:[%s1 + $0xb88] sm:$0xff]
  %v390 = vld [vmem:[%s1 + $0xb90] sm:$0xff]
  %v391 = vld [vmem:[%s1 + $0xb98] sm:$0xff]
  %v392 = vld [vmem:[%s1 + $0xba0] sm:$0xff]
  %v393 = vld [vmem:[%s1 + $0xba8] sm:$0xff]
  %v394 = vld [vmem:[%s1 + $0xbb0] sm:$0xff]
  %v395 = vld [vmem:[%s1 + $0xbb8] sm:$0xff]
  %v396 = vld [vmem:[%s1 + $0xbc0] sm:$0xff]
  %v397 = vld [vmem:[%s1 + $0xbc8] sm:$0xff]
  %v398 = vld [vmem:[%s1 + $0xbd0] sm:$0xff]
  %v399 = vld [vmem:[%s1 + $0xbd8] sm:$0xff]
  %v400 = vld [vmem:[%s1 + $0xbe0] sm:$0xff]
  %v401 = vld [vmem:[%s1 + $0xbe8] sm:$0xff]
  %v402 = vld [vmem:[%s1 + $0xbf0] sm:$0xff]
  %v403 = vld [vmem:[%s1 + $0xbf8] sm:$0xff]
  %v404 = vld [vmem:[%s1 + $0xc00] sm:$0xff]
  %v405 = vld [vmem:[%s1 + $0xc08] sm:$0xff]
  %v406 = vld [vmem:[%s1 + $0xc10] sm:$0xff]
  %v407 = vld [vmem:[%s1 + $0xc18] sm:$0xff]
  %v408 = vld [vmem:[%s1 + $0xc20] sm:$0xff]
  %v409 = vld [vmem:[%s1 + $0xc28] sm:$0xff]
  %v410 = vld [vmem:[%s1 + $0xc30] sm:$0xff]
  %v411 = vld [vmem:[%s1 + $0xc38] sm:$0xff]
  %v412 = vld [vmem:[%s1 + $0xc40] sm:$0xff]
  %v413 = vld [vmem:[%s1 + $0xc48] sm:$0xff]
  %v414 = vld [vmem:[%s1 + $0xc50] sm:$0xff]
  %v415 = vld [vmem:[%s1 + $0xc58] sm:$0xff]
  %v416 = vld [vmem:[%s1 + $0xc60] sm:$0xff]
  %v417 = vld [vmem:[%s1 + $0xc68] sm:$0xff]
  %v418 = vld [vmem:[%s1 + $0xc70] sm:$0xff]
  %v419 = vld [vmem:[%s1 + $0xc78] sm:$0xff]
  %v420 = vld [vmem:[%s1 + $0xc80] sm:$0xff]
  %v421 = vld [vmem:[%s1 + $0xc88] sm:$0xff]
  %v422 = vld [vmem:[%s1 + $0xc90] sm:$0xff]
  %v423 = vld [vmem:[%s1 + $0xc98] sm:$0xff]
  %v424 = vld [vmem:[%s1 + $0xca0] sm:$0xff]
  %v425 = vld [vmem:[%s1 + $0xca8] sm:$0xff]
  %v426 = vld [vmem:[%s1 + $0xcb0] sm:$0xff]
  %v427 = vld [vmem:[%s1 + $0xcb8] sm:$0xff]
  %v428 = vld [vmem:[%s1 + $0xcc0] sm:$0xff]
  %v429 = vld [vmem:[%s1 + $0xcc8] sm:$0xff]
  %v430 = vld [vmem:[%s1 + $0xcd0] sm:$0xff]
  %v431 = vld [vmem:[%s1 + $0xcd8] sm:$0xff]
  %v432 = vld [vmem:[%s1 + $0xce0] sm:$0xff]
  %v433 = vld [vmem:[%s1 + $0xce8] sm:$0xff]
  %v434 = vld [vmem:[%s1 + $0xcf0] sm:$0xff]
  %v435 = vld [vmem:[%s1 + $0xcf8] sm:$0xff]
  %v436 = vld [vmem:[%s1 + $0xd00] sm:$0xff]
  %v437 = vld [vmem:[%s1 + $0xd08] sm:$0xff]
  %v438 = vld [vmem:[%s1 + $0xd10] sm:$0xff]
  %v439 = vld [vmem:[%s1 + $0xd18] sm:$0xff]
  %v440 = vld [vmem:[%s1 + $0xd20] sm:$0xff]
  %v441 = vld [vmem:[%s1 + $0xd28] sm:$0xff]
  %v442 = vld [vmem:[%s1 + $0xd30] sm:$0xff]
  %v443 = vld [vmem:[%s1 + $0xd38] sm:$0xff]
  %v444 = vld [vmem:[%s1 + $0xd40] sm:$0xff]
  %v445 = vld [vmem:[%s1 + $0xd48] sm:$0xff]
  %v446 = vld [vmem:[%s1 + $0xd50] sm:$0xff]
  %v447 = vld [vmem:[%s1 + $0xd58] sm:$0xff]
  %v448 = vld [vmem:[%s1 + $0xd60] sm:$0xff]
  %v449 = vld [vmem:[%s1 + $0xd68] sm:$0xff]
  %v450 = vld [vmem:[%s1 + $0xd70] sm:$0xff]
  %v451 = vld [vmem:[%s1 + $0xd78] sm:$0xff]
  %v452 = vld [vmem:[%s1 + $0xd80] sm:$0xff]
  %v453 = vld [vmem:[%s1 + $0xd88] sm:$0xff]
  %v454 = vld [vmem:[%s1 + $0xd90] sm:$0xff]
  %v455 = vld [vmem:[%s1 + $0xd98] sm:$0xff]
  %v456 = vld [vmem:[%s1 + $0xda0] sm:$0xff]
  %v457 = vld [vmem:[%s1 + $0xda8] sm:$0xff]
  %v458 = vld [vmem:[%s1 + $0xdb0] sm:$0xff]
  %v459 = vld [vmem:[%s1 + $0xdb8] sm:$0xff]
  %v460 = vld [vmem:[%s1 + $0xdc0] sm:$0xff]
  %v461 = vld [vmem:[%s1 + $0xdc8] sm:$0xff]
  %v462 = vld [vmem:[%s1 + $0xdd0] sm:$0xff]
  %v463 = vld [vmem:[%s1 + $0xdd8] sm:$0xff]
  %v464 = vld [vmem:[%s1 + $0xde0] sm:$0xff]
  %v465 = vld [vmem:[%s1 + $0xde8] sm:$0xff]
  %v466 = vld [vmem:[%s1 + $0xdf0] sm:$0xff]
  %v467 = vld [vmem:[%s1 + $0xdf8] sm:$0xff]
  %v468 = vld [vmem:[%s1 + $0xe00] sm:$0xff]
  %v469 = vld [vmem:[%s1 + $0xe08] sm:$0xff]
  %v470 = vld [vmem:[%s1 + $0xe10] sm:$0xff]
  %v471 = vld [vmem:[%s1 + $0xe18] sm:$0xff]
  %v472 = vld [vmem:[%s1 + $0xe20] sm:$0xff]
  %v473 = vld [vmem:[%s1 + $0xe28] sm:$0xff]
  %v474 = vld [vmem:[%s1 + $0xe30] sm:$0xff]
  %v475 = vld [vmem:[%s1 + $0xe38] sm:$0xff]
  %v476 = vld [vmem:[%s1 + $0xe40] sm:$0xff]
  %v477 = vld [vmem:[%s1 + $0xe48] sm:$0xff]
  %v478 = vld [vmem:[%s1 + $0xe50] sm:$0xff]
  %v479 = vld [vmem:[%s1 + $0xe58] sm:$0xff]
  %v480 = vld [vmem:[%s1 + $0xe60] sm:$0xff]
  %v481 = vld [vmem:[%s1 + $0xe68] sm:$0xff]
  %v482 = vld [vmem:[%s1 + $0xe70] sm:$0xff]
  %v483 = vld [vmem:[%s1 + $0xe78] sm:$0xff]
  %v484 = vld [vmem:[%s1 + $0xe80] sm:$0xff]
  %v485 = vld [vmem:[%s1 + $0xe88] sm:$0xff]
  %v486 = vld [vmem:[%s1 + $0xe90] sm:$0xff]
  %v487 = vld [vmem:[%s1 + $0xe98] sm:$0xff]
  %v488 = vld [vmem:[%s1 + $0xea0] sm:$0xff]
  %v489 = vld [vmem:[%s1 + $0xea8] sm:$0xff]
  %v490 = vld [vmem:[%s1 + $0xeb0] sm:$0xff]
  %v491 = vld [vmem:[%s1 + $0xeb8] sm:$0xff]
  %v492 = vld [vmem:[%s1 + $0xec0] sm:$0xff]
  %v493 = vld [vmem:[%s1 + $0xec8] sm:$0xff]
  %v494 = vld [vmem:[%s1 + $0xed0] sm:$0xff]
  %v495 = vld [vmem:[%s1 + $0xed8] sm:$0xff]
  %v496 = vld [vmem:[%s1 + $0xee0] sm:$0xff]
  %v497 = vld [vmem:[%s1 + $0xee8] sm:$0xff]
  %v498 = vld [vmem:[%s1 + $0xef0] sm:$0xff]
  %v499 = vld [vmem:[%s1 + $0xef8] sm:$0xff]
  %v500 = vld [vmem:[%s1 + $0xf00] sm:$0xff]
  %v501 = vld [vmem:[%s1 + $0xf08] sm:$0xff]
  %v502 = vld [vmem:[%s1 + $0xf10] sm:$0xff]
  %v503 = vld [vmem:[%s1 + $0xf18] sm:$0xff]
  %v504 = vld [vmem:[%s1 + $0xf20] sm:$0xff]
  %v505 = vld [vmem:[%s1 + $0xf28] sm:$0xff]
  %v506 = vld [vmem:[%s1 + $0xf30] sm:$0xff]
  %v507 = vld [vmem:[%s1 + $0xf38] sm:$0xff]
  %v508 = vld [vmem:[%s1 + $0xf40] sm:$0xff]
  %v509 = vld [vmem:[%s1 + $0xf48] sm:$0xff]
  %v510 = vld [vmem:[%s1 + $0xf50] sm:$0xff]
  %v511 = vld [vmem:[%s1 + $0xf58] sm:$0xff]
  %v512 = vld [vmem:[%s1 + $0xf60] sm:$0xff]
  %v513 = vld [vmem:[%s1 + $0xf68] sm:$0xff]
  %v514 = vld [vmem:[%s1 + $0xf70] sm:$0xff]
  %v515 = vld [vmem:[%s1 + $0xf78] sm:$0xff]
  %v516 = vld [vmem:[%s1 + $0xf80] sm:$0xff]
  %v517 = vld [vmem:[%s1 + $0xf88] sm:$0xff]
  %v518 = vld [vmem:[%s1 + $0xf90] sm:$0xff]
  %v519 = vld [vmem:[%s1 + $0xf98] sm:$0xff]
  %v520 = vld [vmem:[%s1 + $0xfa0] sm:$0xff]
  %v521 = vld [vmem:[%s1 + $0xfa8] sm:$0xff]
  %v522 = vld [vmem:[%s1 + $0xfb0] sm:$0xff]
  %v523 = vld [vmem:[%s1 + $0xfb8] sm:$0xff]
  %v524 = vld [vmem:[%s1 + $0xfc0] sm:$0xff]
  %v525 = vld [vmem:[%s1 + $0xfc8] sm:$0xff]
  %v526 = vld [vmem:[%s1 + $0xfd0] sm:$0xff]
  %v527 = vld [vmem:[%s1 + $0xfd8] sm:$0xff]
  %v528 = vld [vmem:[%s1 + $0xfe0] sm:$0xff]
  %v529 = vld [vmem:[%s1 + $0xfe8] sm:$0xff]
  %v530 = vld [vmem:[%s1 + $0xff0] sm:$0xff]
  %v531 = vld [vmem:[%s1 + $0xff8] sm:$0xff]
  %v532 = vld [vmem:[%s1 + $0x1000] sm:$0xff]
  %v533 = vld [vmem:[%s1 + $0x1008] sm:$0xff]
  %v534 = vld [vmem:[%s1 + $0x1010] sm:$0xff]
  %v535 = vld [vmem:[%s1 + $0x1018] sm:$0xff]
  %v536 = vld [vmem:[%s1 + $0x1020] sm:$0xff]
  %v537 = vld [vmem:[%s1 + $0x1028] sm:$0xff]
  %v538 = vld [vmem:[%s1 + $0x1030] sm:$0xff]
  %v539 = vld [vmem:[%s1 + $0x1038] sm:$0xff]
  %v540 = vld [vmem:[%s1 + $0x1040] sm:$0xff]
  %v541 = vld [vmem:[%s1 + $0x1048] sm:$0xff]
  %v542 = vld [vmem:[%s1 + $0x1050] sm:$0xff]
  %v543 = vld [vmem:[%s1 + $0x1058] sm:$0xff]
  %v544 = vld [vmem:[%s1 + $0x1060] sm:$0xff]
  %v545 = vld [vmem:[%s1 + $0x1068] sm:$0xff]
  %v546 = vld [vmem:[%s1 + $0x1070] sm:$0xff]
  %v547 = vld [vmem:[%s1 + $0x1078] sm:$0xff]
  %v548 = vld [vmem:[%s1 + $0x1080] sm:$0xff]
  %v549 = vld [vmem:[%s1 + $0x1088] sm:$0xff]
  %v550 = vld [vmem:[%s1 + $0x1090] sm:$0xff]
  %v551 = vld [vmem:[%s1 + $0x1098] sm:$0xff]
  %v552 = vld [vmem:[%s1 + $0x10a0] sm:$0xff]
  %v553 = vld [vmem:[%s1 + $0x10a8] sm:$0xff]
  %v554 = vld [vmem:[%s1 + $0x10b0] sm:$0xff]
  %v555 = vld [vmem:[%s1 + $0x10b8] sm:$0xff]
  %v556 = vld [vmem:[%s1 + $0x10c0] sm:$0xff]
  %v557 = vld [vmem:[%s1 + $0x10c8] sm:$0xff]
  %v558 = vld [vmem:[%s1 + $0x10d0] sm:$0xff]
  %v559 = vld [vmem:[%s1 + $0x10d8] sm:$0xff]
  %v560 = vld [vmem:[%s1 + $0x10e0] sm:$0xff]
  %v561 = vld [vmem:[%s1 + $0x10e8] sm:$0xff]
  %v562 = vld [vmem:[%s1 + $0x10f0] sm:$0xff]
  %v563 = vld [vmem:[%s1 + $0x10f8] sm:$0xff]
  %v564 = vld [vmem:[%s1 + $0x1100] sm:$0xff]
  %v565 = vld [vmem:[%s1 + $0x1108] sm:$0xff]
  %v566 = vld [vmem:[%s1 + $0x1110] sm:$0xff]
  %v567 = vld [vmem:[%s1 + $0x1118] sm:$0xff]
  %v568 = vld [vmem:[%s1 + $0x1120] sm:$0xff]
  %v569 = vld [vmem:[%s1 + $0x1128] sm:$0xff]
  %v570 = vld [vmem:[%s1 + $0x1130] sm:$0xff]
  %v571 = vld [vmem:[%s1 + $0x1138] sm:$0xff]
  %v572 = vld [vmem:[%s1 + $0x1140] sm:$0xff]
  %v573 = vld [vmem:[%s1 + $0x1148] sm:$0xff]
  %v574 = vld [vmem:[%s1 + $0x1150] sm:$0xff]
  %v575 = vld [vmem:[%s1 + $0x1158] sm:$0xff]
  %v576 = vld [vmem:[%s1 + $0x1160] sm:$0xff]
  %v577 = vld [vmem:[%s1 + $0x1168] sm:$0xff]
  %v578 = vld [vmem:[%s1 + $0x1170] sm:$0xff]
  %v579 = vld [vmem:[%s1 + $0x1178] sm:$0xff]
  %v580 = vld [vmem:[%s1 + $0x1180] sm:$0xff]
  %v581 = vld [vmem:[%s1 + $0x1188] sm:$0xff]
  %v582 = vld [vmem:[%s1 + $0x1190] sm:$0xff]
  %v583 = vld [vmem:[%s1 + $0x1198] sm:$0xff]
  %v584 = vld [vmem:[%s1 + $0x11a0] sm:$0xff]
  %v585 = vld [vmem:[%s1 + $0x11a8] sm:$0xff]
  %v586 = vld [vmem:[%s1 + $0x11b0] sm:$0xff]
  %v587 = vld [vmem:[%s1 + $0x11b8] sm:$0xff]
  %v588 = vld [vmem:[%s1 + $0x11c0] sm:$0xff]
  %v589 = vld [vmem:[%s1 + $0x11c8] sm:$0xff]
  %v590 = vld [vmem:[%s1 + $0x11d0] sm:$0xff]
  %v591 = vld [vmem:[%s1 + $0x11d8] sm:$0xff]
  %v592 = vld [vmem:[%s1 + $0x11e0] sm:$0xff]
  %v593 = vld [vmem:[%s1 + $0x11e8] sm:$0xff]
  %v594 = vld [vmem:[%s1 + $0x11f0] sm:$0xff]
  %v595 = vld [vmem:[%s1 + $0x11f8] sm:$0xff]
  %v596 = vld [vmem:[%s1 + $0x1200] sm:$0xff]
  %v597 = vld [vmem:[%s1 + $0x1208] sm:$0xff]
  %v598 = vld [vmem:[%s1 + $0x1210] sm:$0xff]
  %v599 = vld [vmem:[%s1 + $0x1218] sm:$0xff]
  %v600 = vld [vmem:[%s1 + $0x1220] sm:$0xff]
  %v601 = vld [vmem:[%s1 + $0x1228] sm:$0xff]
  %v602 = vld [vmem:[%s1 + $0x1230] sm:$0xff]
  %v603 = vld [vmem:[%s1 + $0x1238] sm:$0xff]
  %v604 = vld [vmem:[%s1 + $0x1240] sm:$0xff]
  %v605 = vld [vmem:[%s1 + $0x1248] sm:$0xff]
  %v606 = vld [vmem:[%s1 + $0x1250] sm:$0xff]
  %v607 = vld [vmem:[%s1 + $0x1258] sm:$0xff]
  %v608 = vld [vmem:[%s1 + $0x1260] sm:$0xff]
  %v609 = vld [vmem:[%s1 + $0x1268] sm:$0xff]
  %v610 = vld [vmem:[%s1 + $0x1270] sm:$0xff]
  %v611 = vld [vmem:[%s1 + $0x1278] sm:$0xff]
  %v612 = vld [vmem:[%s1 + $0x1280] sm:$0xff]
  %v613 = vld [vmem:[%s1 + $0x1288] sm:$0xff]
  %v614 = vld [vmem:[%s1 + $0x1290] sm:$0xff]
  %v615 = vld [vmem:[%s1 + $0x1298] sm:$0xff]
  %v616 = vld [vmem:[%s1 + $0x12a0] sm:$0xff]
  %v617 = vld [vmem:[%s1 + $0x12a8] sm:$0xff]
  %v618 = vld [vmem:[%s1 + $0x12b0] sm:$0xff]
  %v619 = vld [vmem:[%s1 + $0x12b8] sm:$0xff]
  %v620 = vld [vmem:[%s1 + $0x12c0] sm:$0xff]
  %v621 = vld [vmem:[%s1 + $0x12c8] sm:$0xff]
  %v622 = vld [vmem:[%s1 + $0x12d0] sm:$0xff]
  %v623 = vld [vmem:[%s1 + $0x12d8] sm:$0xff]
  %v624 = vld [vmem:[%s1 + $0x12e0] sm:$0xff]
  %v625 = vld [vmem:[%s1 + $0x12e8] sm:$0xff]
  %v626 = vld [vmem:[%s1 + $0x12f0] sm:$0xff]
  %v627 = vld [vmem:[%s1 + $0x12f8] sm:$0xff]
  %v628 = vld [vmem:[%s1 + $0x1300] sm:$0xff]
  %v629 = vld [vmem:[%s1 + $0x1308] sm:$0xff]
  %v630 = vld [vmem:[%s1 + $0x1310] sm:$0xff]
  %v631 = vld [vmem:[%s1 + $0x1318] sm:$0xff]
  %v632 = vld [vmem:[%s1 + $0x1320] sm:$0xff]
  %v633 = vld [vmem:[%s1 + $0x1328] sm:$0xff]
  %v634 = vld [vmem:[%s1 + $0x1330] sm:$0xff]
  %v635 = vld [vmem:[%s1 + $0x1338] sm:$0xff]
  %v636 = vld [vmem:[%s1 + $0x1340] sm:$0xff]
  %v637 = vld [vmem:[%s1 + $0x1348] sm:$0xff]
  %v638 = vld [vmem:[%s1 + $0x1350] sm:$0xff]
  %v639 = vld [vmem:[%s1 + $0x1358] sm:$0xff]
  %v640 = vld [vmem:[%s1 + $0x1360] sm:$0xff]
  %v641 = vld [vmem:[%s1 + $0x1368] sm:$0xff]
  %v642 = vld [vmem:[%s1 + $0x1370] sm:$0xff]
  %v643 = vld [vmem:[%s1 + $0x1378] sm:$0xff]
  %v644 = vld [vmem:[%s1 + $0x1380] sm:$0xff]
  %v645 = vld [vmem:[%s1 + $0x1388] sm:$0xff]
  %v646 = vld [vmem:[%s1 + $0x1390] sm:$0xff]
  %v647 = vld [vmem:[%s1 + $0x1398] sm:$0xff]
  %v648 = vld [vmem:[%s1 + $0x13a0] sm:$0xff]
  %v649 = vld [vmem:[%s1 + $0x13a8] sm:$0xff]
  %v650 = vld [vmem:[%s1 + $0x13b0] sm:$0xff]
  %v651 = vld [vmem:[%s1 + $0x13b8] sm:$0xff]
  %v652 = vld [vmem:[%s1 + $0x13c0] sm:$0xff]
  %v653 = vld [vmem:[%s1 + $0x13c8] sm:$0xff]
  %v654 = vld [vmem:[%s1 + $0x13d0] sm:$0xff]
  %v655 = vld [vmem:[%s1 + $0x13d8] sm:$0xff]
  %v656 = vld [vmem:[%s1 + $0x13e0] sm:$0xff]
  %v657 = vld [vmem:[%s1 + $0x13e8] sm:$0xff]
  %v658 = vld [vmem:[%s1 + $0x13f0] sm:$0xff]
  %v659 = vld [vmem:[%s1 + $0x13f8] sm:$0xff]
  %v660 = vld [vmem:[%s1 + $0x1400] sm:$0xff]
  %v661 = vld [vmem:[%s1 + $0x1408] sm:$0xff]
  %v662 = vld [vmem:[%s1 + $0x1410] sm:$0xff]
  %v663 = vld [vmem:[%s1 + $0x1418] sm:$0xff]
  %v664 = vld [vmem:[%s1 + $0x1420] sm:$0xff]
  %v665 = vld [vmem:[%s1 + $0x1428] sm:$0xff]
  %v666 = vld [vmem:[%s1 + $0x1430] sm:$0xff]
  %v667 = vld [vmem:[%s1 + $0x1438] sm:$0xff]
  %v668 = vld [vmem:[%s1 + $0x1440] sm:$0xff]
  %v669 = vld [vmem:[%s1 + $0x1448] sm:$0xff]
  %v670 = vld [vmem:[%s1 + $0x1450] sm:$0xff]
  %v671 = vld [vmem:[%s1 + $0x1458] sm:$0xff]
  %v672 = vld [vmem:[%s1 + $0x1460] sm:$0xff]
  %v673 = vld [vmem:[%s1 + $0x1468] sm:$0xff]
  %v674 = vld [vmem:[%s1 + $0x1470] sm:$0xff]
  %v675 = vld [vmem:[%s1 + $0x1478] sm:$0xff]
  %v676 = vld [vmem:[%s1 + $0x1480] sm:$0xff]
  %v677 = vld [vmem:[%s1 + $0x1488] sm:$0xff]
  %v678 = vld [vmem:[%s1 + $0x1490] sm:$0xff]
  %v679 = vld [vmem:[%s1 + $0x1498] sm:$0xff]
  %v680 = vld [vmem:[%s1 + $0x14a0] sm:$0xff]
  %v681 = vld [vmem:[%s1 + $0x14a8] sm:$0xff]
  %v682 = vld [vmem:[%s1 + $0x14b0] sm:$0xff]
  %v683 = vld [vmem:[%s1 + $0x14b8] sm:$0xff]
  %v684 = vld [vmem:[%s1 + $0x14c0] sm:$0xff]
  %v685 = vld [vmem:[%s1 + $0x14c8] sm:$0xff]
  %v686 = vld [vmem:[%s1 + $0x14d0] sm:$0xff]
  %v687 = vld [vmem:[%s1 + $0x14d8] sm:$0xff]
  %v688 = vld [vmem:[%s1 + $0x14e0] sm:$0xff]
  %v689 = vld [vmem:[%s1 + $0x14e8] sm:$0xff]
  %v690 = vld [vmem:[%s1 + $0x14f0] sm:$0xff]
  %v691 = vld [vmem:[%s1 + $0x14f8] sm:$0xff]
  %v692 = vld [vmem:[%s1 + $0x1500] sm:$0xff]
  %v693 = vld [vmem:[%s1 + $0x1508] sm:$0xff]
  %v694 = vld [vmem:[%s1 + $0x1510] sm:$0xff]
  %v695 = vld [vmem:[%s1 + $0x1518] sm:$0xff]
  %v696 = vld [vmem:[%s1 + $0x1520] sm:$0xff]
  %v697 = vld [vmem:[%s1 + $0x1528] sm:$0xff]
  %v698 = vld [vmem:[%s1 + $0x1530] sm:$0xff]
  %v699 = vld [vmem:[%s1 + $0x1538] sm:$0xff]
  %v700 = vld [vmem:[%s1 + $0x1540] sm:$0xff]
  %v701 = vld [vmem:[%s1 + $0x1548] sm:$0xff]
  %v702 = vld [vmem:[%s1 + $0x1550] sm:$0xff]
  %v703 = vld [vmem:[%s1 + $0x1558] sm:$0xff]
  %v704 = vld [vmem:[%s1 + $0x1560] sm:$0xff]
  %v705 = vld [vmem:[%s1 + $0x1568] sm:$0xff]
  %v706 = vld [vmem:[%s1 + $0x1570] sm:$0xff]
  %v707 = vld [vmem:[%s1 + $0x1578] sm:$0xff]
  %v708 = vld [vmem:[%s1 + $0x1580] sm:$0xff]
  %v709 = vld [vmem:[%s1 + $0x1588] sm:$0xff]
  %v710 = vld [vmem:[%s1 + $0x1590] sm:$0xff]
  %v711 = vld [vmem:[%s1 + $0x1598] sm:$0xff]
  %v712 = vld [vmem:[%s1 + $0x15a0] sm:$0xff]
  %v713 = vld [vmem:[%s1 + $0x15a8] sm:$0xff]
  %v714 = vld [vmem:[%s1 + $0x15b0] sm:$0xff]
  %v715 = vld [vmem:[%s1 + $0x15b8] sm:$0xff]
  %v716 = vld [vmem:[%s1 + $0x15c0] sm:$0xff]
  %v717 = vld [vmem:[%s1 + $0x15c8] sm:$0xff]
  %v718 = vld [vmem:[%s1 + $0x15d0] sm:$0xff]
  %v719 = vld [vmem:[%s1 + $0x15d8] sm:$0xff]
  %v720 = vld [vmem:[%s1 + $0x15e0] sm:$0xff]
  %v721 = vld [vmem:[%s1 + $0x15e8] sm:$0xff]
  %v722 = vld [vmem:[%s1 + $0x15f0] sm:$0xff]
  %v723 = vld [vmem:[%s1 + $0x15f8] sm:$0xff]
  %v724 = vld [vmem:[%s1 + $0x1600] sm:$0xff]
  %v725 = vld [vmem:[%s1 + $0x1608] sm:$0xff]
  %v726 = vld [vmem:[%s1 + $0x1610] sm:$0xff]
  %v727 = vld [vmem:[%s1 + $0x1618] sm:$0xff]
  %v728 = vld [vmem:[%s1 + $0x1620] sm:$0xff]
  %v729 = vld [vmem:[%s1 + $0x1628] sm:$0xff]
  %v730 = vld [vmem:[%s1 + $0x1630] sm:$0xff]
  %v731 = vld [vmem:[%s1 + $0x1638] sm:$0xff]
  %v732 = vld [vmem:[%s1 + $0x1640] sm:$0xff]
  %v733 = vld [vmem:[%s1 + $0x1648] sm:$0xff]
  %v734 = vld [vmem:[%s1 + $0x1650] sm:$0xff]
  %v735 = vld [vmem:[%s1 + $0x1658] sm:$0xff]
  %v736 = vld [vmem:[%s1 + $0x1660] sm:$0xff]
  %v737 = vld [vmem:[%s1 + $0x1668] sm:$0xff]
  %v738 = vld [vmem:[%s1 + $0x1670] sm:$0xff]
  %v739 = vld [vmem:[%s1 + $0x1678] sm:$0xff]
  %v740 = vld [vmem:[%s1 + $0x1680] sm:$0xff]
  %v741 = vld [vmem:[%s1 + $0x1688] sm:$0xff]
  %v742 = vld [vmem:[%s1 + $0x1690] sm:$0xff]
  %v743 = vld [vmem:[%s1 + $0x1698] sm:$0xff]
  %v744 = vld [vmem:[%s1 + $0x16a0] sm:$0xff]
  %v745 = vld [vmem:[%s1 + $0x16a8] sm:$0xff]
  %v746 = vld [vmem:[%s1 + $0x16b0] sm:$0xff]
  %v747 = vld [vmem:[%s1 + $0x16b8] sm:$0xff]
  %v748 = vld [vmem:[%s1 + $0x16c0] sm:$0xff]
  %v749 = vld [vmem:[%s1 + $0x16c8] sm:$0xff]
  %v750 = vld [vmem:[%s1 + $0x16d0] sm:$0xff]
  %v751 = vld [vmem:[%s1 + $0x16d8] sm:$0xff]
  %v752 = vld [vmem:[%s1 + $0x16e0] sm:$0xff]
  %v753 = vld [vmem:[%s1 + $0x16e8] sm:$0xff]
  %v754 = vld [vmem:[%s1 + $0x16f0] sm:$0xff]
  %v755 = vld [vmem:[%s1 + $0x16f8] sm:$0xff]
  %v756 = vld [vmem:[%s1 + $0x1700] sm:$0xff]
  %v757 = vld [vmem:[%s1 + $0x1708] sm:$0xff]
  %v758 = vld [vmem:[%s1 + $0x1710] sm:$0xff]
  %v759 = vld [vmem:[%s1 + $0x1718] sm:$0xff]
  %v760 = vld [vmem:[%s1 + $0x1720] sm:$0xff]
  %v761 = vld [vmem:[%s1 + $0x1728] sm:$0xff]
  %v762 = vld [vmem:[%s1 + $0x1730] sm:$0xff]
  %v763 = vld [vmem:[%s1 + $0x1738] sm:$0xff]
  %v764 = vld [vmem:[%s1 + $0x1740] sm:$0xff]
  %v765 = vld [vmem:[%s1 + $0x1748] sm:$0xff]
  %v766 = vld [vmem:[%s1 + $0x1750] sm:$0xff]
  %v767 = vld [vmem:[%s1 + $0x1758] sm:$0xff]
  %v768 = vld [vmem:[%s1 + $0x1760] sm:$0xff]
  %v769 = vld [vmem:[%s1 + $0x1768] sm:$0xff]
  %v770 = vld [vmem:[%s1 + $0x1770] sm:$0xff]
  %v771 = vld [vmem:[%s1 + $0x1778] sm:$0xff]
  %v772 = vld [vmem:[%s1 + $0x1780] sm:$0xff]
  %v773 = vld [vmem:[%s1 + $0x1788] sm:$0xff]
  %v774 = vld [vmem:[%s1 + $0x1790] sm:$0xff]
  %v775 = vld [vmem:[%s1 + $0x1798] sm:$0xff]
  %v776 = vld [vmem:[%s1 + $0x17a0] sm:$0xff]
  %v777 = vld [vmem:[%s1 + $0x17a8] sm:$0xff]
  %v778 = vld [vmem:[%s1 + $0x17b0] sm:$0xff]
  %v779 = vld [vmem:[%s1 + $0x17b8] sm:$0xff]
  %v780 = vld [vmem:[%s1 + $0x17c0] sm:$0xff]
  %v781 = vld [vmem:[%s1 + $0x17c8] sm:$0xff]
  %v782 = vld [vmem:[%s1 + $0x17d0] sm:$0xff]
  %v783 = vld [vmem:[%s1 + $0x17d8] sm:$0xff]
  %v784 = vld [vmem:[%s1 + $0x17e0] sm:$0xff]
  %v785 = vld [vmem:[%s1 + $0x17e8] sm:$0xff]
  %v786 = vld [vmem:[%s1 + $0x17f0] sm:$0xff]
  %v787 = vld [vmem:[%s1 + $0x17f8] sm:$0xff]
  %v788 = vld [vmem:[%s1 + $0x1800] sm:$0xff]
  %v789 = vld [vmem:[%s1 + $0x1808] sm:$0xff]
  %v790 = vld [vmem:[%s1 + $0x1810] sm:$0xff]
  %v791 = vld [vmem:[%s1 + $0x1818] sm:$0xff]
  %v792 = vld [vmem:[%s1 + $0x1820] sm:$0xff]
  %v793 = vld [vmem:[%s1 + $0x1828] sm:$0xff]
  %v794 = vld [vmem:[%s1 + $0x1830] sm:$0xff]
  %v795 = vld [vmem:[%s1 + $0x1838] sm:$0xff]
  %v796 = vld [vmem:[%s1 + $0x1840] sm:$0xff]
  %v797 = vld [vmem:[%s1 + $0x1848] sm:$0xff]
  %v798 = vld [vmem:[%s1 + $0x1850] sm:$0xff]
  %v799 = vld [vmem:[%s1 + $0x1858] sm:$0xff]
  %v800 = vld [vmem:[%s1 + $0x1860] sm:$0xff]
  %v801 = vld [vmem:[%s1 + $0x1868] sm:$0xff]
  %v802 = vld [vmem:[%s1 + $0x1870] sm:$0xff]
  %v803 = vld [vmem:[%s1 + $0x1878] sm:$0xff]
  %v804 = vld [vmem:[%s1 + $0x1880] sm:$0xff]
  %v805 = vld [vmem:[%s1 + $0x1888] sm:$0xff]
  %v806 = vld [vmem:[%s1 + $0x1890] sm:$0xff]
  %v807 = vld [vmem:[%s1 + $0x1898] sm:$0xff]
  %v808 = vld [vmem:[%s1 + $0x18a0] sm:$0xff]
  %v809 = vld [vmem:[%s1 + $0x18a8] sm:$0xff]
  %v810 = vld [vmem:[%s1 + $0x18b0] sm:$0xff]
  %v811 = vld [vmem:[%s1 + $0x18b8] sm:$0xff]
  %v812 = vld [vmem:[%s1 + $0x18c0] sm:$0xff]
  %v813 = vld [vmem:[%s1 + $0x18c8] sm:$0xff]
  %v814 = vld [vmem:[%s1 + $0x18d0] sm:$0xff]
  %v815 = vld [vmem:[%s1 + $0x18d8] sm:$0xff]
  %v816 = vld [vmem:[%s1 + $0x18e0] sm:$0xff]
  %v817 = vld [vmem:[%s1 + $0x18e8] sm:$0xff]
  %v818 = vld [vmem:[%s1 + $0x18f0] sm:$0xff]
  %v819 = vld [vmem:[%s1 + $0x18f8] sm:$0xff]
  %v820 = vld [vmem:[%s1 + $0x1900] sm:$0xff]
  %v821 = vld [vmem:[%s1 + $0x1908] sm:$0xff]
  %v822 = vld [vmem:[%s1 + $0x1910] sm:$0xff]
  %v823 = vld [vmem:[%s1 + $0x1918] sm:$0xff]
  %v824 = vld [vmem:[%s1 + $0x1920] sm:$0xff]
  %v825 = vld [vmem:[%s1 + $0x1928] sm:$0xff]
  %v826 = vld [vmem:[%s1 + $0x1930] sm:$0xff]
  %v827 = vld [vmem:[%s1 + $0x1938] sm:$0xff]
  %v828 = vld [vmem:[%s1 + $0x1940] sm:$0xff]
  %v829 = vld [vmem:[%s1 + $0x1948] sm:$0xff]
  %v830 = vld [vmem:[%s1 + $0x1950] sm:$0xff]
  %v831 = vld [vmem:[%s1 + $0x1958] sm:$0xff]
  %v832 = vld [vmem:[%s1 + $0x1960] sm:$0xff]
  %v833 = vld [vmem:[%s1 + $0x1968] sm:$0xff]
  %v834 = vld [vmem:[%s1 + $0x1970] sm:$0xff]
  %v835 = vld [vmem:[%s1 + $0x1978] sm:$0xff]
  %v836 = vld [vmem:[%s1 + $0x1980] sm:$0xff]
  %v837 = vld [vmem:[%s1 + $0x1988] sm:$0xff]
  %v838 = vld [vmem:[%s1 + $0x1990] sm:$0xff]
  %v839 = vld [vmem:[%s1 + $0x1998] sm:$0xff]
  %v840 = vld [vmem:[%s1 + $0x19a0] sm:$0xff]
  %v841 = vld [vmem:[%s1 + $0x19a8] sm:$0xff]
  %v842 = vld [vmem:[%s1 + $0x19b0] sm:$0xff]
  %v843 = vld [vmem:[%s1 + $0x19b8] sm:$0xff]
  %v844 = vld [vmem:[%s1 + $0x19c0] sm:$0xff]
  %v845 = vld [vmem:[%s1 + $0x19c8] sm:$0xff]
  %v846 = vld [vmem:[%s1 + $0x19d0] sm:$0xff]
  %v847 = vld [vmem:[%s1 + $0x19d8] sm:$0xff]
  %v848 = vld [vmem:[%s1 + $0x19e0] sm:$0xff]
  %v849 = vld [vmem:[%s1 + $0x19e8] sm:$0xff]
  %v850 = vld [vmem:[%s1 + $0x19f0] sm:$0xff]
  %v851 = vld [vmem:[%s1 + $0x19f8] sm:$0xff]
  %v852 = vld [vmem:[%s1 + $0x1a00] sm:$0xff]
  %v853 = vld [vmem:[%s1 + $0x1a08] sm:$0xff]
  %v854 = vld [vmem:[%s1 + $0x1a10] sm:$0xff]
  %v855 = vld [vmem:[%s1 + $0x1a18] sm:$0xff]
  %v856 = vld [vmem:[%s1 + $0x1a20] sm:$0xff]
  %v857 = vld [vmem:[%s1 + $0x1a28] sm:$0xff]
  %v858 = vld [vmem:[%s1 + $0x1a30] sm:$0xff]
  %v859 = vld [vmem:[%s1 + $0x1a38] sm:$0xff]
  %v860 = vld [vmem:[%s1 + $0x1a40] sm:$0xff]
  %v861 = vld [vmem:[%s1 + $0x1a48] sm:$0xff]
  %v862 = vld [vmem:[%s1 + $0x1a50] sm:$0xff]
  %v863 = vld [vmem:[%s1 + $0x1a58] sm:$0xff]
  %v864 = vld [vmem:[%s1 + $0x1a60] sm:$0xff]
  %v865 = vld [vmem:[%s1 + $0x1a68] sm:$0xff]
  %v866 = vld [vmem:[%s1 + $0x1a70] sm:$0xff]
  %v867 = vld [vmem:[%s1 + $0x1a78] sm:$0xff]
  %v868 = vld [vmem:[%s1 + $0x1a80] sm:$0xff]
  %v869 = vld [vmem:[%s1 + $0x1a88] sm:$0xff]
  %v870 = vld [vmem:[%s1 + $0x1a90] sm:$0xff]
  %v871 = vld [vmem:[%s1 + $0x1a98] sm:$0xff]
  %v872 = vld [vmem:[%s1 + $0x1aa0] sm:$0xff]
  %v873 = vld [vmem:[%s1 + $0x1aa8] sm:$0xff]
  %v874 = vld [vmem:[%s1 + $0x1ab0] sm:$0xff]
  %v875 = vld [vmem:[%s1 + $0x1ab8] sm:$0xff]
  %v876 = vld [vmem:[%s1 + $0x1ac0] sm:$0xff]
  %v877 = vld [vmem:[%s1 + $0x1ac8] sm:$0xff]
  %v878 = vld [vmem:[%s1 + $0x1ad0] sm:$0xff]
  %v879 = vld [vmem:[%s1 + $0x1ad8] sm:$0xff]
  %v880 = vld [vmem:[%s1 + $0x1ae0] sm:$0xff]
  %v881 = vld [vmem:[%s1 + $0x1ae8] sm:$0xff]
  %v882 = vld [vmem:[%s1 + $0x1af0] sm:$0xff]
  %v883 = vld [vmem:[%s1 + $0x1af8] sm:$0xff]
  %v884 = vld [vmem:[%s1 + $0x1b00] sm:$0xff]
  %v885 = vld [vmem:[%s1 + $0x1b08] sm:$0xff]
  %v886 = vld [vmem:[%s1 + $0x1b10] sm:$0xff]
  %v887 = vld [vmem:[%s1 + $0x1b18] sm:$0xff]
  %v888 = vld [vmem:[%s1 + $0x1b20] sm:$0xff]
  %v889 = vld [vmem:[%s1 + $0x1b28] sm:$0xff]
  %v890 = vld [vmem:[%s1 + $0x1b30] sm:$0xff]
  %v891 = vld [vmem:[%s1 + $0x1b38] sm:$0xff]
  %v892 = vld [vmem:[%s1 + $0x1b40] sm:$0xff]
  %v893 = vld [vmem:[%s1 + $0x1b48] sm:$0xff]
  %v894 = vld [vmem:[%s1 + $0x1b50] sm:$0xff]
  %v895 = vld [vmem:[%s1 + $0x1b58] sm:$0xff]
  %v896 = vld [vmem:[%s1 + $0x1b60] sm:$0xff]
  %v897 = vld [vmem:[%s1 + $0x1b68] sm:$0xff]
  %v898 = vld [vmem:[%s1 + $0x1b70] sm:$0xff]
  %v899 = vld [vmem:[%s1 + $0x1b78] sm:$0xff]
  %v900 = vld [vmem:[%s1 + $0x1b80] sm:$0xff]
  %v901 = vld [vmem:[%s1 + $0x1b88] sm:$0xff]
  %v902 = vld [vmem:[%s1 + $0x1b90] sm:$0xff]
  %v903 = vld [vmem:[%s1 + $0x1b98] sm:$0xff]
  %v904 = vld [vmem:[%s1 + $0x1ba0] sm:$0xff]
  %v905 = vld [vmem:[%s1 + $0x1ba8] sm:$0xff]
  %v906 = vld [vmem:[%s1 + $0x1bb0] sm:$0xff]
  %v907 = vld [vmem:[%s1 + $0x1bb8] sm:$0xff]
  %v908 = vld [vmem:[%s1 + $0x1bc0] sm:$0xff]
  %v909 = vld [vmem:[%s1 + $0x1bc8] sm:$0xff]
  %v910 = vld [vmem:[%s1 + $0x1bd0] sm:$0xff]
  %v911 = vld [vmem:[%s1 + $0x1bd8] sm:$0xff]
  %v912 = vld [vmem:[%s1 + $0x1be0] sm:$0xff]
  %v913 = vld [vmem:[%s1 + $0x1be8] sm:$0xff]
  %v914 = vld [vmem:[%s1 + $0x1bf0] sm:$0xff]
  %v915 = vld [vmem:[%s1 + $0x1bf8] sm:$0xff]
  %v916 = vld [vmem:[%s1 + $0x1c00] sm:$0xff]
  %v917 = vld [vmem:[%s1 + $0x1c08] sm:$0xff]
  %v918 = vld [vmem:[%s1 + $0x1c10] sm:$0xff]
  %v919 = vld [vmem:[%s1 + $0x1c18] sm:$0xff]
  %v920 = vld [vmem:[%s1 + $0x1c20] sm:$0xff]
  %v921 = vld [vmem:[%s1 + $0x1c28] sm:$0xff]
  %v922 = vld [vmem:[%s1 + $0x1c30] sm:$0xff]
  %v923 = vld [vmem:[%s1 + $0x1c38] sm:$0xff]
  %v924 = vld [vmem:[%s1 + $0x1c40] sm:$0xff]
  %v925 = vld [vmem:[%s1 + $0x1c48] sm:$0xff]
  %v926 = vld [vmem:[%s1 + $0x1c50] sm:$0xff]
  %v927 = vld [vmem:[%s1 + $0x1c58] sm:$0xff]
  %v928 = vld [vmem:[%s1 + $0x1c60] sm:$0xff]
  %v929 = vld [vmem:[%s1 + $0x1c68] sm:$0xff]
  %v930 = vld [vmem:[%s1 + $0x1c70] sm:$0xff]
  %v931 = vld [vmem:[%s1 + $0x1c78] sm:$0xff]
  %v932 = vld [vmem:[%s1 + $0x1c80] sm:$0xff]
  %v933 = vld [vmem:[%s1 + $0x1c88] sm:$0xff]
  %v934 = vld [vmem:[%s1 + $0x1c90] sm:$0xff]
  %v935 = vld [vmem:[%s1 + $0x1c98] sm:$0xff]
  %v936 = vld [vmem:[%s1 + $0x1ca0] sm:$0xff]
  %v937 = vld [vmem:[%s1 + $0x1ca8] sm:$0xff]
  %v938 = vld [vmem:[%s1 + $0x1cb0] sm:$0xff]
  %v939 = vld [vmem:[%s1 + $0x1cb8] sm:$0xff]
  %v940 = vld [vmem:[%s1 + $0x1cc0] sm:$0xff]
  %v941 = vld [vmem:[%s1 + $0x1cc8] sm:$0xff]
  %v942 = vld [vmem:[%s1 + $0x1cd0] sm:$0xff]
  %v943 = vld [vmem:[%s1 + $0x1cd8] sm:$0xff]
  %v944 = vld [vmem:[%s1 + $0x1ce0] sm:$0xff]
  %v945 = vld [vmem:[%s1 + $0x1ce8] sm:$0xff]
  %v946 = vld [vmem:[%s1 + $0x1cf0] sm:$0xff]
  %v947 = vld [vmem:[%s1 + $0x1cf8] sm:$0xff]
  %v948 = vld [vmem:[%s1 + $0x1d00] sm:$0xff]
  %v949 = vld [vmem:[%s1 + $0x1d08] sm:$0xff]
  %v950 = vld [vmem:[%s1 + $0x1d10] sm:$0xff]
  %v951 = vld [vmem:[%s1 + $0x1d18] sm:$0xff]
  %v952 = vld [vmem:[%s1 + $0x1d20] sm:$0xff]
  %v953 = vld [vmem:[%s1 + $0x1d28] sm:$0xff]
  %v954 = vld [vmem:[%s1 + $0x1d30] sm:$0xff]
  %v955 = vld [vmem:[%s1 + $0x1d38] sm:$0xff]
  %v956 = vld [vmem:[%s1 + $0x1d40] sm:$0xff]
  %v957 = vld [vmem:[%s1 + $0x1d48] sm:$0xff]
  %v958 = vld [vmem:[%s1 + $0x1d50] sm:$0xff]
  %v959 = vld [vmem:[%s1 + $0x1d58] sm:$0xff]
  %v960 = vld [vmem:[%s1 + $0x1d60] sm:$0xff]
  %v961 = vld [vmem:[%s1 + $0x1d68] sm:$0xff]
  %v962 = vld [vmem:[%s1 + $0x1d70] sm:$0xff]
  %v963 = vld [vmem:[%s1 + $0x1d78] sm:$0xff]
  %v964 = vld [vmem:[%s1 + $0x1d80] sm:$0xff]
  %v965 = vld [vmem:[%s1 + $0x1d88] sm:$0xff]
  %v966 = vld [vmem:[%s1 + $0x1d90] sm:$0xff]
  %v967 = vld [vmem:[%s1 + $0x1d98] sm:$0xff]
  %v968 = vld [vmem:[%s1 + $0x1da0] sm:$0xff]
  %v969 = vld [vmem:[%s1 + $0x1da8] sm:$0xff]
  %v970 = vld [vmem:[%s1 + $0x1db0] sm:$0xff]
  %v971 = vld [vmem:[%s1 + $0x1db8] sm:$0xff]
  %v972 = vld [vmem:[%s1 + $0x1dc0] sm:$0xff]
  %v973 = vld [vmem:[%s1 + $0x1dc8] sm:$0xff]
  %v974 = vld [vmem:[%s1 + $0x1dd0] sm:$0xff]
  %v975 = vld [vmem:[%s1 + $0x1dd8] sm:$0xff]
  %v976 = vld [vmem:[%s1 + $0x1de0] sm:$0xff]
  %v977 = vld [vmem:[%s1 + $0x1de8] sm:$0xff]
  %v978 = vld [vmem:[%s1 + $0x1df0] sm:$0xff]
  %v979 = vld [vmem:[%s1 + $0x1df8] sm:$0xff]
  %v980 = vld [vmem:[%s1 + $0x1e00] sm:$0xff]
  %v981 = vld [vmem:[%s1 + $0x1e08] sm:$0xff]
  %v982 = vld [vmem:[%s1 + $0x1e10] sm:$0xff]
  %v983 = vld [vmem:[%s1 + $0x1e18] sm:$0xff]
  %v984 = vld [vmem:[%s1 + $0x1e20] sm:$0xff]
  %v985 = vld [vmem:[%s1 + $0x1e28] sm:$0xff]
  %v986 = vld [vmem:[%s1 + $0x1e30] sm:$0xff]
  %v987 = vld [vmem:[%s1 + $0x1e38] sm:$0xff]
  %v988 = vld [vmem:[%s1 + $0x1e40] sm:$0xff]
  %v989 = vld [vmem:[%s1 + $0x1e48] sm:$0xff]
  %v990 = vld [vmem:[%s1 + $0x1e50] sm:$0xff]
  %v991 = vld [vmem:[%s1 + $0x1e58] sm:$0xff]
  %v992 = vld [vmem:[%s1 + $0x1e60] sm:$0xff]
  %v993 = vld [vmem:[%s1 + $0x1e68] sm:$0xff]
  %v994 = vld [vmem:[%s1 + $0x1e70] sm:$0xff]
  %v995 = vld [vmem:[%s1 + $0x1e78] sm:$0xff]
  %v996 = vld [vmem:[%s1 + $0x1e80] sm:$0xff]
  %v997 = vld [vmem:[%s1 + $0x1e88] sm:$0xff]
  %v998 = vld [vmem:[%s1 + $0x1e90] sm:$0xff]
  %v999 = vld [vmem:[%s1 + $0x1e98] sm:$0xff]
  %v1000 = vld [vmem:[%s1 + $0x1ea0] sm:$0xff]
  %v1001 = vld [vmem:[%s1 + $0x1ea8] sm:$0xff]
  %v1002 = vld [vmem:[%s1 + $0x1eb0] sm:$0xff]
  %v1003 = vld [vmem:[%s1 + $0x1eb8] sm:$0xff]
  %v1004 = vld [vmem:[%s1 + $0x1ec0] sm:$0xff]
  %v1005 = vld [vmem:[%s1 + $0x1ec8] sm:$0xff]
  %v1006 = vld [vmem:[%s1 + $0x1ed0] sm:$0xff]
  %v1007 = vld [vmem:[%s1 + $0x1ed8] sm:$0xff]
  %v1008 = vld [vmem:[%s1 + $0x1ee0] sm:$0xff]
  %v1009 = vld [vmem:[%s1 + $0x1ee8] sm:$0xff]
  %v1010 = vld [vmem:[%s1 + $0x1ef0] sm:$0xff]
  %v1011 = vld [vmem:[%s1 + $0x1ef8] sm:$0xff]
  %v1012 = vld [vmem:[%s1 + $0x1f00] sm:$0xff]
  %v1013 = vld [vmem:[%s1 + $0x1f08] sm:$0xff]
  %v1014 = vld [vmem:[%s1 + $0x1f10] sm:$0xff]
  %v1015 = vld [vmem:[%s1 + $0x1f18] sm:$0xff]
  %v1016 = vld [vmem:[%s1 + $0x1f20] sm:$0xff]
  %v1017 = vld [vmem:[%s1 + $0x1f28] sm:$0xff]
  %v1018 = vld [vmem:[%s1 + $0x1f30] sm:$0xff]
  %v1019 = vld [vmem:[%s1 + $0x1f38] sm:$0xff]
  %v1020 = vld [vmem:[%s1 + $0x1f40] sm:$0xff]
  %v1021 = vld [vmem:[%s1 + $0x1f48] sm:$0xff]
  %v1022 = vld [vmem:[%s1 + $0x1f50] sm:$0xff]
  %v1023 = vld [vmem:[%s1 + $0x1f58] sm:$0xff]
  %v1024 = vld [vmem:[%s1 + $0x1f60] sm:$0xff]
  %v1025 = vld [vmem:[%s1 + $0x1f68] sm:$0xff]
  %v1026 = vld [vmem:[%s1 + $0x1f70] sm:$0xff]
  %v1027 = vld [vmem:[%s1 + $0x1f78] sm:$0xff]
  %v1028 = vld [vmem:[%s1 + $0x1f80] sm:$0xff]
  %v1029 = vld [vmem:[%s1 + $0x1f88] sm:$0xff]
  %v1030 = vld [vmem:[%s1 + $0x1f90] sm:$0xff]
  %v1031 = vld [vmem:[%s1 + $0x1f98] sm:$0xff]
  %v1032 = vld [vmem:[%s1 + $0x1fa0] sm:$0xff]
  %v1033 = vld [vmem:[%s1 + $0x1fa8] sm:$0xff]
  %v1034 = vld [vmem:[%s1 + $0x1fb0] sm:$0xff]
  %v1035 = vld [vmem:[%s1 + $0x1fb8] sm:$0xff]
  %v1036 = vld [vmem:[%s1 + $0x1fc0] sm:$0xff]
  %v1037 = vld [vmem:[%s1 + $0x1fc8] sm:$0xff]
  %v1038 = vld [vmem:[%s1 + $0x1fd0] sm:$0xff]
  %v1039 = vld [vmem:[%s1 + $0x1fd8] sm:$0xff]
  %v1040 = vld [vmem:[%s1 + $0x1fe0] sm:$0xff]
  %v1041 = vld [vmem:[%s1 + $0x1fe8] sm:$0xff]
  %v1042 = vld [vmem:[%s1 + $0x1ff0] sm:$0xff]
  %v1043 = vld [vmem:[%s1 + $0x1ff8] sm:$0xff]
  %v1044 = vld [vmem:[%s0] sm:$0xff]
  %v1045 = vld [vmem:[%s0 + $0x8] sm:$0xff]
  %v1046 = vld [vmem:[%s0 + $0x10] sm:$0xff]
  %v1047 = vld [vmem:[%s0 + $0x18] sm:$0xff]
  %v1048 = vld [vmem:[%s0 + $0x20] sm:$0xff]
  %v1049 = vld [vmem:[%s0 + $0x28] sm:$0xff]
  %v1050 = vld [vmem:[%s0 + $0x30] sm:$0xff]
  %v1051 = vld [vmem:[%s0 + $0x38] sm:$0xff]
  %v1052 = vld [vmem:[%s0 + $0x40] sm:$0xff]
  %v1053 = vld [vmem:[%s0 + $0x48] sm:$0xff]
  %v1054 = vld [vmem:[%s0 + $0x50] sm:$0xff]
  %v1055 = vld [vmem:[%s0 + $0x58] sm:$0xff]
  %v1056 = vld [vmem:[%s0 + $0x60] sm:$0xff]
  %v1057 = vld [vmem:[%s0 + $0x68] sm:$0xff]
  %v1058 = vld [vmem:[%s0 + $0x70] sm:$0xff]
  %v1059 = vld [vmem:[%s0 + $0x78] sm:$0xff]
  %v1060 = vld [vmem:[%s0 + $0x80] sm:$0xff]
  %v1061 = vld [vmem:[%s0 + $0x88] sm:$0xff]
  %v1062 = vld [vmem:[%s0 + $0x90] sm:$0xff]
  %v1063 = vld [vmem:[%s0 + $0x98] sm:$0xff]
  %v1064 = vld [vmem:[%s0 + $0xa0] sm:$0xff]
  %v1065 = vld [vmem:[%s0 + $0xa8] sm:$0xff]
  %v1066 = vld [vmem:[%s0 + $0xb0] sm:$0xff]
  %v1067 = vld [vmem:[%s0 + $0xb8] sm:$0xff]
  %v1068 = vld [vmem:[%s0 + $0xc0] sm:$0xff]
  %v1069 = vld [vmem:[%s0 + $0xc8] sm:$0xff]
  %v1070 = vld [vmem:[%s0 + $0xd0] sm:$0xff]
  %v1071 = vld [vmem:[%s0 + $0xd8] sm:$0xff]
  %v1072 = vld [vmem:[%s0 + $0xe0] sm:$0xff]
  %v1073 = vld [vmem:[%s0 + $0xe8] sm:$0xff]
  %v1074 = vld [vmem:[%s0 + $0xf0] sm:$0xff]
  %v1075 = vld [vmem:[%s0 + $0xf8] sm:$0xff]
  %v1076 = vld [vmem:[%s0 + $0x100] sm:$0xff]
  %v1077 = vld [vmem:[%s0 + $0x108] sm:$0xff]
  %v1078 = vld [vmem:[%s0 + $0x110] sm:$0xff]
  %v1079 = vld [vmem:[%s0 + $0x118] sm:$0xff]
  %v1080 = vld [vmem:[%s0 + $0x120] sm:$0xff]
  %v1081 = vld [vmem:[%s0 + $0x128] sm:$0xff]
  %v1082 = vld [vmem:[%s0 + $0x130] sm:$0xff]
  %v1083 = vld [vmem:[%s0 + $0x138] sm:$0xff]
  %v1084 = vld [vmem:[%s0 + $0x140] sm:$0xff]
  %v1085 = vld [vmem:[%s0 + $0x148] sm:$0xff]
  %v1086 = vld [vmem:[%s0 + $0x150] sm:$0xff]
  %v1087 = vld [vmem:[%s0 + $0x158] sm:$0xff]
  %v1088 = vld [vmem:[%s0 + $0x160] sm:$0xff]
  %v1089 = vld [vmem:[%s0 + $0x168] sm:$0xff]
  %v1090 = vld [vmem:[%s0 + $0x170] sm:$0xff]
  %v1091 = vld [vmem:[%s0 + $0x178] sm:$0xff]
  %v1092 = vld [vmem:[%s0 + $0x180] sm:$0xff]
  %v1093 = vld [vmem:[%s0 + $0x188] sm:$0xff]
  %v1094 = vld [vmem:[%s0 + $0x190] sm:$0xff]
  %v1095 = vld [vmem:[%s0 + $0x198] sm:$0xff]
  %v1096 = vld [vmem:[%s0 + $0x1a0] sm:$0xff]
  %v1097 = vld [vmem:[%s0 + $0x1a8] sm:$0xff]
  %v1098 = vld [vmem:[%s0 + $0x1b0] sm:$0xff]
  %v1099 = vld [vmem:[%s0 + $0x1b8] sm:$0xff]
  %v1100 = vld [vmem:[%s0 + $0x1c0] sm:$0xff]
  %v1101 = vld [vmem:[%s0 + $0x1c8] sm:$0xff]
  %v1102 = vld [vmem:[%s0 + $0x1d0] sm:$0xff]
  %v1103 = vld [vmem:[%s0 + $0x1d8] sm:$0xff]
  %v1104 = vld [vmem:[%s0 + $0x1e0] sm:$0xff]
  %v1105 = vld [vmem:[%s0 + $0x1e8] sm:$0xff]
  %v1106 = vld [vmem:[%s0 + $0x1f0] sm:$0xff]
  %v1107 = vld [vmem:[%s0 + $0x1f8] sm:$0xff]
  %v1108 = vld [vmem:[%s0 + $0x200] sm:$0xff]
  %v1109 = vld [vmem:[%s0 + $0x208] sm:$0xff]
  %v1110 = vld [vmem:[%s0 + $0x210] sm:$0xff]
  %v1111 = vld [vmem:[%s0 + $0x218] sm:$0xff]
  %v1112 = vld [vmem:[%s0 + $0x220] sm:$0xff]
  %v1113 = vld [vmem:[%s0 + $0x228] sm:$0xff]
  %v1114 = vld [vmem:[%s0 + $0x230] sm:$0xff]
  %v1115 = vld [vmem:[%s0 + $0x238] sm:$0xff]
  %v1116 = vld [vmem:[%s0 + $0x240] sm:$0xff]
  %v1117 = vld [vmem:[%s0 + $0x248] sm:$0xff]
  %v1118 = vld [vmem:[%s0 + $0x250] sm:$0xff]
  %v1119 = vld [vmem:[%s0 + $0x258] sm:$0xff]
  %v1120 = vld [vmem:[%s0 + $0x260] sm:$0xff]
  %v1121 = vld [vmem:[%s0 + $0x268] sm:$0xff]
  %v1122 = vld [vmem:[%s0 + $0x270] sm:$0xff]
  %v1123 = vld [vmem:[%s0 + $0x278] sm:$0xff]
  %v1124 = vld [vmem:[%s0 + $0x280] sm:$0xff]
  %v1125 = vld [vmem:[%s0 + $0x288] sm:$0xff]
  %v1126 = vld [vmem:[%s0 + $0x290] sm:$0xff]
  %v1127 = vld [vmem:[%s0 + $0x298] sm:$0xff]
  %v1128 = vld [vmem:[%s0 + $0x2a0] sm:$0xff]
  %v1129 = vld [vmem:[%s0 + $0x2a8] sm:$0xff]
  %v1130 = vld [vmem:[%s0 + $0x2b0] sm:$0xff]
  %v1131 = vld [vmem:[%s0 + $0x2b8] sm:$0xff]
  %v1132 = vld [vmem:[%s0 + $0x2c0] sm:$0xff]
  %v1133 = vld [vmem:[%s0 + $0x2c8] sm:$0xff]
  %v1134 = vld [vmem:[%s0 + $0x2d0] sm:$0xff]
  %v1135 = vld [vmem:[%s0 + $0x2d8] sm:$0xff]
  %v1136 = vld [vmem:[%s0 + $0x2e0] sm:$0xff]
  %v1137 = vld [vmem:[%s0 + $0x2e8] sm:$0xff]
  %v1138 = vld [vmem:[%s0 + $0x2f0] sm:$0xff]
  %v1139 = vld [vmem:[%s0 + $0x2f8] sm:$0xff]
  %v1140 = vld [vmem:[%s0 + $0x300] sm:$0xff]
  %v1141 = vld [vmem:[%s0 + $0x308] sm:$0xff]
  %v1142 = vld [vmem:[%s0 + $0x310] sm:$0xff]
  %v1143 = vld [vmem:[%s0 + $0x318] sm:$0xff]
  %v1144 = vld [vmem:[%s0 + $0x320] sm:$0xff]
  %v1145 = vld [vmem:[%s0 + $0x328] sm:$0xff]
  %v1146 = vld [vmem:[%s0 + $0x330] sm:$0xff]
  %v1147 = vld [vmem:[%s0 + $0x338] sm:$0xff]
  %v1148 = vld [vmem:[%s0 + $0x340] sm:$0xff]
  %v1149 = vld [vmem:[%s0 + $0x348] sm:$0xff]
  %v1150 = vld [vmem:[%s0 + $0x350] sm:$0xff]
  %v1151 = vld [vmem:[%s0 + $0x358] sm:$0xff]
  %v1152 = vld [vmem:[%s0 + $0x360] sm:$0xff]
  %v1153 = vld [vmem:[%s0 + $0x368] sm:$0xff]
  %v1154 = vld [vmem:[%s0 + $0x370] sm:$0xff]
  %v1155 = vld [vmem:[%s0 + $0x378] sm:$0xff]
  %v1156 = vld [vmem:[%s0 + $0x380] sm:$0xff]
  %v1157 = vld [vmem:[%s0 + $0x388] sm:$0xff]
  %v1158 = vld [vmem:[%s0 + $0x390] sm:$0xff]
  %v1159 = vld [vmem:[%s0 + $0x398] sm:$0xff]
  %v1160 = vld [vmem:[%s0 + $0x3a0] sm:$0xff]
  %v1161 = vld [vmem:[%s0 + $0x3a8] sm:$0xff]
  %v1162 = vld [vmem:[%s0 + $0x3b0] sm:$0xff]
  %v1163 = vld [vmem:[%s0 + $0x3b8] sm:$0xff]
  %v1164 = vld [vmem:[%s0 + $0x3c0] sm:$0xff]
  %v1165 = vld [vmem:[%s0 + $0x3c8] sm:$0xff]
  %v1166 = vld [vmem:[%s0 + $0x3d0] sm:$0xff]
  %v1167 = vld [vmem:[%s0 + $0x3d8] sm:$0xff]
  %v1168 = vld [vmem:[%s0 + $0x3e0] sm:$0xff]
  %v1169 = vld [vmem:[%s0 + $0x3e8] sm:$0xff]
  %v1170 = vld [vmem:[%s0 + $0x3f0] sm:$0xff]
  %v1171 = vld [vmem:[%s0 + $0x3f8] sm:$0xff]
  %v1172 = vld [vmem:[%s0 + $0x400] sm:$0xff]
  %v1173 = vld [vmem:[%s0 + $0x408] sm:$0xff]
  %v1174 = vld [vmem:[%s0 + $0x410] sm:$0xff]
  %v1175 = vld [vmem:[%s0 + $0x418] sm:$0xff]
  %v1176 = vld [vmem:[%s0 + $0x420] sm:$0xff]
  %v1177 = vld [vmem:[%s0 + $0x428] sm:$0xff]
  %v1178 = vld [vmem:[%s0 + $0x430] sm:$0xff]
  %v1179 = vld [vmem:[%s0 + $0x438] sm:$0xff]
  %v1180 = vld [vmem:[%s0 + $0x440] sm:$0xff]
  %v1181 = vld [vmem:[%s0 + $0x448] sm:$0xff]
  %v1182 = vld [vmem:[%s0 + $0x450] sm:$0xff]
  %v1183 = vld [vmem:[%s0 + $0x458] sm:$0xff]
  %v1184 = vld [vmem:[%s0 + $0x460] sm:$0xff]
  %v1185 = vld [vmem:[%s0 + $0x468] sm:$0xff]
  %v1186 = vld [vmem:[%s0 + $0x470] sm:$0xff]
  %v1187 = vld [vmem:[%s0 + $0x478] sm:$0xff]
  %v1188 = vld [vmem:[%s0 + $0x480] sm:$0xff]
  %v1189 = vld [vmem:[%s0 + $0x488] sm:$0xff]
  %v1190 = vld [vmem:[%s0 + $0x490] sm:$0xff]
  %v1191 = vld [vmem:[%s0 + $0x498] sm:$0xff]
  %v1192 = vld [vmem:[%s0 + $0x4a0] sm:$0xff]
  %v1193 = vld [vmem:[%s0 + $0x4a8] sm:$0xff]
  %v1194 = vld [vmem:[%s0 + $0x4b0] sm:$0xff]
  %v1195 = vld [vmem:[%s0 + $0x4b8] sm:$0xff]
  %v1196 = vld [vmem:[%s0 + $0x4c0] sm:$0xff]
  %v1197 = vld [vmem:[%s0 + $0x4c8] sm:$0xff]
  %v1198 = vld [vmem:[%s0 + $0x4d0] sm:$0xff]
  %v1199 = vld [vmem:[%s0 + $0x4d8] sm:$0xff]
  %v1200 = vld [vmem:[%s0 + $0x4e0] sm:$0xff]
  %v1201 = vld [vmem:[%s0 + $0x4e8] sm:$0xff]
  %v1202 = vld [vmem:[%s0 + $0x4f0] sm:$0xff]
  %v1203 = vld [vmem:[%s0 + $0x4f8] sm:$0xff]
  %v1204 = vld [vmem:[%s0 + $0x500] sm:$0xff]
  %v1205 = vld [vmem:[%s0 + $0x508] sm:$0xff]
  %v1206 = vld [vmem:[%s0 + $0x510] sm:$0xff]
  %v1207 = vld [vmem:[%s0 + $0x518] sm:$0xff]
  %v1208 = vld [vmem:[%s0 + $0x520] sm:$0xff]
  %v1209 = vld [vmem:[%s0 + $0x528] sm:$0xff]
  %v1210 = vld [vmem:[%s0 + $0x530] sm:$0xff]
  %v1211 = vld [vmem:[%s0 + $0x538] sm:$0xff]
  %v1212 = vld [vmem:[%s0 + $0x540] sm:$0xff]
  %v1213 = vld [vmem:[%s0 + $0x548] sm:$0xff]
  %v1214 = vld [vmem:[%s0 + $0x550] sm:$0xff]
  %v1215 = vld [vmem:[%s0 + $0x558] sm:$0xff]
  %v1216 = vld [vmem:[%s0 + $0x560] sm:$0xff]
  %v1217 = vld [vmem:[%s0 + $0x568] sm:$0xff]
  %v1218 = vld [vmem:[%s0 + $0x570] sm:$0xff]
  %v1219 = vld [vmem:[%s0 + $0x578] sm:$0xff]
  %v1220 = vld [vmem:[%s0 + $0x580] sm:$0xff]
  %v1221 = vld [vmem:[%s0 + $0x588] sm:$0xff]
  %v1222 = vld [vmem:[%s0 + $0x590] sm:$0xff]
  %v1223 = vld [vmem:[%s0 + $0x598] sm:$0xff]
  %v1224 = vld [vmem:[%s0 + $0x5a0] sm:$0xff]
  %v1225 = vld [vmem:[%s0 + $0x5a8] sm:$0xff]
  %v1226 = vld [vmem:[%s0 + $0x5b0] sm:$0xff]
  %v1227 = vld [vmem:[%s0 + $0x5b8] sm:$0xff]
  %v1228 = vld [vmem:[%s0 + $0x5c0] sm:$0xff]
  %v1229 = vld [vmem:[%s0 + $0x5c8] sm:$0xff]
  %v1230 = vld [vmem:[%s0 + $0x5d0] sm:$0xff]
  %v1231 = vld [vmem:[%s0 + $0x5d8] sm:$0xff]
  %v1232 = vld [vmem:[%s0 + $0x5e0] sm:$0xff]
  %v1233 = vld [vmem:[%s0 + $0x5e8] sm:$0xff]
  %v1234 = vld [vmem:[%s0 + $0x5f0] sm:$0xff]
  %v1235 = vld [vmem:[%s0 + $0x5f8] sm:$0xff]
  %v1236 = vld [vmem:[%s0 + $0x600] sm:$0xff]
  %v1237 = vld [vmem:[%s0 + $0x608] sm:$0xff]
  %v1238 = vld [vmem:[%s0 + $0x610] sm:$0xff]
  %v1239 = vld [vmem:[%s0 + $0x618] sm:$0xff]
  %v1240 = vld [vmem:[%s0 + $0x620] sm:$0xff]
  %v1241 = vld [vmem:[%s0 + $0x628] sm:$0xff]
  %v1242 = vld [vmem:[%s0 + $0x630] sm:$0xff]
  %v1243 = vld [vmem:[%s0 + $0x638] sm:$0xff]
  %v1244 = vld [vmem:[%s0 + $0x640] sm:$0xff]
  %v1245 = vld [vmem:[%s0 + $0x648] sm:$0xff]
  %v1246 = vld [vmem:[%s0 + $0x650] sm:$0xff]
  %v1247 = vld [vmem:[%s0 + $0x658] sm:$0xff]
  %v1248 = vld [vmem:[%s0 + $0x660] sm:$0xff]
  %v1249 = vld [vmem:[%s0 + $0x668] sm:$0xff]
  %v1250 = vld [vmem:[%s0 + $0x670] sm:$0xff]
  %v1251 = vld [vmem:[%s0 + $0x678] sm:$0xff]
  %v1252 = vld [vmem:[%s0 + $0x680] sm:$0xff]
  %v1253 = vld [vmem:[%s0 + $0x688] sm:$0xff]
  %v1254 = vld [vmem:[%s0 + $0x690] sm:$0xff]
  %v1255 = vld [vmem:[%s0 + $0x698] sm:$0xff]
  %v1256 = vld [vmem:[%s0 + $0x6a0] sm:$0xff]
  %v1257 = vld [vmem:[%s0 + $0x6a8] sm:$0xff]
  %v1258 = vld [vmem:[%s0 + $0x6b0] sm:$0xff]
  %v1259 = vld [vmem:[%s0 + $0x6b8] sm:$0xff]
  %v1260 = vld [vmem:[%s0 + $0x6c0] sm:$0xff]
  %v1261 = vld [vmem:[%s0 + $0x6c8] sm:$0xff]
  %v1262 = vld [vmem:[%s0 + $0x6d0] sm:$0xff]
  %v1263 = vld [vmem:[%s0 + $0x6d8] sm:$0xff]
  %v1264 = vld [vmem:[%s0 + $0x6e0] sm:$0xff]
  %v1265 = vld [vmem:[%s0 + $0x6e8] sm:$0xff]
  %v1266 = vld [vmem:[%s0 + $0x6f0] sm:$0xff]
  %v1267 = vld [vmem:[%s0 + $0x6f8] sm:$0xff]
  %v1268 = vld [vmem:[%s0 + $0x700] sm:$0xff]
  %v1269 = vld [vmem:[%s0 + $0x708] sm:$0xff]
  %v1270 = vld [vmem:[%s0 + $0x710] sm:$0xff]
  %v1271 = vld [vmem:[%s0 + $0x718] sm:$0xff]
  %v1272 = vld [vmem:[%s0 + $0x720] sm:$0xff]
  %v1273 = vld [vmem:[%s0 + $0x728] sm:$0xff]
  %v1274 = vld [vmem:[%s0 + $0x730] sm:$0xff]
  %v1275 = vld [vmem:[%s0 + $0x738] sm:$0xff]
  %v1276 = vld [vmem:[%s0 + $0x740] sm:$0xff]
  %v1277 = vld [vmem:[%s0 + $0x748] sm:$0xff]
  %v1278 = vld [vmem:[%s0 + $0x750] sm:$0xff]
  %v1279 = vld [vmem:[%s0 + $0x758] sm:$0xff]
  %v1280 = vld [vmem:[%s0 + $0x760] sm:$0xff]
  %v1281 = vld [vmem:[%s0 + $0x768] sm:$0xff]
  %v1282 = vld [vmem:[%s0 + $0x770] sm:$0xff]
  %v1283 = vld [vmem:[%s0 + $0x778] sm:$0xff]
  %v1284 = vld [vmem:[%s0 + $0x780] sm:$0xff]
  %v1285 = vld [vmem:[%s0 + $0x788] sm:$0xff]
  %v1286 = vld [vmem:[%s0 + $0x790] sm:$0xff]
  %v1287 = vld [vmem:[%s0 + $0x798] sm:$0xff]
  %v1288 = vld [vmem:[%s0 + $0x7a0] sm:$0xff]
  %v1289 = vld [vmem:[%s0 + $0x7a8] sm:$0xff]
  %v1290 = vld [vmem:[%s0 + $0x7b0] sm:$0xff]
  %v1291 = vld [vmem:[%s0 + $0x7b8] sm:$0xff]
  %v1292 = vld [vmem:[%s0 + $0x7c0] sm:$0xff]
  %v1293 = vld [vmem:[%s0 + $0x7c8] sm:$0xff]
  %v1294 = vld [vmem:[%s2] sm:$0xff]
  %v1295 = vld [vmem:[%s2 + $0x8] sm:$0xff]
  %v1296 = vld [vmem:[%s2 + $0x10] sm:$0xff]
  %v1297 = vld [vmem:[%s2 + $0x18] sm:$0xff]
  %v1298 = vld [vmem:[%s2 + $0x20] sm:$0xff]
  %v1299 = vld [vmem:[%s2 + $0x28] sm:$0xff]
  %v1300 = vld [vmem:[%s2 + $0x30] sm:$0xff]
  %v1301 = vld [vmem:[%s2 + $0x38] sm:$0xff]
  %v1302 = vld [vmem:[%s2 + $0x40] sm:$0xff]
  %v1303 = vld [vmem:[%s2 + $0x48] sm:$0xff]
  %v1304 = vld [vmem:[%s2 + $0x50] sm:$0xff]
  %v1305 = vld [vmem:[%s2 + $0x58] sm:$0xff]
  %v1306 = vld [vmem:[%s2 + $0x60] sm:$0xff]
  %v1307 = vld [vmem:[%s2 + $0x68] sm:$0xff]
  %v1308 = vld [vmem:[%s2 + $0x70] sm:$0xff]
  %v1309 = vld [vmem:[%s2 + $0x78] sm:$0xff]
  %v1310 = vld [vmem:[%s2 + $0x80] sm:$0xff]
  %v1311 = vld [vmem:[%s2 + $0x88] sm:$0xff]
  %v1312 = vld [vmem:[%s2 + $0x90] sm:$0xff]
  %v1313 = vld [vmem:[%s2 + $0x98] sm:$0xff]
  %v1314 = vld [vmem:[%s2 + $0xa0] sm:$0xff]
  %v1315 = vld [vmem:[%s2 + $0xa8] sm:$0xff]
  %v1316 = vld [vmem:[%s2 + $0xb0] sm:$0xff]
  %v1317 = vld [vmem:[%s2 + $0xb8] sm:$0xff]
  %v1318 = vld [vmem:[%s2 + $0xc0] sm:$0xff]
  %v1319 = vld [vmem:[%s2 + $0xc8] sm:$0xff]
  %v1320 = vld [vmem:[%s2 + $0xd0] sm:$0xff]
  %v1321 = vld [vmem:[%s2 + $0xd8] sm:$0xff]
  %v1322 = vld [vmem:[%s2 + $0xe0] sm:$0xff]
  %v1323 = vld [vmem:[%s2 + $0xe8] sm:$0xff]
  %v1324 = vld [vmem:[%s2 + $0xf0] sm:$0xff]
  %v1325 = vld [vmem:[%s2 + $0xf8] sm:$0xff]
  %v1326 = vld [vmem:[%s2 + $0x100] sm:$0xff]
  %v1327 = vld [vmem:[%s2 + $0x108] sm:$0xff]
  %v1328 = vld [vmem:[%s2 + $0x110] sm:$0xff]
  %v1329 = vld [vmem:[%s2 + $0x118] sm:$0xff]
  %v1330 = vld [vmem:[%s2 + $0x120] sm:$0xff]
  %v1331 = vld [vmem:[%s2 + $0x128] sm:$0xff]
  %v1332 = vld [vmem:[%s2 + $0x130] sm:$0xff]
  %v1333 = vld [vmem:[%s2 + $0x138] sm:$0xff]
  %v1334 = vld [vmem:[%s2 + $0x140] sm:$0xff]
  %v1335 = vld [vmem:[%s2 + $0x148] sm:$0xff]
  %v1336 = vld [vmem:[%s2 + $0x150] sm:$0xff]
  %v1337 = vld [vmem:[%s2 + $0x158] sm:$0xff]
  %v1338 = vld [vmem:[%s2 + $0x160] sm:$0xff]
  %v1339 = vld [vmem:[%s2 + $0x168] sm:$0xff]
  %v1340 = vld [vmem:[%s2 + $0x170] sm:$0xff]
  %v1341 = vld [vmem:[%s2 + $0x178] sm:$0xff]
  %v1342 = vld [vmem:[%s2 + $0x180] sm:$0xff]
  %v1343 = vld [vmem:[%s2 + $0x188] sm:$0xff]
  %v1344 = vld [vmem:[%s2 + $0x190] sm:$0xff]
  %v1345 = vld [vmem:[%s2 + $0x198] sm:$0xff]
  %v1346 = vld [vmem:[%s2 + $0x1a0] sm:$0xff]
  %v1347 = vld [vmem:[%s2 + $0x1a8] sm:$0xff]
  %v1348 = vld [vmem:[%s2 + $0x1b0] sm:$0xff]
  %v1349 = vld [vmem:[%s2 + $0x1b8] sm:$0xff]
  %v1350 = vld [vmem:[%s2 + $0x1c0] sm:$0xff]
  %v1351 = vld [vmem:[%s2 + $0x1c8] sm:$0xff]
  %v1352 = vld [vmem:[%s2 + $0x1d0] sm:$0xff]
  %v1353 = vld [vmem:[%s2 + $0x1d8] sm:$0xff]
  %v1354 = vld [vmem:[%s2 + $0x1e0] sm:$0xff]
  %v1355 = vld [vmem:[%s2 + $0x1e8] sm:$0xff]
  %v1356 = vld [vmem:[%s2 + $0x1f0] sm:$0xff]
  %v1357 = vld [vmem:[%s2 + $0x1f8] sm:$0xff]
  %1359 = vset.pattern.permute.xlu0 0
  %1360 = vperm.xlu0 %1359, %v1294
  %v1361 = vpop.permute.xlu0 %1360
  %1364 = vset.pattern.permute.xlu0 0
  %1365 = vperm.xlu0 %1364, %v1295
  %v1366 = vpop.permute.xlu0 %1365
  %1369 = vset.pattern.permute.xlu0 0
  %1370 = vperm.xlu0 %1369, %v1296
  %v1371 = vpop.permute.xlu0 %1370
  %1374 = vset.pattern.permute.xlu0 0
  %1375 = vperm.xlu0 %1374, %v1297
  %v1376 = vpop.permute.xlu0 %1375
  %1379 = vset.pattern.permute.xlu0 0
  %1380 = vperm.xlu0 %1379, %v1298
  %v1381 = vpop.permute.xlu0 %1380
  %1384 = vset.pattern.permute.xlu0 0
  %1385 = vperm.xlu0 %1384, %v1299
  %v1386 = vpop.permute.xlu0 %1385
  %1389 = vset.pattern.permute.xlu0 0
  %1390 = vperm.xlu0 %1389, %v1300
  %v1391 = vpop.permute.xlu0 %1390
  %1394 = vset.pattern.permute.xlu0 0
  %1395 = vperm.xlu0 %1394, %v1301
  %v1396 = vpop.permute.xlu0 %1395
  %1399 = vset.pattern.permute.xlu0 0
  %1400 = vperm.xlu0 %1399, %v1302
  %v1401 = vpop.permute.xlu0 %1400
  %1404 = vset.pattern.permute.xlu0 0
  %1405 = vperm.xlu0 %1404, %v1303
  %v1406 = vpop.permute.xlu0 %1405
  %1409 = vset.pattern.permute.xlu0 0
  %1410 = vperm.xlu0 %1409, %v1304
  %v1411 = vpop.permute.xlu0 %1410
  %1414 = vset.pattern.permute.xlu0 0
  %1415 = vperm.xlu0 %1414, %v1305
  %v1416 = vpop.permute.xlu0 %1415
  %1419 = vset.pattern.permute.xlu0 0
  %1420 = vperm.xlu0 %1419, %v1306
  %v1421 = vpop.permute.xlu0 %1420
  %1424 = vset.pattern.permute.xlu0 0
  %1425 = vperm.xlu0 %1424, %v1307
  %v1426 = vpop.permute.xlu0 %1425
  %1429 = vset.pattern.permute.xlu0 0
  %1430 = vperm.xlu0 %1429, %v1308
  %v1431 = vpop.permute.xlu0 %1430
  %1434 = vset.pattern.permute.xlu0 0
  %1435 = vperm.xlu0 %1434, %v1309
  %v1436 = vpop.permute.xlu0 %1435
  %1439 = vset.pattern.permute.xlu0 0
  %1440 = vperm.xlu0 %1439, %v1310
  %v1441 = vpop.permute.xlu0 %1440
  %1444 = vset.pattern.permute.xlu0 0
  %1445 = vperm.xlu0 %1444, %v1311
  %v1446 = vpop.permute.xlu0 %1445
  %1449 = vset.pattern.permute.xlu0 0
  %1450 = vperm.xlu0 %1449, %v1312
  %v1451 = vpop.permute.xlu0 %1450
  %1454 = vset.pattern.permute.xlu0 0
  %1455 = vperm.xlu0 %1454, %v1313
  %v1456 = vpop.permute.xlu0 %1455
  %1459 = vset.pattern.permute.xlu0 0
  %1460 = vperm.xlu0 %1459, %v1314
  %v1461 = vpop.permute.xlu0 %1460
  %1464 = vset.pattern.permute.xlu0 0
  %1465 = vperm.xlu0 %1464, %v1315
  %v1466 = vpop.permute.xlu0 %1465
  %1469 = vset.pattern.permute.xlu0 0
  %1470 = vperm.xlu0 %1469, %v1316
  %v1471 = vpop.permute.xlu0 %1470
  %1474 = vset.pattern.permute.xlu0 0
  %1475 = vperm.xlu0 %1474, %v1317
  %v1476 = vpop.permute.xlu0 %1475
  %1479 = vset.pattern.permute.xlu0 0
  %1480 = vperm.xlu0 %1479, %v1318
  %v1481 = vpop.permute.xlu0 %1480
  %1484 = vset.pattern.permute.xlu0 0
  %1485 = vperm.xlu0 %1484, %v1319
  %v1486 = vpop.permute.xlu0 %1485
  %1489 = vset.pattern.permute.xlu0 0
  %1490 = vperm.xlu0 %1489, %v1320
  %v1491 = vpop.permute.xlu0 %1490
  %1494 = vset.pattern.permute.xlu0 0
  %1495 = vperm.xlu0 %1494, %v1321
  %v1496 = vpop.permute.xlu0 %1495
  %1499 = vset.pattern.permute.xlu0 0
  %1500 = vperm.xlu0 %1499, %v1322
  %v1501 = vpop.permute.xlu0 %1500
  %1504 = vset.pattern.permute.xlu0 0
  %1505 = vperm.xlu0 %1504, %v1323
  %v1506 = vpop.permute.xlu0 %1505
  %1509 = vset.pattern.permute.xlu0 0
  %1510 = vperm.xlu0 %1509, %v1324
  %v1511 = vpop.permute.xlu0 %1510
  %1514 = vset.pattern.permute.xlu0 0
  %1515 = vperm.xlu0 %1514, %v1325
  %v1516 = vpop.permute.xlu0 %1515
  %1519 = vset.pattern.permute.xlu0 0
  %1520 = vperm.xlu0 %1519, %v1326
  %v1521 = vpop.permute.xlu0 %1520
  %1524 = vset.pattern.permute.xlu0 0
  %1525 = vperm.xlu0 %1524, %v1327
  %v1526 = vpop.permute.xlu0 %1525
  %1529 = vset.pattern.permute.xlu0 0
  %1530 = vperm.xlu0 %1529, %v1328
  %v1531 = vpop.permute.xlu0 %1530
  %1534 = vset.pattern.permute.xlu0 0
  %1535 = vperm.xlu0 %1534, %v1329
  %v1536 = vpop.permute.xlu0 %1535
  %1539 = vset.pattern.permute.xlu0 0
  %1540 = vperm.xlu0 %1539, %v1330
  %v1541 = vpop.permute.xlu0 %1540
  %1544 = vset.pattern.permute.xlu0 0
  %1545 = vperm.xlu0 %1544, %v1331
  %v1546 = vpop.permute.xlu0 %1545
  %1549 = vset.pattern.permute.xlu0 0
  %1550 = vperm.xlu0 %1549, %v1332
  %v1551 = vpop.permute.xlu0 %1550
  %1554 = vset.pattern.permute.xlu0 0
  %1555 = vperm.xlu0 %1554, %v1333
  %v1556 = vpop.permute.xlu0 %1555
  %1559 = vset.pattern.permute.xlu0 0
  %1560 = vperm.xlu0 %1559, %v1334
  %v1561 = vpop.permute.xlu0 %1560
  %1564 = vset.pattern.permute.xlu0 0
  %1565 = vperm.xlu0 %1564, %v1335
  %v1566 = vpop.permute.xlu0 %1565
  %1569 = vset.pattern.permute.xlu0 0
  %1570 = vperm.xlu0 %1569, %v1336
  %v1571 = vpop.permute.xlu0 %1570
  %1574 = vset.pattern.permute.xlu0 0
  %1575 = vperm.xlu0 %1574, %v1337
  %v1576 = vpop.permute.xlu0 %1575
  %1579 = vset.pattern.permute.xlu0 0
  %1580 = vperm.xlu0 %1579, %v1338
  %v1581 = vpop.permute.xlu0 %1580
  %1584 = vset.pattern.permute.xlu0 0
  %1585 = vperm.xlu0 %1584, %v1339
  %v1586 = vpop.permute.xlu0 %1585
  %1589 = vset.pattern.permute.xlu0 0
  %1590 = vperm.xlu0 %1589, %v1340
  %v1591 = vpop.permute.xlu0 %1590
  %1594 = vset.pattern.permute.xlu0 0
  %1595 = vperm.xlu0 %1594, %v1341
  %v1596 = vpop.permute.xlu0 %1595
  %1599 = vset.pattern.permute.xlu0 0
  %1600 = vperm.xlu0 %1599, %v1342
  %v1601 = vpop.permute.xlu0 %1600
  %1604 = vset.pattern.permute.xlu0 0
  %1605 = vperm.xlu0 %1604, %v1343
  %v1606 = vpop.permute.xlu0 %1605
  %1609 = vset.pattern.permute.xlu0 0
  %1610 = vperm.xlu0 %1609, %v1344
  %v1611 = vpop.permute.xlu0 %1610
  %1614 = vset.pattern.permute.xlu0 0
  %1615 = vperm.xlu0 %1614, %v1345
  %v1616 = vpop.permute.xlu0 %1615
  %1619 = vset.pattern.permute.xlu0 0
  %1620 = vperm.xlu0 %1619, %v1346
  %v1621 = vpop.permute.xlu0 %1620
  %1624 = vset.pattern.permute.xlu0 0
  %1625 = vperm.xlu0 %1624, %v1347
  %v1626 = vpop.permute.xlu0 %1625
  %1629 = vset.pattern.permute.xlu0 0
  %1630 = vperm.xlu0 %1629, %v1348
  %v1631 = vpop.permute.xlu0 %1630
  %1634 = vset.pattern.permute.xlu0 0
  %1635 = vperm.xlu0 %1634, %v1349
  %v1636 = vpop.permute.xlu0 %1635
  %1639 = vset.pattern.permute.xlu0 0
  %1640 = vperm.xlu0 %1639, %v1350
  %v1641 = vpop.permute.xlu0 %1640
  %1644 = vset.pattern.permute.xlu0 0
  %1645 = vperm.xlu0 %1644, %v1351
  %v1646 = vpop.permute.xlu0 %1645
  %1649 = vset.pattern.permute.xlu0 0
  %1650 = vperm.xlu0 %1649, %v1352
  %v1651 = vpop.permute.xlu0 %1650
  %1654 = vset.pattern.permute.xlu0 0
  %1655 = vperm.xlu0 %1654, %v1353
  %v1656 = vpop.permute.xlu0 %1655
  %1659 = vset.pattern.permute.xlu0 0
  %1660 = vperm.xlu0 %1659, %v1354
  %v1661 = vpop.permute.xlu0 %1660
  %1664 = vset.pattern.permute.xlu0 0
  %1665 = vperm.xlu0 %1664, %v1355
  %v1666 = vpop.permute.xlu0 %1665
  %1669 = vset.pattern.permute.xlu0 0
  %1670 = vperm.xlu0 %1669, %v1356
  %v1671 = vpop.permute.xlu0 %1670
  %1674 = vset.pattern.permute.xlu0 0
  %1675 = vperm.xlu0 %1674, %v1357
  %v1676 = vpop.permute.xlu0 %1675
  %vm1678 = vcmask 654336
  %v1680 = vsel %vm1678, %v35, 0
  %v1683 = vsel %vm1678, %v51, 0
  %v1686 = vsel %vm1678, %v67, 0
  %v1689 = vsel %vm1678, %v83, 0
  %v1692 = vsel %vm1678, %v99, 0
  %v1695 = vsel %vm1678, %v115, 0
  %v1698 = vsel %vm1678, %v131, 0
  %v1701 = vsel %vm1678, %v147, 0
  %v1704 = vsel %vm1678, %v163, 0
  %v1707 = vsel %vm1678, %v179, 0
  %v1710 = vsel %vm1678, %v195, 0
  %v1713 = vsel %vm1678, %v211, 0
  %v1716 = vsel %vm1678, %v227, 0
  %v1719 = vsel %vm1678, %v243, 0
  %v1722 = vsel %vm1678, %v259, 0
  %v1725 = vsel %vm1678, %v275, 0
  %v1728 = vsel %vm1678, %v291, 0
  %v1731 = vsel %vm1678, %v307, 0
  %v1734 = vsel %vm1678, %v323, 0
  %v1737 = vsel %vm1678, %v339, 0
  %v1740 = vsel %vm1678, %v355, 0
  %v1743 = vsel %vm1678, %v371, 0
  %v1746 = vsel %vm1678, %v387, 0
  %v1749 = vsel %vm1678, %v403, 0
  %v1752 = vsel %vm1678, %v419, 0
  %v1755 = vsel %vm1678, %v435, 0
  %v1758 = vsel %vm1678, %v451, 0
  %v1761 = vsel %vm1678, %v467, 0
  %v1764 = vsel %vm1678, %v483, 0
  %v1767 = vsel %vm1678, %v499, 0
  %v1770 = vsel %vm1678, %v515, 0
  %v1773 = vsel %vm1678, %v531, 0
  %v1776 = vsel %vm1678, %v547, 0
  %v1779 = vsel %vm1678, %v563, 0
  %v1782 = vsel %vm1678, %v579, 0
  %v1785 = vsel %vm1678, %v595, 0
  %v1788 = vsel %vm1678, %v611, 0
  %v1791 = vsel %vm1678, %v627, 0
  %v1794 = vsel %vm1678, %v643, 0
  %v1797 = vsel %vm1678, %v659, 0
  %v1800 = vsel %vm1678, %v675, 0
  %v1803 = vsel %vm1678, %v691, 0
  %v1806 = vsel %vm1678, %v707, 0
  %v1809 = vsel %vm1678, %v723, 0
  %v1812 = vsel %vm1678, %v739, 0
  %v1815 = vsel %vm1678, %v755, 0
  %v1818 = vsel %vm1678, %v771, 0
  %v1821 = vsel %vm1678, %v787, 0
  %v1824 = vsel %vm1678, %v803, 0
  %v1827 = vsel %vm1678, %v819, 0
  %v1830 = vsel %vm1678, %v835, 0
  %v1833 = vsel %vm1678, %v851, 0
  %v1836 = vsel %vm1678, %v867, 0
  %v1839 = vsel %vm1678, %v883, 0
  %v1842 = vsel %vm1678, %v899, 0
  %v1845 = vsel %vm1678, %v915, 0
  %v1848 = vsel %vm1678, %v931, 0
  %v1851 = vsel %vm1678, %v947, 0
  %v1854 = vsel %vm1678, %v963, 0
  %v1857 = vsel %vm1678, %v979, 0
  %v1860 = vsel %vm1678, %v995, 0
  %v1863 = vsel %vm1678, %v1011, 0
  %v1866 = vsel %vm1678, %v1027, 0
  %v1869 = vsel %vm1678, %v1043, 0
  %1871 = vmatprep.subr.mxu0 0.0
  %1872 = vmatpush1.msra.mxu0 %v1044
  %1873 = vmatprep.subr.mxu0 0.0
  %1874 = vmatpush1.msra.mxu0 %v1045
  %1875 = vmatprep.subr.mxu0 0.0
  %1876 = vmatpush1.msra.mxu0 %v1046
  %1877 = vmatprep.subr.mxu0 0.0
  %1878 = vmatpush1.msra.mxu0 %v1047
  %1879 = vmatprep.subr.mxu0 0.0
  %1880 = vmatpush1.msra.mxu0 %v1048
  %1881 = vmatprep.subr.mxu0 0.0
  %1882 = vmatpush1.msra.mxu0 %v1049
  %1883 = vmatprep.subr.mxu0 0.0
  %1884 = vmatpush1.msra.mxu0 %v1050
  %1885 = vmatprep.subr.mxu0 0.0
  %1886 = vmatpush1.msra.mxu0 %v1051
  %1887 = vmatprep.subr.mxu0 0.0
  %1888 = vmatpush1.msra.mxu0 %v1052
  %1889 = vmatprep.subr.mxu0 0.0
  %1890 = vmatpush1.msra.mxu0 %v1053
  %1891 = vmatprep.subr.mxu0 0.0
  %1892 = vmatpush1.msra.mxu0 %v1054
  %1893 = vmatprep.subr.mxu0 0.0
  %1894 = vmatpush1.msra.mxu0 %v1055
  %1895 = vmatprep.subr.mxu0 0.0
  %1896 = vmatpush1.msra.mxu0 %v1056
  %1897 = vmatprep.subr.mxu0 0.0
  %1898 = vmatpush1.msra.mxu0 %v1057
  %1899 = vmatprep.subr.mxu0 0.0
  %1900 = vmatpush1.msra.mxu0 %v1058
  %1901 = vmatprep.subr.mxu0 0.0
  %1902 = vmatpush1.msra.mxu0 %v1059
  %1903 = vmatprep.subr.mxu0 0.0
  %1904 = vmatpush1.msra.mxu0 %v1060
  %1905 = vmatprep.subr.mxu0 0.0
  %1906 = vmatpush1.msra.mxu0 %v1061
  %1907 = vmatprep.subr.mxu0 0.0
  %1908 = vmatpush1.msra.mxu0 %v1062
  %1909 = vmatprep.subr.mxu0 0.0
  %1910 = vmatpush1.msra.mxu0 %v1063
  %1911 = vmatprep.subr.mxu0 0.0
  %1912 = vmatpush1.msra.mxu0 %v1064
  %1913 = vmatprep.subr.mxu0 0.0
  %1914 = vmatpush1.msra.mxu0 %v1065
  %1915 = vmatprep.subr.mxu0 0.0
  %1916 = vmatpush1.msra.mxu0 %v1066
  %1917 = vmatprep.subr.mxu0 0.0
  %1918 = vmatpush1.msra.mxu0 %v1067
  %1919 = vmatprep.subr.mxu0 0.0
  %1920 = vmatpush1.msra.mxu0 %v1068
  %1921 = vmatprep.subr.mxu0 0.0
  %1922 = vmatpush1.msra.mxu0 %v1069
  %1923 = vmatprep.subr.mxu0 0.0
  %1924 = vmatpush1.msra.mxu0 %v1070
  %1925 = vmatprep.subr.mxu0 0.0
  %1926 = vmatpush1.msra.mxu0 %v1071
  %1927 = vmatprep.subr.mxu0 0.0
  %1928 = vmatpush1.msra.mxu0 %v1072
  %1929 = vmatprep.subr.mxu0 0.0
  %1930 = vmatpush1.msra.mxu0 %v1073
  %1931 = vmatprep.subr.mxu0 0.0
  %1932 = vmatpush1.msra.mxu0 %v1074
  %1933 = vmatprep.subr.mxu0 0.0
  %1934 = vmatpush1.msra.mxu0 %v1075
  %1935 = vmatprep.mubr.f32.mxu0 %v21
  %1936 = vmatmul.mubr.f32.gmra.mrb[0].mxu0 %v20
  %v1937 = vpop.f32.mrb[0].mxu0
  %v1938 = vadd.f32 %v1361, %v1937
  %v1939 = vpop.f32.mrb[0].mxu0
  %1940 = vmatprep.mubr.f32.mxu0 %v37
  %1941 = vmatmul.mubr.f32.gmra.mrb[0].mxu0 %v36
  %v1942 = vpop.f32.mrb[0].mxu0
  %v1943 = vadd.f32 %v1366, %v1942
  %v1944 = vpop.f32.mrb[0].mxu0
  %1945 = vmatprep.mubr.f32.mxu0 %v53
  %1946 = vmatmul.mubr.f32.gmra.mrb[0].mxu0 %v52
  %v1947 = vpop.f32.mrb[0].mxu0
  %v1948 = vadd.f32 %v1371, %v1947
  %v1949 = vpop.f32.mrb[0].mxu0
  %1950 = vmatprep.mubr.f32.mxu0 %v69
  %1951 = vmatmul.mubr.f32.gmra.mrb[0].mxu0 %v68
  %v1952 = vpop.f32.mrb[0].mxu0
  %v1953 = vadd.f32 %v1376, %v1952
  %v1954 = vpop.f32.mrb[0].mxu0
  %1955 = vmatprep.mubr.f32.mxu0 %v85
  %1956 = vmatmul.mubr.f32.gmra.mrb[0].mxu0 %v84
  %v1957 = vpop.f32.mrb[0].mxu0
  %v1958 = vadd.f32 %v1381, %v1957
  %v1959 = vpop.f32.mrb[0].mxu0
  %1960 = vmatprep.mubr.f32.mxu0 %v101
  %1961 = vmatmul.mubr.f32.gmra.mrb[0].mxu0 %v100
  %v1962 = vpop.f32.mrb[0].mxu0
  %v1963 = vadd.f32 %v1386, %v1962
  %v1964 = vpop.f32.mrb[0].mxu0
  %1965 = vmatprep.mubr.f32.mxu0 %v117
  %1966 = vmatmul.mubr.f32.gmra.mrb[0].mxu0 %v116
  %v1967 = vpop.f32.mrb[0].mxu0
  %v1968 = vadd.f32 %v1391, %v1967
  %v1969 = vpop.f32.mrb[0].mxu0
  %1970 = vmatprep.mubr.f32.mxu0 %v133
  %1971 = vmatmul.mubr.f32.gmra.mrb[0].mxu0 %v132
  %v1972 = vpop.f32.mrb[0].mxu0
  %v1973 = vadd.f32 %v1396, %v1972
  %v1974 = vpop.f32.mrb[0].mxu0
  %1975 = vmatprep.mubr.f32.mxu0 %v149
  %1976 = vmatmul.mubr.f32.gmra.mrb[0].mxu0 %v148
  %v1977 = vpop.f32.mrb[0].mxu0
  %v1978 = vadd.f32 %v1401, %v1977
  %v1979 = vpop.f32.mrb[0].mxu0
  %1980 = vmatprep.mubr.f32.mxu0 %v165
  %1981 = vmatmul.mubr.f32.gmra.mrb[0].mxu0 %v164
  %v1982 = vpop.f32.mrb[0].mxu0
  %v1983 = vadd.f32 %v1406, %v1982
  %v1984 = vpop.f32.mrb[0].mxu0
  %1985 = vmatprep.mubr.f32.mxu0 %v181
  %1986 = vmatmul.mubr.f32.gmra.mrb[0].mxu0 %v180
  %v1987 = vpop.f32.mrb[0].mxu0
  %v1988 = vadd.f32 %v1411, %v1987
  %v1989 = vpop.f32.mrb[0].mxu0
  %1990 = vmatprep.mubr.f32.mxu0 %v197
  %1991 = vmatmul.mubr.f32.gmra.mrb[0].mxu0 %v196
  %v1992 = vpop.f32.mrb[0].mxu0
  %v1993 = vadd.f32 %v1416, %v1992
  %v1994 = vpop.f32.mrb[0].mxu0
  %1995 = vmatprep.mubr.f32.mxu0 %v213
  %1996 = vmatmul.mubr.f32.gmra.mrb[0].mxu0 %v212
  %v1997 = vpop.f32.mrb[0].mxu0
  %v1998 = vadd.f32 %v1421, %v1997
  %v1999 = vpop.f32.mrb[0].mxu0
  %2000 = vmatprep.mubr.f32.mxu0 %v229
  %2001 = vmatmul.mubr.f32.gmra.mrb[0].mxu0 %v228
  %v2002 = vpop.f32.mrb[0].mxu0
  %v2003 = vadd.f32 %v1426, %v2002
  %v2004 = vpop.f32.mrb[0].mxu0
  %2005 = vmatprep.mubr.f32.mxu0 %v245
  %2006 = vmatmul.mubr.f32.gmra.mrb[0].mxu0 %v244
  %v2007 = vpop.f32.mrb[0].mxu0
  %v2008 = vadd.f32 %v1431, %v2007
  %v2009 = vpop.f32.mrb[0].mxu0
  %2010 = vmatprep.mubr.f32.mxu0 %v261
  %2011 = vmatmul.mubr.f32.gmra.mrb[0].mxu0 %v260
  %v2012 = vpop.f32.mrb[0].mxu0
  %v2013 = vadd.f32 %v1436, %v2012
  %v2014 = vpop.f32.mrb[0].mxu0
  %2015 = vmatprep.mubr.f32.mxu0 %v277
  %2016 = vmatmul.mubr.f32.gmra.mrb[0].mxu0 %v276
  %v2017 = vpop.f32.mrb[0].mxu0
  %v2018 = vadd.f32 %v1441, %v2017
  %v2019 = vpop.f32.mrb[0].mxu0
  %2020 = vmatprep.mubr.f32.mxu0 %v293
  %2021 = vmatmul.mubr.f32.gmra.mrb[0].mxu0 %v292
  %v2022 = vpop.f32.mrb[0].mxu0
  %v2023 = vadd.f32 %v1446, %v2022
  %v2024 = vpop.f32.mrb[0].mxu0
  %2025 = vmatprep.mubr.f32.mxu0 %v309
  %2026 = vmatmul.mubr.f32.gmra.mrb[0].mxu0 %v308
  %v2027 = vpop.f32.mrb[0].mxu0
  %v2028 = vadd.f32 %v1451, %v2027
  %v2029 = vpop.f32.mrb[0].mxu0
  %2030 = vmatprep.mubr.f32.mxu0 %v325
  %2031 = vmatmul.mubr.f32.gmra.mrb[0].mxu0 %v324
  %v2032 = vpop.f32.mrb[0].mxu0
  %v2033 = vadd.f32 %v1456, %v2032
  %v2034 = vpop.f32.mrb[0].mxu0
  %2035 = vmatprep.mubr.f32.mxu0 %v341
  %2036 = vmatmul.mubr.f32.gmra.mrb[0].mxu0 %v340
  %v2037 = vpop.f32.mrb[0].mxu0
  %v2038 = vadd.f32 %v1461, %v2037
  %v2039 = vpop.f32.mrb[0].mxu0
  %2040 = vmatprep.mubr.f32.mxu0 %v357
  %2041 = vmatmul.mubr.f32.gmra.mrb[0].mxu0 %v356
  %v2042 = vpop.f32.mrb[0].mxu0
  %v2043 = vadd.f32 %v1466, %v2042
  %v2044 = vpop.f32.mrb[0].mxu0
  %2045 = vmatprep.mubr.f32.mxu0 %v373
  %2046 = vmatmul.mubr.f32.gmra.mrb[0].mxu0 %v372
  %v2047 = vpop.f32.mrb[0].mxu0
  %v2048 = vadd.f32 %v1471, %v2047
  %v2049 = vpop.f32.mrb[0].mxu0
  %2050 = vmatprep.mubr.f32.mxu0 %v389
  %2051 = vmatmul.mubr.f32.gmra.mrb[0].mxu0 %v388
  %v2052 = vpop.f32.mrb[0].mxu0
  %v2053 = vadd.f32 %v1476, %v2052
  %v2054 = vpop.f32.mrb[0].mxu0
  %2055 = vmatprep.mubr.f32.mxu0 %v405
  %2056 = vmatmul.mubr.f32.gmra.mrb[0].mxu0 %v404
  %v2057 = vpop.f32.mrb[0].mxu0
  %v2058 = vadd.f32 %v1481, %v2057
  %v2059 = vpop.f32.mrb[0].mxu0
  %2060 = vmatprep.mubr.f32.mxu0 %v421
  %2061 = vmatmul.mubr.f32.gmra.mrb[0].mxu0 %v420
  %v2062 = vpop.f32.mrb[0].mxu0
  %v2063 = vadd.f32 %v1486, %v2062
  %v2064 = vpop.f32.mrb[0].mxu0
  %2065 = vmatprep.mubr.f32.mxu0 %v437
  %2066 = vmatmul.mubr.f32.gmra.mrb[0].mxu0 %v436
  %v2067 = vpop.f32.mrb[0].mxu0
  %v2068 = vadd.f32 %v1491, %v2067
  %v2069 = vpop.f32.mrb[0].mxu0
  %2070 = vmatprep.mubr.f32.mxu0 %v453
  %2071 = vmatmul.mubr.f32.gmra.mrb[0].mxu0 %v452
  %v2072 = vpop.f32.mrb[0].mxu0
  %v2073 = vadd.f32 %v1496, %v2072
  %v2074 = vpop.f32.mrb[0].mxu0
  %2075 = vmatprep.mubr.f32.mxu0 %v469
  %2076 = vmatmul.mubr.f32.gmra.mrb[0].mxu0 %v468
  %v2077 = vpop.f32.mrb[0].mxu0
  %v2078 = vadd.f32 %v1501, %v2077
  %v2079 = vpop.f32.mrb[0].mxu0
  %2080 = vmatprep.mubr.f32.mxu0 %v485
  %2081 = vmatmul.mubr.f32.gmra.mrb[0].mxu0 %v484
  %v2082 = vpop.f32.mrb[0].mxu0
  %v2083 = vadd.f32 %v1506, %v2082
  %v2084 = vpop.f32.mrb[0].mxu0
  %2085 = vmatprep.mubr.f32.mxu0 %v501
  %2086 = vmatmul.mubr.f32.gmra.mrb[0].mxu0 %v500
  %v2087 = vpop.f32.mrb[0].mxu0
  %v2088 = vadd.f32 %v1511, %v2087
  %v2089 = vpop.f32.mrb[0].mxu0
  %2090 = vmatprep.mubr.f32.mxu0 %v517
  %2091 = vmatmul.mubr.f32.gmra.mrb[0].mxu0 %v516
  %v2092 = vpop.f32.mrb[0].mxu0
  %v2093 = vadd.f32 %v1516, %v2092
  %v2094 = vpop.f32.mrb[0].mxu0
  %2095 = vmatprep.mubr.f32.mxu0 %v533
  %2096 = vmatmul.mubr.f32.gmra.mrb[0].mxu0 %v532
  %v2097 = vpop.f32.mrb[0].mxu0
  %v2098 = vadd.f32 %v1521, %v2097
  %v2099 = vpop.f32.mrb[0].mxu0
  %2100 = vmatprep.mubr.f32.mxu0 %v549
  %2101 = vmatmul.mubr.f32.gmra.mrb[0].mxu0 %v548
  %v2102 = vpop.f32.mrb[0].mxu0
  %v2103 = vadd.f32 %v1526, %v2102
  %v2104 = vpop.f32.mrb[0].mxu0
  %2105 = vmatprep.mubr.f32.mxu0 %v565
  %2106 = vmatmul.mubr.f32.gmra.mrb[0].mxu0 %v564
  %v2107 = vpop.f32.mrb[0].mxu0
  %v2108 = vadd.f32 %v1531, %v2107
  %v2109 = vpop.f32.mrb[0].mxu0
  %2110 = vmatprep.mubr.f32.mxu0 %v581
  %2111 = vmatmul.mubr.f32.gmra.mrb[0].mxu0 %v580
  %v2112 = vpop.f32.mrb[0].mxu0
  %v2113 = vadd.f32 %v1536, %v2112
  %v2114 = vpop.f32.mrb[0].mxu0
  %2115 = vmatprep.mubr.f32.mxu0 %v597
  %2116 = vmatmul.mubr.f32.gmra.mrb[0].mxu0 %v596
  %v2117 = vpop.f32.mrb[0].mxu0
  %v2118 = vadd.f32 %v1541, %v2117
  %v2119 = vpop.f32.mrb[0].mxu0
  %2120 = vmatprep.mubr.f32.mxu0 %v613
  %2121 = vmatmul.mubr.f32.gmra.mrb[0].mxu0 %v612
  %v2122 = vpop.f32.mrb[0].mxu0
  %v2123 = vadd.f32 %v1546, %v2122
  %v2124 = vpop.f32.mrb[0].mxu0
  %2125 = vmatprep.mubr.f32.mxu0 %v629
  %2126 = vmatmul.mubr.f32.gmra.mrb[0].mxu0 %v628
  %v2127 = vpop.f32.mrb[0].mxu0
  %v2128 = vadd.f32 %v1551, %v2127
  %v2129 = vpop.f32.mrb[0].mxu0
  %2130 = vmatprep.mubr.f32.mxu0 %v645
  %2131 = vmatmul.mubr.f32.gmra.mrb[0].mxu0 %v644
  %v2132 = vpop.f32.mrb[0].mxu0
  %v2133 = vadd.f32 %v1556, %v2132
  %v2134 = vpop.f32.mrb[0].mxu0
  %2135 = vmatprep.mubr.f32.mxu0 %v661
  %2136 = vmatmul.mubr.f32.gmra.mrb[0].mxu0 %v660
  %v2137 = vpop.f32.mrb[0].mxu0
  %v2138 = vadd.f32 %v1561, %v2137
  %v2139 = vpop.f32.mrb[0].mxu0
  %2140 = vmatprep.mubr.f32.mxu0 %v677
  %2141 = vmatmul.mubr.f32.gmra.mrb[0].mxu0 %v676
  %v2142 = vpop.f32.mrb[0].mxu0
  %v2143 = vadd.f32 %v1566, %v2142
  %v2144 = vpop.f32.mrb[0].mxu0
  %2145 = vmatprep.mubr.f32.mxu0 %v693
  %2146 = vmatmul.mubr.f32.gmra.mrb[0].mxu0 %v692
  %v2147 = vpop.f32.mrb[0].mxu0
  %v2148 = vadd.f32 %v1571, %v2147
  %v2149 = vpop.f32.mrb[0].mxu0
  %2150 = vmatprep.mubr.f32.mxu0 %v709
  %2151 = vmatmul.mubr.f32.gmra.mrb[0].mxu0 %v708
  %v2152 = vpop.f32.mrb[0].mxu0
  %v2153 = vadd.f32 %v1576, %v2152
  %v2154 = vpop.f32.mrb[0].mxu0
  %2155 = vmatprep.mubr.f32.mxu0 %v725
  %2156 = vmatmul.mubr.f32.gmra.mrb[0].mxu0 %v724
  %v2157 = vpop.f32.mrb[0].mxu0
  %v2158 = vadd.f32 %v1581, %v2157
  %v2159 = vpop.f32.mrb[0].mxu0
  %2160 = vmatprep.mubr.f32.mxu0 %v741
  %2161 = vmatmul.mubr.f32.gmra.mrb[0].mxu0 %v740
  %v2162 = vpop.f32.mrb[0].mxu0
  %v2163 = vadd.f32 %v1586, %v2162
  %v2164 = vpop.f32.mrb[0].mxu0
  %2165 = vmatprep.mubr.f32.mxu0 %v757
  %2166 = vmatmul.mubr.f32.gmra.mrb[0].mxu0 %v756
  %v2167 = vpop.f32.mrb[0].mxu0
  %v2168 = vadd.f32 %v1591, %v2167
  %v2169 = vpop.f32.mrb[0].mxu0
  %2170 = vmatprep.mubr.f32.mxu0 %v773
  %2171 = vmatmul.mubr.f32.gmra.mrb[0].mxu0 %v772
  %v2172 = vpop.f32.mrb[0].mxu0
  %v2173 = vadd.f32 %v1596, %v2172
  %v2174 = vpop.f32.mrb[0].mxu0
  %2175 = vmatprep.mubr.f32.mxu0 %v789
  %2176 = vmatmul.mubr.f32.gmra.mrb[0].mxu0 %v788
  %v2177 = vpop.f32.mrb[0].mxu0
  %v2178 = vadd.f32 %v1601, %v2177
  %v2179 = vpop.f32.mrb[0].mxu0
  %2180 = vmatprep.mubr.f32.mxu0 %v805
  %2181 = vmatmul.mubr.f32.gmra.mrb[0].mxu0 %v804
  %v2182 = vpop.f32.mrb[0].mxu0
  %v2183 = vadd.f32 %v1606, %v2182
  %v2184 = vpop.f32.mrb[0].mxu0
  %2185 = vmatprep.mubr.f32.mxu0 %v821
  %2186 = vmatmul.mubr.f32.gmra.mrb[0].mxu0 %v820
  %v2187 = vpop.f32.mrb[0].mxu0
  %v2188 = vadd.f32 %v1611, %v2187
  %v2189 = vpop.f32.mrb[0].mxu0
  %2190 = vmatprep.mubr.f32.mxu0 %v837
  %2191 = vmatmul.mubr.f32.gmra.mrb[0].mxu0 %v836
  %v2192 = vpop.f32.mrb[0].mxu0
  %v2193 = vadd.f32 %v1616, %v2192
  %v2194 = vpop.f32.mrb[0].mxu0
  %2195 = vmatprep.mubr.f32.mxu0 %v853
  %2196 = vmatmul.mubr.f32.gmra.mrb[0].mxu0 %v852
  %v2197 = vpop.f32.mrb[0].mxu0
  %v2198 = vadd.f32 %v1621, %v2197
  %v2199 = vpop.f32.mrb[0].mxu0
  %2200 = vmatprep.mubr.f32.mxu0 %v869
  %2201 = vmatmul.mubr.f32.gmra.mrb[0].mxu0 %v868
  %v2202 = vpop.f32.mrb[0].mxu0
  %v2203 = vadd.f32 %v1626, %v2202
  %v2204 = vpop.f32.mrb[0].mxu0
  %2205 = vmatprep.mubr.f32.mxu0 %v885
  %2206 = vmatmul.mubr.f32.gmra.mrb[0].mxu0 %v884
  %v2207 = vpop.f32.mrb[0].mxu0
  %v2208 = vadd.f32 %v1631, %v2207
  %v2209 = vpop.f32.mrb[0].mxu0
  %2210 = vmatprep.mubr.f32.mxu0 %v901
  %2211 = vmatmul.mubr.f32.gmra.mrb[0].mxu0 %v900
  %v2212 = vpop.f32.mrb[0].mxu0
  %v2213 = vadd.f32 %v1636, %v2212
  %v2214 = vpop.f32.mrb[0].mxu0
  %2215 = vmatprep.mubr.f32.mxu0 %v917
  %2216 = vmatmul.mubr.f32.gmra.mrb[0].mxu0 %v916
  %v2217 = vpop.f32.mrb[0].mxu0
  %v2218 = vadd.f32 %v1641, %v2217
  %v2219 = vpop.f32.mrb[0].mxu0
  %2220 = vmatprep.mubr.f32.mxu0 %v933
  %2221 = vmatmul.mubr.f32.gmra.mrb[0].mxu0 %v932
  %v2222 = vpop.f32.mrb[0].mxu0
  %v2223 = vadd.f32 %v1646, %v2222
  %v2224 = vpop.f32.mrb[0].mxu0
  %2225 = vmatprep.mubr.f32.mxu0 %v949
  %2226 = vmatmul.mubr.f32.gmra.mrb[0].mxu0 %v948
  %v2227 = vpop.f32.mrb[0].mxu0
  %v2228 = vadd.f32 %v1651, %v2227
  %v2229 = vpop.f32.mrb[0].mxu0
  %2230 = vmatprep.mubr.f32.mxu0 %v965
  %2231 = vmatmul.mubr.f32.gmra.mrb[0].mxu0 %v964
  %v2232 = vpop.f32.mrb[0].mxu0
  %v2233 = vadd.f32 %v1656, %v2232
  %v2234 = vpop.f32.mrb[0].mxu0
  %2235 = vmatprep.mubr.f32.mxu0 %v981
  %2236 = vmatmul.mubr.f32.gmra.mrb[0].mxu0 %v980
  %v2237 = vpop.f32.mrb[0].mxu0
  %v2238 = vadd.f32 %v1661, %v2237
  %v2239 = vpop.f32.mrb[0].mxu0
  %2240 = vmatprep.mubr.f32.mxu0 %v997
  %2241 = vmatmul.mubr.f32.gmra.mrb[0].mxu0 %v996
  %v2242 = vpop.f32.mrb[0].mxu0
  %v2243 = vadd.f32 %v1666, %v2242
  %v2244 = vpop.f32.mrb[0].mxu0
  %2245 = vmatprep.mubr.f32.mxu0 %v1013
  %2246 = vmatmul.mubr.f32.gmra.mrb[0].mxu0 %v1012
  %v2247 = vpop.f32.mrb[0].mxu0
  %v2248 = vadd.f32 %v1671, %v2247
  %v2249 = vpop.f32.mrb[0].mxu0
  %2250 = vmatprep.mubr.f32.mxu0 %v1029
  %2251 = vmatmul.mubr.f32.gmra.mrb[0].mxu0 %v1028
  %v2252 = vpop.f32.mrb[0].mxu0
  %v2253 = vadd.f32 %v1676, %v2252
  %v2254 = vpop.f32.mrb[0].mxu0
  %2255 = vdwg.mxu0
  %2256 = vmatprep.subr.mxu0 0.0
  %2257 = vmatpush1.msra.mxu0 %v1076
  %2258 = vmatprep.subr.mxu0 0.0
  %2259 = vmatpush1.msra.mxu0 %v1077
  %2260 = vmatprep.subr.mxu0 0.0
  %2261 = vmatpush1.msra.mxu0 %v1078
  %2262 = vmatprep.subr.mxu0 0.0
  %2263 = vmatpush1.msra.mxu0 %v1079
  %2264 = vmatprep.subr.mxu0 0.0
  %2265 = vmatpush1.msra.mxu0 %v1080
  %2266 = vmatprep.subr.mxu0 0.0
  %2267 = vmatpush1.msra.mxu0 %v1081
  %2268 = vmatprep.subr.mxu0 0.0
  %2269 = vmatpush1.msra.mxu0 %v1082
  %2270 = vmatprep.subr.mxu0 0.0
  %2271 = vmatpush1.msra.mxu0 %v1083
  %2272 = vmatprep.subr.mxu0 0.0
  %2273 = vmatpush1.msra.mxu0 %v1084
  %2274 = vmatprep.subr.mxu0 0.0
  %2275 = vmatpush1.msra.mxu0 %v1085
  %2276 = vmatprep.subr.mxu0 0.0
  %2277 = vmatpush1.msra.mxu0 %v1086
  %2278 = vmatprep.subr.mxu0 0.0
  %2279 = vmatpush1.msra.mxu0 %v1087
  %2280 = vmatprep.subr.mxu0 0.0
  %2281 = vmatpush1.msra.mxu0 %v1088
  %2282 = vmatprep.subr.mxu0 0.0
  %2283 = vmatpush1.msra.mxu0 %v1089
  %2284 = vmatprep.subr.mxu0 0.0
  %2285 = vmatpush1.msra.mxu0 %v1090
  %2286 = vmatprep.subr.mxu0 0.0
  %2287 = vmatpush1.msra.mxu0 %v1091
  %2288 = vmatprep.subr.mxu0 0.0
  %2289 = vmatpush1.msra.mxu0 %v1092
  %2290 = vmatprep.subr.mxu0 0.0
  %2291 = vmatpush1.msra.mxu0 %v1093
  %2292 = vmatprep.subr.mxu0 0.0
  %2293 = vmatpush1.msra.mxu0 %v1094
  %2294 = vmatprep.subr.mxu0 0.0
  %2295 = vmatpush1.msra.mxu0 %v1095
  %2296 = vmatprep.subr.mxu0 0.0
  %2297 = vmatpush1.msra.mxu0 %v1096
  %2298 = vmatprep.subr.mxu0 0.0
  %2299 = vmatpush1.msra.mxu0 %v1097
  %2300 = vmatprep.subr.mxu0 0.0
  %2301 = vmatpush1.msra.mxu0 %v1098
  %2302 = vmatprep.subr.mxu0 0.0
  %2303 = vmatpush1.msra.mxu0 %v1099
  %2304 = vmatprep.subr.mxu0 0.0
  %2305 = vmatpush1.msra.mxu0 %v1100
  %2306 = vmatprep.subr.mxu0 0.0
  %2307 = vmatpush1.msra.mxu0 %v1101
  %2308 = vmatprep.subr.mxu0 0.0
  %2309 = vmatpush1.msra.mxu0 %v1102
  %2310 = vmatprep.subr.mxu0 0.0
  %2311 = vmatpush1.msra.mxu0 %v1103
  %2312 = vmatprep.subr.mxu0 0.0
  %2313 = vmatpush1.msra.mxu0 %v1104
  %2314 = vmatprep.subr.mxu0 0.0
  %2315 = vmatpush1.msra.mxu0 %v1105
  %2316 = vmatprep.subr.mxu0 0.0
  %2317 = vmatpush1.msra.mxu0 %v1106
  %2318 = vmatprep.subr.mxu0 0.0
  %2319 = vmatpush1.msra.mxu0 %v1107
  %2320 = vmatprep.mubr.f32.mxu0 %v23
  %2321 = vmatmul.mubr.f32.gmra.mrb[0].mxu0 %v22
  %v2322 = vpop.f32.mrb[0].mxu0
  %v2323 = vadd.f32 %v1938, %v2322
  %v2324 = vpop.f32.mrb[0].mxu0
  %2325 = vmatprep.mubr.f32.mxu0 %v39
  %2326 = vmatmul.mubr.f32.gmra.mrb[0].mxu0 %v38
  %v2327 = vpop.f32.mrb[0].mxu0
  %v2328 = vadd.f32 %v1943, %v2327
  %v2329 = vpop.f32.mrb[0].mxu0
  %2330 = vmatprep.mubr.f32.mxu0 %v55
  %2331 = vmatmul.mubr.f32.gmra.mrb[0].mxu0 %v54
  %v2332 = vpop.f32.mrb[0].mxu0
  %v2333 = vadd.f32 %v1948, %v2332
  %v2334 = vpop.f32.mrb[0].mxu0
  %2335 = vmatprep.mubr.f32.mxu0 %v71
  %2336 = vmatmul.mubr.f32.gmra.mrb[0].mxu0 %v70
  %v2337 = vpop.f32.mrb[0].mxu0
  %v2338 = vadd.f32 %v1953, %v2337
  %v2339 = vpop.f32.mrb[0].mxu0
  %2340 = vmatprep.mubr.f32.mxu0 %v87
  %2341 = vmatmul.mubr.f32.gmra.mrb[0].mxu0 %v86
  %v2342 = vpop.f32.mrb[0].mxu0
  %v2343 = vadd.f32 %v1958, %v2342
  %v2344 = vpop.f32.mrb[0].mxu0
  %2345 = vmatprep.mubr.f32.mxu0 %v103
  %2346 = vmatmul.mubr.f32.gmra.mrb[0].mxu0 %v102
  %v2347 = vpop.f32.mrb[0].mxu0
  %v2348 = vadd.f32 %v1963, %v2347
  %v2349 = vpop.f32.mrb[0].mxu0
  %2350 = vmatprep.mubr.f32.mxu0 %v119
  %2351 = vmatmul.mubr.f32.gmra.mrb[0].mxu0 %v118
  %v2352 = vpop.f32.mrb[0].mxu0
  %v2353 = vadd.f32 %v1968, %v2352
  %v2354 = vpop.f32.mrb[0].mxu0
  %2355 = vmatprep.mubr.f32.mxu0 %v135
  %2356 = vmatmul.mubr.f32.gmra.mrb[0].mxu0 %v134
  %v2357 = vpop.f32.mrb[0].mxu0
  %v2358 = vadd.f32 %v1973, %v2357
  %v2359 = vpop.f32.mrb[0].mxu0
  %2360 = vmatprep.mubr.f32.mxu0 %v151
  %2361 = vmatmul.mubr.f32.gmra.mrb[0].mxu0 %v150
  %v2362 = vpop.f32.mrb[0].mxu0
  %v2363 = vadd.f32 %v1978, %v2362
  %v2364 = vpop.f32.mrb[0].mxu0
  %2365 = vmatprep.mubr.f32.mxu0 %v167
  %2366 = vmatmul.mubr.f32.gmra.mrb[0].mxu0 %v166
  %v2367 = vpop.f32.mrb[0].mxu0
  %v2368 = vadd.f32 %v1983, %v2367
  %v2369 = vpop.f32.mrb[0].mxu0
  %2370 = vmatprep.mubr.f32.mxu0 %v183
  %2371 = vmatmul.mubr.f32.gmra.mrb[0].mxu0 %v182
  %v2372 = vpop.f32.mrb[0].mxu0
  %v2373 = vadd.f32 %v1988, %v2372
  %v2374 = vpop.f32.mrb[0].mxu0
  %2375 = vmatprep.mubr.f32.mxu0 %v199
  %2376 = vmatmul.mubr.f32.gmra.mrb[0].mxu0 %v198
  %v2377 = vpop.f32.mrb[0].mxu0
  %v2378 = vadd.f32 %v1993, %v2377
  %v2379 = vpop.f32.mrb[0].mxu0
  %2380 = vmatprep.mubr.f32.mxu0 %v215
  %2381 = vmatmul.mubr.f32.gmra.mrb[0].mxu0 %v214
  %v2382 = vpop.f32.mrb[0].mxu0
  %v2383 = vadd.f32 %v1998, %v2382
  %v2384 = vpop.f32.mrb[0].mxu0
  %2385 = vmatprep.mubr.f32.mxu0 %v231
  %2386 = vmatmul.mubr.f32.gmra.mrb[0].mxu0 %v230
  %v2387 = vpop.f32.mrb[0].mxu0
  %v2388 = vadd.f32 %v2003, %v2387
  %v2389 = vpop.f32.mrb[0].mxu0
  %2390 = vmatprep.mubr.f32.mxu0 %v247
  %2391 = vmatmul.mubr.f32.gmra.mrb[0].mxu0 %v246
  %v2392 = vpop.f32.mrb[0].mxu0
  %v2393 = vadd.f32 %v2008, %v2392
  %v2394 = vpop.f32.mrb[0].mxu0
  %2395 = vmatprep.mubr.f32.mxu0 %v263
  %2396 = vmatmul.mubr.f32.gmra.mrb[0].mxu0 %v262
  %v2397 = vpop.f32.mrb[0].mxu0
  %v2398 = vadd.f32 %v2013, %v2397
  %v2399 = vpop.f32.mrb[0].mxu0
  %2400 = vmatprep.mubr.f32.mxu0 %v279
  %2401 = vmatmul.mubr.f32.gmra.mrb[0].mxu0 %v278
  %v2402 = vpop.f32.mrb[0].mxu0
  %v2403 = vadd.f32 %v2018, %v2402
  %v2404 = vpop.f32.mrb[0].mxu0
  %2405 = vmatprep.mubr.f32.mxu0 %v295
  %2406 = vmatmul.mubr.f32.gmra.mrb[0].mxu0 %v294
  %v2407 = vpop.f32.mrb[0].mxu0
  %v2408 = vadd.f32 %v2023, %v2407
  %v2409 = vpop.f32.mrb[0].mxu0
  %2410 = vmatprep.mubr.f32.mxu0 %v311
  %2411 = vmatmul.mubr.f32.gmra.mrb[0].mxu0 %v310
  %v2412 = vpop.f32.mrb[0].mxu0
  %v2413 = vadd.f32 %v2028, %v2412
  %v2414 = vpop.f32.mrb[0].mxu0
  %2415 = vmatprep.mubr.f32.mxu0 %v327
  %2416 = vmatmul.mubr.f32.gmra.mrb[0].mxu0 %v326
  %v2417 = vpop.f32.mrb[0].mxu0
  %v2418 = vadd.f32 %v2033, %v2417
  %v2419 = vpop.f32.mrb[0].mxu0
  %2420 = vmatprep.mubr.f32.mxu0 %v343
  %2421 = vmatmul.mubr.f32.gmra.mrb[0].mxu0 %v342
  %v2422 = vpop.f32.mrb[0].mxu0
  %v2423 = vadd.f32 %v2038, %v2422
  %v2424 = vpop.f32.mrb[0].mxu0
  %2425 = vmatprep.mubr.f32.mxu0 %v359
  %2426 = vmatmul.mubr.f32.gmra.mrb[0].mxu0 %v358
  %v2427 = vpop.f32.mrb[0].mxu0
  %v2428 = vadd.f32 %v2043, %v2427
  %v2429 = vpop.f32.mrb[0].mxu0
  %2430 = vmatprep.mubr.f32.mxu0 %v375
  %2431 = vmatmul.mubr.f32.gmra.mrb[0].mxu0 %v374
  %v2432 = vpop.f32.mrb[0].mxu0
  %v2433 = vadd.f32 %v2048, %v2432
  %v2434 = vpop.f32.mrb[0].mxu0
  %2435 = vmatprep.mubr.f32.mxu0 %v391
  %2436 = vmatmul.mubr.f32.gmra.mrb[0].mxu0 %v390
  %v2437 = vpop.f32.mrb[0].mxu0
  %v2438 = vadd.f32 %v2053, %v2437
  %v2439 = vpop.f32.mrb[0].mxu0
  %2440 = vmatprep.mubr.f32.mxu0 %v407
  %2441 = vmatmul.mubr.f32.gmra.mrb[0].mxu0 %v406
  %v2442 = vpop.f32.mrb[0].mxu0
  %v2443 = vadd.f32 %v2058, %v2442
  %v2444 = vpop.f32.mrb[0].mxu0
  %2445 = vmatprep.mubr.f32.mxu0 %v423
  %2446 = vmatmul.mubr.f32.gmra.mrb[0].mxu0 %v422
  %v2447 = vpop.f32.mrb[0].mxu0
  %v2448 = vadd.f32 %v2063, %v2447
  %v2449 = vpop.f32.mrb[0].mxu0
  %2450 = vmatprep.mubr.f32.mxu0 %v439
  %2451 = vmatmul.mubr.f32.gmra.mrb[0].mxu0 %v438
  %v2452 = vpop.f32.mrb[0].mxu0
  %v2453 = vadd.f32 %v2068, %v2452
  %v2454 = vpop.f32.mrb[0].mxu0
  %2455 = vmatprep.mubr.f32.mxu0 %v455
  %2456 = vmatmul.mubr.f32.gmra.mrb[0].mxu0 %v454
  %v2457 = vpop.f32.mrb[0].mxu0
  %v2458 = vadd.f32 %v2073, %v2457
  %v2459 = vpop.f32.mrb[0].mxu0
  %2460 = vmatprep.mubr.f32.mxu0 %v471
  %2461 = vmatmul.mubr.f32.gmra.mrb[0].mxu0 %v470
  %v2462 = vpop.f32.mrb[0].mxu0
  %v2463 = vadd.f32 %v2078, %v2462
  %v2464 = vpop.f32.mrb[0].mxu0
  %2465 = vmatprep.mubr.f32.mxu0 %v487
  %2466 = vmatmul.mubr.f32.gmra.mrb[0].mxu0 %v486
  %v2467 = vpop.f32.mrb[0].mxu0
  %v2468 = vadd.f32 %v2083, %v2467
  %v2469 = vpop.f32.mrb[0].mxu0
  %2470 = vmatprep.mubr.f32.mxu0 %v503
  %2471 = vmatmul.mubr.f32.gmra.mrb[0].mxu0 %v502
  %v2472 = vpop.f32.mrb[0].mxu0
  %v2473 = vadd.f32 %v2088, %v2472
  %v2474 = vpop.f32.mrb[0].mxu0
  %2475 = vmatprep.mubr.f32.mxu0 %v519
  %2476 = vmatmul.mubr.f32.gmra.mrb[0].mxu0 %v518
  %v2477 = vpop.f32.mrb[0].mxu0
  %v2478 = vadd.f32 %v2093, %v2477
  %v2479 = vpop.f32.mrb[0].mxu0
  %2480 = vmatprep.mubr.f32.mxu0 %v535
  %2481 = vmatmul.mubr.f32.gmra.mrb[0].mxu0 %v534
  %v2482 = vpop.f32.mrb[0].mxu0
  %v2483 = vadd.f32 %v2098, %v2482
  %v2484 = vpop.f32.mrb[0].mxu0
  %2485 = vmatprep.mubr.f32.mxu0 %v551
  %2486 = vmatmul.mubr.f32.gmra.mrb[0].mxu0 %v550
  %v2487 = vpop.f32.mrb[0].mxu0
  %v2488 = vadd.f32 %v2103, %v2487
  %v2489 = vpop.f32.mrb[0].mxu0
  %2490 = vmatprep.mubr.f32.mxu0 %v567
  %2491 = vmatmul.mubr.f32.gmra.mrb[0].mxu0 %v566
  %v2492 = vpop.f32.mrb[0].mxu0
  %v2493 = vadd.f32 %v2108, %v2492
  %v2494 = vpop.f32.mrb[0].mxu0
  %2495 = vmatprep.mubr.f32.mxu0 %v583
  %2496 = vmatmul.mubr.f32.gmra.mrb[0].mxu0 %v582
  %v2497 = vpop.f32.mrb[0].mxu0
  %v2498 = vadd.f32 %v2113, %v2497
  %v2499 = vpop.f32.mrb[0].mxu0
  %2500 = vmatprep.mubr.f32.mxu0 %v599
  %2501 = vmatmul.mubr.f32.gmra.mrb[0].mxu0 %v598
  %v2502 = vpop.f32.mrb[0].mxu0
  %v2503 = vadd.f32 %v2118, %v2502
  %v2504 = vpop.f32.mrb[0].mxu0
  %2505 = vmatprep.mubr.f32.mxu0 %v615
  %2506 = vmatmul.mubr.f32.gmra.mrb[0].mxu0 %v614
  %v2507 = vpop.f32.mrb[0].mxu0
  %v2508 = vadd.f32 %v2123, %v2507
  %v2509 = vpop.f32.mrb[0].mxu0
  %2510 = vmatprep.mubr.f32.mxu0 %v631
  %2511 = vmatmul.mubr.f32.gmra.mrb[0].mxu0 %v630
  %v2512 = vpop.f32.mrb[0].mxu0
  %v2513 = vadd.f32 %v2128, %v2512
  %v2514 = vpop.f32.mrb[0].mxu0
  %2515 = vmatprep.mubr.f32.mxu0 %v647
  %2516 = vmatmul.mubr.f32.gmra.mrb[0].mxu0 %v646
  %v2517 = vpop.f32.mrb[0].mxu0
  %v2518 = vadd.f32 %v2133, %v2517
  %v2519 = vpop.f32.mrb[0].mxu0
  %2520 = vmatprep.mubr.f32.mxu0 %v663
  %2521 = vmatmul.mubr.f32.gmra.mrb[0].mxu0 %v662
  %v2522 = vpop.f32.mrb[0].mxu0
  %v2523 = vadd.f32 %v2138, %v2522
  %v2524 = vpop.f32.mrb[0].mxu0
  %2525 = vmatprep.mubr.f32.mxu0 %v679
  %2526 = vmatmul.mubr.f32.gmra.mrb[0].mxu0 %v678
  %v2527 = vpop.f32.mrb[0].mxu0
  %v2528 = vadd.f32 %v2143, %v2527
  %v2529 = vpop.f32.mrb[0].mxu0
  %2530 = vmatprep.mubr.f32.mxu0 %v695
  %2531 = vmatmul.mubr.f32.gmra.mrb[0].mxu0 %v694
  %v2532 = vpop.f32.mrb[0].mxu0
  %v2533 = vadd.f32 %v2148, %v2532
  %v2534 = vpop.f32.mrb[0].mxu0
  %2535 = vmatprep.mubr.f32.mxu0 %v711
  %2536 = vmatmul.mubr.f32.gmra.mrb[0].mxu0 %v710
  %v2537 = vpop.f32.mrb[0].mxu0
  %v2538 = vadd.f32 %v2153, %v2537
  %v2539 = vpop.f32.mrb[0].mxu0
  %2540 = vmatprep.mubr.f32.mxu0 %v727
  %2541 = vmatmul.mubr.f32.gmra.mrb[0].mxu0 %v726
  %v2542 = vpop.f32.mrb[0].mxu0
  %v2543 = vadd.f32 %v2158, %v2542
  %v2544 = vpop.f32.mrb[0].mxu0
  %2545 = vmatprep.mubr.f32.mxu0 %v743
  %2546 = vmatmul.mubr.f32.gmra.mrb[0].mxu0 %v742
  %v2547 = vpop.f32.mrb[0].mxu0
  %v2548 = vadd.f32 %v2163, %v2547
  %v2549 = vpop.f32.mrb[0].mxu0
  %2550 = vmatprep.mubr.f32.mxu0 %v759
  %2551 = vmatmul.mubr.f32.gmra.mrb[0].mxu0 %v758
  %v2552 = vpop.f32.mrb[0].mxu0
  %v2553 = vadd.f32 %v2168, %v2552
  %v2554 = vpop.f32.mrb[0].mxu0
  %2555 = vmatprep.mubr.f32.mxu0 %v775
  %2556 = vmatmul.mubr.f32.gmra.mrb[0].mxu0 %v774
  %v2557 = vpop.f32.mrb[0].mxu0
  %v2558 = vadd.f32 %v2173, %v2557
  %v2559 = vpop.f32.mrb[0].mxu0
  %2560 = vmatprep.mubr.f32.mxu0 %v791
  %2561 = vmatmul.mubr.f32.gmra.mrb[0].mxu0 %v790
  %v2562 = vpop.f32.mrb[0].mxu0
  %v2563 = vadd.f32 %v2178, %v2562
  %v2564 = vpop.f32.mrb[0].mxu0
  %2565 = vmatprep.mubr.f32.mxu0 %v807
  %2566 = vmatmul.mubr.f32.gmra.mrb[0].mxu0 %v806
  %v2567 = vpop.f32.mrb[0].mxu0
  %v2568 = vadd.f32 %v2183, %v2567
  %v2569 = vpop.f32.mrb[0].mxu0
  %2570 = vmatprep.mubr.f32.mxu0 %v823
  %2571 = vmatmul.mubr.f32.gmra.mrb[0].mxu0 %v822
  %v2572 = vpop.f32.mrb[0].mxu0
  %v2573 = vadd.f32 %v2188, %v2572
  %v2574 = vpop.f32.mrb[0].mxu0
  %2575 = vmatprep.mubr.f32.mxu0 %v839
  %2576 = vmatmul.mubr.f32.gmra.mrb[0].mxu0 %v838
  %v2577 = vpop.f32.mrb[0].mxu0
  %v2578 = vadd.f32 %v2193, %v2577
  %v2579 = vpop.f32.mrb[0].mxu0
  %2580 = vmatprep.mubr.f32.mxu0 %v855
  %2581 = vmatmul.mubr.f32.gmra.mrb[0].mxu0 %v854
  %v2582 = vpop.f32.mrb[0].mxu0
  %v2583 = vadd.f32 %v2198, %v2582
  %v2584 = vpop.f32.mrb[0].mxu0
  %2585 = vmatprep.mubr.f32.mxu0 %v871
  %2586 = vmatmul.mubr.f32.gmra.mrb[0].mxu0 %v870
  %v2587 = vpop.f32.mrb[0].mxu0
  %v2588 = vadd.f32 %v2203, %v2587
  %v2589 = vpop.f32.mrb[0].mxu0
  %2590 = vmatprep.mubr.f32.mxu0 %v887
  %2591 = vmatmul.mubr.f32.gmra.mrb[0].mxu0 %v886
  %v2592 = vpop.f32.mrb[0].mxu0
  %v2593 = vadd.f32 %v2208, %v2592
  %v2594 = vpop.f32.mrb[0].mxu0
  %2595 = vmatprep.mubr.f32.mxu0 %v903
  %2596 = vmatmul.mubr.f32.gmra.mrb[0].mxu0 %v902
  %v2597 = vpop.f32.mrb[0].mxu0
  %v2598 = vadd.f32 %v2213, %v2597
  %v2599 = vpop.f32.mrb[0].mxu0
  %2600 = vmatprep.mubr.f32.mxu0 %v919
  %2601 = vmatmul.mubr.f32.gmra.mrb[0].mxu0 %v918
  %v2602 = vpop.f32.mrb[0].mxu0
  %v2603 = vadd.f32 %v2218, %v2602
  %v2604 = vpop.f32.mrb[0].mxu0
  %2605 = vmatprep.mubr.f32.mxu0 %v935
  %2606 = vmatmul.mubr.f32.gmra.mrb[0].mxu0 %v934
  %v2607 = vpop.f32.mrb[0].mxu0
  %v2608 = vadd.f32 %v2223, %v2607
  %v2609 = vpop.f32.mrb[0].mxu0
  %2610 = vmatprep.mubr.f32.mxu0 %v951
  %2611 = vmatmul.mubr.f32.gmra.mrb[0].mxu0 %v950
  %v2612 = vpop.f32.mrb[0].mxu0
  %v2613 = vadd.f32 %v2228, %v2612
  %v2614 = vpop.f32.mrb[0].mxu0
  %2615 = vmatprep.mubr.f32.mxu0 %v967
  %2616 = vmatmul.mubr.f32.gmra.mrb[0].mxu0 %v966
  %v2617 = vpop.f32.mrb[0].mxu0
  %v2618 = vadd.f32 %v2233, %v2617
  %v2619 = vpop.f32.mrb[0].mxu0
  %2620 = vmatprep.mubr.f32.mxu0 %v983
  %2621 = vmatmul.mubr.f32.gmra.mrb[0].mxu0 %v982
  %v2622 = vpop.f32.mrb[0].mxu0
  %v2623 = vadd.f32 %v2238, %v2622
  %v2624 = vpop.f32.mrb[0].mxu0
  %2625 = vmatprep.mubr.f32.mxu0 %v999
  %2626 = vmatmul.mubr.f32.gmra.mrb[0].mxu0 %v998
  %v2627 = vpop.f32.mrb[0].mxu0
  %v2628 = vadd.f32 %v2243, %v2627
  %v2629 = vpop.f32.mrb[0].mxu0
  %2630 = vmatprep.mubr.f32.mxu0 %v1015
  %2631 = vmatmul.mubr.f32.gmra.mrb[0].mxu0 %v1014
  %v2632 = vpop.f32.mrb[0].mxu0
  %v2633 = vadd.f32 %v2248, %v2632
  %v2634 = vpop.f32.mrb[0].mxu0
  %2635 = vmatprep.mubr.f32.mxu0 %v1031
  %2636 = vmatmul.mubr.f32.gmra.mrb[0].mxu0 %v1030
  %v2637 = vpop.f32.mrb[0].mxu0
  %v2638 = vadd.f32 %v2253, %v2637
  %v2639 = vpop.f32.mrb[0].mxu0
  %2640 = vdwg.mxu0
  %2641 = vmatprep.subr.mxu0 0.0
  %2642 = vmatpush1.msra.mxu0 %v1108
  %2643 = vmatprep.subr.mxu0 0.0
  %2644 = vmatpush1.msra.mxu0 %v1109
  %2645 = vmatprep.subr.mxu0 0.0
  %2646 = vmatpush1.msra.mxu0 %v1110
  %2647 = vmatprep.subr.mxu0 0.0
  %2648 = vmatpush1.msra.mxu0 %v1111
  %2649 = vmatprep.subr.mxu0 0.0
  %2650 = vmatpush1.msra.mxu0 %v1112
  %2651 = vmatprep.subr.mxu0 0.0
  %2652 = vmatpush1.msra.mxu0 %v1113
  %2653 = vmatprep.subr.mxu0 0.0
  %2654 = vmatpush1.msra.mxu0 %v1114
  %2655 = vmatprep.subr.mxu0 0.0
  %2656 = vmatpush1.msra.mxu0 %v1115
  %2657 = vmatprep.subr.mxu0 0.0
  %2658 = vmatpush1.msra.mxu0 %v1116
  %2659 = vmatprep.subr.mxu0 0.0
  %2660 = vmatpush1.msra.mxu0 %v1117
  %2661 = vmatprep.subr.mxu0 0.0
  %2662 = vmatpush1.msra.mxu0 %v1118
  %2663 = vmatprep.subr.mxu0 0.0
  %2664 = vmatpush1.msra.mxu0 %v1119
  %2665 = vmatprep.subr.mxu0 0.0
  %2666 = vmatpush1.msra.mxu0 %v1120
  %2667 = vmatprep.subr.mxu0 0.0
  %2668 = vmatpush1.msra.mxu0 %v1121
  %2669 = vmatprep.subr.mxu0 0.0
  %2670 = vmatpush1.msra.mxu0 %v1122
  %2671 = vmatprep.subr.mxu0 0.0
  %2672 = vmatpush1.msra.mxu0 %v1123
  %2673 = vmatprep.subr.mxu0 0.0
  %2674 = vmatpush1.msra.mxu0 %v1124
  %2675 = vmatprep.subr.mxu0 0.0
  %2676 = vmatpush1.msra.mxu0 %v1125
  %2677 = vmatprep.subr.mxu0 0.0
  %2678 = vmatpush1.msra.mxu0 %v1126
  %2679 = vmatprep.subr.mxu0 0.0
  %2680 = vmatpush1.msra.mxu0 %v1127
  %2681 = vmatprep.subr.mxu0 0.0
  %2682 = vmatpush1.msra.mxu0 %v1128
  %2683 = vmatprep.subr.mxu0 0.0
  %2684 = vmatpush1.msra.mxu0 %v1129
  %2685 = vmatprep.subr.mxu0 0.0
  %2686 = vmatpush1.msra.mxu0 %v1130
  %2687 = vmatprep.subr.mxu0 0.0
  %2688 = vmatpush1.msra.mxu0 %v1131
  %2689 = vmatprep.subr.mxu0 0.0
  %2690 = vmatpush1.msra.mxu0 %v1132
  %2691 = vmatprep.subr.mxu0 0.0
  %2692 = vmatpush1.msra.mxu0 %v1133
  %2693 = vmatprep.subr.mxu0 0.0
  %2694 = vmatpush1.msra.mxu0 %v1134
  %2695 = vmatprep.subr.mxu0 0.0
  %2696 = vmatpush1.msra.mxu0 %v1135
  %2697 = vmatprep.subr.mxu0 0.0
  %2698 = vmatpush1.msra.mxu0 %v1136
  %2699 = vmatprep.subr.mxu0 0.0
  %2700 = vmatpush1.msra.mxu0 %v1137
  %2701 = vmatprep.subr.mxu0 0.0
  %2702 = vmatpush1.msra.mxu0 %v1138
  %2703 = vmatprep.subr.mxu0 0.0
  %2704 = vmatpush1.msra.mxu0 %v1139
  %2705 = vmatprep.mubr.f32.mxu0 %v25
  %2706 = vmatmul.mubr.f32.gmra.mrb[0].mxu0 %v24
  %v2707 = vpop.f32.mrb[0].mxu0
  %v2708 = vadd.f32 %v2323, %v2707
  %v2709 = vpop.f32.mrb[0].mxu0
  %2710 = vmatprep.mubr.f32.mxu0 %v41
  %2711 = vmatmul.mubr.f32.gmra.mrb[0].mxu0 %v40
  %v2712 = vpop.f32.mrb[0].mxu0
  %v2713 = vadd.f32 %v2328, %v2712
  %v2714 = vpop.f32.mrb[0].mxu0
  %2715 = vmatprep.mubr.f32.mxu0 %v57
  %2716 = vmatmul.mubr.f32.gmra.mrb[0].mxu0 %v56
  %v2717 = vpop.f32.mrb[0].mxu0
  %v2718 = vadd.f32 %v2333, %v2717
  %v2719 = vpop.f32.mrb[0].mxu0
  %2720 = vmatprep.mubr.f32.mxu0 %v73
  %2721 = vmatmul.mubr.f32.gmra.mrb[0].mxu0 %v72
  %v2722 = vpop.f32.mrb[0].mxu0
  %v2723 = vadd.f32 %v2338, %v2722
  %v2724 = vpop.f32.mrb[0].mxu0
  %2725 = vmatprep.mubr.f32.mxu0 %v89
  %2726 = vmatmul.mubr.f32.gmra.mrb[0].mxu0 %v88
  %v2727 = vpop.f32.mrb[0].mxu0
  %v2728 = vadd.f32 %v2343, %v2727
  %v2729 = vpop.f32.mrb[0].mxu0
  %2730 = vmatprep.mubr.f32.mxu0 %v105
  %2731 = vmatmul.mubr.f32.gmra.mrb[0].mxu0 %v104
  %v2732 = vpop.f32.mrb[0].mxu0
  %v2733 = vadd.f32 %v2348, %v2732
  %v2734 = vpop.f32.mrb[0].mxu0
  %2735 = vmatprep.mubr.f32.mxu0 %v121
  %2736 = vmatmul.mubr.f32.gmra.mrb[0].mxu0 %v120
  %v2737 = vpop.f32.mrb[0].mxu0
  %v2738 = vadd.f32 %v2353, %v2737
  %v2739 = vpop.f32.mrb[0].mxu0
  %2740 = vmatprep.mubr.f32.mxu0 %v137
  %2741 = vmatmul.mubr.f32.gmra.mrb[0].mxu0 %v136
  %v2742 = vpop.f32.mrb[0].mxu0
  %v2743 = vadd.f32 %v2358, %v2742
  %v2744 = vpop.f32.mrb[0].mxu0
  %2745 = vmatprep.mubr.f32.mxu0 %v153
  %2746 = vmatmul.mubr.f32.gmra.mrb[0].mxu0 %v152
  %v2747 = vpop.f32.mrb[0].mxu0
  %v2748 = vadd.f32 %v2363, %v2747
  %v2749 = vpop.f32.mrb[0].mxu0
  %2750 = vmatprep.mubr.f32.mxu0 %v169
  %2751 = vmatmul.mubr.f32.gmra.mrb[0].mxu0 %v168
  %v2752 = vpop.f32.mrb[0].mxu0
  %v2753 = vadd.f32 %v2368, %v2752
  %v2754 = vpop.f32.mrb[0].mxu0
  %2755 = vmatprep.mubr.f32.mxu0 %v185
  %2756 = vmatmul.mubr.f32.gmra.mrb[0].mxu0 %v184
  %v2757 = vpop.f32.mrb[0].mxu0
  %v2758 = vadd.f32 %v2373, %v2757
  %v2759 = vpop.f32.mrb[0].mxu0
  %2760 = vmatprep.mubr.f32.mxu0 %v201
  %2761 = vmatmul.mubr.f32.gmra.mrb[0].mxu0 %v200
  %v2762 = vpop.f32.mrb[0].mxu0
  %v2763 = vadd.f32 %v2378, %v2762
  %v2764 = vpop.f32.mrb[0].mxu0
  %2765 = vmatprep.mubr.f32.mxu0 %v217
  %2766 = vmatmul.mubr.f32.gmra.mrb[0].mxu0 %v216
  %v2767 = vpop.f32.mrb[0].mxu0
  %v2768 = vadd.f32 %v2383, %v2767
  %v2769 = vpop.f32.mrb[0].mxu0
  %2770 = vmatprep.mubr.f32.mxu0 %v233
  %2771 = vmatmul.mubr.f32.gmra.mrb[0].mxu0 %v232
  %v2772 = vpop.f32.mrb[0].mxu0
  %v2773 = vadd.f32 %v2388, %v2772
  %v2774 = vpop.f32.mrb[0].mxu0
  %2775 = vmatprep.mubr.f32.mxu0 %v249
  %2776 = vmatmul.mubr.f32.gmra.mrb[0].mxu0 %v248
  %v2777 = vpop.f32.mrb[0].mxu0
  %v2778 = vadd.f32 %v2393, %v2777
  %v2779 = vpop.f32.mrb[0].mxu0
  %2780 = vmatprep.mubr.f32.mxu0 %v265
  %2781 = vmatmul.mubr.f32.gmra.mrb[0].mxu0 %v264
  %v2782 = vpop.f32.mrb[0].mxu0
  %v2783 = vadd.f32 %v2398, %v2782
  %v2784 = vpop.f32.mrb[0].mxu0
  %2785 = vmatprep.mubr.f32.mxu0 %v281
  %2786 = vmatmul.mubr.f32.gmra.mrb[0].mxu0 %v280
  %v2787 = vpop.f32.mrb[0].mxu0
  %v2788 = vadd.f32 %v2403, %v2787
  %v2789 = vpop.f32.mrb[0].mxu0
  %2790 = vmatprep.mubr.f32.mxu0 %v297
  %2791 = vmatmul.mubr.f32.gmra.mrb[0].mxu0 %v296
  %v2792 = vpop.f32.mrb[0].mxu0
  %v2793 = vadd.f32 %v2408, %v2792
  %v2794 = vpop.f32.mrb[0].mxu0
  %2795 = vmatprep.mubr.f32.mxu0 %v313
  %2796 = vmatmul.mubr.f32.gmra.mrb[0].mxu0 %v312
  %v2797 = vpop.f32.mrb[0].mxu0
  %v2798 = vadd.f32 %v2413, %v2797
  %v2799 = vpop.f32.mrb[0].mxu0
  %2800 = vmatprep.mubr.f32.mxu0 %v329
  %2801 = vmatmul.mubr.f32.gmra.mrb[0].mxu0 %v328
  %v2802 = vpop.f32.mrb[0].mxu0
  %v2803 = vadd.f32 %v2418, %v2802
  %v2804 = vpop.f32.mrb[0].mxu0
  %2805 = vmatprep.mubr.f32.mxu0 %v345
  %2806 = vmatmul.mubr.f32.gmra.mrb[0].mxu0 %v344
  %v2807 = vpop.f32.mrb[0].mxu0
  %v2808 = vadd.f32 %v2423, %v2807
  %v2809 = vpop.f32.mrb[0].mxu0
  %2810 = vmatprep.mubr.f32.mxu0 %v361
  %2811 = vmatmul.mubr.f32.gmra.mrb[0].mxu0 %v360
  %v2812 = vpop.f32.mrb[0].mxu0
  %v2813 = vadd.f32 %v2428, %v2812
  %v2814 = vpop.f32.mrb[0].mxu0
  %2815 = vmatprep.mubr.f32.mxu0 %v377
  %2816 = vmatmul.mubr.f32.gmra.mrb[0].mxu0 %v376
  %v2817 = vpop.f32.mrb[0].mxu0
  %v2818 = vadd.f32 %v2433, %v2817
  %v2819 = vpop.f32.mrb[0].mxu0
  %2820 = vmatprep.mubr.f32.mxu0 %v393
  %2821 = vmatmul.mubr.f32.gmra.mrb[0].mxu0 %v392
  %v2822 = vpop.f32.mrb[0].mxu0
  %v2823 = vadd.f32 %v2438, %v2822
  %v2824 = vpop.f32.mrb[0].mxu0
  %2825 = vmatprep.mubr.f32.mxu0 %v409
  %2826 = vmatmul.mubr.f32.gmra.mrb[0].mxu0 %v408
  %v2827 = vpop.f32.mrb[0].mxu0
  %v2828 = vadd.f32 %v2443, %v2827
  %v2829 = vpop.f32.mrb[0].mxu0
  %2830 = vmatprep.mubr.f32.mxu0 %v425
  %2831 = vmatmul.mubr.f32.gmra.mrb[0].mxu0 %v424
  %v2832 = vpop.f32.mrb[0].mxu0
  %v2833 = vadd.f32 %v2448, %v2832
  %v2834 = vpop.f32.mrb[0].mxu0
  %2835 = vmatprep.mubr.f32.mxu0 %v441
  %2836 = vmatmul.mubr.f32.gmra.mrb[0].mxu0 %v440
  %v2837 = vpop.f32.mrb[0].mxu0
  %v2838 = vadd.f32 %v2453, %v2837
  %v2839 = vpop.f32.mrb[0].mxu0
  %2840 = vmatprep.mubr.f32.mxu0 %v457
  %2841 = vmatmul.mubr.f32.gmra.mrb[0].mxu0 %v456
  %v2842 = vpop.f32.mrb[0].mxu0
  %v2843 = vadd.f32 %v2458, %v2842
  %v2844 = vpop.f32.mrb[0].mxu0
  %2845 = vmatprep.mubr.f32.mxu0 %v473
  %2846 = vmatmul.mubr.f32.gmra.mrb[0].mxu0 %v472
  %v2847 = vpop.f32.mrb[0].mxu0
  %v2848 = vadd.f32 %v2463, %v2847
  %v2849 = vpop.f32.mrb[0].mxu0
  %2850 = vmatprep.mubr.f32.mxu0 %v489
  %2851 = vmatmul.mubr.f32.gmra.mrb[0].mxu0 %v488
  %v2852 = vpop.f32.mrb[0].mxu0
  %v2853 = vadd.f32 %v2468, %v2852
  %v2854 = vpop.f32.mrb[0].mxu0
  %2855 = vmatprep.mubr.f32.mxu0 %v505
  %2856 = vmatmul.mubr.f32.gmra.mrb[0].mxu0 %v504
  %v2857 = vpop.f32.mrb[0].mxu0
  %v2858 = vadd.f32 %v2473, %v2857
  %v2859 = vpop.f32.mrb[0].mxu0
  %2860 = vmatprep.mubr.f32.mxu0 %v521
  %2861 = vmatmul.mubr.f32.gmra.mrb[0].mxu0 %v520
  %v2862 = vpop.f32.mrb[0].mxu0
  %v2863 = vadd.f32 %v2478, %v2862
  %v2864 = vpop.f32.mrb[0].mxu0
  %2865 = vmatprep.mubr.f32.mxu0 %v537
  %2866 = vmatmul.mubr.f32.gmra.mrb[0].mxu0 %v536
  %v2867 = vpop.f32.mrb[0].mxu0
  %v2868 = vadd.f32 %v2483, %v2867
  %v2869 = vpop.f32.mrb[0].mxu0
  %2870 = vmatprep.mubr.f32.mxu0 %v553
  %2871 = vmatmul.mubr.f32.gmra.mrb[0].mxu0 %v552
  %v2872 = vpop.f32.mrb[0].mxu0
  %v2873 = vadd.f32 %v2488, %v2872
  %v2874 = vpop.f32.mrb[0].mxu0
  %2875 = vmatprep.mubr.f32.mxu0 %v569
  %2876 = vmatmul.mubr.f32.gmra.mrb[0].mxu0 %v568
  %v2877 = vpop.f32.mrb[0].mxu0
  %v2878 = vadd.f32 %v2493, %v2877
  %v2879 = vpop.f32.mrb[0].mxu0
  %2880 = vmatprep.mubr.f32.mxu0 %v585
  %2881 = vmatmul.mubr.f32.gmra.mrb[0].mxu0 %v584
  %v2882 = vpop.f32.mrb[0].mxu0
  %v2883 = vadd.f32 %v2498, %v2882
  %v2884 = vpop.f32.mrb[0].mxu0
  %2885 = vmatprep.mubr.f32.mxu0 %v601
  %2886 = vmatmul.mubr.f32.gmra.mrb[0].mxu0 %v600
  %v2887 = vpop.f32.mrb[0].mxu0
  %v2888 = vadd.f32 %v2503, %v2887
  %v2889 = vpop.f32.mrb[0].mxu0
  %2890 = vmatprep.mubr.f32.mxu0 %v617
  %2891 = vmatmul.mubr.f32.gmra.mrb[0].mxu0 %v616
  %v2892 = vpop.f32.mrb[0].mxu0
  %v2893 = vadd.f32 %v2508, %v2892
  %v2894 = vpop.f32.mrb[0].mxu0
  %2895 = vmatprep.mubr.f32.mxu0 %v633
  %2896 = vmatmul.mubr.f32.gmra.mrb[0].mxu0 %v632
  %v2897 = vpop.f32.mrb[0].mxu0
  %v2898 = vadd.f32 %v2513, %v2897
  %v2899 = vpop.f32.mrb[0].mxu0
  %2900 = vmatprep.mubr.f32.mxu0 %v649
  %2901 = vmatmul.mubr.f32.gmra.mrb[0].mxu0 %v648
  %v2902 = vpop.f32.mrb[0].mxu0
  %v2903 = vadd.f32 %v2518, %v2902
  %v2904 = vpop.f32.mrb[0].mxu0
  %2905 = vmatprep.mubr.f32.mxu0 %v665
  %2906 = vmatmul.mubr.f32.gmra.mrb[0].mxu0 %v664
  %v2907 = vpop.f32.mrb[0].mxu0
  %v2908 = vadd.f32 %v2523, %v2907
  %v2909 = vpop.f32.mrb[0].mxu0
  %2910 = vmatprep.mubr.f32.mxu0 %v681
  %2911 = vmatmul.mubr.f32.gmra.mrb[0].mxu0 %v680
  %v2912 = vpop.f32.mrb[0].mxu0
  %v2913 = vadd.f32 %v2528, %v2912
  %v2914 = vpop.f32.mrb[0].mxu0
  %2915 = vmatprep.mubr.f32.mxu0 %v697
  %2916 = vmatmul.mubr.f32.gmra.mrb[0].mxu0 %v696
  %v2917 = vpop.f32.mrb[0].mxu0
  %v2918 = vadd.f32 %v2533, %v2917
  %v2919 = vpop.f32.mrb[0].mxu0
  %2920 = vmatprep.mubr.f32.mxu0 %v713
  %2921 = vmatmul.mubr.f32.gmra.mrb[0].mxu0 %v712
  %v2922 = vpop.f32.mrb[0].mxu0
  %v2923 = vadd.f32 %v2538, %v2922
  %v2924 = vpop.f32.mrb[0].mxu0
  %2925 = vmatprep.mubr.f32.mxu0 %v729
  %2926 = vmatmul.mubr.f32.gmra.mrb[0].mxu0 %v728
  %v2927 = vpop.f32.mrb[0].mxu0
  %v2928 = vadd.f32 %v2543, %v2927
  %v2929 = vpop.f32.mrb[0].mxu0
  %2930 = vmatprep.mubr.f32.mxu0 %v745
  %2931 = vmatmul.mubr.f32.gmra.mrb[0].mxu0 %v744
  %v2932 = vpop.f32.mrb[0].mxu0
  %v2933 = vadd.f32 %v2548, %v2932
  %v2934 = vpop.f32.mrb[0].mxu0
  %2935 = vmatprep.mubr.f32.mxu0 %v761
  %2936 = vmatmul.mubr.f32.gmra.mrb[0].mxu0 %v760
  %v2937 = vpop.f32.mrb[0].mxu0
  %v2938 = vadd.f32 %v2553, %v2937
  %v2939 = vpop.f32.mrb[0].mxu0
  %2940 = vmatprep.mubr.f32.mxu0 %v777
  %2941 = vmatmul.mubr.f32.gmra.mrb[0].mxu0 %v776
  %v2942 = vpop.f32.mrb[0].mxu0
  %v2943 = vadd.f32 %v2558, %v2942
  %v2944 = vpop.f32.mrb[0].mxu0
  %2945 = vmatprep.mubr.f32.mxu0 %v793
  %2946 = vmatmul.mubr.f32.gmra.mrb[0].mxu0 %v792
  %v2947 = vpop.f32.mrb[0].mxu0
  %v2948 = vadd.f32 %v2563, %v2947
  %v2949 = vpop.f32.mrb[0].mxu0
  %2950 = vmatprep.mubr.f32.mxu0 %v809
  %2951 = vmatmul.mubr.f32.gmra.mrb[0].mxu0 %v808
  %v2952 = vpop.f32.mrb[0].mxu0
  %v2953 = vadd.f32 %v2568, %v2952
  %v2954 = vpop.f32.mrb[0].mxu0
  %2955 = vmatprep.mubr.f32.mxu0 %v825
  %2956 = vmatmul.mubr.f32.gmra.mrb[0].mxu0 %v824
  %v2957 = vpop.f32.mrb[0].mxu0
  %v2958 = vadd.f32 %v2573, %v2957
  %v2959 = vpop.f32.mrb[0].mxu0
  %2960 = vmatprep.mubr.f32.mxu0 %v841
  %2961 = vmatmul.mubr.f32.gmra.mrb[0].mxu0 %v840
  %v2962 = vpop.f32.mrb[0].mxu0
  %v2963 = vadd.f32 %v2578, %v2962
  %v2964 = vpop.f32.mrb[0].mxu0
  %2965 = vmatprep.mubr.f32.mxu0 %v857
  %2966 = vmatmul.mubr.f32.gmra.mrb[0].mxu0 %v856
  %v2967 = vpop.f32.mrb[0].mxu0
  %v2968 = vadd.f32 %v2583, %v2967
  %v2969 = vpop.f32.mrb[0].mxu0
  %2970 = vmatprep.mubr.f32.mxu0 %v873
  %2971 = vmatmul.mubr.f32.gmra.mrb[0].mxu0 %v872
  %v2972 = vpop.f32.mrb[0].mxu0
  %v2973 = vadd.f32 %v2588, %v2972
  %v2974 = vpop.f32.mrb[0].mxu0
  %2975 = vmatprep.mubr.f32.mxu0 %v889
  %2976 = vmatmul.mubr.f32.gmra.mrb[0].mxu0 %v888
  %v2977 = vpop.f32.mrb[0].mxu0
  %v2978 = vadd.f32 %v2593, %v2977
  %v2979 = vpop.f32.mrb[0].mxu0
  %2980 = vmatprep.mubr.f32.mxu0 %v905
  %2981 = vmatmul.mubr.f32.gmra.mrb[0].mxu0 %v904
  %v2982 = vpop.f32.mrb[0].mxu0
  %v2983 = vadd.f32 %v2598, %v2982
  %v2984 = vpop.f32.mrb[0].mxu0
  %2985 = vmatprep.mubr.f32.mxu0 %v921
  %2986 = vmatmul.mubr.f32.gmra.mrb[0].mxu0 %v920
  %v2987 = vpop.f32.mrb[0].mxu0
  %v2988 = vadd.f32 %v2603, %v2987
  %v2989 = vpop.f32.mrb[0].mxu0
  %2990 = vmatprep.mubr.f32.mxu0 %v937
  %2991 = vmatmul.mubr.f32.gmra.mrb[0].mxu0 %v936
  %v2992 = vpop.f32.mrb[0].mxu0
  %v2993 = vadd.f32 %v2608, %v2992
  %v2994 = vpop.f32.mrb[0].mxu0
  %2995 = vmatprep.mubr.f32.mxu0 %v953
  %2996 = vmatmul.mubr.f32.gmra.mrb[0].mxu0 %v952
  %v2997 = vpop.f32.mrb[0].mxu0
  %v2998 = vadd.f32 %v2613, %v2997
  %v2999 = vpop.f32.mrb[0].mxu0
  %3000 = vmatprep.mubr.f32.mxu0 %v969
  %3001 = vmatmul.mubr.f32.gmra.mrb[0].mxu0 %v968
  %v3002 = vpop.f32.mrb[0].mxu0
  %v3003 = vadd.f32 %v2618, %v3002
  %v3004 = vpop.f32.mrb[0].mxu0
  %3005 = vmatprep.mubr.f32.mxu0 %v985
  %3006 = vmatmul.mubr.f32.gmra.mrb[0].mxu0 %v984
  %v3007 = vpop.f32.mrb[0].mxu0
  %v3008 = vadd.f32 %v2623, %v3007
  %v3009 = vpop.f32.mrb[0].mxu0
  %3010 = vmatprep.mubr.f32.mxu0 %v1001
  %3011 = vmatmul.mubr.f32.gmra.mrb[0].mxu0 %v1000
  %v3012 = vpop.f32.mrb[0].mxu0
  %v3013 = vadd.f32 %v2628, %v3012
  %v3014 = vpop.f32.mrb[0].mxu0
  %3015 = vmatprep.mubr.f32.mxu0 %v1017
  %3016 = vmatmul.mubr.f32.gmra.mrb[0].mxu0 %v1016
  %v3017 = vpop.f32.mrb[0].mxu0
  %v3018 = vadd.f32 %v2633, %v3017
  %v3019 = vpop.f32.mrb[0].mxu0
  %3020 = vmatprep.mubr.f32.mxu0 %v1033
  %3021 = vmatmul.mubr.f32.gmra.mrb[0].mxu0 %v1032
  %v3022 = vpop.f32.mrb[0].mxu0
  %v3023 = vadd.f32 %v2638, %v3022
  %v3024 = vpop.f32.mrb[0].mxu0
  %3025 = vdwg.mxu0
  %3026 = vmatprep.subr.mxu0 0.0
  %3027 = vmatpush1.msra.mxu0 %v1140
  %3028 = vmatprep.subr.mxu0 0.0
  %3029 = vmatpush1.msra.mxu0 %v1141
  %3030 = vmatprep.subr.mxu0 0.0
  %3031 = vmatpush1.msra.mxu0 %v1142
  %3032 = vmatprep.subr.mxu0 0.0
  %3033 = vmatpush1.msra.mxu0 %v1143
  %3034 = vmatprep.subr.mxu0 0.0
  %3035 = vmatpush1.msra.mxu0 %v1144
  %3036 = vmatprep.subr.mxu0 0.0
  %3037 = vmatpush1.msra.mxu0 %v1145
  %3038 = vmatprep.subr.mxu0 0.0
  %3039 = vmatpush1.msra.mxu0 %v1146
  %3040 = vmatprep.subr.mxu0 0.0
  %3041 = vmatpush1.msra.mxu0 %v1147
  %3042 = vmatprep.subr.mxu0 0.0
  %3043 = vmatpush1.msra.mxu0 %v1148
  %3044 = vmatprep.subr.mxu0 0.0
  %3045 = vmatpush1.msra.mxu0 %v1149
  %3046 = vmatprep.subr.mxu0 0.0
  %3047 = vmatpush1.msra.mxu0 %v1150
  %3048 = vmatprep.subr.mxu0 0.0
  %3049 = vmatpush1.msra.mxu0 %v1151
  %3050 = vmatprep.subr.mxu0 0.0
  %3051 = vmatpush1.msra.mxu0 %v1152
  %3052 = vmatprep.subr.mxu0 0.0
  %3053 = vmatpush1.msra.mxu0 %v1153
  %3054 = vmatprep.subr.mxu0 0.0
  %3055 = vmatpush1.msra.mxu0 %v1154
  %3056 = vmatprep.subr.mxu0 0.0
  %3057 = vmatpush1.msra.mxu0 %v1155
  %3058 = vmatprep.subr.mxu0 0.0
  %3059 = vmatpush1.msra.mxu0 %v1156
  %3060 = vmatprep.subr.mxu0 0.0
  %3061 = vmatpush1.msra.mxu0 %v1157
  %3062 = vmatprep.subr.mxu0 0.0
  %3063 = vmatpush1.msra.mxu0 %v1158
  %3064 = vmatprep.subr.mxu0 0.0
  %3065 = vmatpush1.msra.mxu0 %v1159
  %3066 = vmatprep.subr.mxu0 0.0
  %3067 = vmatpush1.msra.mxu0 %v1160
  %3068 = vmatprep.subr.mxu0 0.0
  %3069 = vmatpush1.msra.mxu0 %v1161
  %3070 = vmatprep.subr.mxu0 0.0
  %3071 = vmatpush1.msra.mxu0 %v1162
  %3072 = vmatprep.subr.mxu0 0.0
  %3073 = vmatpush1.msra.mxu0 %v1163
  %3074 = vmatprep.subr.mxu0 0.0
  %3075 = vmatpush1.msra.mxu0 %v1164
  %3076 = vmatprep.subr.mxu0 0.0
  %3077 = vmatpush1.msra.mxu0 %v1165
  %3078 = vmatprep.subr.mxu0 0.0
  %3079 = vmatpush1.msra.mxu0 %v1166
  %3080 = vmatprep.subr.mxu0 0.0
  %3081 = vmatpush1.msra.mxu0 %v1167
  %3082 = vmatprep.subr.mxu0 0.0
  %3083 = vmatpush1.msra.mxu0 %v1168
  %3084 = vmatprep.subr.mxu0 0.0
  %3085 = vmatpush1.msra.mxu0 %v1169
  %3086 = vmatprep.subr.mxu0 0.0
  %3087 = vmatpush1.msra.mxu0 %v1170
  %3088 = vmatprep.subr.mxu0 0.0
  %3089 = vmatpush1.msra.mxu0 %v1171
  %3090 = vmatprep.mubr.f32.mxu0 %v27
  %3091 = vmatmul.mubr.f32.gmra.mrb[0].mxu0 %v26
  %v3092 = vpop.f32.mrb[0].mxu0
  %v3093 = vadd.f32 %v2708, %v3092
  %v3094 = vpop.f32.mrb[0].mxu0
  %3095 = vmatprep.mubr.f32.mxu0 %v43
  %3096 = vmatmul.mubr.f32.gmra.mrb[0].mxu0 %v42
  %v3097 = vpop.f32.mrb[0].mxu0
  %v3098 = vadd.f32 %v2713, %v3097
  %v3099 = vpop.f32.mrb[0].mxu0
  %3100 = vmatprep.mubr.f32.mxu0 %v59
  %3101 = vmatmul.mubr.f32.gmra.mrb[0].mxu0 %v58
  %v3102 = vpop.f32.mrb[0].mxu0
  %v3103 = vadd.f32 %v2718, %v3102
  %v3104 = vpop.f32.mrb[0].mxu0
  %3105 = vmatprep.mubr.f32.mxu0 %v75
  %3106 = vmatmul.mubr.f32.gmra.mrb[0].mxu0 %v74
  %v3107 = vpop.f32.mrb[0].mxu0
  %v3108 = vadd.f32 %v2723, %v3107
  %v3109 = vpop.f32.mrb[0].mxu0
  %3110 = vmatprep.mubr.f32.mxu0 %v91
  %3111 = vmatmul.mubr.f32.gmra.mrb[0].mxu0 %v90
  %v3112 = vpop.f32.mrb[0].mxu0
  %v3113 = vadd.f32 %v2728, %v3112
  %v3114 = vpop.f32.mrb[0].mxu0
  %3115 = vmatprep.mubr.f32.mxu0 %v107
  %3116 = vmatmul.mubr.f32.gmra.mrb[0].mxu0 %v106
  %v3117 = vpop.f32.mrb[0].mxu0
  %v3118 = vadd.f32 %v2733, %v3117
  %v3119 = vpop.f32.mrb[0].mxu0
  %3120 = vmatprep.mubr.f32.mxu0 %v123
  %3121 = vmatmul.mubr.f32.gmra.mrb[0].mxu0 %v122
  %v3122 = vpop.f32.mrb[0].mxu0
  %v3123 = vadd.f32 %v2738, %v3122
  %v3124 = vpop.f32.mrb[0].mxu0
  %3125 = vmatprep.mubr.f32.mxu0 %v139
  %3126 = vmatmul.mubr.f32.gmra.mrb[0].mxu0 %v138
  %v3127 = vpop.f32.mrb[0].mxu0
  %v3128 = vadd.f32 %v2743, %v3127
  %v3129 = vpop.f32.mrb[0].mxu0
  %3130 = vmatprep.mubr.f32.mxu0 %v155
  %3131 = vmatmul.mubr.f32.gmra.mrb[0].mxu0 %v154
  %v3132 = vpop.f32.mrb[0].mxu0
  %v3133 = vadd.f32 %v2748, %v3132
  %v3134 = vpop.f32.mrb[0].mxu0
  %3135 = vmatprep.mubr.f32.mxu0 %v171
  %3136 = vmatmul.mubr.f32.gmra.mrb[0].mxu0 %v170
  %v3137 = vpop.f32.mrb[0].mxu0
  %v3138 = vadd.f32 %v2753, %v3137
  %v3139 = vpop.f32.mrb[0].mxu0
  %3140 = vmatprep.mubr.f32.mxu0 %v187
  %3141 = vmatmul.mubr.f32.gmra.mrb[0].mxu0 %v186
  %v3142 = vpop.f32.mrb[0].mxu0
  %v3143 = vadd.f32 %v2758, %v3142
  %v3144 = vpop.f32.mrb[0].mxu0
  %3145 = vmatprep.mubr.f32.mxu0 %v203
  %3146 = vmatmul.mubr.f32.gmra.mrb[0].mxu0 %v202
  %v3147 = vpop.f32.mrb[0].mxu0
  %v3148 = vadd.f32 %v2763, %v3147
  %v3149 = vpop.f32.mrb[0].mxu0
  %3150 = vmatprep.mubr.f32.mxu0 %v219
  %3151 = vmatmul.mubr.f32.gmra.mrb[0].mxu0 %v218
  %v3152 = vpop.f32.mrb[0].mxu0
  %v3153 = vadd.f32 %v2768, %v3152
  %v3154 = vpop.f32.mrb[0].mxu0
  %3155 = vmatprep.mubr.f32.mxu0 %v235
  %3156 = vmatmul.mubr.f32.gmra.mrb[0].mxu0 %v234
  %v3157 = vpop.f32.mrb[0].mxu0
  %v3158 = vadd.f32 %v2773, %v3157
  %v3159 = vpop.f32.mrb[0].mxu0
  %3160 = vmatprep.mubr.f32.mxu0 %v251
  %3161 = vmatmul.mubr.f32.gmra.mrb[0].mxu0 %v250
  %v3162 = vpop.f32.mrb[0].mxu0
  %v3163 = vadd.f32 %v2778, %v3162
  %v3164 = vpop.f32.mrb[0].mxu0
  %3165 = vmatprep.mubr.f32.mxu0 %v267
  %3166 = vmatmul.mubr.f32.gmra.mrb[0].mxu0 %v266
  %v3167 = vpop.f32.mrb[0].mxu0
  %v3168 = vadd.f32 %v2783, %v3167
  %v3169 = vpop.f32.mrb[0].mxu0
  %3170 = vmatprep.mubr.f32.mxu0 %v283
  %3171 = vmatmul.mubr.f32.gmra.mrb[0].mxu0 %v282
  %v3172 = vpop.f32.mrb[0].mxu0
  %v3173 = vadd.f32 %v2788, %v3172
  %v3174 = vpop.f32.mrb[0].mxu0
  %3175 = vmatprep.mubr.f32.mxu0 %v299
  %3176 = vmatmul.mubr.f32.gmra.mrb[0].mxu0 %v298
  %v3177 = vpop.f32.mrb[0].mxu0
  %v3178 = vadd.f32 %v2793, %v3177
  %v3179 = vpop.f32.mrb[0].mxu0
  %3180 = vmatprep.mubr.f32.mxu0 %v315
  %3181 = vmatmul.mubr.f32.gmra.mrb[0].mxu0 %v314
  %v3182 = vpop.f32.mrb[0].mxu0
  %v3183 = vadd.f32 %v2798, %v3182
  %v3184 = vpop.f32.mrb[0].mxu0
  %3185 = vmatprep.mubr.f32.mxu0 %v331
  %3186 = vmatmul.mubr.f32.gmra.mrb[0].mxu0 %v330
  %v3187 = vpop.f32.mrb[0].mxu0
  %v3188 = vadd.f32 %v2803, %v3187
  %v3189 = vpop.f32.mrb[0].mxu0
  %3190 = vmatprep.mubr.f32.mxu0 %v347
  %3191 = vmatmul.mubr.f32.gmra.mrb[0].mxu0 %v346
  %v3192 = vpop.f32.mrb[0].mxu0
  %v3193 = vadd.f32 %v2808, %v3192
  %v3194 = vpop.f32.mrb[0].mxu0
  %3195 = vmatprep.mubr.f32.mxu0 %v363
  %3196 = vmatmul.mubr.f32.gmra.mrb[0].mxu0 %v362
  %v3197 = vpop.f32.mrb[0].mxu0
  %v3198 = vadd.f32 %v2813, %v3197
  %v3199 = vpop.f32.mrb[0].mxu0
  %3200 = vmatprep.mubr.f32.mxu0 %v379
  %3201 = vmatmul.mubr.f32.gmra.mrb[0].mxu0 %v378
  %v3202 = vpop.f32.mrb[0].mxu0
  %v3203 = vadd.f32 %v2818, %v3202
  %v3204 = vpop.f32.mrb[0].mxu0
  %3205 = vmatprep.mubr.f32.mxu0 %v395
  %3206 = vmatmul.mubr.f32.gmra.mrb[0].mxu0 %v394
  %v3207 = vpop.f32.mrb[0].mxu0
  %v3208 = vadd.f32 %v2823, %v3207
  %v3209 = vpop.f32.mrb[0].mxu0
  %3210 = vmatprep.mubr.f32.mxu0 %v411
  %3211 = vmatmul.mubr.f32.gmra.mrb[0].mxu0 %v410
  %v3212 = vpop.f32.mrb[0].mxu0
  %v3213 = vadd.f32 %v2828, %v3212
  %v3214 = vpop.f32.mrb[0].mxu0
  %3215 = vmatprep.mubr.f32.mxu0 %v427
  %3216 = vmatmul.mubr.f32.gmra.mrb[0].mxu0 %v426
  %v3217 = vpop.f32.mrb[0].mxu0
  %v3218 = vadd.f32 %v2833, %v3217
  %v3219 = vpop.f32.mrb[0].mxu0
  %3220 = vmatprep.mubr.f32.mxu0 %v443
  %3221 = vmatmul.mubr.f32.gmra.mrb[0].mxu0 %v442
  %v3222 = vpop.f32.mrb[0].mxu0
  %v3223 = vadd.f32 %v2838, %v3222
  %v3224 = vpop.f32.mrb[0].mxu0
  %3225 = vmatprep.mubr.f32.mxu0 %v459
  %3226 = vmatmul.mubr.f32.gmra.mrb[0].mxu0 %v458
  %v3227 = vpop.f32.mrb[0].mxu0
  %v3228 = vadd.f32 %v2843, %v3227
  %v3229 = vpop.f32.mrb[0].mxu0
  %3230 = vmatprep.mubr.f32.mxu0 %v475
  %3231 = vmatmul.mubr.f32.gmra.mrb[0].mxu0 %v474
  %v3232 = vpop.f32.mrb[0].mxu0
  %v3233 = vadd.f32 %v2848, %v3232
  %v3234 = vpop.f32.mrb[0].mxu0
  %3235 = vmatprep.mubr.f32.mxu0 %v491
  %3236 = vmatmul.mubr.f32.gmra.mrb[0].mxu0 %v490
  %v3237 = vpop.f32.mrb[0].mxu0
  %v3238 = vadd.f32 %v2853, %v3237
  %v3239 = vpop.f32.mrb[0].mxu0
  %3240 = vmatprep.mubr.f32.mxu0 %v507
  %3241 = vmatmul.mubr.f32.gmra.mrb[0].mxu0 %v506
  %v3242 = vpop.f32.mrb[0].mxu0
  %v3243 = vadd.f32 %v2858, %v3242
  %v3244 = vpop.f32.mrb[0].mxu0
  %3245 = vmatprep.mubr.f32.mxu0 %v523
  %3246 = vmatmul.mubr.f32.gmra.mrb[0].mxu0 %v522
  %v3247 = vpop.f32.mrb[0].mxu0
  %v3248 = vadd.f32 %v2863, %v3247
  %v3249 = vpop.f32.mrb[0].mxu0
  %3250 = vmatprep.mubr.f32.mxu0 %v539
  %3251 = vmatmul.mubr.f32.gmra.mrb[0].mxu0 %v538
  %v3252 = vpop.f32.mrb[0].mxu0
  %v3253 = vadd.f32 %v2868, %v3252
  %v3254 = vpop.f32.mrb[0].mxu0
  %3255 = vmatprep.mubr.f32.mxu0 %v555
  %3256 = vmatmul.mubr.f32.gmra.mrb[0].mxu0 %v554
  %v3257 = vpop.f32.mrb[0].mxu0
  %v3258 = vadd.f32 %v2873, %v3257
  %v3259 = vpop.f32.mrb[0].mxu0
  %3260 = vmatprep.mubr.f32.mxu0 %v571
  %3261 = vmatmul.mubr.f32.gmra.mrb[0].mxu0 %v570
  %v3262 = vpop.f32.mrb[0].mxu0
  %v3263 = vadd.f32 %v2878, %v3262
  %v3264 = vpop.f32.mrb[0].mxu0
  %3265 = vmatprep.mubr.f32.mxu0 %v587
  %3266 = vmatmul.mubr.f32.gmra.mrb[0].mxu0 %v586
  %v3267 = vpop.f32.mrb[0].mxu0
  %v3268 = vadd.f32 %v2883, %v3267
  %v3269 = vpop.f32.mrb[0].mxu0
  %3270 = vmatprep.mubr.f32.mxu0 %v603
  %3271 = vmatmul.mubr.f32.gmra.mrb[0].mxu0 %v602
  %v3272 = vpop.f32.mrb[0].mxu0
  %v3273 = vadd.f32 %v2888, %v3272
  %v3274 = vpop.f32.mrb[0].mxu0
  %3275 = vmatprep.mubr.f32.mxu0 %v619
  %3276 = vmatmul.mubr.f32.gmra.mrb[0].mxu0 %v618
  %v3277 = vpop.f32.mrb[0].mxu0
  %v3278 = vadd.f32 %v2893, %v3277
  %v3279 = vpop.f32.mrb[0].mxu0
  %3280 = vmatprep.mubr.f32.mxu0 %v635
  %3281 = vmatmul.mubr.f32.gmra.mrb[0].mxu0 %v634
  %v3282 = vpop.f32.mrb[0].mxu0
  %v3283 = vadd.f32 %v2898, %v3282
  %v3284 = vpop.f32.mrb[0].mxu0
  %3285 = vmatprep.mubr.f32.mxu0 %v651
  %3286 = vmatmul.mubr.f32.gmra.mrb[0].mxu0 %v650
  %v3287 = vpop.f32.mrb[0].mxu0
  %v3288 = vadd.f32 %v2903, %v3287
  %v3289 = vpop.f32.mrb[0].mxu0
  %3290 = vmatprep.mubr.f32.mxu0 %v667
  %3291 = vmatmul.mubr.f32.gmra.mrb[0].mxu0 %v666
  %v3292 = vpop.f32.mrb[0].mxu0
  %v3293 = vadd.f32 %v2908, %v3292
  %v3294 = vpop.f32.mrb[0].mxu0
  %3295 = vmatprep.mubr.f32.mxu0 %v683
  %3296 = vmatmul.mubr.f32.gmra.mrb[0].mxu0 %v682
  %v3297 = vpop.f32.mrb[0].mxu0
  %v3298 = vadd.f32 %v2913, %v3297
  %v3299 = vpop.f32.mrb[0].mxu0
  %3300 = vmatprep.mubr.f32.mxu0 %v699
  %3301 = vmatmul.mubr.f32.gmra.mrb[0].mxu0 %v698
  %v3302 = vpop.f32.mrb[0].mxu0
  %v3303 = vadd.f32 %v2918, %v3302
  %v3304 = vpop.f32.mrb[0].mxu0
  %3305 = vmatprep.mubr.f32.mxu0 %v715
  %3306 = vmatmul.mubr.f32.gmra.mrb[0].mxu0 %v714
  %v3307 = vpop.f32.mrb[0].mxu0
  %v3308 = vadd.f32 %v2923, %v3307
  %v3309 = vpop.f32.mrb[0].mxu0
  %3310 = vmatprep.mubr.f32.mxu0 %v731
  %3311 = vmatmul.mubr.f32.gmra.mrb[0].mxu0 %v730
  %v3312 = vpop.f32.mrb[0].mxu0
  %v3313 = vadd.f32 %v2928, %v3312
  %v3314 = vpop.f32.mrb[0].mxu0
  %3315 = vmatprep.mubr.f32.mxu0 %v747
  %3316 = vmatmul.mubr.f32.gmra.mrb[0].mxu0 %v746
  %v3317 = vpop.f32.mrb[0].mxu0
  %v3318 = vadd.f32 %v2933, %v3317
  %v3319 = vpop.f32.mrb[0].mxu0
  %3320 = vmatprep.mubr.f32.mxu0 %v763
  %3321 = vmatmul.mubr.f32.gmra.mrb[0].mxu0 %v762
  %v3322 = vpop.f32.mrb[0].mxu0
  %v3323 = vadd.f32 %v2938, %v3322
  %v3324 = vpop.f32.mrb[0].mxu0
  %3325 = vmatprep.mubr.f32.mxu0 %v779
  %3326 = vmatmul.mubr.f32.gmra.mrb[0].mxu0 %v778
  %v3327 = vpop.f32.mrb[0].mxu0
  %v3328 = vadd.f32 %v2943, %v3327
  %v3329 = vpop.f32.mrb[0].mxu0
  %3330 = vmatprep.mubr.f32.mxu0 %v795
  %3331 = vmatmul.mubr.f32.gmra.mrb[0].mxu0 %v794
  %v3332 = vpop.f32.mrb[0].mxu0
  %v3333 = vadd.f32 %v2948, %v3332
  %v3334 = vpop.f32.mrb[0].mxu0
  %3335 = vmatprep.mubr.f32.mxu0 %v811
  %3336 = vmatmul.mubr.f32.gmra.mrb[0].mxu0 %v810
  %v3337 = vpop.f32.mrb[0].mxu0
  %v3338 = vadd.f32 %v2953, %v3337
  %v3339 = vpop.f32.mrb[0].mxu0
  %3340 = vmatprep.mubr.f32.mxu0 %v827
  %3341 = vmatmul.mubr.f32.gmra.mrb[0].mxu0 %v826
  %v3342 = vpop.f32.mrb[0].mxu0
  %v3343 = vadd.f32 %v2958, %v3342
  %v3344 = vpop.f32.mrb[0].mxu0
  %3345 = vmatprep.mubr.f32.mxu0 %v843
  %3346 = vmatmul.mubr.f32.gmra.mrb[0].mxu0 %v842
  %v3347 = vpop.f32.mrb[0].mxu0
  %v3348 = vadd.f32 %v2963, %v3347
  %v3349 = vpop.f32.mrb[0].mxu0
  %3350 = vmatprep.mubr.f32.mxu0 %v859
  %3351 = vmatmul.mubr.f32.gmra.mrb[0].mxu0 %v858
  %v3352 = vpop.f32.mrb[0].mxu0
  %v3353 = vadd.f32 %v2968, %v3352
  %v3354 = vpop.f32.mrb[0].mxu0
  %3355 = vmatprep.mubr.f32.mxu0 %v875
  %3356 = vmatmul.mubr.f32.gmra.mrb[0].mxu0 %v874
  %v3357 = vpop.f32.mrb[0].mxu0
  %v3358 = vadd.f32 %v2973, %v3357
  %v3359 = vpop.f32.mrb[0].mxu0
  %3360 = vmatprep.mubr.f32.mxu0 %v891
  %3361 = vmatmul.mubr.f32.gmra.mrb[0].mxu0 %v890
  %v3362 = vpop.f32.mrb[0].mxu0
  %v3363 = vadd.f32 %v2978, %v3362
  %v3364 = vpop.f32.mrb[0].mxu0
  %3365 = vmatprep.mubr.f32.mxu0 %v907
  %3366 = vmatmul.mubr.f32.gmra.mrb[0].mxu0 %v906
  %v3367 = vpop.f32.mrb[0].mxu0
  %v3368 = vadd.f32 %v2983, %v3367
  %v3369 = vpop.f32.mrb[0].mxu0
  %3370 = vmatprep.mubr.f32.mxu0 %v923
  %3371 = vmatmul.mubr.f32.gmra.mrb[0].mxu0 %v922
  %v3372 = vpop.f32.mrb[0].mxu0
  %v3373 = vadd.f32 %v2988, %v3372
  %v3374 = vpop.f32.mrb[0].mxu0
  %3375 = vmatprep.mubr.f32.mxu0 %v939
  %3376 = vmatmul.mubr.f32.gmra.mrb[0].mxu0 %v938
  %v3377 = vpop.f32.mrb[0].mxu0
  %v3378 = vadd.f32 %v2993, %v3377
  %v3379 = vpop.f32.mrb[0].mxu0
  %3380 = vmatprep.mubr.f32.mxu0 %v955
  %3381 = vmatmul.mubr.f32.gmra.mrb[0].mxu0 %v954
  %v3382 = vpop.f32.mrb[0].mxu0
  %v3383 = vadd.f32 %v2998, %v3382
  %v3384 = vpop.f32.mrb[0].mxu0
  %3385 = vmatprep.mubr.f32.mxu0 %v971
  %3386 = vmatmul.mubr.f32.gmra.mrb[0].mxu0 %v970
  %v3387 = vpop.f32.mrb[0].mxu0
  %v3388 = vadd.f32 %v3003, %v3387
  %v3389 = vpop.f32.mrb[0].mxu0
  %3390 = vmatprep.mubr.f32.mxu0 %v987
  %3391 = vmatmul.mubr.f32.gmra.mrb[0].mxu0 %v986
  %v3392 = vpop.f32.mrb[0].mxu0
  %v3393 = vadd.f32 %v3008, %v3392
  %v3394 = vpop.f32.mrb[0].mxu0
  %3395 = vmatprep.mubr.f32.mxu0 %v1003
  %3396 = vmatmul.mubr.f32.gmra.mrb[0].mxu0 %v1002
  %v3397 = vpop.f32.mrb[0].mxu0
  %v3398 = vadd.f32 %v3013, %v3397
  %v3399 = vpop.f32.mrb[0].mxu0
  %3400 = vmatprep.mubr.f32.mxu0 %v1019
  %3401 = vmatmul.mubr.f32.gmra.mrb[0].mxu0 %v1018
  %v3402 = vpop.f32.mrb[0].mxu0
  %v3403 = vadd.f32 %v3018, %v3402
  %v3404 = vpop.f32.mrb[0].mxu0
  %3405 = vmatprep.mubr.f32.mxu0 %v1035
  %3406 = vmatmul.mubr.f32.gmra.mrb[0].mxu0 %v1034
  %v3407 = vpop.f32.mrb[0].mxu0
  %v3408 = vadd.f32 %v3023, %v3407
  %v3409 = vpop.f32.mrb[0].mxu0
  %3410 = vdwg.mxu0
  %3411 = vmatprep.subr.mxu0 0.0
  %3412 = vmatpush1.msra.mxu0 %v1172
  %3413 = vmatprep.subr.mxu0 0.0
  %3414 = vmatpush1.msra.mxu0 %v1173
  %3415 = vmatprep.subr.mxu0 0.0
  %3416 = vmatpush1.msra.mxu0 %v1174
  %3417 = vmatprep.subr.mxu0 0.0
  %3418 = vmatpush1.msra.mxu0 %v1175
  %3419 = vmatprep.subr.mxu0 0.0
  %3420 = vmatpush1.msra.mxu0 %v1176
  %3421 = vmatprep.subr.mxu0 0.0
  %3422 = vmatpush1.msra.mxu0 %v1177
  %3423 = vmatprep.subr.mxu0 0.0
  %3424 = vmatpush1.msra.mxu0 %v1178
  %3425 = vmatprep.subr.mxu0 0.0
  %3426 = vmatpush1.msra.mxu0 %v1179
  %3427 = vmatprep.subr.mxu0 0.0
  %3428 = vmatpush1.msra.mxu0 %v1180
  %3429 = vmatprep.subr.mxu0 0.0
  %3430 = vmatpush1.msra.mxu0 %v1181
  %3431 = vmatprep.subr.mxu0 0.0
  %3432 = vmatpush1.msra.mxu0 %v1182
  %3433 = vmatprep.subr.mxu0 0.0
  %3434 = vmatpush1.msra.mxu0 %v1183
  %3435 = vmatprep.subr.mxu0 0.0
  %3436 = vmatpush1.msra.mxu0 %v1184
  %3437 = vmatprep.subr.mxu0 0.0
  %3438 = vmatpush1.msra.mxu0 %v1185
  %3439 = vmatprep.subr.mxu0 0.0
  %3440 = vmatpush1.msra.mxu0 %v1186
  %3441 = vmatprep.subr.mxu0 0.0
  %3442 = vmatpush1.msra.mxu0 %v1187
  %3443 = vmatprep.subr.mxu0 0.0
  %3444 = vmatpush1.msra.mxu0 %v1188
  %3445 = vmatprep.subr.mxu0 0.0
  %3446 = vmatpush1.msra.mxu0 %v1189
  %3447 = vmatprep.subr.mxu0 0.0
  %3448 = vmatpush1.msra.mxu0 %v1190
  %3449 = vmatprep.subr.mxu0 0.0
  %3450 = vmatpush1.msra.mxu0 %v1191
  %3451 = vmatprep.subr.mxu0 0.0
  %3452 = vmatpush1.msra.mxu0 %v1192
  %3453 = vmatprep.subr.mxu0 0.0
  %3454 = vmatpush1.msra.mxu0 %v1193
  %3455 = vmatprep.subr.mxu0 0.0
  %3456 = vmatpush1.msra.mxu0 %v1194
  %3457 = vmatprep.subr.mxu0 0.0
  %3458 = vmatpush1.msra.mxu0 %v1195
  %3459 = vmatprep.subr.mxu0 0.0
  %3460 = vmatpush1.msra.mxu0 %v1196
  %3461 = vmatprep.subr.mxu0 0.0
  %3462 = vmatpush1.msra.mxu0 %v1197
  %3463 = vmatprep.subr.mxu0 0.0
  %3464 = vmatpush1.msra.mxu0 %v1198
  %3465 = vmatprep.subr.mxu0 0.0
  %3466 = vmatpush1.msra.mxu0 %v1199
  %3467 = vmatprep.subr.mxu0 0.0
  %3468 = vmatpush1.msra.mxu0 %v1200
  %3469 = vmatprep.subr.mxu0 0.0
  %3470 = vmatpush1.msra.mxu0 %v1201
  %3471 = vmatprep.subr.mxu0 0.0
  %3472 = vmatpush1.msra.mxu0 %v1202
  %3473 = vmatprep.subr.mxu0 0.0
  %3474 = vmatpush1.msra.mxu0 %v1203
  %3475 = vmatprep.mubr.f32.mxu0 %v29
  %3476 = vmatmul.mubr.f32.gmra.mrb[0].mxu0 %v28
  %v3477 = vpop.f32.mrb[0].mxu0
  %v3478 = vadd.f32 %v3093, %v3477
  %v3479 = vpop.f32.mrb[0].mxu0
  %3480 = vmatprep.mubr.f32.mxu0 %v45
  %3481 = vmatmul.mubr.f32.gmra.mrb[0].mxu0 %v44
  %v3482 = vpop.f32.mrb[0].mxu0
  %v3483 = vadd.f32 %v3098, %v3482
  %v3484 = vpop.f32.mrb[0].mxu0
  %3485 = vmatprep.mubr.f32.mxu0 %v61
  %3486 = vmatmul.mubr.f32.gmra.mrb[0].mxu0 %v60
  %v3487 = vpop.f32.mrb[0].mxu0
  %v3488 = vadd.f32 %v3103, %v3487
  %v3489 = vpop.f32.mrb[0].mxu0
  %3490 = vmatprep.mubr.f32.mxu0 %v77
  %3491 = vmatmul.mubr.f32.gmra.mrb[0].mxu0 %v76
  %v3492 = vpop.f32.mrb[0].mxu0
  %v3493 = vadd.f32 %v3108, %v3492
  %v3494 = vpop.f32.mrb[0].mxu0
  %3495 = vmatprep.mubr.f32.mxu0 %v93
  %3496 = vmatmul.mubr.f32.gmra.mrb[0].mxu0 %v92
  %v3497 = vpop.f32.mrb[0].mxu0
  %v3498 = vadd.f32 %v3113, %v3497
  %v3499 = vpop.f32.mrb[0].mxu0
  %3500 = vmatprep.mubr.f32.mxu0 %v109
  %3501 = vmatmul.mubr.f32.gmra.mrb[0].mxu0 %v108
  %v3502 = vpop.f32.mrb[0].mxu0
  %v3503 = vadd.f32 %v3118, %v3502
  %v3504 = vpop.f32.mrb[0].mxu0
  %3505 = vmatprep.mubr.f32.mxu0 %v125
  %3506 = vmatmul.mubr.f32.gmra.mrb[0].mxu0 %v124
  %v3507 = vpop.f32.mrb[0].mxu0
  %v3508 = vadd.f32 %v3123, %v3507
  %v3509 = vpop.f32.mrb[0].mxu0
  %3510 = vmatprep.mubr.f32.mxu0 %v141
  %3511 = vmatmul.mubr.f32.gmra.mrb[0].mxu0 %v140
  %v3512 = vpop.f32.mrb[0].mxu0
  %v3513 = vadd.f32 %v3128, %v3512
  %v3514 = vpop.f32.mrb[0].mxu0
  %3515 = vmatprep.mubr.f32.mxu0 %v157
  %3516 = vmatmul.mubr.f32.gmra.mrb[0].mxu0 %v156
  %v3517 = vpop.f32.mrb[0].mxu0
  %v3518 = vadd.f32 %v3133, %v3517
  %v3519 = vpop.f32.mrb[0].mxu0
  %3520 = vmatprep.mubr.f32.mxu0 %v173
  %3521 = vmatmul.mubr.f32.gmra.mrb[0].mxu0 %v172
  %v3522 = vpop.f32.mrb[0].mxu0
  %v3523 = vadd.f32 %v3138, %v3522
  %v3524 = vpop.f32.mrb[0].mxu0
  %3525 = vmatprep.mubr.f32.mxu0 %v189
  %3526 = vmatmul.mubr.f32.gmra.mrb[0].mxu0 %v188
  %v3527 = vpop.f32.mrb[0].mxu0
  %v3528 = vadd.f32 %v3143, %v3527
  %v3529 = vpop.f32.mrb[0].mxu0
  %3530 = vmatprep.mubr.f32.mxu0 %v205
  %3531 = vmatmul.mubr.f32.gmra.mrb[0].mxu0 %v204
  %v3532 = vpop.f32.mrb[0].mxu0
  %v3533 = vadd.f32 %v3148, %v3532
  %v3534 = vpop.f32.mrb[0].mxu0
  %3535 = vmatprep.mubr.f32.mxu0 %v221
  %3536 = vmatmul.mubr.f32.gmra.mrb[0].mxu0 %v220
  %v3537 = vpop.f32.mrb[0].mxu0
  %v3538 = vadd.f32 %v3153, %v3537
  %v3539 = vpop.f32.mrb[0].mxu0
  %3540 = vmatprep.mubr.f32.mxu0 %v237
  %3541 = vmatmul.mubr.f32.gmra.mrb[0].mxu0 %v236
  %v3542 = vpop.f32.mrb[0].mxu0
  %v3543 = vadd.f32 %v3158, %v3542
  %v3544 = vpop.f32.mrb[0].mxu0
  %3545 = vmatprep.mubr.f32.mxu0 %v253
  %3546 = vmatmul.mubr.f32.gmra.mrb[0].mxu0 %v252
  %v3547 = vpop.f32.mrb[0].mxu0
  %v3548 = vadd.f32 %v3163, %v3547
  %v3549 = vpop.f32.mrb[0].mxu0
  %3550 = vmatprep.mubr.f32.mxu0 %v269
  %3551 = vmatmul.mubr.f32.gmra.mrb[0].mxu0 %v268
  %v3552 = vpop.f32.mrb[0].mxu0
  %v3553 = vadd.f32 %v3168, %v3552
  %v3554 = vpop.f32.mrb[0].mxu0
  %3555 = vmatprep.mubr.f32.mxu0 %v285
  %3556 = vmatmul.mubr.f32.gmra.mrb[0].mxu0 %v284
  %v3557 = vpop.f32.mrb[0].mxu0
  %v3558 = vadd.f32 %v3173, %v3557
  %v3559 = vpop.f32.mrb[0].mxu0
  %3560 = vmatprep.mubr.f32.mxu0 %v301
  %3561 = vmatmul.mubr.f32.gmra.mrb[0].mxu0 %v300
  %v3562 = vpop.f32.mrb[0].mxu0
  %v3563 = vadd.f32 %v3178, %v3562
  %v3564 = vpop.f32.mrb[0].mxu0
  %3565 = vmatprep.mubr.f32.mxu0 %v317
  %3566 = vmatmul.mubr.f32.gmra.mrb[0].mxu0 %v316
  %v3567 = vpop.f32.mrb[0].mxu0
  %v3568 = vadd.f32 %v3183, %v3567
  %v3569 = vpop.f32.mrb[0].mxu0
  %3570 = vmatprep.mubr.f32.mxu0 %v333
  %3571 = vmatmul.mubr.f32.gmra.mrb[0].mxu0 %v332
  %v3572 = vpop.f32.mrb[0].mxu0
  %v3573 = vadd.f32 %v3188, %v3572
  %v3574 = vpop.f32.mrb[0].mxu0
  %3575 = vmatprep.mubr.f32.mxu0 %v349
  %3576 = vmatmul.mubr.f32.gmra.mrb[0].mxu0 %v348
  %v3577 = vpop.f32.mrb[0].mxu0
  %v3578 = vadd.f32 %v3193, %v3577
  %v3579 = vpop.f32.mrb[0].mxu0
  %3580 = vmatprep.mubr.f32.mxu0 %v365
  %3581 = vmatmul.mubr.f32.gmra.mrb[0].mxu0 %v364
  %v3582 = vpop.f32.mrb[0].mxu0
  %v3583 = vadd.f32 %v3198, %v3582
  %v3584 = vpop.f32.mrb[0].mxu0
  %3585 = vmatprep.mubr.f32.mxu0 %v381
  %3586 = vmatmul.mubr.f32.gmra.mrb[0].mxu0 %v380
  %v3587 = vpop.f32.mrb[0].mxu0
  %v3588 = vadd.f32 %v3203, %v3587
  %v3589 = vpop.f32.mrb[0].mxu0
  %3590 = vmatprep.mubr.f32.mxu0 %v397
  %3591 = vmatmul.mubr.f32.gmra.mrb[0].mxu0 %v396
  %v3592 = vpop.f32.mrb[0].mxu0
  %v3593 = vadd.f32 %v3208, %v3592
  %v3594 = vpop.f32.mrb[0].mxu0
  %3595 = vmatprep.mubr.f32.mxu0 %v413
  %3596 = vmatmul.mubr.f32.gmra.mrb[0].mxu0 %v412
  %v3597 = vpop.f32.mrb[0].mxu0
  %v3598 = vadd.f32 %v3213, %v3597
  %v3599 = vpop.f32.mrb[0].mxu0
  %3600 = vmatprep.mubr.f32.mxu0 %v429
  %3601 = vmatmul.mubr.f32.gmra.mrb[0].mxu0 %v428
  %v3602 = vpop.f32.mrb[0].mxu0
  %v3603 = vadd.f32 %v3218, %v3602
  %v3604 = vpop.f32.mrb[0].mxu0
  %3605 = vmatprep.mubr.f32.mxu0 %v445
  %3606 = vmatmul.mubr.f32.gmra.mrb[0].mxu0 %v444
  %v3607 = vpop.f32.mrb[0].mxu0
  %v3608 = vadd.f32 %v3223, %v3607
  %v3609 = vpop.f32.mrb[0].mxu0
  %3610 = vmatprep.mubr.f32.mxu0 %v461
  %3611 = vmatmul.mubr.f32.gmra.mrb[0].mxu0 %v460
  %v3612 = vpop.f32.mrb[0].mxu0
  %v3613 = vadd.f32 %v3228, %v3612
  %v3614 = vpop.f32.mrb[0].mxu0
  %3615 = vmatprep.mubr.f32.mxu0 %v477
  %3616 = vmatmul.mubr.f32.gmra.mrb[0].mxu0 %v476
  %v3617 = vpop.f32.mrb[0].mxu0
  %v3618 = vadd.f32 %v3233, %v3617
  %v3619 = vpop.f32.mrb[0].mxu0
  %3620 = vmatprep.mubr.f32.mxu0 %v493
  %3621 = vmatmul.mubr.f32.gmra.mrb[0].mxu0 %v492
  %v3622 = vpop.f32.mrb[0].mxu0
  %v3623 = vadd.f32 %v3238, %v3622
  %v3624 = vpop.f32.mrb[0].mxu0
  %3625 = vmatprep.mubr.f32.mxu0 %v509
  %3626 = vmatmul.mubr.f32.gmra.mrb[0].mxu0 %v508
  %v3627 = vpop.f32.mrb[0].mxu0
  %v3628 = vadd.f32 %v3243, %v3627
  %v3629 = vpop.f32.mrb[0].mxu0
  %3630 = vmatprep.mubr.f32.mxu0 %v525
  %3631 = vmatmul.mubr.f32.gmra.mrb[0].mxu0 %v524
  %v3632 = vpop.f32.mrb[0].mxu0
  %v3633 = vadd.f32 %v3248, %v3632
  %v3634 = vpop.f32.mrb[0].mxu0
  %3635 = vmatprep.mubr.f32.mxu0 %v541
  %3636 = vmatmul.mubr.f32.gmra.mrb[0].mxu0 %v540
  %v3637 = vpop.f32.mrb[0].mxu0
  %v3638 = vadd.f32 %v3253, %v3637
  %v3639 = vpop.f32.mrb[0].mxu0
  %3640 = vmatprep.mubr.f32.mxu0 %v557
  %3641 = vmatmul.mubr.f32.gmra.mrb[0].mxu0 %v556
  %v3642 = vpop.f32.mrb[0].mxu0
  %v3643 = vadd.f32 %v3258, %v3642
  %v3644 = vpop.f32.mrb[0].mxu0
  %3645 = vmatprep.mubr.f32.mxu0 %v573
  %3646 = vmatmul.mubr.f32.gmra.mrb[0].mxu0 %v572
  %v3647 = vpop.f32.mrb[0].mxu0
  %v3648 = vadd.f32 %v3263, %v3647
  %v3649 = vpop.f32.mrb[0].mxu0
  %3650 = vmatprep.mubr.f32.mxu0 %v589
  %3651 = vmatmul.mubr.f32.gmra.mrb[0].mxu0 %v588
  %v3652 = vpop.f32.mrb[0].mxu0
  %v3653 = vadd.f32 %v3268, %v3652
  %v3654 = vpop.f32.mrb[0].mxu0
  %3655 = vmatprep.mubr.f32.mxu0 %v605
  %3656 = vmatmul.mubr.f32.gmra.mrb[0].mxu0 %v604
  %v3657 = vpop.f32.mrb[0].mxu0
  %v3658 = vadd.f32 %v3273, %v3657
  %v3659 = vpop.f32.mrb[0].mxu0
  %3660 = vmatprep.mubr.f32.mxu0 %v621
  %3661 = vmatmul.mubr.f32.gmra.mrb[0].mxu0 %v620
  %v3662 = vpop.f32.mrb[0].mxu0
  %v3663 = vadd.f32 %v3278, %v3662
  %v3664 = vpop.f32.mrb[0].mxu0
  %3665 = vmatprep.mubr.f32.mxu0 %v637
  %3666 = vmatmul.mubr.f32.gmra.mrb[0].mxu0 %v636
  %v3667 = vpop.f32.mrb[0].mxu0
  %v3668 = vadd.f32 %v3283, %v3667
  %v3669 = vpop.f32.mrb[0].mxu0
  %3670 = vmatprep.mubr.f32.mxu0 %v653
  %3671 = vmatmul.mubr.f32.gmra.mrb[0].mxu0 %v652
  %v3672 = vpop.f32.mrb[0].mxu0
  %v3673 = vadd.f32 %v3288, %v3672
  %v3674 = vpop.f32.mrb[0].mxu0
  %3675 = vmatprep.mubr.f32.mxu0 %v669
  %3676 = vmatmul.mubr.f32.gmra.mrb[0].mxu0 %v668
  %v3677 = vpop.f32.mrb[0].mxu0
  %v3678 = vadd.f32 %v3293, %v3677
  %v3679 = vpop.f32.mrb[0].mxu0
  %3680 = vmatprep.mubr.f32.mxu0 %v685
  %3681 = vmatmul.mubr.f32.gmra.mrb[0].mxu0 %v684
  %v3682 = vpop.f32.mrb[0].mxu0
  %v3683 = vadd.f32 %v3298, %v3682
  %v3684 = vpop.f32.mrb[0].mxu0
  %3685 = vmatprep.mubr.f32.mxu0 %v701
  %3686 = vmatmul.mubr.f32.gmra.mrb[0].mxu0 %v700
  %v3687 = vpop.f32.mrb[0].mxu0
  %v3688 = vadd.f32 %v3303, %v3687
  %v3689 = vpop.f32.mrb[0].mxu0
  %3690 = vmatprep.mubr.f32.mxu0 %v717
  %3691 = vmatmul.mubr.f32.gmra.mrb[0].mxu0 %v716
  %v3692 = vpop.f32.mrb[0].mxu0
  %v3693 = vadd.f32 %v3308, %v3692
  %v3694 = vpop.f32.mrb[0].mxu0
  %3695 = vmatprep.mubr.f32.mxu0 %v733
  %3696 = vmatmul.mubr.f32.gmra.mrb[0].mxu0 %v732
  %v3697 = vpop.f32.mrb[0].mxu0
  %v3698 = vadd.f32 %v3313, %v3697
  %v3699 = vpop.f32.mrb[0].mxu0
  %3700 = vmatprep.mubr.f32.mxu0 %v749
  %3701 = vmatmul.mubr.f32.gmra.mrb[0].mxu0 %v748
  %v3702 = vpop.f32.mrb[0].mxu0
  %v3703 = vadd.f32 %v3318, %v3702
  %v3704 = vpop.f32.mrb[0].mxu0
  %3705 = vmatprep.mubr.f32.mxu0 %v765
  %3706 = vmatmul.mubr.f32.gmra.mrb[0].mxu0 %v764
  %v3707 = vpop.f32.mrb[0].mxu0
  %v3708 = vadd.f32 %v3323, %v3707
  %v3709 = vpop.f32.mrb[0].mxu0
  %3710 = vmatprep.mubr.f32.mxu0 %v781
  %3711 = vmatmul.mubr.f32.gmra.mrb[0].mxu0 %v780
  %v3712 = vpop.f32.mrb[0].mxu0
  %v3713 = vadd.f32 %v3328, %v3712
  %v3714 = vpop.f32.mrb[0].mxu0
  %3715 = vmatprep.mubr.f32.mxu0 %v797
  %3716 = vmatmul.mubr.f32.gmra.mrb[0].mxu0 %v796
  %v3717 = vpop.f32.mrb[0].mxu0
  %v3718 = vadd.f32 %v3333, %v3717
  %v3719 = vpop.f32.mrb[0].mxu0
  %3720 = vmatprep.mubr.f32.mxu0 %v813
  %3721 = vmatmul.mubr.f32.gmra.mrb[0].mxu0 %v812
  %v3722 = vpop.f32.mrb[0].mxu0
  %v3723 = vadd.f32 %v3338, %v3722
  %v3724 = vpop.f32.mrb[0].mxu0
  %3725 = vmatprep.mubr.f32.mxu0 %v829
  %3726 = vmatmul.mubr.f32.gmra.mrb[0].mxu0 %v828
  %v3727 = vpop.f32.mrb[0].mxu0
  %v3728 = vadd.f32 %v3343, %v3727
  %v3729 = vpop.f32.mrb[0].mxu0
  %3730 = vmatprep.mubr.f32.mxu0 %v845
  %3731 = vmatmul.mubr.f32.gmra.mrb[0].mxu0 %v844
  %v3732 = vpop.f32.mrb[0].mxu0
  %v3733 = vadd.f32 %v3348, %v3732
  %v3734 = vpop.f32.mrb[0].mxu0
  %3735 = vmatprep.mubr.f32.mxu0 %v861
  %3736 = vmatmul.mubr.f32.gmra.mrb[0].mxu0 %v860
  %v3737 = vpop.f32.mrb[0].mxu0
  %v3738 = vadd.f32 %v3353, %v3737
  %v3739 = vpop.f32.mrb[0].mxu0
  %3740 = vmatprep.mubr.f32.mxu0 %v877
  %3741 = vmatmul.mubr.f32.gmra.mrb[0].mxu0 %v876
  %v3742 = vpop.f32.mrb[0].mxu0
  %v3743 = vadd.f32 %v3358, %v3742
  %v3744 = vpop.f32.mrb[0].mxu0
  %3745 = vmatprep.mubr.f32.mxu0 %v893
  %3746 = vmatmul.mubr.f32.gmra.mrb[0].mxu0 %v892
  %v3747 = vpop.f32.mrb[0].mxu0
  %v3748 = vadd.f32 %v3363, %v3747
  %v3749 = vpop.f32.mrb[0].mxu0
  %3750 = vmatprep.mubr.f32.mxu0 %v909
  %3751 = vmatmul.mubr.f32.gmra.mrb[0].mxu0 %v908
  %v3752 = vpop.f32.mrb[0].mxu0
  %v3753 = vadd.f32 %v3368, %v3752
  %v3754 = vpop.f32.mrb[0].mxu0
  %3755 = vmatprep.mubr.f32.mxu0 %v925
  %3756 = vmatmul.mubr.f32.gmra.mrb[0].mxu0 %v924
  %v3757 = vpop.f32.mrb[0].mxu0
  %v3758 = vadd.f32 %v3373, %v3757
  %v3759 = vpop.f32.mrb[0].mxu0
  %3760 = vmatprep.mubr.f32.mxu0 %v941
  %3761 = vmatmul.mubr.f32.gmra.mrb[0].mxu0 %v940
  %v3762 = vpop.f32.mrb[0].mxu0
  %v3763 = vadd.f32 %v3378, %v3762
  %v3764 = vpop.f32.mrb[0].mxu0
  %3765 = vmatprep.mubr.f32.mxu0 %v957
  %3766 = vmatmul.mubr.f32.gmra.mrb[0].mxu0 %v956
  %v3767 = vpop.f32.mrb[0].mxu0
  %v3768 = vadd.f32 %v3383, %v3767
  %v3769 = vpop.f32.mrb[0].mxu0
  %3770 = vmatprep.mubr.f32.mxu0 %v973
  %3771 = vmatmul.mubr.f32.gmra.mrb[0].mxu0 %v972
  %v3772 = vpop.f32.mrb[0].mxu0
  %v3773 = vadd.f32 %v3388, %v3772
  %v3774 = vpop.f32.mrb[0].mxu0
  %3775 = vmatprep.mubr.f32.mxu0 %v989
  %3776 = vmatmul.mubr.f32.gmra.mrb[0].mxu0 %v988
  %v3777 = vpop.f32.mrb[0].mxu0
  %v3778 = vadd.f32 %v3393, %v3777
  %v3779 = vpop.f32.mrb[0].mxu0
  %3780 = vmatprep.mubr.f32.mxu0 %v1005
  %3781 = vmatmul.mubr.f32.gmra.mrb[0].mxu0 %v1004
  %v3782 = vpop.f32.mrb[0].mxu0
  %v3783 = vadd.f32 %v3398, %v3782
  %v3784 = vpop.f32.mrb[0].mxu0
  %3785 = vmatprep.mubr.f32.mxu0 %v1021
  %3786 = vmatmul.mubr.f32.gmra.mrb[0].mxu0 %v1020
  %v3787 = vpop.f32.mrb[0].mxu0
  %v3788 = vadd.f32 %v3403, %v3787
  %v3789 = vpop.f32.mrb[0].mxu0
  %3790 = vmatprep.mubr.f32.mxu0 %v1037
  %3791 = vmatmul.mubr.f32.gmra.mrb[0].mxu0 %v1036
  %v3792 = vpop.f32.mrb[0].mxu0
  %v3793 = vadd.f32 %v3408, %v3792
  %v3794 = vpop.f32.mrb[0].mxu0
  %3795 = vdwg.mxu0
  %3796 = vmatprep.subr.mxu0 0.0
  %3797 = vmatpush1.msra.mxu0 %v1204
  %3798 = vmatprep.subr.mxu0 0.0
  %3799 = vmatpush1.msra.mxu0 %v1205
  %3800 = vmatprep.subr.mxu0 0.0
  %3801 = vmatpush1.msra.mxu0 %v1206
  %3802 = vmatprep.subr.mxu0 0.0
  %3803 = vmatpush1.msra.mxu0 %v1207
  %3804 = vmatprep.subr.mxu0 0.0
  %3805 = vmatpush1.msra.mxu0 %v1208
  %3806 = vmatprep.subr.mxu0 0.0
  %3807 = vmatpush1.msra.mxu0 %v1209
  %3808 = vmatprep.subr.mxu0 0.0
  %3809 = vmatpush1.msra.mxu0 %v1210
  %3810 = vmatprep.subr.mxu0 0.0
  %3811 = vmatpush1.msra.mxu0 %v1211
  %3812 = vmatprep.subr.mxu0 0.0
  %3813 = vmatpush1.msra.mxu0 %v1212
  %3814 = vmatprep.subr.mxu0 0.0
  %3815 = vmatpush1.msra.mxu0 %v1213
  %3816 = vmatprep.subr.mxu0 0.0
  %3817 = vmatpush1.msra.mxu0 %v1214
  %3818 = vmatprep.subr.mxu0 0.0
  %3819 = vmatpush1.msra.mxu0 %v1215
  %3820 = vmatprep.subr.mxu0 0.0
  %3821 = vmatpush1.msra.mxu0 %v1216
  %3822 = vmatprep.subr.mxu0 0.0
  %3823 = vmatpush1.msra.mxu0 %v1217
  %3824 = vmatprep.subr.mxu0 0.0
  %3825 = vmatpush1.msra.mxu0 %v1218
  %3826 = vmatprep.subr.mxu0 0.0
  %3827 = vmatpush1.msra.mxu0 %v1219
  %3828 = vmatprep.subr.mxu0 0.0
  %3829 = vmatpush1.msra.mxu0 %v1220
  %3830 = vmatprep.subr.mxu0 0.0
  %3831 = vmatpush1.msra.mxu0 %v1221
  %3832 = vmatprep.subr.mxu0 0.0
  %3833 = vmatpush1.msra.mxu0 %v1222
  %3834 = vmatprep.subr.mxu0 0.0
  %3835 = vmatpush1.msra.mxu0 %v1223
  %3836 = vmatprep.subr.mxu0 0.0
  %3837 = vmatpush1.msra.mxu0 %v1224
  %3838 = vmatprep.subr.mxu0 0.0
  %3839 = vmatpush1.msra.mxu0 %v1225
  %3840 = vmatprep.subr.mxu0 0.0
  %3841 = vmatpush1.msra.mxu0 %v1226
  %3842 = vmatprep.subr.mxu0 0.0
  %3843 = vmatpush1.msra.mxu0 %v1227
  %3844 = vmatprep.subr.mxu0 0.0
  %3845 = vmatpush1.msra.mxu0 %v1228
  %3846 = vmatprep.subr.mxu0 0.0
  %3847 = vmatpush1.msra.mxu0 %v1229
  %3848 = vmatprep.subr.mxu0 0.0
  %3849 = vmatpush1.msra.mxu0 %v1230
  %3850 = vmatprep.subr.mxu0 0.0
  %3851 = vmatpush1.msra.mxu0 %v1231
  %3852 = vmatprep.subr.mxu0 0.0
  %3853 = vmatpush1.msra.mxu0 %v1232
  %3854 = vmatprep.subr.mxu0 0.0
  %3855 = vmatpush1.msra.mxu0 %v1233
  %3856 = vmatprep.subr.mxu0 0.0
  %3857 = vmatpush1.msra.mxu0 %v1234
  %3858 = vmatprep.subr.mxu0 0.0
  %3859 = vmatpush1.msra.mxu0 %v1235
  %3860 = vmatprep.mubr.f32.mxu0 %v31
  %3861 = vmatmul.mubr.f32.gmra.mrb[0].mxu0 %v30
  %v3862 = vpop.f32.mrb[0].mxu0
  %v3863 = vadd.f32 %v3478, %v3862
  %v3864 = vpop.f32.mrb[0].mxu0
  %3865 = vmatprep.mubr.f32.mxu0 %v47
  %3866 = vmatmul.mubr.f32.gmra.mrb[0].mxu0 %v46
  %v3867 = vpop.f32.mrb[0].mxu0
  %v3868 = vadd.f32 %v3483, %v3867
  %v3869 = vpop.f32.mrb[0].mxu0
  %3870 = vmatprep.mubr.f32.mxu0 %v63
  %3871 = vmatmul.mubr.f32.gmra.mrb[0].mxu0 %v62
  %v3872 = vpop.f32.mrb[0].mxu0
  %v3873 = vadd.f32 %v3488, %v3872
  %v3874 = vpop.f32.mrb[0].mxu0
  %3875 = vmatprep.mubr.f32.mxu0 %v79
  %3876 = vmatmul.mubr.f32.gmra.mrb[0].mxu0 %v78
  %v3877 = vpop.f32.mrb[0].mxu0
  %v3878 = vadd.f32 %v3493, %v3877
  %v3879 = vpop.f32.mrb[0].mxu0
  %3880 = vmatprep.mubr.f32.mxu0 %v95
  %3881 = vmatmul.mubr.f32.gmra.mrb[0].mxu0 %v94
  %v3882 = vpop.f32.mrb[0].mxu0
  %v3883 = vadd.f32 %v3498, %v3882
  %v3884 = vpop.f32.mrb[0].mxu0
  %3885 = vmatprep.mubr.f32.mxu0 %v111
  %3886 = vmatmul.mubr.f32.gmra.mrb[0].mxu0 %v110
  %v3887 = vpop.f32.mrb[0].mxu0
  %v3888 = vadd.f32 %v3503, %v3887
  %v3889 = vpop.f32.mrb[0].mxu0
  %3890 = vmatprep.mubr.f32.mxu0 %v127
  %3891 = vmatmul.mubr.f32.gmra.mrb[0].mxu0 %v126
  %v3892 = vpop.f32.mrb[0].mxu0
  %v3893 = vadd.f32 %v3508, %v3892
  %v3894 = vpop.f32.mrb[0].mxu0
  %3895 = vmatprep.mubr.f32.mxu0 %v143
  %3896 = vmatmul.mubr.f32.gmra.mrb[0].mxu0 %v142
  %v3897 = vpop.f32.mrb[0].mxu0
  %v3898 = vadd.f32 %v3513, %v3897
  %v3899 = vpop.f32.mrb[0].mxu0
  %3900 = vmatprep.mubr.f32.mxu0 %v159
  %3901 = vmatmul.mubr.f32.gmra.mrb[0].mxu0 %v158
  %v3902 = vpop.f32.mrb[0].mxu0
  %v3903 = vadd.f32 %v3518, %v3902
  %v3904 = vpop.f32.mrb[0].mxu0
  %3905 = vmatprep.mubr.f32.mxu0 %v175
  %3906 = vmatmul.mubr.f32.gmra.mrb[0].mxu0 %v174
  %v3907 = vpop.f32.mrb[0].mxu0
  %v3908 = vadd.f32 %v3523, %v3907
  %v3909 = vpop.f32.mrb[0].mxu0
  %3910 = vmatprep.mubr.f32.mxu0 %v191
  %3911 = vmatmul.mubr.f32.gmra.mrb[0].mxu0 %v190
  %v3912 = vpop.f32.mrb[0].mxu0
  %v3913 = vadd.f32 %v3528, %v3912
  %v3914 = vpop.f32.mrb[0].mxu0
  %3915 = vmatprep.mubr.f32.mxu0 %v207
  %3916 = vmatmul.mubr.f32.gmra.mrb[0].mxu0 %v206
  %v3917 = vpop.f32.mrb[0].mxu0
  %v3918 = vadd.f32 %v3533, %v3917
  %v3919 = vpop.f32.mrb[0].mxu0
  %3920 = vmatprep.mubr.f32.mxu0 %v223
  %3921 = vmatmul.mubr.f32.gmra.mrb[0].mxu0 %v222
  %v3922 = vpop.f32.mrb[0].mxu0
  %v3923 = vadd.f32 %v3538, %v3922
  %v3924 = vpop.f32.mrb[0].mxu0
  %3925 = vmatprep.mubr.f32.mxu0 %v239
  %3926 = vmatmul.mubr.f32.gmra.mrb[0].mxu0 %v238
  %v3927 = vpop.f32.mrb[0].mxu0
  %v3928 = vadd.f32 %v3543, %v3927
  %v3929 = vpop.f32.mrb[0].mxu0
  %3930 = vmatprep.mubr.f32.mxu0 %v255
  %3931 = vmatmul.mubr.f32.gmra.mrb[0].mxu0 %v254
  %v3932 = vpop.f32.mrb[0].mxu0
  %v3933 = vadd.f32 %v3548, %v3932
  %v3934 = vpop.f32.mrb[0].mxu0
  %3935 = vmatprep.mubr.f32.mxu0 %v271
  %3936 = vmatmul.mubr.f32.gmra.mrb[0].mxu0 %v270
  %v3937 = vpop.f32.mrb[0].mxu0
  %v3938 = vadd.f32 %v3553, %v3937
  %v3939 = vpop.f32.mrb[0].mxu0
  %3940 = vmatprep.mubr.f32.mxu0 %v287
  %3941 = vmatmul.mubr.f32.gmra.mrb[0].mxu0 %v286
  %v3942 = vpop.f32.mrb[0].mxu0
  %v3943 = vadd.f32 %v3558, %v3942
  %v3944 = vpop.f32.mrb[0].mxu0
  %3945 = vmatprep.mubr.f32.mxu0 %v303
  %3946 = vmatmul.mubr.f32.gmra.mrb[0].mxu0 %v302
  %v3947 = vpop.f32.mrb[0].mxu0
  %v3948 = vadd.f32 %v3563, %v3947
  %v3949 = vpop.f32.mrb[0].mxu0
  %3950 = vmatprep.mubr.f32.mxu0 %v319
  %3951 = vmatmul.mubr.f32.gmra.mrb[0].mxu0 %v318
  %v3952 = vpop.f32.mrb[0].mxu0
  %v3953 = vadd.f32 %v3568, %v3952
  %v3954 = vpop.f32.mrb[0].mxu0
  %3955 = vmatprep.mubr.f32.mxu0 %v335
  %3956 = vmatmul.mubr.f32.gmra.mrb[0].mxu0 %v334
  %v3957 = vpop.f32.mrb[0].mxu0
  %v3958 = vadd.f32 %v3573, %v3957
  %v3959 = vpop.f32.mrb[0].mxu0
  %3960 = vmatprep.mubr.f32.mxu0 %v351
  %3961 = vmatmul.mubr.f32.gmra.mrb[0].mxu0 %v350
  %v3962 = vpop.f32.mrb[0].mxu0
  %v3963 = vadd.f32 %v3578, %v3962
  %v3964 = vpop.f32.mrb[0].mxu0
  %3965 = vmatprep.mubr.f32.mxu0 %v367
  %3966 = vmatmul.mubr.f32.gmra.mrb[0].mxu0 %v366
  %v3967 = vpop.f32.mrb[0].mxu0
  %v3968 = vadd.f32 %v3583, %v3967
  %v3969 = vpop.f32.mrb[0].mxu0
  %3970 = vmatprep.mubr.f32.mxu0 %v383
  %3971 = vmatmul.mubr.f32.gmra.mrb[0].mxu0 %v382
  %v3972 = vpop.f32.mrb[0].mxu0
  %v3973 = vadd.f32 %v3588, %v3972
  %v3974 = vpop.f32.mrb[0].mxu0
  %3975 = vmatprep.mubr.f32.mxu0 %v399
  %3976 = vmatmul.mubr.f32.gmra.mrb[0].mxu0 %v398
  %v3977 = vpop.f32.mrb[0].mxu0
  %v3978 = vadd.f32 %v3593, %v3977
  %v3979 = vpop.f32.mrb[0].mxu0
  %3980 = vmatprep.mubr.f32.mxu0 %v415
  %3981 = vmatmul.mubr.f32.gmra.mrb[0].mxu0 %v414
  %v3982 = vpop.f32.mrb[0].mxu0
  %v3983 = vadd.f32 %v3598, %v3982
  %v3984 = vpop.f32.mrb[0].mxu0
  %3985 = vmatprep.mubr.f32.mxu0 %v431
  %3986 = vmatmul.mubr.f32.gmra.mrb[0].mxu0 %v430
  %v3987 = vpop.f32.mrb[0].mxu0
  %v3988 = vadd.f32 %v3603, %v3987
  %v3989 = vpop.f32.mrb[0].mxu0
  %3990 = vmatprep.mubr.f32.mxu0 %v447
  %3991 = vmatmul.mubr.f32.gmra.mrb[0].mxu0 %v446
  %v3992 = vpop.f32.mrb[0].mxu0
  %v3993 = vadd.f32 %v3608, %v3992
  %v3994 = vpop.f32.mrb[0].mxu0
  %3995 = vmatprep.mubr.f32.mxu0 %v463
  %3996 = vmatmul.mubr.f32.gmra.mrb[0].mxu0 %v462
  %v3997 = vpop.f32.mrb[0].mxu0
  %v3998 = vadd.f32 %v3613, %v3997
  %v3999 = vpop.f32.mrb[0].mxu0
  %4000 = vmatprep.mubr.f32.mxu0 %v479
  %4001 = vmatmul.mubr.f32.gmra.mrb[0].mxu0 %v478
  %v4002 = vpop.f32.mrb[0].mxu0
  %v4003 = vadd.f32 %v3618, %v4002
  %v4004 = vpop.f32.mrb[0].mxu0
  %4005 = vmatprep.mubr.f32.mxu0 %v495
  %4006 = vmatmul.mubr.f32.gmra.mrb[0].mxu0 %v494
  %v4007 = vpop.f32.mrb[0].mxu0
  %v4008 = vadd.f32 %v3623, %v4007
  %v4009 = vpop.f32.mrb[0].mxu0
  %4010 = vmatprep.mubr.f32.mxu0 %v511
  %4011 = vmatmul.mubr.f32.gmra.mrb[0].mxu0 %v510
  %v4012 = vpop.f32.mrb[0].mxu0
  %v4013 = vadd.f32 %v3628, %v4012
  %v4014 = vpop.f32.mrb[0].mxu0
  %4015 = vmatprep.mubr.f32.mxu0 %v527
  %4016 = vmatmul.mubr.f32.gmra.mrb[0].mxu0 %v526
  %v4017 = vpop.f32.mrb[0].mxu0
  %v4018 = vadd.f32 %v3633, %v4017
  %v4019 = vpop.f32.mrb[0].mxu0
  %4020 = vmatprep.mubr.f32.mxu0 %v543
  %4021 = vmatmul.mubr.f32.gmra.mrb[0].mxu0 %v542
  %v4022 = vpop.f32.mrb[0].mxu0
  %v4023 = vadd.f32 %v3638, %v4022
  %v4024 = vpop.f32.mrb[0].mxu0
  %4025 = vmatprep.mubr.f32.mxu0 %v559
  %4026 = vmatmul.mubr.f32.gmra.mrb[0].mxu0 %v558
  %v4027 = vpop.f32.mrb[0].mxu0
  %v4028 = vadd.f32 %v3643, %v4027
  %v4029 = vpop.f32.mrb[0].mxu0
  %4030 = vmatprep.mubr.f32.mxu0 %v575
  %4031 = vmatmul.mubr.f32.gmra.mrb[0].mxu0 %v574
  %v4032 = vpop.f32.mrb[0].mxu0
  %v4033 = vadd.f32 %v3648, %v4032
  %v4034 = vpop.f32.mrb[0].mxu0
  %4035 = vmatprep.mubr.f32.mxu0 %v591
  %4036 = vmatmul.mubr.f32.gmra.mrb[0].mxu0 %v590
  %v4037 = vpop.f32.mrb[0].mxu0
  %v4038 = vadd.f32 %v3653, %v4037
  %v4039 = vpop.f32.mrb[0].mxu0
  %4040 = vmatprep.mubr.f32.mxu0 %v607
  %4041 = vmatmul.mubr.f32.gmra.mrb[0].mxu0 %v606
  %v4042 = vpop.f32.mrb[0].mxu0
  %v4043 = vadd.f32 %v3658, %v4042
  %v4044 = vpop.f32.mrb[0].mxu0
  %4045 = vmatprep.mubr.f32.mxu0 %v623
  %4046 = vmatmul.mubr.f32.gmra.mrb[0].mxu0 %v622
  %v4047 = vpop.f32.mrb[0].mxu0
  %v4048 = vadd.f32 %v3663, %v4047
  %v4049 = vpop.f32.mrb[0].mxu0
  %4050 = vmatprep.mubr.f32.mxu0 %v639
  %4051 = vmatmul.mubr.f32.gmra.mrb[0].mxu0 %v638
  %v4052 = vpop.f32.mrb[0].mxu0
  %v4053 = vadd.f32 %v3668, %v4052
  %v4054 = vpop.f32.mrb[0].mxu0
  %4055 = vmatprep.mubr.f32.mxu0 %v655
  %4056 = vmatmul.mubr.f32.gmra.mrb[0].mxu0 %v654
  %v4057 = vpop.f32.mrb[0].mxu0
  %v4058 = vadd.f32 %v3673, %v4057
  %v4059 = vpop.f32.mrb[0].mxu0
  %4060 = vmatprep.mubr.f32.mxu0 %v671
  %4061 = vmatmul.mubr.f32.gmra.mrb[0].mxu0 %v670
  %v4062 = vpop.f32.mrb[0].mxu0
  %v4063 = vadd.f32 %v3678, %v4062
  %v4064 = vpop.f32.mrb[0].mxu0
  %4065 = vmatprep.mubr.f32.mxu0 %v687
  %4066 = vmatmul.mubr.f32.gmra.mrb[0].mxu0 %v686
  %v4067 = vpop.f32.mrb[0].mxu0
  %v4068 = vadd.f32 %v3683, %v4067
  %v4069 = vpop.f32.mrb[0].mxu0
  %4070 = vmatprep.mubr.f32.mxu0 %v703
  %4071 = vmatmul.mubr.f32.gmra.mrb[0].mxu0 %v702
  %v4072 = vpop.f32.mrb[0].mxu0
  %v4073 = vadd.f32 %v3688, %v4072
  %v4074 = vpop.f32.mrb[0].mxu0
  %4075 = vmatprep.mubr.f32.mxu0 %v719
  %4076 = vmatmul.mubr.f32.gmra.mrb[0].mxu0 %v718
  %v4077 = vpop.f32.mrb[0].mxu0
  %v4078 = vadd.f32 %v3693, %v4077
  %v4079 = vpop.f32.mrb[0].mxu0
  %4080 = vmatprep.mubr.f32.mxu0 %v735
  %4081 = vmatmul.mubr.f32.gmra.mrb[0].mxu0 %v734
  %v4082 = vpop.f32.mrb[0].mxu0
  %v4083 = vadd.f32 %v3698, %v4082
  %v4084 = vpop.f32.mrb[0].mxu0
  %4085 = vmatprep.mubr.f32.mxu0 %v751
  %4086 = vmatmul.mubr.f32.gmra.mrb[0].mxu0 %v750
  %v4087 = vpop.f32.mrb[0].mxu0
  %v4088 = vadd.f32 %v3703, %v4087
  %v4089 = vpop.f32.mrb[0].mxu0
  %4090 = vmatprep.mubr.f32.mxu0 %v767
  %4091 = vmatmul.mubr.f32.gmra.mrb[0].mxu0 %v766
  %v4092 = vpop.f32.mrb[0].mxu0
  %v4093 = vadd.f32 %v3708, %v4092
  %v4094 = vpop.f32.mrb[0].mxu0
  %4095 = vmatprep.mubr.f32.mxu0 %v783
  %4096 = vmatmul.mubr.f32.gmra.mrb[0].mxu0 %v782
  %v4097 = vpop.f32.mrb[0].mxu0
  %v4098 = vadd.f32 %v3713, %v4097
  %v4099 = vpop.f32.mrb[0].mxu0
  %4100 = vmatprep.mubr.f32.mxu0 %v799
  %4101 = vmatmul.mubr.f32.gmra.mrb[0].mxu0 %v798
  %v4102 = vpop.f32.mrb[0].mxu0
  %v4103 = vadd.f32 %v3718, %v4102
  %v4104 = vpop.f32.mrb[0].mxu0
  %4105 = vmatprep.mubr.f32.mxu0 %v815
  %4106 = vmatmul.mubr.f32.gmra.mrb[0].mxu0 %v814
  %v4107 = vpop.f32.mrb[0].mxu0
  %v4108 = vadd.f32 %v3723, %v4107
  %v4109 = vpop.f32.mrb[0].mxu0
  %4110 = vmatprep.mubr.f32.mxu0 %v831
  %4111 = vmatmul.mubr.f32.gmra.mrb[0].mxu0 %v830
  %v4112 = vpop.f32.mrb[0].mxu0
  %v4113 = vadd.f32 %v3728, %v4112
  %v4114 = vpop.f32.mrb[0].mxu0
  %4115 = vmatprep.mubr.f32.mxu0 %v847
  %4116 = vmatmul.mubr.f32.gmra.mrb[0].mxu0 %v846
  %v4117 = vpop.f32.mrb[0].mxu0
  %v4118 = vadd.f32 %v3733, %v4117
  %v4119 = vpop.f32.mrb[0].mxu0
  %4120 = vmatprep.mubr.f32.mxu0 %v863
  %4121 = vmatmul.mubr.f32.gmra.mrb[0].mxu0 %v862
  %v4122 = vpop.f32.mrb[0].mxu0
  %v4123 = vadd.f32 %v3738, %v4122
  %v4124 = vpop.f32.mrb[0].mxu0
  %4125 = vmatprep.mubr.f32.mxu0 %v879
  %4126 = vmatmul.mubr.f32.gmra.mrb[0].mxu0 %v878
  %v4127 = vpop.f32.mrb[0].mxu0
  %v4128 = vadd.f32 %v3743, %v4127
  %v4129 = vpop.f32.mrb[0].mxu0
  %4130 = vmatprep.mubr.f32.mxu0 %v895
  %4131 = vmatmul.mubr.f32.gmra.mrb[0].mxu0 %v894
  %v4132 = vpop.f32.mrb[0].mxu0
  %v4133 = vadd.f32 %v3748, %v4132
  %v4134 = vpop.f32.mrb[0].mxu0
  %4135 = vmatprep.mubr.f32.mxu0 %v911
  %4136 = vmatmul.mubr.f32.gmra.mrb[0].mxu0 %v910
  %v4137 = vpop.f32.mrb[0].mxu0
  %v4138 = vadd.f32 %v3753, %v4137
  %v4139 = vpop.f32.mrb[0].mxu0
  %4140 = vmatprep.mubr.f32.mxu0 %v927
  %4141 = vmatmul.mubr.f32.gmra.mrb[0].mxu0 %v926
  %v4142 = vpop.f32.mrb[0].mxu0
  %v4143 = vadd.f32 %v3758, %v4142
  %v4144 = vpop.f32.mrb[0].mxu0
  %4145 = vmatprep.mubr.f32.mxu0 %v943
  %4146 = vmatmul.mubr.f32.gmra.mrb[0].mxu0 %v942
  %v4147 = vpop.f32.mrb[0].mxu0
  %v4148 = vadd.f32 %v3763, %v4147
  %v4149 = vpop.f32.mrb[0].mxu0
  %4150 = vmatprep.mubr.f32.mxu0 %v959
  %4151 = vmatmul.mubr.f32.gmra.mrb[0].mxu0 %v958
  %v4152 = vpop.f32.mrb[0].mxu0
  %v4153 = vadd.f32 %v3768, %v4152
  %v4154 = vpop.f32.mrb[0].mxu0
  %4155 = vmatprep.mubr.f32.mxu0 %v975
  %4156 = vmatmul.mubr.f32.gmra.mrb[0].mxu0 %v974
  %v4157 = vpop.f32.mrb[0].mxu0
  %v4158 = vadd.f32 %v3773, %v4157
  %v4159 = vpop.f32.mrb[0].mxu0
  %4160 = vmatprep.mubr.f32.mxu0 %v991
  %4161 = vmatmul.mubr.f32.gmra.mrb[0].mxu0 %v990
  %v4162 = vpop.f32.mrb[0].mxu0
  %v4163 = vadd.f32 %v3778, %v4162
  %v4164 = vpop.f32.mrb[0].mxu0
  %4165 = vmatprep.mubr.f32.mxu0 %v1007
  %4166 = vmatmul.mubr.f32.gmra.mrb[0].mxu0 %v1006
  %v4167 = vpop.f32.mrb[0].mxu0
  %v4168 = vadd.f32 %v3783, %v4167
  %v4169 = vpop.f32.mrb[0].mxu0
  %4170 = vmatprep.mubr.f32.mxu0 %v1023
  %4171 = vmatmul.mubr.f32.gmra.mrb[0].mxu0 %v1022
  %v4172 = vpop.f32.mrb[0].mxu0
  %v4173 = vadd.f32 %v3788, %v4172
  %v4174 = vpop.f32.mrb[0].mxu0
  %4175 = vmatprep.mubr.f32.mxu0 %v1039
  %4176 = vmatmul.mubr.f32.gmra.mrb[0].mxu0 %v1038
  %v4177 = vpop.f32.mrb[0].mxu0
  %v4178 = vadd.f32 %v3793, %v4177
  %v4179 = vpop.f32.mrb[0].mxu0
  %4180 = vdwg.mxu0
  %4181 = vmatprep.subr.mxu0 0.0
  %4182 = vmatpush1.msra.mxu0 %v1236
  %4183 = vmatprep.subr.mxu0 0.0
  %4184 = vmatpush1.msra.mxu0 %v1237
  %4185 = vmatprep.subr.mxu0 0.0
  %4186 = vmatpush1.msra.mxu0 %v1238
  %4187 = vmatprep.subr.mxu0 0.0
  %4188 = vmatpush1.msra.mxu0 %v1239
  %4189 = vmatprep.subr.mxu0 0.0
  %4190 = vmatpush1.msra.mxu0 %v1240
  %4191 = vmatprep.subr.mxu0 0.0
  %4192 = vmatpush1.msra.mxu0 %v1241
  %4193 = vmatprep.subr.mxu0 0.0
  %4194 = vmatpush1.msra.mxu0 %v1242
  %4195 = vmatprep.subr.mxu0 0.0
  %4196 = vmatpush1.msra.mxu0 %v1243
  %4197 = vmatprep.subr.mxu0 0.0
  %4198 = vmatpush1.msra.mxu0 %v1244
  %4199 = vmatprep.subr.mxu0 0.0
  %4200 = vmatpush1.msra.mxu0 %v1245
  %4201 = vmatprep.subr.mxu0 0.0
  %4202 = vmatpush1.msra.mxu0 %v1246
  %4203 = vmatprep.subr.mxu0 0.0
  %4204 = vmatpush1.msra.mxu0 %v1247
  %4205 = vmatprep.subr.mxu0 0.0
  %4206 = vmatpush1.msra.mxu0 %v1248
  %4207 = vmatprep.subr.mxu0 0.0
  %4208 = vmatpush1.msra.mxu0 %v1249
  %4209 = vmatprep.subr.mxu0 0.0
  %4210 = vmatpush1.msra.mxu0 %v1250
  %4211 = vmatprep.subr.mxu0 0.0
  %4212 = vmatpush1.msra.mxu0 %v1251
  %4213 = vmatprep.subr.mxu0 0.0
  %4214 = vmatpush1.msra.mxu0 %v1252
  %4215 = vmatprep.subr.mxu0 0.0
  %4216 = vmatpush1.msra.mxu0 %v1253
  %4217 = vmatprep.subr.mxu0 0.0
  %4218 = vmatpush1.msra.mxu0 %v1254
  %4219 = vmatprep.subr.mxu0 0.0
  %4220 = vmatpush1.msra.mxu0 %v1255
  %4221 = vmatprep.subr.mxu0 0.0
  %4222 = vmatpush1.msra.mxu0 %v1256
  %4223 = vmatprep.subr.mxu0 0.0
  %4224 = vmatpush1.msra.mxu0 %v1257
  %4225 = vmatprep.subr.mxu0 0.0
  %4226 = vmatpush1.msra.mxu0 %v1258
  %4227 = vmatprep.subr.mxu0 0.0
  %4228 = vmatpush1.msra.mxu0 %v1259
  %4229 = vmatprep.subr.mxu0 0.0
  %4230 = vmatpush1.msra.mxu0 %v1260
  %4231 = vmatprep.subr.mxu0 0.0
  %4232 = vmatpush1.msra.mxu0 %v1261
  %4233 = vmatprep.subr.mxu0 0.0
  %4234 = vmatpush1.msra.mxu0 %v1262
  %4235 = vmatprep.subr.mxu0 0.0
  %4236 = vmatpush1.msra.mxu0 %v1263
  %4237 = vmatprep.subr.mxu0 0.0
  %4238 = vmatpush1.msra.mxu0 %v1264
  %4239 = vmatprep.subr.mxu0 0.0
  %4240 = vmatpush1.msra.mxu0 %v1265
  %4241 = vmatprep.subr.mxu0 0.0
  %4242 = vmatpush1.msra.mxu0 %v1266
  %4243 = vmatprep.subr.mxu0 0.0
  %4244 = vmatpush1.msra.mxu0 %v1267
  %4245 = vmatprep.mubr.f32.mxu0 %v33
  %4246 = vmatmul.mubr.f32.gmra.mrb[0].mxu0 %v32
  %v4247 = vpop.f32.mrb[0].mxu0
  %v4248 = vadd.f32 %v3863, %v4247
  %v4249 = vpop.f32.mrb[0].mxu0
  %4250 = vmatprep.mubr.f32.mxu0 %v49
  %4251 = vmatmul.mubr.f32.gmra.mrb[0].mxu0 %v48
  %v4252 = vpop.f32.mrb[0].mxu0
  %v4253 = vadd.f32 %v3868, %v4252
  %v4254 = vpop.f32.mrb[0].mxu0
  %4255 = vmatprep.mubr.f32.mxu0 %v65
  %4256 = vmatmul.mubr.f32.gmra.mrb[0].mxu0 %v64
  %v4257 = vpop.f32.mrb[0].mxu0
  %v4258 = vadd.f32 %v3873, %v4257
  %v4259 = vpop.f32.mrb[0].mxu0
  %4260 = vmatprep.mubr.f32.mxu0 %v81
  %4261 = vmatmul.mubr.f32.gmra.mrb[0].mxu0 %v80
  %v4262 = vpop.f32.mrb[0].mxu0
  %v4263 = vadd.f32 %v3878, %v4262
  %v4264 = vpop.f32.mrb[0].mxu0
  %4265 = vmatprep.mubr.f32.mxu0 %v97
  %4266 = vmatmul.mubr.f32.gmra.mrb[0].mxu0 %v96
  %v4267 = vpop.f32.mrb[0].mxu0
  %v4268 = vadd.f32 %v3883, %v4267
  %v4269 = vpop.f32.mrb[0].mxu0
  %4270 = vmatprep.mubr.f32.mxu0 %v113
  %4271 = vmatmul.mubr.f32.gmra.mrb[0].mxu0 %v112
  %v4272 = vpop.f32.mrb[0].mxu0
  %v4273 = vadd.f32 %v3888, %v4272
  %v4274 = vpop.f32.mrb[0].mxu0
  %4275 = vmatprep.mubr.f32.mxu0 %v129
  %4276 = vmatmul.mubr.f32.gmra.mrb[0].mxu0 %v128
  %v4277 = vpop.f32.mrb[0].mxu0
  %v4278 = vadd.f32 %v3893, %v4277
  %v4279 = vpop.f32.mrb[0].mxu0
  %4280 = vmatprep.mubr.f32.mxu0 %v145
  %4281 = vmatmul.mubr.f32.gmra.mrb[0].mxu0 %v144
  %v4282 = vpop.f32.mrb[0].mxu0
  %v4283 = vadd.f32 %v3898, %v4282
  %v4284 = vpop.f32.mrb[0].mxu0
  %4285 = vmatprep.mubr.f32.mxu0 %v161
  %4286 = vmatmul.mubr.f32.gmra.mrb[0].mxu0 %v160
  %v4287 = vpop.f32.mrb[0].mxu0
  %v4288 = vadd.f32 %v3903, %v4287
  %v4289 = vpop.f32.mrb[0].mxu0
  %4290 = vmatprep.mubr.f32.mxu0 %v177
  %4291 = vmatmul.mubr.f32.gmra.mrb[0].mxu0 %v176
  %v4292 = vpop.f32.mrb[0].mxu0
  %v4293 = vadd.f32 %v3908, %v4292
  %v4294 = vpop.f32.mrb[0].mxu0
  %4295 = vmatprep.mubr.f32.mxu0 %v193
  %4296 = vmatmul.mubr.f32.gmra.mrb[0].mxu0 %v192
  %v4297 = vpop.f32.mrb[0].mxu0
  %v4298 = vadd.f32 %v3913, %v4297
  %v4299 = vpop.f32.mrb[0].mxu0
  %4300 = vmatprep.mubr.f32.mxu0 %v209
  %4301 = vmatmul.mubr.f32.gmra.mrb[0].mxu0 %v208
  %v4302 = vpop.f32.mrb[0].mxu0
  %v4303 = vadd.f32 %v3918, %v4302
  %v4304 = vpop.f32.mrb[0].mxu0
  %4305 = vmatprep.mubr.f32.mxu0 %v225
  %4306 = vmatmul.mubr.f32.gmra.mrb[0].mxu0 %v224
  %v4307 = vpop.f32.mrb[0].mxu0
  %v4308 = vadd.f32 %v3923, %v4307
  %v4309 = vpop.f32.mrb[0].mxu0
  %4310 = vmatprep.mubr.f32.mxu0 %v241
  %4311 = vmatmul.mubr.f32.gmra.mrb[0].mxu0 %v240
  %v4312 = vpop.f32.mrb[0].mxu0
  %v4313 = vadd.f32 %v3928, %v4312
  %v4314 = vpop.f32.mrb[0].mxu0
  %4315 = vmatprep.mubr.f32.mxu0 %v257
  %4316 = vmatmul.mubr.f32.gmra.mrb[0].mxu0 %v256
  %v4317 = vpop.f32.mrb[0].mxu0
  %v4318 = vadd.f32 %v3933, %v4317
  %v4319 = vpop.f32.mrb[0].mxu0
  %4320 = vmatprep.mubr.f32.mxu0 %v273
  %4321 = vmatmul.mubr.f32.gmra.mrb[0].mxu0 %v272
  %v4322 = vpop.f32.mrb[0].mxu0
  %v4323 = vadd.f32 %v3938, %v4322
  %v4324 = vpop.f32.mrb[0].mxu0
  %4325 = vmatprep.mubr.f32.mxu0 %v289
  %4326 = vmatmul.mubr.f32.gmra.mrb[0].mxu0 %v288
  %v4327 = vpop.f32.mrb[0].mxu0
  %v4328 = vadd.f32 %v3943, %v4327
  %v4329 = vpop.f32.mrb[0].mxu0
  %4330 = vmatprep.mubr.f32.mxu0 %v305
  %4331 = vmatmul.mubr.f32.gmra.mrb[0].mxu0 %v304
  %v4332 = vpop.f32.mrb[0].mxu0
  %v4333 = vadd.f32 %v3948, %v4332
  %v4334 = vpop.f32.mrb[0].mxu0
  %4335 = vmatprep.mubr.f32.mxu0 %v321
  %4336 = vmatmul.mubr.f32.gmra.mrb[0].mxu0 %v320
  %v4337 = vpop.f32.mrb[0].mxu0
  %v4338 = vadd.f32 %v3953, %v4337
  %v4339 = vpop.f32.mrb[0].mxu0
  %4340 = vmatprep.mubr.f32.mxu0 %v337
  %4341 = vmatmul.mubr.f32.gmra.mrb[0].mxu0 %v336
  %v4342 = vpop.f32.mrb[0].mxu0
  %v4343 = vadd.f32 %v3958, %v4342
  %v4344 = vpop.f32.mrb[0].mxu0
  %4345 = vmatprep.mubr.f32.mxu0 %v353
  %4346 = vmatmul.mubr.f32.gmra.mrb[0].mxu0 %v352
  %v4347 = vpop.f32.mrb[0].mxu0
  %v4348 = vadd.f32 %v3963, %v4347
  %v4349 = vpop.f32.mrb[0].mxu0
  %4350 = vmatprep.mubr.f32.mxu0 %v369
  %4351 = vmatmul.mubr.f32.gmra.mrb[0].mxu0 %v368
  %v4352 = vpop.f32.mrb[0].mxu0
  %v4353 = vadd.f32 %v3968, %v4352
  %v4354 = vpop.f32.mrb[0].mxu0
  %4355 = vmatprep.mubr.f32.mxu0 %v385
  %4356 = vmatmul.mubr.f32.gmra.mrb[0].mxu0 %v384
  %v4357 = vpop.f32.mrb[0].mxu0
  %v4358 = vadd.f32 %v3973, %v4357
  %v4359 = vpop.f32.mrb[0].mxu0
  %4360 = vmatprep.mubr.f32.mxu0 %v401
  %4361 = vmatmul.mubr.f32.gmra.mrb[0].mxu0 %v400
  %v4362 = vpop.f32.mrb[0].mxu0
  %v4363 = vadd.f32 %v3978, %v4362
  %v4364 = vpop.f32.mrb[0].mxu0
  %4365 = vmatprep.mubr.f32.mxu0 %v417
  %4366 = vmatmul.mubr.f32.gmra.mrb[0].mxu0 %v416
  %v4367 = vpop.f32.mrb[0].mxu0
  %v4368 = vadd.f32 %v3983, %v4367
  %v4369 = vpop.f32.mrb[0].mxu0
  %4370 = vmatprep.mubr.f32.mxu0 %v433
  %4371 = vmatmul.mubr.f32.gmra.mrb[0].mxu0 %v432
  %v4372 = vpop.f32.mrb[0].mxu0
  %v4373 = vadd.f32 %v3988, %v4372
  %v4374 = vpop.f32.mrb[0].mxu0
  %4375 = vmatprep.mubr.f32.mxu0 %v449
  %4376 = vmatmul.mubr.f32.gmra.mrb[0].mxu0 %v448
  %v4377 = vpop.f32.mrb[0].mxu0
  %v4378 = vadd.f32 %v3993, %v4377
  %v4379 = vpop.f32.mrb[0].mxu0
  %4380 = vmatprep.mubr.f32.mxu0 %v465
  %4381 = vmatmul.mubr.f32.gmra.mrb[0].mxu0 %v464
  %v4382 = vpop.f32.mrb[0].mxu0
  %v4383 = vadd.f32 %v3998, %v4382
  %v4384 = vpop.f32.mrb[0].mxu0
  %4385 = vmatprep.mubr.f32.mxu0 %v481
  %4386 = vmatmul.mubr.f32.gmra.mrb[0].mxu0 %v480
  %v4387 = vpop.f32.mrb[0].mxu0
  %v4388 = vadd.f32 %v4003, %v4387
  %v4389 = vpop.f32.mrb[0].mxu0
  %4390 = vmatprep.mubr.f32.mxu0 %v497
  %4391 = vmatmul.mubr.f32.gmra.mrb[0].mxu0 %v496
  %v4392 = vpop.f32.mrb[0].mxu0
  %v4393 = vadd.f32 %v4008, %v4392
  %v4394 = vpop.f32.mrb[0].mxu0
  %4395 = vmatprep.mubr.f32.mxu0 %v513
  %4396 = vmatmul.mubr.f32.gmra.mrb[0].mxu0 %v512
  %v4397 = vpop.f32.mrb[0].mxu0
  %v4398 = vadd.f32 %v4013, %v4397
  %v4399 = vpop.f32.mrb[0].mxu0
  %4400 = vmatprep.mubr.f32.mxu0 %v529
  %4401 = vmatmul.mubr.f32.gmra.mrb[0].mxu0 %v528
  %v4402 = vpop.f32.mrb[0].mxu0
  %v4403 = vadd.f32 %v4018, %v4402
  %v4404 = vpop.f32.mrb[0].mxu0
  %4405 = vmatprep.mubr.f32.mxu0 %v545
  %4406 = vmatmul.mubr.f32.gmra.mrb[0].mxu0 %v544
  %v4407 = vpop.f32.mrb[0].mxu0
  %v4408 = vadd.f32 %v4023, %v4407
  %v4409 = vpop.f32.mrb[0].mxu0
  %4410 = vmatprep.mubr.f32.mxu0 %v561
  %4411 = vmatmul.mubr.f32.gmra.mrb[0].mxu0 %v560
  %v4412 = vpop.f32.mrb[0].mxu0
  %v4413 = vadd.f32 %v4028, %v4412
  %v4414 = vpop.f32.mrb[0].mxu0
  %4415 = vmatprep.mubr.f32.mxu0 %v577
  %4416 = vmatmul.mubr.f32.gmra.mrb[0].mxu0 %v576
  %v4417 = vpop.f32.mrb[0].mxu0
  %v4418 = vadd.f32 %v4033, %v4417
  %v4419 = vpop.f32.mrb[0].mxu0
  %4420 = vmatprep.mubr.f32.mxu0 %v593
  %4421 = vmatmul.mubr.f32.gmra.mrb[0].mxu0 %v592
  %v4422 = vpop.f32.mrb[0].mxu0
  %v4423 = vadd.f32 %v4038, %v4422
  %v4424 = vpop.f32.mrb[0].mxu0
  %4425 = vmatprep.mubr.f32.mxu0 %v609
  %4426 = vmatmul.mubr.f32.gmra.mrb[0].mxu0 %v608
  %v4427 = vpop.f32.mrb[0].mxu0
  %v4428 = vadd.f32 %v4043, %v4427
  %v4429 = vpop.f32.mrb[0].mxu0
  %4430 = vmatprep.mubr.f32.mxu0 %v625
  %4431 = vmatmul.mubr.f32.gmra.mrb[0].mxu0 %v624
  %v4432 = vpop.f32.mrb[0].mxu0
  %v4433 = vadd.f32 %v4048, %v4432
  %v4434 = vpop.f32.mrb[0].mxu0
  %4435 = vmatprep.mubr.f32.mxu0 %v641
  %4436 = vmatmul.mubr.f32.gmra.mrb[0].mxu0 %v640
  %v4437 = vpop.f32.mrb[0].mxu0
  %v4438 = vadd.f32 %v4053, %v4437
  %v4439 = vpop.f32.mrb[0].mxu0
  %4440 = vmatprep.mubr.f32.mxu0 %v657
  %4441 = vmatmul.mubr.f32.gmra.mrb[0].mxu0 %v656
  %v4442 = vpop.f32.mrb[0].mxu0
  %v4443 = vadd.f32 %v4058, %v4442
  %v4444 = vpop.f32.mrb[0].mxu0
  %4445 = vmatprep.mubr.f32.mxu0 %v673
  %4446 = vmatmul.mubr.f32.gmra.mrb[0].mxu0 %v672
  %v4447 = vpop.f32.mrb[0].mxu0
  %v4448 = vadd.f32 %v4063, %v4447
  %v4449 = vpop.f32.mrb[0].mxu0
  %4450 = vmatprep.mubr.f32.mxu0 %v689
  %4451 = vmatmul.mubr.f32.gmra.mrb[0].mxu0 %v688
  %v4452 = vpop.f32.mrb[0].mxu0
  %v4453 = vadd.f32 %v4068, %v4452
  %v4454 = vpop.f32.mrb[0].mxu0
  %4455 = vmatprep.mubr.f32.mxu0 %v705
  %4456 = vmatmul.mubr.f32.gmra.mrb[0].mxu0 %v704
  %v4457 = vpop.f32.mrb[0].mxu0
  %v4458 = vadd.f32 %v4073, %v4457
  %v4459 = vpop.f32.mrb[0].mxu0
  %4460 = vmatprep.mubr.f32.mxu0 %v721
  %4461 = vmatmul.mubr.f32.gmra.mrb[0].mxu0 %v720
  %v4462 = vpop.f32.mrb[0].mxu0
  %v4463 = vadd.f32 %v4078, %v4462
  %v4464 = vpop.f32.mrb[0].mxu0
  %4465 = vmatprep.mubr.f32.mxu0 %v737
  %4466 = vmatmul.mubr.f32.gmra.mrb[0].mxu0 %v736
  %v4467 = vpop.f32.mrb[0].mxu0
  %v4468 = vadd.f32 %v4083, %v4467
  %v4469 = vpop.f32.mrb[0].mxu0
  %4470 = vmatprep.mubr.f32.mxu0 %v753
  %4471 = vmatmul.mubr.f32.gmra.mrb[0].mxu0 %v752
  %v4472 = vpop.f32.mrb[0].mxu0
  %v4473 = vadd.f32 %v4088, %v4472
  %v4474 = vpop.f32.mrb[0].mxu0
  %4475 = vmatprep.mubr.f32.mxu0 %v769
  %4476 = vmatmul.mubr.f32.gmra.mrb[0].mxu0 %v768
  %v4477 = vpop.f32.mrb[0].mxu0
  %v4478 = vadd.f32 %v4093, %v4477
  %v4479 = vpop.f32.mrb[0].mxu0
  %4480 = vmatprep.mubr.f32.mxu0 %v785
  %4481 = vmatmul.mubr.f32.gmra.mrb[0].mxu0 %v784
  %v4482 = vpop.f32.mrb[0].mxu0
  %v4483 = vadd.f32 %v4098, %v4482
  %v4484 = vpop.f32.mrb[0].mxu0
  %4485 = vmatprep.mubr.f32.mxu0 %v801
  %4486 = vmatmul.mubr.f32.gmra.mrb[0].mxu0 %v800
  %v4487 = vpop.f32.mrb[0].mxu0
  %v4488 = vadd.f32 %v4103, %v4487
  %v4489 = vpop.f32.mrb[0].mxu0
  %4490 = vmatprep.mubr.f32.mxu0 %v817
  %4491 = vmatmul.mubr.f32.gmra.mrb[0].mxu0 %v816
  %v4492 = vpop.f32.mrb[0].mxu0
  %v4493 = vadd.f32 %v4108, %v4492
  %v4494 = vpop.f32.mrb[0].mxu0
  %4495 = vmatprep.mubr.f32.mxu0 %v833
  %4496 = vmatmul.mubr.f32.gmra.mrb[0].mxu0 %v832
  %v4497 = vpop.f32.mrb[0].mxu0
  %v4498 = vadd.f32 %v4113, %v4497
  %v4499 = vpop.f32.mrb[0].mxu0
  %4500 = vmatprep.mubr.f32.mxu0 %v849
  %4501 = vmatmul.mubr.f32.gmra.mrb[0].mxu0 %v848
  %v4502 = vpop.f32.mrb[0].mxu0
  %v4503 = vadd.f32 %v4118, %v4502
  %v4504 = vpop.f32.mrb[0].mxu0
  %4505 = vmatprep.mubr.f32.mxu0 %v865
  %4506 = vmatmul.mubr.f32.gmra.mrb[0].mxu0 %v864
  %v4507 = vpop.f32.mrb[0].mxu0
  %v4508 = vadd.f32 %v4123, %v4507
  %v4509 = vpop.f32.mrb[0].mxu0
  %4510 = vmatprep.mubr.f32.mxu0 %v881
  %4511 = vmatmul.mubr.f32.gmra.mrb[0].mxu0 %v880
  %v4512 = vpop.f32.mrb[0].mxu0
  %v4513 = vadd.f32 %v4128, %v4512
  %v4514 = vpop.f32.mrb[0].mxu0
  %4515 = vmatprep.mubr.f32.mxu0 %v897
  %4516 = vmatmul.mubr.f32.gmra.mrb[0].mxu0 %v896
  %v4517 = vpop.f32.mrb[0].mxu0
  %v4518 = vadd.f32 %v4133, %v4517
  %v4519 = vpop.f32.mrb[0].mxu0
  %4520 = vmatprep.mubr.f32.mxu0 %v913
  %4521 = vmatmul.mubr.f32.gmra.mrb[0].mxu0 %v912
  %v4522 = vpop.f32.mrb[0].mxu0
  %v4523 = vadd.f32 %v4138, %v4522
  %v4524 = vpop.f32.mrb[0].mxu0
  %4525 = vmatprep.mubr.f32.mxu0 %v929
  %4526 = vmatmul.mubr.f32.gmra.mrb[0].mxu0 %v928
  %v4527 = vpop.f32.mrb[0].mxu0
  %v4528 = vadd.f32 %v4143, %v4527
  %v4529 = vpop.f32.mrb[0].mxu0
  %4530 = vmatprep.mubr.f32.mxu0 %v945
  %4531 = vmatmul.mubr.f32.gmra.mrb[0].mxu0 %v944
  %v4532 = vpop.f32.mrb[0].mxu0
  %v4533 = vadd.f32 %v4148, %v4532
  %v4534 = vpop.f32.mrb[0].mxu0
  %4535 = vmatprep.mubr.f32.mxu0 %v961
  %4536 = vmatmul.mubr.f32.gmra.mrb[0].mxu0 %v960
  %v4537 = vpop.f32.mrb[0].mxu0
  %v4538 = vadd.f32 %v4153, %v4537
  %v4539 = vpop.f32.mrb[0].mxu0
  %4540 = vmatprep.mubr.f32.mxu0 %v977
  %4541 = vmatmul.mubr.f32.gmra.mrb[0].mxu0 %v976
  %v4542 = vpop.f32.mrb[0].mxu0
  %v4543 = vadd.f32 %v4158, %v4542
  %v4544 = vpop.f32.mrb[0].mxu0
  %4545 = vmatprep.mubr.f32.mxu0 %v993
  %4546 = vmatmul.mubr.f32.gmra.mrb[0].mxu0 %v992
  %v4547 = vpop.f32.mrb[0].mxu0
  %v4548 = vadd.f32 %v4163, %v4547
  %v4549 = vpop.f32.mrb[0].mxu0
  %4550 = vmatprep.mubr.f32.mxu0 %v1009
  %4551 = vmatmul.mubr.f32.gmra.mrb[0].mxu0 %v1008
  %v4552 = vpop.f32.mrb[0].mxu0
  %v4553 = vadd.f32 %v4168, %v4552
  %v4554 = vpop.f32.mrb[0].mxu0
  %4555 = vmatprep.mubr.f32.mxu0 %v1025
  %4556 = vmatmul.mubr.f32.gmra.mrb[0].mxu0 %v1024
  %v4557 = vpop.f32.mrb[0].mxu0
  %v4558 = vadd.f32 %v4173, %v4557
  %v4559 = vpop.f32.mrb[0].mxu0
  %4560 = vmatprep.mubr.f32.mxu0 %v1041
  %4561 = vmatmul.mubr.f32.gmra.mrb[0].mxu0 %v1040
  %v4562 = vpop.f32.mrb[0].mxu0
  %v4563 = vadd.f32 %v4178, %v4562
  %v4564 = vpop.f32.mrb[0].mxu0
  %4565 = vdwg.mxu0
  %4566 = vmatprep.subr.mxu0 0.0
  %4567 = vmatpush1.msra.mxu0 %v1268
  %4568 = vmatprep.subr.mxu0 0.0
  %4569 = vmatpush1.msra.mxu0 %v1269
  %4570 = vmatprep.subr.mxu0 0.0
  %4571 = vmatpush1.msra.mxu0 %v1270
  %4572 = vmatprep.subr.mxu0 0.0
  %4573 = vmatpush1.msra.mxu0 %v1271
  %4574 = vmatprep.subr.mxu0 0.0
  %4575 = vmatpush1.msra.mxu0 %v1272
  %4576 = vmatprep.subr.mxu0 0.0
  %4577 = vmatpush1.msra.mxu0 %v1273
  %4578 = vmatprep.subr.mxu0 0.0
  %4579 = vmatpush1.msra.mxu0 %v1274
  %4580 = vmatprep.subr.mxu0 0.0
  %4581 = vmatpush1.msra.mxu0 %v1275
  %4582 = vmatprep.subr.mxu0 0.0
  %4583 = vmatpush1.msra.mxu0 %v1276
  %4584 = vmatprep.subr.mxu0 0.0
  %4585 = vmatpush1.msra.mxu0 %v1277
  %4586 = vmatprep.subr.mxu0 0.0
  %4587 = vmatpush1.msra.mxu0 %v1278
  %4588 = vmatprep.subr.mxu0 0.0
  %4589 = vmatpush1.msra.mxu0 %v1279
  %4590 = vmatprep.subr.mxu0 0.0
  %4591 = vmatpush1.msra.mxu0 %v1280
  %4592 = vmatprep.subr.mxu0 0.0
  %4593 = vmatpush1.msra.mxu0 %v1281
  %4594 = vmatprep.subr.mxu0 0.0
  %4595 = vmatpush1.msra.mxu0 %v1282
  %4596 = vmatprep.subr.mxu0 0.0
  %4597 = vmatpush1.msra.mxu0 %v1283
  %4598 = vmatprep.subr.mxu0 0.0
  %4599 = vmatpush1.msra.mxu0 %v1284
  %4600 = vmatprep.subr.mxu0 0.0
  %4601 = vmatpush1.msra.mxu0 %v1285
  %4602 = vmatprep.subr.mxu0 0.0
  %4603 = vmatpush1.msra.mxu0 %v1286
  %4604 = vmatprep.subr.mxu0 0.0
  %4605 = vmatpush1.msra.mxu0 %v1287
  %4606 = vmatprep.subr.mxu0 0.0
  %4607 = vmatpush1.msra.mxu0 %v1288
  %4608 = vmatprep.subr.mxu0 0.0
  %4609 = vmatpush1.msra.mxu0 %v1289
  %4610 = vmatprep.subr.mxu0 0.0
  %4611 = vmatpush1.msra.mxu0 %v1290
  %4612 = vmatprep.subr.mxu0 0.0
  %4613 = vmatpush1.msra.mxu0 %v1291
  %4614 = vmatprep.subr.mxu0 0.0
  %4615 = vmatpush1.msra.mxu0 %v1292
  %4616 = vmatprep.subr.mxu0 0.0
  %4617 = vmatpush1.msra.mxu0 %v1293
  %4618 = vmatprep.subr.mxu0 0.0
  %4619 = vmatpush1.msra.mxu0 0.0
  %4620 = vmatprep.subr.mxu0 0.0
  %4621 = vmatpush1.msra.mxu0 0.0
  %4622 = vmatprep.subr.mxu0 0.0
  %4623 = vmatpush1.msra.mxu0 0.0
  %4624 = vmatprep.subr.mxu0 0.0
  %4625 = vmatpush1.msra.mxu0 0.0
  %4626 = vmatprep.subr.mxu0 0.0
  %4627 = vmatpush1.msra.mxu0 0.0
  %4628 = vmatprep.subr.mxu0 0.0
  %4629 = vmatpush1.msra.mxu0 0.0
  %4630 = vmatprep.mubr.f32.mxu0 %v1680
  %4631 = vmatmul.mubr.f32.gmra.mrb[0].mxu0 %v34
  %v4632 = vpop.f32.mrb[0].mxu0
  %v4633 = vadd.f32 %v4248, %v4632
  %v4634 = vpop.f32.mrb[0].mxu0
  %4635 = vmatprep.mubr.f32.mxu0 %v1683
  %4636 = vmatmul.mubr.f32.gmra.mrb[0].mxu0 %v50
  %v4637 = vpop.f32.mrb[0].mxu0
  %v4638 = vadd.f32 %v4253, %v4637
  %v4639 = vpop.f32.mrb[0].mxu0
  %4640 = vmatprep.mubr.f32.mxu0 %v1686
  %4641 = vmatmul.mubr.f32.gmra.mrb[0].mxu0 %v66
  %v4642 = vpop.f32.mrb[0].mxu0
  %v4643 = vadd.f32 %v4258, %v4642
  %v4644 = vpop.f32.mrb[0].mxu0
  %4645 = vmatprep.mubr.f32.mxu0 %v1689
  %4646 = vmatmul.mubr.f32.gmra.mrb[0].mxu0 %v82
  %v4647 = vpop.f32.mrb[0].mxu0
  %v4648 = vadd.f32 %v4263, %v4647
  %v4649 = vpop.f32.mrb[0].mxu0
  %4650 = vmatprep.mubr.f32.mxu0 %v1692
  %4651 = vmatmul.mubr.f32.gmra.mrb[0].mxu0 %v98
  %v4652 = vpop.f32.mrb[0].mxu0
  %v4653 = vadd.f32 %v4268, %v4652
  %v4654 = vpop.f32.mrb[0].mxu0
  %4655 = vmatprep.mubr.f32.mxu0 %v1695
  %4656 = vmatmul.mubr.f32.gmra.mrb[0].mxu0 %v114
  %v4657 = vpop.f32.mrb[0].mxu0
  %v4658 = vadd.f32 %v4273, %v4657
  %v4659 = vpop.f32.mrb[0].mxu0
  %4660 = vmatprep.mubr.f32.mxu0 %v1698
  %4661 = vmatmul.mubr.f32.gmra.mrb[0].mxu0 %v130
  %v4662 = vpop.f32.mrb[0].mxu0
  %v4663 = vadd.f32 %v4278, %v4662
  %v4664 = vpop.f32.mrb[0].mxu0
  %4665 = vmatprep.mubr.f32.mxu0 %v1701
  %4666 = vmatmul.mubr.f32.gmra.mrb[0].mxu0 %v146
  %v4667 = vpop.f32.mrb[0].mxu0
  %v4668 = vadd.f32 %v4283, %v4667
  %v4669 = vpop.f32.mrb[0].mxu0
  %4670 = vmatprep.mubr.f32.mxu0 %v1704
  %4671 = vmatmul.mubr.f32.gmra.mrb[0].mxu0 %v162
  %v4672 = vpop.f32.mrb[0].mxu0
  %v4673 = vadd.f32 %v4288, %v4672
  %v4674 = vpop.f32.mrb[0].mxu0
  %4675 = vmatprep.mubr.f32.mxu0 %v1707
  %4676 = vmatmul.mubr.f32.gmra.mrb[0].mxu0 %v178
  %v4677 = vpop.f32.mrb[0].mxu0
  %v4678 = vadd.f32 %v4293, %v4677
  %v4679 = vpop.f32.mrb[0].mxu0
  %4680 = vmatprep.mubr.f32.mxu0 %v1710
  %4681 = vmatmul.mubr.f32.gmra.mrb[0].mxu0 %v194
  %v4682 = vpop.f32.mrb[0].mxu0
  %v4683 = vadd.f32 %v4298, %v4682
  %v4684 = vpop.f32.mrb[0].mxu0
  %4685 = vmatprep.mubr.f32.mxu0 %v1713
  %4686 = vmatmul.mubr.f32.gmra.mrb[0].mxu0 %v210
  %v4687 = vpop.f32.mrb[0].mxu0
  %v4688 = vadd.f32 %v4303, %v4687
  %v4689 = vpop.f32.mrb[0].mxu0
  %4690 = vmatprep.mubr.f32.mxu0 %v1716
  %4691 = vmatmul.mubr.f32.gmra.mrb[0].mxu0 %v226
  %v4692 = vpop.f32.mrb[0].mxu0
  %v4693 = vadd.f32 %v4308, %v4692
  %v4694 = vpop.f32.mrb[0].mxu0
  %4695 = vmatprep.mubr.f32.mxu0 %v1719
  %4696 = vmatmul.mubr.f32.gmra.mrb[0].mxu0 %v242
  %v4697 = vpop.f32.mrb[0].mxu0
  %v4698 = vadd.f32 %v4313, %v4697
  %v4699 = vpop.f32.mrb[0].mxu0
  %4700 = vmatprep.mubr.f32.mxu0 %v1722
  %4701 = vmatmul.mubr.f32.gmra.mrb[0].mxu0 %v258
  %v4702 = vpop.f32.mrb[0].mxu0
  %v4703 = vadd.f32 %v4318, %v4702
  %v4704 = vpop.f32.mrb[0].mxu0
  %4705 = vmatprep.mubr.f32.mxu0 %v1725
  %4706 = vmatmul.mubr.f32.gmra.mrb[0].mxu0 %v274
  %v4707 = vpop.f32.mrb[0].mxu0
  %v4708 = vadd.f32 %v4323, %v4707
  %v4709 = vpop.f32.mrb[0].mxu0
  %4710 = vmatprep.mubr.f32.mxu0 %v1728
  %4711 = vmatmul.mubr.f32.gmra.mrb[0].mxu0 %v290
  %v4712 = vpop.f32.mrb[0].mxu0
  %v4713 = vadd.f32 %v4328, %v4712
  %v4714 = vpop.f32.mrb[0].mxu0
  %4715 = vmatprep.mubr.f32.mxu0 %v1731
  %4716 = vmatmul.mubr.f32.gmra.mrb[0].mxu0 %v306
  %v4717 = vpop.f32.mrb[0].mxu0
  %v4718 = vadd.f32 %v4333, %v4717
  %v4719 = vpop.f32.mrb[0].mxu0
  %4720 = vmatprep.mubr.f32.mxu0 %v1734
  %4721 = vmatmul.mubr.f32.gmra.mrb[0].mxu0 %v322
  %v4722 = vpop.f32.mrb[0].mxu0
  %v4723 = vadd.f32 %v4338, %v4722
  %v4724 = vpop.f32.mrb[0].mxu0
  %4725 = vmatprep.mubr.f32.mxu0 %v1737
  %4726 = vmatmul.mubr.f32.gmra.mrb[0].mxu0 %v338
  %v4727 = vpop.f32.mrb[0].mxu0
  %v4728 = vadd.f32 %v4343, %v4727
  %v4729 = vpop.f32.mrb[0].mxu0
  %4730 = vmatprep.mubr.f32.mxu0 %v1740
  %4731 = vmatmul.mubr.f32.gmra.mrb[0].mxu0 %v354
  %v4732 = vpop.f32.mrb[0].mxu0
  %v4733 = vadd.f32 %v4348, %v4732
  %v4734 = vpop.f32.mrb[0].mxu0
  %4735 = vmatprep.mubr.f32.mxu0 %v1743
  %4736 = vmatmul.mubr.f32.gmra.mrb[0].mxu0 %v370
  %v4737 = vpop.f32.mrb[0].mxu0
  %v4738 = vadd.f32 %v4353, %v4737
  %v4739 = vpop.f32.mrb[0].mxu0
  %4740 = vmatprep.mubr.f32.mxu0 %v1746
  %4741 = vmatmul.mubr.f32.gmra.mrb[0].mxu0 %v386
  %v4742 = vpop.f32.mrb[0].mxu0
  %v4743 = vadd.f32 %v4358, %v4742
  %v4744 = vpop.f32.mrb[0].mxu0
  %4745 = vmatprep.mubr.f32.mxu0 %v1749
  %4746 = vmatmul.mubr.f32.gmra.mrb[0].mxu0 %v402
  %v4747 = vpop.f32.mrb[0].mxu0
  %v4748 = vadd.f32 %v4363, %v4747
  %v4749 = vpop.f32.mrb[0].mxu0
  %4750 = vmatprep.mubr.f32.mxu0 %v1752
  %4751 = vmatmul.mubr.f32.gmra.mrb[0].mxu0 %v418
  %v4752 = vpop.f32.mrb[0].mxu0
  %v4753 = vadd.f32 %v4368, %v4752
  %v4754 = vpop.f32.mrb[0].mxu0
  %4755 = vmatprep.mubr.f32.mxu0 %v1755
  %4756 = vmatmul.mubr.f32.gmra.mrb[0].mxu0 %v434
  %v4757 = vpop.f32.mrb[0].mxu0
  %v4758 = vadd.f32 %v4373, %v4757
  %v4759 = vpop.f32.mrb[0].mxu0
  %4760 = vmatprep.mubr.f32.mxu0 %v1758
  %4761 = vmatmul.mubr.f32.gmra.mrb[0].mxu0 %v450
  %v4762 = vpop.f32.mrb[0].mxu0
  %v4763 = vadd.f32 %v4378, %v4762
  %v4764 = vpop.f32.mrb[0].mxu0
  %4765 = vmatprep.mubr.f32.mxu0 %v1761
  %4766 = vmatmul.mubr.f32.gmra.mrb[0].mxu0 %v466
  %v4767 = vpop.f32.mrb[0].mxu0
  %v4768 = vadd.f32 %v4383, %v4767
  %v4769 = vpop.f32.mrb[0].mxu0
  %4770 = vmatprep.mubr.f32.mxu0 %v1764
  %4771 = vmatmul.mubr.f32.gmra.mrb[0].mxu0 %v482
  %v4772 = vpop.f32.mrb[0].mxu0
  %v4773 = vadd.f32 %v4388, %v4772
  %v4774 = vpop.f32.mrb[0].mxu0
  %4775 = vmatprep.mubr.f32.mxu0 %v1767
  %4776 = vmatmul.mubr.f32.gmra.mrb[0].mxu0 %v498
  %v4777 = vpop.f32.mrb[0].mxu0
  %v4778 = vadd.f32 %v4393, %v4777
  %v4779 = vpop.f32.mrb[0].mxu0
  %4780 = vmatprep.mubr.f32.mxu0 %v1770
  %4781 = vmatmul.mubr.f32.gmra.mrb[0].mxu0 %v514
  %v4782 = vpop.f32.mrb[0].mxu0
  %v4783 = vadd.f32 %v4398, %v4782
  %v4784 = vpop.f32.mrb[0].mxu0
  %4785 = vmatprep.mubr.f32.mxu0 %v1773
  %4786 = vmatmul.mubr.f32.gmra.mrb[0].mxu0 %v530
  %v4787 = vpop.f32.mrb[0].mxu0
  %v4788 = vadd.f32 %v4403, %v4787
  %v4789 = vpop.f32.mrb[0].mxu0
  %4790 = vmatprep.mubr.f32.mxu0 %v1776
  %4791 = vmatmul.mubr.f32.gmra.mrb[0].mxu0 %v546
  %v4792 = vpop.f32.mrb[0].mxu0
  %v4793 = vadd.f32 %v4408, %v4792
  %v4794 = vpop.f32.mrb[0].mxu0
  %4795 = vmatprep.mubr.f32.mxu0 %v1779
  %4796 = vmatmul.mubr.f32.gmra.mrb[0].mxu0 %v562
  %v4797 = vpop.f32.mrb[0].mxu0
  %v4798 = vadd.f32 %v4413, %v4797
  %v4799 = vpop.f32.mrb[0].mxu0
  %4800 = vmatprep.mubr.f32.mxu0 %v1782
  %4801 = vmatmul.mubr.f32.gmra.mrb[0].mxu0 %v578
  %v4802 = vpop.f32.mrb[0].mxu0
  %v4803 = vadd.f32 %v4418, %v4802
  %v4804 = vpop.f32.mrb[0].mxu0
  %4805 = vmatprep.mubr.f32.mxu0 %v1785
  %4806 = vmatmul.mubr.f32.gmra.mrb[0].mxu0 %v594
  %v4807 = vpop.f32.mrb[0].mxu0
  %v4808 = vadd.f32 %v4423, %v4807
  %v4809 = vpop.f32.mrb[0].mxu0
  %4810 = vmatprep.mubr.f32.mxu0 %v1788
  %4811 = vmatmul.mubr.f32.gmra.mrb[0].mxu0 %v610
  %v4812 = vpop.f32.mrb[0].mxu0
  %v4813 = vadd.f32 %v4428, %v4812
  %v4814 = vpop.f32.mrb[0].mxu0
  %4815 = vmatprep.mubr.f32.mxu0 %v1791
  %4816 = vmatmul.mubr.f32.gmra.mrb[0].mxu0 %v626
  %v4817 = vpop.f32.mrb[0].mxu0
  %v4818 = vadd.f32 %v4433, %v4817
  %v4819 = vpop.f32.mrb[0].mxu0
  %4820 = vmatprep.mubr.f32.mxu0 %v1794
  %4821 = vmatmul.mubr.f32.gmra.mrb[0].mxu0 %v642
  %v4822 = vpop.f32.mrb[0].mxu0
  %v4823 = vadd.f32 %v4438, %v4822
  %v4824 = vpop.f32.mrb[0].mxu0
  %4825 = vmatprep.mubr.f32.mxu0 %v1797
  %4826 = vmatmul.mubr.f32.gmra.mrb[0].mxu0 %v658
  %v4827 = vpop.f32.mrb[0].mxu0
  %v4828 = vadd.f32 %v4443, %v4827
  %v4829 = vpop.f32.mrb[0].mxu0
  %4830 = vmatprep.mubr.f32.mxu0 %v1800
  %4831 = vmatmul.mubr.f32.gmra.mrb[0].mxu0 %v674
  %v4832 = vpop.f32.mrb[0].mxu0
  %v4833 = vadd.f32 %v4448, %v4832
  %v4834 = vpop.f32.mrb[0].mxu0
  %4835 = vmatprep.mubr.f32.mxu0 %v1803
  %4836 = vmatmul.mubr.f32.gmra.mrb[0].mxu0 %v690
  %v4837 = vpop.f32.mrb[0].mxu0
  %v4838 = vadd.f32 %v4453, %v4837
  %v4839 = vpop.f32.mrb[0].mxu0
  %4840 = vmatprep.mubr.f32.mxu0 %v1806
  %4841 = vmatmul.mubr.f32.gmra.mrb[0].mxu0 %v706
  %v4842 = vpop.f32.mrb[0].mxu0
  %v4843 = vadd.f32 %v4458, %v4842
  %v4844 = vpop.f32.mrb[0].mxu0
  %4845 = vmatprep.mubr.f32.mxu0 %v1809
  %4846 = vmatmul.mubr.f32.gmra.mrb[0].mxu0 %v722
  %v4847 = vpop.f32.mrb[0].mxu0
  %v4848 = vadd.f32 %v4463, %v4847
  %v4849 = vpop.f32.mrb[0].mxu0
  %4850 = vmatprep.mubr.f32.mxu0 %v1812
  %4851 = vmatmul.mubr.f32.gmra.mrb[0].mxu0 %v738
  %v4852 = vpop.f32.mrb[0].mxu0
  %v4853 = vadd.f32 %v4468, %v4852
  %v4854 = vpop.f32.mrb[0].mxu0
  %4855 = vmatprep.mubr.f32.mxu0 %v1815
  %4856 = vmatmul.mubr.f32.gmra.mrb[0].mxu0 %v754
  %v4857 = vpop.f32.mrb[0].mxu0
  %v4858 = vadd.f32 %v4473, %v4857
  %v4859 = vpop.f32.mrb[0].mxu0
  %4860 = vmatprep.mubr.f32.mxu0 %v1818
  %4861 = vmatmul.mubr.f32.gmra.mrb[0].mxu0 %v770
  %v4862 = vpop.f32.mrb[0].mxu0
  %v4863 = vadd.f32 %v4478, %v4862
  %v4864 = vpop.f32.mrb[0].mxu0
  %4865 = vmatprep.mubr.f32.mxu0 %v1821
  %4866 = vmatmul.mubr.f32.gmra.mrb[0].mxu0 %v786
  %v4867 = vpop.f32.mrb[0].mxu0
  %v4868 = vadd.f32 %v4483, %v4867
  %v4869 = vpop.f32.mrb[0].mxu0
  %4870 = vmatprep.mubr.f32.mxu0 %v1824
  %4871 = vmatmul.mubr.f32.gmra.mrb[0].mxu0 %v802
  %v4872 = vpop.f32.mrb[0].mxu0
  %v4873 = vadd.f32 %v4488, %v4872
  %v4874 = vpop.f32.mrb[0].mxu0
  %4875 = vmatprep.mubr.f32.mxu0 %v1827
  %4876 = vmatmul.mubr.f32.gmra.mrb[0].mxu0 %v818
  %v4877 = vpop.f32.mrb[0].mxu0
  %v4878 = vadd.f32 %v4493, %v4877
  %v4879 = vpop.f32.mrb[0].mxu0
  %4880 = vmatprep.mubr.f32.mxu0 %v1830
  %4881 = vmatmul.mubr.f32.gmra.mrb[0].mxu0 %v834
  %v4882 = vpop.f32.mrb[0].mxu0
  %v4883 = vadd.f32 %v4498, %v4882
  %v4884 = vpop.f32.mrb[0].mxu0
  %4885 = vmatprep.mubr.f32.mxu0 %v1833
  %4886 = vmatmul.mubr.f32.gmra.mrb[0].mxu0 %v850
  %v4887 = vpop.f32.mrb[0].mxu0
  %v4888 = vadd.f32 %v4503, %v4887
  %v4889 = vpop.f32.mrb[0].mxu0
  %4890 = vmatprep.mubr.f32.mxu0 %v1836
  %4891 = vmatmul.mubr.f32.gmra.mrb[0].mxu0 %v866
  %v4892 = vpop.f32.mrb[0].mxu0
  %v4893 = vadd.f32 %v4508, %v4892
  %v4894 = vpop.f32.mrb[0].mxu0
  %4895 = vmatprep.mubr.f32.mxu0 %v1839
  %4896 = vmatmul.mubr.f32.gmra.mrb[0].mxu0 %v882
  %v4897 = vpop.f32.mrb[0].mxu0
  %v4898 = vadd.f32 %v4513, %v4897
  %v4899 = vpop.f32.mrb[0].mxu0
  %4900 = vmatprep.mubr.f32.mxu0 %v1842
  %4901 = vmatmul.mubr.f32.gmra.mrb[0].mxu0 %v898
  %v4902 = vpop.f32.mrb[0].mxu0
  %v4903 = vadd.f32 %v4518, %v4902
  %v4904 = vpop.f32.mrb[0].mxu0
  %4905 = vmatprep.mubr.f32.mxu0 %v1845
  %4906 = vmatmul.mubr.f32.gmra.mrb[0].mxu0 %v914
  %v4907 = vpop.f32.mrb[0].mxu0
  %v4908 = vadd.f32 %v4523, %v4907
  %v4909 = vpop.f32.mrb[0].mxu0
  %4910 = vmatprep.mubr.f32.mxu0 %v1848
  %4911 = vmatmul.mubr.f32.gmra.mrb[0].mxu0 %v930
  %v4912 = vpop.f32.mrb[0].mxu0
  %v4913 = vadd.f32 %v4528, %v4912
  %v4914 = vpop.f32.mrb[0].mxu0
  %4915 = vmatprep.mubr.f32.mxu0 %v1851
  %4916 = vmatmul.mubr.f32.gmra.mrb[0].mxu0 %v946
  %v4917 = vpop.f32.mrb[0].mxu0
  %v4918 = vadd.f32 %v4533, %v4917
  %v4919 = vpop.f32.mrb[0].mxu0
  %4920 = vmatprep.mubr.f32.mxu0 %v1854
  %4921 = vmatmul.mubr.f32.gmra.mrb[0].mxu0 %v962
  %v4922 = vpop.f32.mrb[0].mxu0
  %v4923 = vadd.f32 %v4538, %v4922
  %v4924 = vpop.f32.mrb[0].mxu0
  %4925 = vmatprep.mubr.f32.mxu0 %v1857
  %4926 = vmatmul.mubr.f32.gmra.mrb[0].mxu0 %v978
  %v4927 = vpop.f32.mrb[0].mxu0
  %v4928 = vadd.f32 %v4543, %v4927
  %v4929 = vpop.f32.mrb[0].mxu0
  %4930 = vmatprep.mubr.f32.mxu0 %v1860
  %4931 = vmatmul.mubr.f32.gmra.mrb[0].mxu0 %v994
  %v4932 = vpop.f32.mrb[0].mxu0
  %v4933 = vadd.f32 %v4548, %v4932
  %v4934 = vpop.f32.mrb[0].mxu0
  %4935 = vmatprep.mubr.f32.mxu0 %v1863
  %4936 = vmatmul.mubr.f32.gmra.mrb[0].mxu0 %v1010
  %v4937 = vpop.f32.mrb[0].mxu0
  %v4938 = vadd.f32 %v4553, %v4937
  %v4939 = vpop.f32.mrb[0].mxu0
  %4940 = vmatprep.mubr.f32.mxu0 %v1866
  %4941 = vmatmul.mubr.f32.gmra.mrb[0].mxu0 %v1026
  %v4942 = vpop.f32.mrb[0].mxu0
  %v4943 = vadd.f32 %v4558, %v4942
  %v4944 = vpop.f32.mrb[0].mxu0
  %4945 = vmatprep.mubr.f32.mxu0 %v1869
  %4946 = vmatmul.mubr.f32.gmra.mrb[0].mxu0 %v1042
  %v4947 = vpop.f32.mrb[0].mxu0
  %v4948 = vadd.f32 %v4563, %v4947
  %v4949 = vpop.f32.mrb[0].mxu0
  %4950 = vdwg.mxu0
  %v4951 = vmax.f32 %v4633, 0.0
  %v4952 = vmax.f32 %v4638, 0.0
  %v4953 = vmax.f32 %v4643, 0.0
  %v4954 = vmax.f32 %v4648, 0.0
  %v4955 = vmax.f32 %v4653, 0.0
  %v4956 = vmax.f32 %v4658, 0.0
  %v4957 = vmax.f32 %v4663, 0.0
  %v4958 = vmax.f32 %v4668, 0.0
  %v4959 = vmax.f32 %v4673, 0.0
  %v4960 = vmax.f32 %v4678, 0.0
  %v4961 = vmax.f32 %v4683, 0.0
  %v4962 = vmax.f32 %v4688, 0.0
  %v4963 = vmax.f32 %v4693, 0.0
  %v4964 = vmax.f32 %v4698, 0.0
  %v4965 = vmax.f32 %v4703, 0.0
  %v4966 = vmax.f32 %v4708, 0.0
  %v4967 = vmax.f32 %v4713, 0.0
  %v4968 = vmax.f32 %v4718, 0.0
  %v4969 = vmax.f32 %v4723, 0.0
  %v4970 = vmax.f32 %v4728, 0.0
  %v4971 = vmax.f32 %v4733, 0.0
  %v4972 = vmax.f32 %v4738, 0.0
  %v4973 = vmax.f32 %v4743, 0.0
  %v4974 = vmax.f32 %v4748, 0.0
  %v4975 = vmax.f32 %v4753, 0.0
  %v4976 = vmax.f32 %v4758, 0.0
  %v4977 = vmax.f32 %v4763, 0.0
  %v4978 = vmax.f32 %v4768, 0.0
  %v4979 = vmax.f32 %v4773, 0.0
  %v4980 = vmax.f32 %v4778, 0.0
  %v4981 = vmax.f32 %v4783, 0.0
  %v4982 = vmax.f32 %v4788, 0.0
  %v4983 = vmax.f32 %v4793, 0.0
  %v4984 = vmax.f32 %v4798, 0.0
  %v4985 = vmax.f32 %v4803, 0.0
  %v4986 = vmax.f32 %v4808, 0.0
  %v4987 = vmax.f32 %v4813, 0.0
  %v4988 = vmax.f32 %v4818, 0.0
  %v4989 = vmax.f32 %v4823, 0.0
  %v4990 = vmax.f32 %v4828, 0.0
  %v4991 = vmax.f32 %v4833, 0.0
  %v4992 = vmax.f32 %v4838, 0.0
  %v4993 = vmax.f32 %v4843, 0.0
  %v4994 = vmax.f32 %v4848, 0.0
  %v4995 = vmax.f32 %v4853, 0.0
  %v4996 = vmax.f32 %v4858, 0.0
  %v4997 = vmax.f32 %v4863, 0.0
  %v4998 = vmax.f32 %v4868, 0.0
  %v4999 = vmax.f32 %v4873, 0.0
  %v5000 = vmax.f32 %v4878, 0.0
  %v5001 = vmax.f32 %v4883, 0.0
  %v5002 = vmax.f32 %v4888, 0.0
  %v5003 = vmax.f32 %v4893, 0.0
  %v5004 = vmax.f32 %v4898, 0.0
  %v5005 = vmax.f32 %v4903, 0.0
  %v5006 = vmax.f32 %v4908, 0.0
  %v5007 = vmax.f32 %v4913, 0.0
  %v5008 = vmax.f32 %v4918, 0.0
  %v5009 = vmax.f32 %v4923, 0.0
  %v5010 = vmax.f32 %v4928, 0.0
  %v5011 = vmax.f32 %v4933, 0.0
  %v5012 = vmax.f32 %v4938, 0.0
  %v5013 = vmax.f32 %v4943, 0.0
  %v5014 = vmax.f32 %v4948, 0.0
  %vm5015 = vcmask 15360
  %5016 = vst.msk [vmem:[#allocation2] sm:$0xff] %vm5015, %v4951
  %5017 = vst.msk [vmem:[#allocation2 + $0x8] sm:$0xff] %vm5015, %v4952
  %5018 = vst.msk [vmem:[#allocation2 + $0x10] sm:$0xff] %vm5015, %v4953
  %5019 = vst.msk [vmem:[#allocation2 + $0x18] sm:$0xff] %vm5015, %v4954
  %5020 = vst.msk [vmem:[#allocation2 + $0x20] sm:$0xff] %vm5015, %v4955
  %5021 = vst.msk [vmem:[#allocation2 + $0x28] sm:$0xff] %vm5015, %v4956
  %5022 = vst.msk [vmem:[#allocation2 + $0x30] sm:$0xff] %vm5015, %v4957
  %5023 = vst.msk [vmem:[#allocation2 + $0x38] sm:$0xff] %vm5015, %v4958
  %5024 = vst.msk [vmem:[#allocation2 + $0x40] sm:$0xff] %vm5015, %v4959
  %5025 = vst.msk [vmem:[#allocation2 + $0x48] sm:$0xff] %vm5015, %v4960
  %5026 = vst.msk [vmem:[#allocation2 + $0x50] sm:$0xff] %vm5015, %v4961
  %5027 = vst.msk [vmem:[#allocation2 + $0x58] sm:$0xff] %vm5015, %v4962
  %5028 = vst.msk [vmem:[#allocation2 + $0x60] sm:$0xff] %vm5015, %v4963
  %5029 = vst.msk [vmem:[#allocation2 + $0x68] sm:$0xff] %vm5015, %v4964
  %5030 = vst.msk [vmem:[#allocation2 + $0x70] sm:$0xff] %vm5015, %v4965
  %5031 = vst.msk [vmem:[#allocation2 + $0x78] sm:$0xff] %vm5015, %v4966
  %5032 = vst.msk [vmem:[#allocation2 + $0x80] sm:$0xff] %vm5015, %v4967
  %5033 = vst.msk [vmem:[#allocation2 + $0x88] sm:$0xff] %vm5015, %v4968
  %5034 = vst.msk [vmem:[#allocation2 + $0x90] sm:$0xff] %vm5015, %v4969
  %5035 = vst.msk [vmem:[#allocation2 + $0x98] sm:$0xff] %vm5015, %v4970
  %5036 = vst.msk [vmem:[#allocation2 + $0xa0] sm:$0xff] %vm5015, %v4971
  %5037 = vst.msk [vmem:[#allocation2 + $0xa8] sm:$0xff] %vm5015, %v4972
  %5038 = vst.msk [vmem:[#allocation2 + $0xb0] sm:$0xff] %vm5015, %v4973
  %5039 = vst.msk [vmem:[#allocation2 + $0xb8] sm:$0xff] %vm5015, %v4974
  %5040 = vst.msk [vmem:[#allocation2 + $0xc0] sm:$0xff] %vm5015, %v4975
  %5041 = vst.msk [vmem:[#allocation2 + $0xc8] sm:$0xff] %vm5015, %v4976
  %5042 = vst.msk [vmem:[#allocation2 + $0xd0] sm:$0xff] %vm5015, %v4977
  %5043 = vst.msk [vmem:[#allocation2 + $0xd8] sm:$0xff] %vm5015, %v4978
  %5044 = vst.msk [vmem:[#allocation2 + $0xe0] sm:$0xff] %vm5015, %v4979
  %5045 = vst.msk [vmem:[#allocation2 + $0xe8] sm:$0xff] %vm5015, %v4980
  %5046 = vst.msk [vmem:[#allocation2 + $0xf0] sm:$0xff] %vm5015, %v4981
  %5047 = vst.msk [vmem:[#allocation2 + $0xf8] sm:$0xff] %vm5015, %v4982
  %5048 = vst.msk [vmem:[#allocation2 + $0x100] sm:$0xff] %vm5015, %v4983
  %5049 = vst.msk [vmem:[#allocation2 + $0x108] sm:$0xff] %vm5015, %v4984
  %5050 = vst.msk [vmem:[#allocation2 + $0x110] sm:$0xff] %vm5015, %v4985
  %5051 = vst.msk [vmem:[#allocation2 + $0x118] sm:$0xff] %vm5015, %v4986
  %5052 = vst.msk [vmem:[#allocation2 + $0x120] sm:$0xff] %vm5015, %v4987
  %5053 = vst.msk [vmem:[#allocation2 + $0x128] sm:$0xff] %vm5015, %v4988
  %5054 = vst.msk [vmem:[#allocation2 + $0x130] sm:$0xff] %vm5015, %v4989
  %5055 = vst.msk [vmem:[#allocation2 + $0x138] sm:$0xff] %vm5015, %v4990
  %5056 = vst.msk [vmem:[#allocation2 + $0x140] sm:$0xff] %vm5015, %v4991
  %5057 = vst.msk [vmem:[#allocation2 + $0x148] sm:$0xff] %vm5015, %v4992
  %5058 = vst.msk [vmem:[#allocation2 + $0x150] sm:$0xff] %vm5015, %v4993
  %5059 = vst.msk [vmem:[#allocation2 + $0x158] sm:$0xff] %vm5015, %v4994
  %5060 = vst.msk [vmem:[#allocation2 + $0x160] sm:$0xff] %vm5015, %v4995
  %5061 = vst.msk [vmem:[#allocation2 + $0x168] sm:$0xff] %vm5015, %v4996
  %5062 = vst.msk [vmem:[#allocation2 + $0x170] sm:$0xff] %vm5015, %v4997
  %5063 = vst.msk [vmem:[#allocation2 + $0x178] sm:$0xff] %vm5015, %v4998
  %5064 = vst.msk [vmem:[#allocation2 + $0x180] sm:$0xff] %vm5015, %v4999
  %5065 = vst.msk [vmem:[#allocation2 + $0x188] sm:$0xff] %vm5015, %v5000
  %5066 = vst.msk [vmem:[#allocation2 + $0x190] sm:$0xff] %vm5015, %v5001
  %5067 = vst.msk [vmem:[#allocation2 + $0x198] sm:$0xff] %vm5015, %v5002
  %5068 = vst.msk [vmem:[#allocation2 + $0x1a0] sm:$0xff] %vm5015, %v5003
  %5069 = vst.msk [vmem:[#allocation2 + $0x1a8] sm:$0xff] %vm5015, %v5004
  %5070 = vst.msk [vmem:[#allocation2 + $0x1b0] sm:$0xff] %vm5015, %v5005
  %5071 = vst.msk [vmem:[#allocation2 + $0x1b8] sm:$0xff] %vm5015, %v5006
  %5072 = vst.msk [vmem:[#allocation2 + $0x1c0] sm:$0xff] %vm5015, %v5007
  %5073 = vst.msk [vmem:[#allocation2 + $0x1c8] sm:$0xff] %vm5015, %v5008
  %5074 = vst.msk [vmem:[#allocation2 + $0x1d0] sm:$0xff] %vm5015, %v5009
  %5075 = vst.msk [vmem:[#allocation2 + $0x1d8] sm:$0xff] %vm5015, %v5010
  %5076 = vst.msk [vmem:[#allocation2 + $0x1e0] sm:$0xff] %vm5015, %v5011
  %5077 = vst.msk [vmem:[#allocation2 + $0x1e8] sm:$0xff] %vm5015, %v5012
  %5078 = vst.msk [vmem:[#allocation2 + $0x1f0] sm:$0xff] %vm5015, %v5013
  %5079 = vst.msk [vmem:[#allocation2 + $0x1f8] sm:$0xff] %vm5015, %v5014
  %v5080 = vld [vmem:[%s3] sm:$0xff]
  %v5081 = vld [vmem:[%s3 + $0x8] sm:$0xff]
  %v5082 = vld [vmem:[%s3 + $0x10] sm:$0xff]
  %v5083 = vld [vmem:[%s3 + $0x18] sm:$0xff]
  %v5084 = vld [vmem:[%s3 + $0x20] sm:$0x3]
  %v5085 = vld [vmem:[%s3 + $0x28] sm:$0x3]
  %v5086 = vld [vmem:[%s3 + $0x30] sm:$0x3]
  %v5087 = vld [vmem:[%s3 + $0x38] sm:$0x3]
  %v5088 = vld [vmem:[#allocation2] sm:$0xff]
  %v5089 = vld [vmem:[#allocation2 + $0x8] sm:$0xff]
  %v5090 = vld [vmem:[#allocation2 + $0x10] sm:$0xff]
  %v5091 = vld [vmem:[#allocation2 + $0x18] sm:$0xff]
  %v5092 = vld [vmem:[#allocation2 + $0x20] sm:$0xff]
  %v5093 = vld [vmem:[#allocation2 + $0x28] sm:$0xff]
  %v5094 = vld [vmem:[#allocation2 + $0x30] sm:$0xff]
  %v5095 = vld [vmem:[#allocation2 + $0x38] sm:$0xff]
  %v5096 = vld [vmem:[#allocation2 + $0x40] sm:$0xff]
  %v5097 = vld [vmem:[#allocation2 + $0x48] sm:$0xff]
  %v5098 = vld [vmem:[#allocation2 + $0x50] sm:$0xff]
  %v5099 = vld [vmem:[#allocation2 + $0x58] sm:$0xff]
  %v5100 = vld [vmem:[#allocation2 + $0x60] sm:$0xff]
  %v5101 = vld [vmem:[#allocation2 + $0x68] sm:$0xff]
  %v5102 = vld [vmem:[#allocation2 + $0x70] sm:$0xff]
  %v5103 = vld [vmem:[#allocation2 + $0x78] sm:$0xff]
  %v5104 = vld [vmem:[#allocation2 + $0x80] sm:$0xff]
  %v5105 = vld [vmem:[#allocation2 + $0x88] sm:$0xff]
  %v5106 = vld [vmem:[#allocation2 + $0x90] sm:$0xff]
  %v5107 = vld [vmem:[#allocation2 + $0x98] sm:$0xff]
  %v5108 = vld [vmem:[#allocation2 + $0xa0] sm:$0xff]
  %v5109 = vld [vmem:[#allocation2 + $0xa8] sm:$0xff]
  %v5110 = vld [vmem:[#allocation2 + $0xb0] sm:$0xff]
  %v5111 = vld [vmem:[#allocation2 + $0xb8] sm:$0xff]
  %v5112 = vld [vmem:[#allocation2 + $0xc0] sm:$0xff]
  %v5113 = vld [vmem:[#allocation2 + $0xc8] sm:$0xff]
  %v5114 = vld [vmem:[#allocation2 + $0xd0] sm:$0xff]
  %v5115 = vld [vmem:[#allocation2 + $0xd8] sm:$0xff]
  %v5116 = vld [vmem:[#allocation2 + $0xe0] sm:$0xff]
  %v5117 = vld [vmem:[#allocation2 + $0xe8] sm:$0xff]
  %v5118 = vld [vmem:[#allocation2 + $0xf0] sm:$0xff]
  %v5119 = vld [vmem:[#allocation2 + $0xf8] sm:$0xff]
  %v5120 = vld [vmem:[#allocation2 + $0x100] sm:$0xff]
  %v5121 = vld [vmem:[#allocation2 + $0x108] sm:$0xff]
  %v5122 = vld [vmem:[#allocation2 + $0x110] sm:$0xff]
  %v5123 = vld [vmem:[#allocation2 + $0x118] sm:$0xff]
  %v5124 = vld [vmem:[#allocation2 + $0x120] sm:$0xff]
  %v5125 = vld [vmem:[#allocation2 + $0x128] sm:$0xff]
  %v5126 = vld [vmem:[#allocation2 + $0x130] sm:$0xff]
  %v5127 = vld [vmem:[#allocation2 + $0x138] sm:$0xff]
  %v5128 = vld [vmem:[#allocation2 + $0x140] sm:$0xff]
  %v5129 = vld [vmem:[#allocation2 + $0x148] sm:$0xff]
  %v5130 = vld [vmem:[#allocation2 + $0x150] sm:$0xff]
  %v5131 = vld [vmem:[#allocation2 + $0x158] sm:$0xff]
  %v5132 = vld [vmem:[#allocation2 + $0x160] sm:$0xff]
  %v5133 = vld [vmem:[#allocation2 + $0x168] sm:$0xff]
  %v5134 = vld [vmem:[#allocation2 + $0x170] sm:$0xff]
  %v5135 = vld [vmem:[#allocation2 + $0x178] sm:$0xff]
  %v5136 = vld [vmem:[#allocation2 + $0x180] sm:$0xff]
  %v5137 = vld [vmem:[#allocation2 + $0x188] sm:$0xff]
  %v5138 = vld [vmem:[#allocation2 + $0x190] sm:$0xff]
  %v5139 = vld [vmem:[#allocation2 + $0x198] sm:$0xff]
  %v5140 = vld [vmem:[#allocation2 + $0x1a0] sm:$0xff]
  %v5141 = vld [vmem:[#allocation2 + $0x1a8] sm:$0xff]
  %v5142 = vld [vmem:[#allocation2 + $0x1b0] sm:$0xff]
  %v5143 = vld [vmem:[#allocation2 + $0x1b8] sm:$0xff]
  %v5144 = vld [vmem:[#allocation2 + $0x1c0] sm:$0xff]
  %v5145 = vld [vmem:[#allocation2 + $0x1c8] sm:$0xff]
  %v5146 = vld [vmem:[#allocation2 + $0x1d0] sm:$0xff]
  %v5147 = vld [vmem:[#allocation2 + $0x1d8] sm:$0xff]
  %v5148 = vld [vmem:[#allocation2 + $0x1e0] sm:$0xff]
  %v5149 = vld [vmem:[#allocation2 + $0x1e8] sm:$0xff]
  %v5150 = vld [vmem:[#allocation2 + $0x1f0] sm:$0xff]
  %v5151 = vld [vmem:[#allocation2 + $0x1f8] sm:$0xff]
  %v5152 = vld [vmem:[%s4] sm:$0xff]
  %v5153 = vld [vmem:[%s4 + $0x8] sm:$0x3]
  %5155 = vset.pattern.permute.xlu0 0
  %5156 = vperm.xlu0 %5155, %v5152
  %v5157 = vpop.permute.xlu0 %5156
  %5160 = vset.pattern.permute.xlu0 0
  %5161 = vperm.xlu0 %5160, %v5153
  %v5162 = vpop.permute.xlu0 %5161
  %5164 = vmatprep.subr.mxu0 0.0
  %5165 = vmatpush1.msra.mxu0 %v5088
  %5166 = vmatprep.subr.mxu0 0.0
  %5167 = vmatpush1.msra.mxu0 %v5089
  %5168 = vmatprep.subr.mxu0 0.0
  %5169 = vmatpush1.msra.mxu0 %v5090
  %5170 = vmatprep.subr.mxu0 0.0
  %5171 = vmatpush1.msra.mxu0 %v5091
  %5172 = vmatprep.subr.mxu0 0.0
  %5173 = vmatpush1.msra.mxu0 %v5092
  %5174 = vmatprep.subr.mxu0 0.0
  %5175 = vmatpush1.msra.mxu0 %v5093
  %5176 = vmatprep.subr.mxu0 0.0
  %5177 = vmatpush1.msra.mxu0 %v5094
  %5178 = vmatprep.subr.mxu0 0.0
  %5179 = vmatpush1.msra.mxu0 %v5095
  %5180 = vmatprep.subr.mxu0 0.0
  %5181 = vmatpush1.msra.mxu0 %v5096
  %5182 = vmatprep.subr.mxu0 0.0
  %5183 = vmatpush1.msra.mxu0 %v5097
  %5184 = vmatprep.subr.mxu0 0.0
  %5185 = vmatpush1.msra.mxu0 %v5098
  %5186 = vmatprep.subr.mxu0 0.0
  %5187 = vmatpush1.msra.mxu0 %v5099
  %5188 = vmatprep.subr.mxu0 0.0
  %5189 = vmatpush1.msra.mxu0 %v5100
  %5190 = vmatprep.subr.mxu0 0.0
  %5191 = vmatpush1.msra.mxu0 %v5101
  %5192 = vmatprep.subr.mxu0 0.0
  %5193 = vmatpush1.msra.mxu0 %v5102
  %5194 = vmatprep.subr.mxu0 0.0
  %5195 = vmatpush1.msra.mxu0 %v5103
  %5196 = vmatprep.subr.mxu0 0.0
  %5197 = vmatpush1.msra.mxu0 %v5104
  %5198 = vmatprep.subr.mxu0 0.0
  %5199 = vmatpush1.msra.mxu0 %v5105
  %5200 = vmatprep.subr.mxu0 0.0
  %5201 = vmatpush1.msra.mxu0 %v5106
  %5202 = vmatprep.subr.mxu0 0.0
  %5203 = vmatpush1.msra.mxu0 %v5107
  %5204 = vmatprep.subr.mxu0 0.0
  %5205 = vmatpush1.msra.mxu0 %v5108
  %5206 = vmatprep.subr.mxu0 0.0
  %5207 = vmatpush1.msra.mxu0 %v5109
  %5208 = vmatprep.subr.mxu0 0.0
  %5209 = vmatpush1.msra.mxu0 %v5110
  %5210 = vmatprep.subr.mxu0 0.0
  %5211 = vmatpush1.msra.mxu0 %v5111
  %5212 = vmatprep.subr.mxu0 0.0
  %5213 = vmatpush1.msra.mxu0 %v5112
  %5214 = vmatprep.subr.mxu0 0.0
  %5215 = vmatpush1.msra.mxu0 %v5113
  %5216 = vmatprep.subr.mxu0 0.0
  %5217 = vmatpush1.msra.mxu0 %v5114
  %5218 = vmatprep.subr.mxu0 0.0
  %5219 = vmatpush1.msra.mxu0 %v5115
  %5220 = vmatprep.subr.mxu0 0.0
  %5221 = vmatpush1.msra.mxu0 %v5116
  %5222 = vmatprep.subr.mxu0 0.0
  %5223 = vmatpush1.msra.mxu0 %v5117
  %5224 = vmatprep.subr.mxu0 0.0
  %5225 = vmatpush1.msra.mxu0 %v5118
  %5226 = vmatprep.subr.mxu0 0.0
  %5227 = vmatpush1.msra.mxu0 %v5119
  %5228 = vmatprep.mubr.f32.mxu0 %v5081
  %5229 = vmatmul.mubr.f32.gmra.mrb[0].mxu0 %v5080
  %v5230 = vpop.f32.mrb[0].mxu0
  %v5231 = vadd.f32 %v5157, %v5230
  %v5232 = vpop.f32.mrb[0].mxu0
  %5233 = vmatprep.mubr.f32.mxu0 %v5085
  %5234 = vmatmul.mubr.f32.gmra.mrb[0].mxu0 %v5084
  %v5235 = vpop.f32.mrb[0].mxu0
  %v5236 = vadd.f32 %v5162, %v5235
  %v5237 = vpop.f32.mrb[0].mxu0
  %5238 = vdwg.mxu0
  %5239 = vmatprep.subr.mxu0 0.0
  %5240 = vmatpush1.msra.mxu0 %v5120
  %5241 = vmatprep.subr.mxu0 0.0
  %5242 = vmatpush1.msra.mxu0 %v5121
  %5243 = vmatprep.subr.mxu0 0.0
  %5244 = vmatpush1.msra.mxu0 %v5122
  %5245 = vmatprep.subr.mxu0 0.0
  %5246 = vmatpush1.msra.mxu0 %v5123
  %5247 = vmatprep.subr.mxu0 0.0
  %5248 = vmatpush1.msra.mxu0 %v5124
  %5249 = vmatprep.subr.mxu0 0.0
  %5250 = vmatpush1.msra.mxu0 %v5125
  %5251 = vmatprep.subr.mxu0 0.0
  %5252 = vmatpush1.msra.mxu0 %v5126
  %5253 = vmatprep.subr.mxu0 0.0
  %5254 = vmatpush1.msra.mxu0 %v5127
  %5255 = vmatprep.subr.mxu0 0.0
  %5256 = vmatpush1.msra.mxu0 %v5128
  %5257 = vmatprep.subr.mxu0 0.0
  %5258 = vmatpush1.msra.mxu0 %v5129
  %5259 = vmatprep.subr.mxu0 0.0
  %5260 = vmatpush1.msra.mxu0 %v5130
  %5261 = vmatprep.subr.mxu0 0.0
  %5262 = vmatpush1.msra.mxu0 %v5131
  %5263 = vmatprep.subr.mxu0 0.0
  %5264 = vmatpush1.msra.mxu0 %v5132
  %5265 = vmatprep.subr.mxu0 0.0
  %5266 = vmatpush1.msra.mxu0 %v5133
  %5267 = vmatprep.subr.mxu0 0.0
  %5268 = vmatpush1.msra.mxu0 %v5134
  %5269 = vmatprep.subr.mxu0 0.0
  %5270 = vmatpush1.msra.mxu0 %v5135
  %5271 = vmatprep.subr.mxu0 0.0
  %5272 = vmatpush1.msra.mxu0 %v5136
  %5273 = vmatprep.subr.mxu0 0.0
  %5274 = vmatpush1.msra.mxu0 %v5137
  %5275 = vmatprep.subr.mxu0 0.0
  %5276 = vmatpush1.msra.mxu0 %v5138
  %5277 = vmatprep.subr.mxu0 0.0
  %5278 = vmatpush1.msra.mxu0 %v5139
  %5279 = vmatprep.subr.mxu0 0.0
  %5280 = vmatpush1.msra.mxu0 %v5140
  %5281 = vmatprep.subr.mxu0 0.0
  %5282 = vmatpush1.msra.mxu0 %v5141
  %5283 = vmatprep.subr.mxu0 0.0
  %5284 = vmatpush1.msra.mxu0 %v5142
  %5285 = vmatprep.subr.mxu0 0.0
  %5286 = vmatpush1.msra.mxu0 %v5143
  %5287 = vmatprep.subr.mxu0 0.0
  %5288 = vmatpush1.msra.mxu0 %v5144
  %5289 = vmatprep.subr.mxu0 0.0
  %5290 = vmatpush1.msra.mxu0 %v5145
  %5291 = vmatprep.subr.mxu0 0.0
  %5292 = vmatpush1.msra.mxu0 %v5146
  %5293 = vmatprep.subr.mxu0 0.0
  %5294 = vmatpush1.msra.mxu0 %v5147
  %5295 = vmatprep.subr.mxu0 0.0
  %5296 = vmatpush1.msra.mxu0 %v5148
  %5297 = vmatprep.subr.mxu0 0.0
  %5298 = vmatpush1.msra.mxu0 %v5149
  %5299 = vmatprep.subr.mxu0 0.0
  %5300 = vmatpush1.msra.mxu0 %v5150
  %5301 = vmatprep.subr.mxu0 0.0
  %5302 = vmatpush1.msra.mxu0 %v5151
  %5303 = vmatprep.mubr.f32.mxu0 %v5083
  %5304 = vmatmul.mubr.f32.gmra.mrb[0].mxu0 %v5082
  %v5305 = vpop.f32.mrb[0].mxu0
  %v5306 = vadd.f32 %v5231, %v5305
  %v5307 = vpop.f32.mrb[0].mxu0
  %5308 = vmatprep.mubr.f32.mxu0 %v5087
  %5309 = vmatmul.mubr.f32.gmra.mrb[0].mxu0 %v5086
  %v5310 = vpop.f32.mrb[0].mxu0
  %v5311 = vadd.f32 %v5236, %v5310
  %v5312 = vpop.f32.mrb[0].mxu0
  %5313 = vdwg.mxu0
  %v5314 = vsel %vm5015, %v5306, -inf
  %vm5315 = vcmask 9216
  %v5316 = vsel %vm5315, %v5311, -inf
  %v5317 = vmax.f32 %v5314, %v5316
  %v5318 = vrot.slane %v5317, 4
  %v5319 = vmax.f32 %v5317, %v5318
  %v5320 = vrot.slane %v5319, 2
  %v5321 = vmax.f32 %v5319, %v5320
  %v5322 = vrot.slane %v5321, 1
  %v5323 = vmax.f32 %v5321, %v5322
  %v5324 = vsub.f32 %v5306, %v5323
  %v5325 = vsub.f32 %v5311, %v5323
  %v5326 = vmul.f32 %v5324, 1.442695
  %v5327 = vpow.pop %v5326
  %v5328 = vmul.f32 %v5325, 1.442695
  %v5329 = vpow.pop %v5328
  %v5330 = vsel %vm5015, %v5327, 0.0
  %v5331 = vsel %vm5315, %v5329, 0.0
  %v5332 = vadd.f32 %v5330, %v5331
  %v5333 = vrot.slane %v5332, 4
  %v5334 = vadd.f32 %v5332, %v5333
  %v5335 = vrot.slane %v5334, 2
  %v5336 = vadd.f32 %v5334, %v5335
  %v5337 = vrot.slane %v5336, 1
  %v5338 = vadd.f32 %v5336, %v5337
  %v5339 = vlog2.pop %v5338
  %v5340 = vmul.f32 %v5339, 0.6931472
  %v5341 = vsub.f32 %v5324, %v5340
  %v5342 = vsub.f32 %v5325, %v5340
  %5343 = vst.msk [vmem:[%s5] sm:$0xff] %vm5015, %v5341
  %5344 = vst.msk [vmem:[%s5 + $0x8] sm:$0x3] %vm5315, %v5342
  // Predicated region
  $region22: #{digit_forward.5} parent=0 // pred_check
    _
  $region23: #{digit_forward.5} parent=0 // pred_check_branch
    %5346 = sbr.rel (0) target = $region25
  $region24: #{digit_forward.5} parent=0 // pred_region
    _
  $region25: #{digit_forward.5} parent=0 // pred_fallthru
    _
  // Predicated region
  $region26: #{digit_forward.5} parent=0 // pred_check
    _
  $region27: #{digit_forward.5} parent=0 // pred_check_branch
    %5348 = sbr.rel (0) target = $region29
  $region28: #{digit_forward.5} parent=0 // pred_region
    _
  $region29: #{digit_forward.5} parent=0 // pred_fallthru
    _

</llo_original>
